<compile_context>
chip_gen: v5e
topology: v5e:2x2
jax: 0.10.0
libtpu: 0.0.40
codegen_flags: <defaults>
</compile_context>

<pallas_src>
import numpy as np
import jax
import jax.numpy as jnp
from jax.experimental import pallas as pl
from jax.experimental.pallas import tpu as pltpu

F32 = jnp.float32
BF16 = jnp.bfloat16


# ----------------------------- Pallas kernels -------------------------------

def _conv_stage_kernel(x_ref, w1_ref, b1_ref, w2_ref, b2_ref, o_ref):
    # x_ref : (4, 6*IMG, 256) bf16  dim0 = conv1 output-row residue m (oh = 4*r1 + m),
    #         rows = r1*IMG + img, lanes = 5 shifted input-row slabs (i*28 + j), zero-padded.
    # w1_ref: (256, 512) bf16  merged block-Toeplitz conv1 (cols = width-parity x 12 x 20, padded)
    # b1_ref: (1, 256) f32
    # w2_ref: (5, 256, 512) bf16 block-Toeplitz conv2 (rows = 12x20 padded, cols = parity x 4 x 50)
    # b2_ref: (1, 256) f32
    # o_ref : (IMG, 1024) bf16  lanes = pooled-h h*256 + (pooled-w c2)*50 + channel
    img = o_ref.shape[0]
    w1 = w1_ref[...]
    b1 = b1_ref[...]

    # ---- conv1 (one deep matmul per residue) + 2x2 maxpool + bias + relu ----
    # Residues are consumed pairwise so only two (6*IMG, 512) f32 results are live.
    h1 = []                                             # h1[p] rows = r1*IMG + img (pooled row 2*r1+p)
    for p in range(2):
        a = jnp.dot(x_ref[2 * p], w1, preferred_element_type=F32)
        b = jnp.dot(x_ref[2 * p + 1], w1, preferred_element_type=F32)
        m4 = jnp.maximum(jnp.maximum(a[:, :256], a[:, 256:]),
                         jnp.maximum(b[:, :256], b[:, 256:]))
        h1.append(jnp.maximum(m4 + b1, 0.0).astype(BF16))   # (6*IMG, 256) bf16

    # ---- conv2: output rows oh2 = 2*r2 + q, grouped by parity q (r2 in 0..3) ----
    b2 = b2_ref[...]
    conv2 = []
    for q in range(2):
        acc = None
        for i in range(5):                              # chained single accumulator (MRB-friendly)
            s = q + i
            lhs = h1[s % 2][(s // 2) * img:(s // 2 + 4) * img, :]
            d = jnp.dot(lhs, w2_ref[i], preferred_element_type=F32)
            acc = d if acc is None else acc + d
        conv2.append(acc)                               # (4*IMG, 512) f32

    # ---- 2x2 maxpool + bias + relu ----
    a, b = conv2
    m4 = jnp.maximum(jnp.maximum(a[:, :256], a[:, 256:]),
                     jnp.maximum(b[:, :256], b[:, 256:]))
    h2 = jnp.maximum(m4 + b2, 0.0).astype(BF16)         # (4*IMG, 256), rows = (h, img)

    # lane-dense (IMG, 1024) output: pooled-h group h at lane offset h*256
    for h in range(4):
        o_ref[:, h * 256:(h + 1) * 256] = h2[h * img:(h + 1) * img, :]


def _fc_stage_kernel(h2_ref, wf1_ref, bf1_ref, wf2_ref, bf2_ref, o_ref):
    # h2_ref : (TM, 1024) bf16 ; wf1_ref: (1024, 512) bf16 ; bf1_ref: (1, 512) f32
    # wf2_ref: (512, 128) bf16 ; bf2_ref: (1, 128) f32 (-1e30 on padded logit lanes)
    # o_ref  : (TM, 128) f32
    a1 = jnp.dot(h2_ref[...], wf1_ref[...], preferred_element_type=F32)
    a1 = jnp.maximum(a1 + bf1_ref[...], 0.0)             # fc1 + relu (f32)
    logits = jnp.dot(a1.astype(BF16), wf2_ref[...],
                     preferred_element_type=F32) + bf2_ref[...]
    m = jnp.max(logits, axis=-1, keepdims=True)           # padded lanes hold -1e30
    z = logits - m
    lse = jnp.log(jnp.sum(jnp.exp(z), axis=-1, keepdims=True))
    o_ref[...] = z - lse


# ------------------------- host-side weight packing -------------------------

def init_params(key):
    ks = jax.random.split(key, 8)

    def rnd(k, shape, scale):
        return np.asarray(scale * jax.random.normal(k, shape, F32))

    return {
        "conv1_w": rnd(ks[0], (20, 1, 5, 5), 0.2),   # torch OIHW
        "conv1_b": rnd(ks[1], (20,), 0.01),
        "conv2_w": rnd(ks[2], (50, 20, 5, 5), 0.05),
        "conv2_b": rnd(ks[3], (50,), 0.01),
        "fc1_w":  rnd(ks[4], (500, 800), 0.03),      # torch (out, in)
        "fc1_b":  rnd(ks[5], (500,), 0.01),
        "fc2_w":  rnd(ks[6], (10, 500), 0.05),
        "fc2_b":  rnd(ks[7], (10,), 0.01),
    }


def prepare_params(p):
    """Build block-Toeplitz / lane-padded kernel weights (host-side, once)."""
    w1, b1 = p["conv1_w"], p["conv1_b"]
    w2, b2 = p["conv2_w"], p["conv2_b"]

    # Merged conv1: rows = (tap i)*28 + input column jj, cols = (pw, 12 out-cols, 20 ch) x2
    W1 = np.zeros((256, 512), np.float32)
    for i in range(5):
        for pw in range(2):
            for c in range(12):
                ow, col = 2 * c + pw, pw * 256 + c * 20
                for j in range(5):
                    W1[i * 28 + ow + j, col:col + 20] = w1[:, 0, i, j]
    B1 = np.zeros((1, 256), np.float32)
    for c in range(12):
        B1[0, c * 20:(c + 1) * 20] = b1

    W2 = np.zeros((5, 256, 512), np.float32)         # [tap_i, (12,20)pad256, (pw,4,50)pad256 x2]
    for i in range(5):
        for pw in range(2):
            for c2 in range(4):
                ow, col = 2 * c2 + pw, pw * 256 + c2 * 50
                for j in range(5):
                    wj = ow + j
                    W2[i, wj * 20:(wj + 1) * 20, col:col + 50] = w2[:, :, i, j].T
    B2 = np.zeros((1, 256), np.float32)
    for c2 in range(4):
        B2[0, c2 * 50:(c2 + 1) * 50] = b2

    # fc1 weight permuted to the kernel's h2 lane layout h*256 + c2*50 + ch;
    # torch flat index = ch*16 + h*4 + c2
    WF1 = np.zeros((1024, 512), np.float32)
    for h in range(4):
        for c2 in range(4):
            k_torch = np.arange(50) * 16 + h * 4 + c2
            WF1[h * 256 + c2 * 50:h * 256 + (c2 + 1) * 50, :500] = p["fc1_w"][:, k_torch].T
    BF1 = np.zeros((1, 512), np.float32)
    BF1[0, :500] = p["fc1_b"]

    WF2 = np.zeros((512, 128), np.float32)
    WF2[:500, :10] = p["fc2_w"].T
    BF2 = np.full((1, 128), -1e30, np.float32)       # padded logit lanes -> exp() == 0
    BF2[0, :10] = p["fc2_b"]

    return {
        "W1": jnp.asarray(W1, BF16), "B1": jnp.asarray(B1),
        "W2": jnp.asarray(W2, BF16), "B2": jnp.asarray(B2),
        "WF1": jnp.asarray(WF1, BF16), "BF1": jnp.asarray(BF1),
        "WF2": jnp.asarray(WF2, BF16), "BF2": jnp.asarray(BF2),
    }


# ------------------------------ forward pass --------------------------------

def net_forward(x_nchw, prepped):
    N = x_nchw.shape[0]
    n_pad = ((N + 7) // 8) * 8

    # Conv-stage images/step: prefer 32, but keep >=2 grid steps when the batch allows
    # (so both v7x TensorCores get work); tile must divide the padded batch.
    img_tile = None
    for cand in (32, 24, 16, 8):
        if n_pad % cand == 0 and n_pad // cand >= 2:
            img_tile = cand
            break
    if img_tile is None:
        img_tile = min(n_pad, 32)

    x = x_nchw.astype(F32).reshape(N, 28, 28)
    if n_pad != N:
        x = jnp.pad(x, ((0, n_pad - N), (0, 0), (0, 0)))

    # Conv1 tap-merge layout: for each conv1 output row oh (= 4*r1 + m), place the 5
    # shifted input rows side by side in the lane dim (K = 5*28 = 140, padded to 256).
    rows = np.arange(24)[:, None] + np.arange(5)[None, :]            # (24, 5)
    xg = x[:, rows, :].reshape(n_pad, 24, 140)                       # (img, oh, i*28+j)
    xg = jnp.pad(xg, ((0, 0), (0, 0), (0, 116)))                     # lane-pad to 256
    # (b, img, r1, m, lane) -> (m, b, r1, img, lane); rows per step: r1*IMG + img
    xg = xg.reshape(n_pad // img_tile, img_tile, 6, 4, 256).transpose(3, 0, 2, 1, 4)
    x_prep = xg.reshape(4, n_pad * 6, 256).astype(BF16)

    cparams = pltpu.CompilerParams(dimension_semantics=("parallel",),
                                   vmem_limit_bytes=32 * 1024 * 1024)

    h2 = pl.pallas_call(
        _conv_stage_kernel,
        out_shape=jax.ShapeDtypeStruct((n_pad, 1024), BF16),
        grid=(n_pad // img_tile,),
        in_specs=[
            pl.BlockSpec((4, 6 * img_tile, 256), lambda b: (0, b, 0)),
            pl.BlockSpec((256, 512), lambda b: (0, 0)),
            pl.BlockSpec((1, 256), lambda b: (0, 0)),
            pl.BlockSpec((5, 256, 512), lambda b: (0, 0, 0)),
            pl.BlockSpec((1, 256), lambda b: (0, 0)),
        ],
        out_specs=pl.BlockSpec((img_tile, 1024), lambda b: (b, 0)),
        compiler_params=cparams,
    )(x_prep, prepped["W1"], prepped["B1"], prepped["W2"], prepped["B2"])

    # FC-stage row tile: up to 512 rows/step.
    tm = 8
    for cand in (512, 256, 128, 64, 32, 16, 8):
        if n_pad % cand == 0:
            tm = cand
            break

    out = pl.pallas_call(
        _fc_stage_kernel,
        out_shape=jax.ShapeDtypeStruct((n_pad, 128), F32),
        grid=(n_pad // tm,),
        in_specs=[
            pl.BlockSpec((tm, 1024), lambda b: (b, 0)),
            pl.BlockSpec((1024, 512), lambda b: (0, 0)),
            pl.BlockSpec((1, 512), lambda b: (0, 0)),
            pl.BlockSpec((512, 128), lambda b: (0, 0)),
            pl.BlockSpec((1, 128), lambda b: (0, 0)),
        ],
        out_specs=pl.BlockSpec((tm, 128), lambda b: (b, 0)),
        compiler_params=cparams,
    )(h2, prepped["WF1"], prepped["BF1"], prepped["WF2"], prepped["BF2"])

    return out[:N, :10]


# ----------------------------- pure-JAX reference ----------------------------

def net_reference(x_nchw, p):
    x = x_nchw.astype(F32)
    y = jax.lax.conv_general_dilated(x, p["conv1_w"], (1, 1), "VALID",
                                     dimension_numbers=("NCHW", "OIHW", "NCHW"))
    y = jnp.maximum(y + p["conv1_b"][None, :, None, None], 0.0)
    y = jax.lax.reduce_window(y, -jnp.inf, jax.lax.max, (1, 1, 2, 2), (1, 1, 2, 2), "VALID")
    y = jax.lax.conv_general_dilated(y, p["conv2_w"], (1, 1), "VALID",
                                     dimension_numbers=("NCHW", "OIHW", "NCHW"))
    y = jnp.maximum(y + p["conv2_b"][None, :, None, None], 0.0)
    y = jax.lax.reduce_window(y, -jnp.inf, jax.lax.max, (1, 1, 2, 2), (1, 1, 2, 2), "VALID")
    y = y.reshape(x.shape[0], 800)                               # torch CHW flatten
    y = jnp.maximum(y @ p["fc1_w"].T + p["fc1_b"], 0.0)
    y = y @ p["fc2_w"].T + p["fc2_b"]
    return jax.nn.log_softmax(y, axis=-1)


if __name__ == "__main__":
    key = jax.random.PRNGKey(0)
    k_x, k_p = jax.random.split(key)
    x = jax.random.normal(k_x, (2, 1, 28, 28), jnp.float32)
    params = init_params(k_p)
    prepped = prepare_params(params)

    fwd = jax.jit(net_forward)
    out = jax.block_until_ready(fwd(x, prepped))

    assert out.shape == (2, 10), out.shape
    assert bool(jnp.all(jnp.isfinite(out)))
    row_sums = jnp.sum(jnp.exp(out), axis=1)
    assert bool(jnp.all(jnp.abs(row_sums - 1.0) < 1e-3)), row_sums

    ref = net_reference(x, params)
    err = float(jnp.max(jnp.abs(out - ref)))
    assert err < 0.2, f"mismatch vs reference: {err}"   # bf16 matmuls vs f32 reference

    print("KERNEL_OK")
</pallas_src>

<mosaic_0001>
module attributes {stable_mosaic.version = 11 : i64} {
  func.func @_conv_stage_kernel(%arg0: i32, %arg1: memref<4x48x256xbf16, #tpu.memory_space<vmem>>, %arg2: memref<256x512xbf16, #tpu.memory_space<vmem>>, %arg3: memref<1x256xf32, #tpu.memory_space<vmem>>, %arg4: memref<5x256x512xbf16, #tpu.memory_space<vmem>>, %arg5: memref<1x256xf32, #tpu.memory_space<vmem>>, %arg6: memref<8x1024xbf16, #tpu.memory_space<vmem>>) attributes {dimension_semantics = [#tpu.dimension_semantics<parallel>], iteration_bounds = array<i64: 1>, scalar_prefetch = 0 : i64, scratch_operands = 0 : i64, tpu.core_type = #tpu.core_type<tc>, window_params = [{transform_indices = @transform_0, window_bounds = array<i64: 4, 48, 256>}, {pipeline_mode = #tpu.pipeline_mode<synchronous>, transform_indices = @transform_1, window_bounds = array<i64: 256, 512>}, {pipeline_mode = #tpu.pipeline_mode<synchronous>, transform_indices = @transform_2, window_bounds = array<i64: 1, 256>}, {pipeline_mode = #tpu.pipeline_mode<synchronous>, transform_indices = @transform_3, window_bounds = array<i64: 5, 256, 512>}, {pipeline_mode = #tpu.pipeline_mode<synchronous>, transform_indices = @transform_4, window_bounds = array<i64: 1, 256>}, {transform_indices = @transform_5, window_bounds = array<i64: 8, 1024>}]} {
    %c0 = arith.constant 0 : index
    %c0_0 = arith.constant 0 : index
    %0 = vector.load %arg2[%c0, %c0_0] : memref<256x512xbf16, #tpu.memory_space<vmem>>, vector<256x512xbf16>
    %c0_1 = arith.constant 0 : index
    %c0_2 = arith.constant 0 : index
    %1 = vector.load %arg3[%c0_1, %c0_2] : memref<1x256xf32, #tpu.memory_space<vmem>>, vector<1x256xf32>
    %c0_3 = arith.constant 0 : index
    %c0_4 = arith.constant 0 : index
    %c0_5 = arith.constant 0 : index
    %2 = vector.load %arg1[%c0_3, %c0_4, %c0_5] : memref<4x48x256xbf16, #tpu.memory_space<vmem>>, vector<1x48x256xbf16>
    %3 = vector.shape_cast %2 : vector<1x48x256xbf16> to vector<48x256xbf16>
    %cst = arith.constant dense<0.000000e+00> : vector<48x512xf32>
    %4 = tpu.matmul %3, %0, %cst {dimension_numbers = #tpu.dot_dimension_numbers<[1], [0], [0], [1], [0, 0, 1, 1], [], []>} : vector<48x256xbf16>, vector<256x512xbf16>, vector<48x512xf32> -> vector<48x512xf32>
    %c1 = arith.constant 1 : index
    %c0_6 = arith.constant 0 : index
    %c0_7 = arith.constant 0 : index
    %5 = vector.load %arg1[%c1, %c0_6, %c0_7] : memref<4x48x256xbf16, #tpu.memory_space<vmem>>, vector<1x48x256xbf16>
    %6 = vector.shape_cast %5 : vector<1x48x256xbf16> to vector<48x256xbf16>
    %cst_8 = arith.constant dense<0.000000e+00> : vector<48x512xf32>
    %7 = tpu.matmul %6, %0, %cst_8 {dimension_numbers = #tpu.dot_dimension_numbers<[1], [0], [0], [1], [0, 0, 1, 1], [], []>} : vector<48x256xbf16>, vector<256x512xbf16>, vector<48x512xf32> -> vector<48x512xf32>
    %8 = vector.extract_strided_slice %4 {offsets = [0, 0], sizes = [48, 256], strides = [1, 1]} : vector<48x512xf32> to vector<48x256xf32>
    %9 = vector.extract_strided_slice %4 {offsets = [0, 256], sizes = [48, 256], strides = [1, 1]} : vector<48x512xf32> to vector<48x256xf32>
    %10 = arith.maximumf %8, %9 : vector<48x256xf32>
    %11 = vector.extract_strided_slice %7 {offsets = [0, 0], sizes = [48, 256], strides = [1, 1]} : vector<48x512xf32> to vector<48x256xf32>
    %12 = vector.extract_strided_slice %7 {offsets = [0, 256], sizes = [48, 256], strides = [1, 1]} : vector<48x512xf32> to vector<48x256xf32>
    %13 = arith.maximumf %11, %12 : vector<48x256xf32>
    %14 = arith.maximumf %10, %13 : vector<48x256xf32>
    %15 = vector.broadcast %1 : vector<1x256xf32> to vector<48x256xf32>
    %16 = arith.addf %14, %15 : vector<48x256xf32>
    %cst_9 = arith.constant 0.000000e+00 : f32
    %17 = vector.broadcast %cst_9 : f32 to vector<48x256xf32>
    %18 = arith.maximumf %16, %17 : vector<48x256xf32>
    %19 = arith.truncf %18 : vector<48x256xf32> to vector<48x256xbf16>
    %c2 = arith.constant 2 : index
    %c0_10 = arith.constant 0 : index
    %c0_11 = arith.constant 0 : index
    %20 = vector.load %arg1[%c2, %c0_10, %c0_11] : memref<4x48x256xbf16, #tpu.memory_space<vmem>>, vector<1x48x256xbf16>
    %21 = vector.shape_cast %20 : vector<1x48x256xbf16> to vector<48x256xbf16>
    %cst_12 = arith.constant dense<0.000000e+00> : vector<48x512xf32>
    %22 = tpu.matmul %21, %0, %cst_12 {dimension_numbers = #tpu.dot_dimension_numbers<[1], [0], [0], [1], [0, 0, 1, 1], [], []>} : vector<48x256xbf16>, vector<256x512xbf16>, vector<48x512xf32> -> vector<48x512xf32>
    %c3 = arith.constant 3 : index
    %c0_13 = arith.constant 0 : index
    %c0_14 = arith.constant 0 : index
    %23 = vector.load %arg1[%c3, %c0_13, %c0_14] : memref<4x48x256xbf16, #tpu.memory_space<vmem>>, vector<1x48x256xbf16>
    %24 = vector.shape_cast %23 : vector<1x48x256xbf16> to vector<48x256xbf16>
    %cst_15 = arith.constant dense<0.000000e+00> : vector<48x512xf32>
    %25 = tpu.matmul %24, %0, %cst_15 {dimension_numbers = #tpu.dot_dimension_numbers<[1], [0], [0], [1], [0, 0, 1, 1], [], []>} : vector<48x256xbf16>, vector<256x512xbf16>, vector<48x512xf32> -> vector<48x512xf32>
    %26 = vector.extract_strided_slice %22 {offsets = [0, 0], sizes = [48, 256], strides = [1, 1]} : vector<48x512xf32> to vector<48x256xf32>
    %27 = vector.extract_strided_slice %22 {offsets = [0, 256], sizes = [48, 256], strides = [1, 1]} : vector<48x512xf32> to vector<48x256xf32>
    %28 = arith.maximumf %26, %27 : vector<48x256xf32>
    %29 = vector.extract_strided_slice %25 {offsets = [0, 0], sizes = [48, 256], strides = [1, 1]} : vector<48x512xf32> to vector<48x256xf32>
    %30 = vector.extract_strided_slice %25 {offsets = [0, 256], sizes = [48, 256], strides = [1, 1]} : vector<48x512xf32> to vector<48x256xf32>
    %31 = arith.maximumf %29, %30 : vector<48x256xf32>
    %32 = arith.maximumf %28, %31 : vector<48x256xf32>
    %33 = vector.broadcast %1 : vector<1x256xf32> to vector<48x256xf32>
    %34 = arith.addf %32, %33 : vector<48x256xf32>
    %cst_16 = arith.constant 0.000000e+00 : f32
    %35 = vector.broadcast %cst_16 : f32 to vector<48x256xf32>
    %36 = arith.maximumf %34, %35 : vector<48x256xf32>
    %37 = arith.truncf %36 : vector<48x256xf32> to vector<48x256xbf16>
    %c0_17 = arith.constant 0 : index
    %c0_18 = arith.constant 0 : index
    %38 = vector.load %arg5[%c0_17, %c0_18] : memref<1x256xf32, #tpu.memory_space<vmem>>, vector<1x256xf32>
    %39 = vector.extract_strided_slice %19 {offsets = [0, 0], sizes = [32, 256], strides = [1, 1]} : vector<48x256xbf16> to vector<32x256xbf16>
    %c0_19 = arith.constant 0 : index
    %c0_20 = arith.constant 0 : index
    %c0_21 = arith.constant 0 : index
    %40 = vector.load %arg4[%c0_19, %c0_20, %c0_21] : memref<5x256x512xbf16, #tpu.memory_space<vmem>>, vector<1x256x512xbf16>
    %41 = vector.shape_cast %40 : vector<1x256x512xbf16> to vector<256x512xbf16>
    %cst_22 = arith.constant dense<0.000000e+00> : vector<32x512xf32>
    %42 = tpu.matmul %39, %41, %cst_22 {dimension_numbers = #tpu.dot_dimension_numbers<[1], [0], [0], [1], [0, 0, 1, 1], [], []>} : vector<32x256xbf16>, vector<256x512xbf16>, vector<32x512xf32> -> vector<32x512xf32>
    %43 = vector.extract_strided_slice %37 {offsets = [0, 0], sizes = [32, 256], strides = [1, 1]} : vector<48x256xbf16> to vector<32x256xbf16>
    %c1_23 = arith.constant 1 : index
    %c0_24 = arith.constant 0 : index
    %c0_25 = arith.constant 0 : index
    %44 = vector.load %arg4[%c1_23, %c0_24, %c0_25] : memref<5x256x512xbf16, #tpu.memory_space<vmem>>, vector<1x256x512xbf16>
    %45 = vector.shape_cast %44 : vector<1x256x512xbf16> to vector<256x512xbf16>
    %cst_26 = arith.constant dense<0.000000e+00> : vector<32x512xf32>
    %46 = tpu.matmul %43, %45, %cst_26 {dimension_numbers = #tpu.dot_dimension_numbers<[1], [0], [0], [1], [0, 0, 1, 1], [], []>} : vector<32x256xbf16>, vector<256x512xbf16>, vector<32x512xf32> -> vector<32x512xf32>
    %47 = arith.addf %42, %46 : vector<32x512xf32>
    %48 = vector.extract_strided_slice %19 {offsets = [8, 0], sizes = [32, 256], strides = [1, 1]} : vector<48x256xbf16> to vector<32x256xbf16>
    %c2_27 = arith.constant 2 : index
    %c0_28 = arith.constant 0 : index
    %c0_29 = arith.constant 0 : index
    %49 = vector.load %arg4[%c2_27, %c0_28, %c0_29] : memref<5x256x512xbf16, #tpu.memory_space<vmem>>, vector<1x256x512xbf16>
    %50 = vector.shape_cast %49 : vector<1x256x512xbf16> to vector<256x512xbf16>
    %cst_30 = arith.constant dense<0.000000e+00> : vector<32x512xf32>
    %51 = tpu.matmul %48, %50, %cst_30 {dimension_numbers = #tpu.dot_dimension_numbers<[1], [0], [0], [1], [0, 0, 1, 1], [], []>} : vector<32x256xbf16>, vector<256x512xbf16>, vector<32x512xf32> -> vector<32x512xf32>
    %52 = arith.addf %47, %51 : vector<32x512xf32>
    %53 = vector.extract_strided_slice %37 {offsets = [8, 0], sizes = [32, 256], strides = [1, 1]} : vector<48x256xbf16> to vector<32x256xbf16>
    %c3_31 = arith.constant 3 : index
    %c0_32 = arith.constant 0 : index
    %c0_33 = arith.constant 0 : index
    %54 = vector.load %arg4[%c3_31, %c0_32, %c0_33] : memref<5x256x512xbf16, #tpu.memory_space<vmem>>, vector<1x256x512xbf16>
    %55 = vector.shape_cast %54 : vector<1x256x512xbf16> to vector<256x512xbf16>
    %cst_34 = arith.constant dense<0.000000e+00> : vector<32x512xf32>
    %56 = tpu.matmul %53, %55, %cst_34 {dimension_numbers = #tpu.dot_dimension_numbers<[1], [0], [0], [1], [0, 0, 1, 1], [], []>} : vector<32x256xbf16>, vector<256x512xbf16>, vector<32x512xf32> -> vector<32x512xf32>
    %57 = arith.addf %52, %56 : vector<32x512xf32>
    %58 = vector.extract_strided_slice %19 {offsets = [16, 0], sizes = [32, 256], strides = [1, 1]} : vector<48x256xbf16> to vector<32x256xbf16>
    %c4 = arith.constant 4 : index
    %c0_35 = arith.constant 0 : index
    %c0_36 = arith.constant 0 : index
    %59 = vector.load %arg4[%c4, %c0_35, %c0_36] : memref<5x256x512xbf16, #tpu.memory_space<vmem>>, vector<1x256x512xbf16>
    %60 = vector.shape_cast %59 : vector<1x256x512xbf16> to vector<256x512xbf16>
    %cst_37 = arith.constant dense<0.000000e+00> : vector<32x512xf32>
    %61 = tpu.matmul %58, %60, %cst_37 {dimension_numbers = #tpu.dot_dimension_numbers<[1], [0], [0], [1], [0, 0, 1, 1], [], []>} : vector<32x256xbf16>, vector<256x512xbf16>, vector<32x512xf32> -> vector<32x512xf32>
    %62 = arith.addf %57, %61 : vector<32x512xf32>
    %63 = vector.extract_strided_slice %37 {offsets = [0, 0], sizes = [32, 256], strides = [1, 1]} : vector<48x256xbf16> to vector<32x256xbf16>
    %c0_38 = arith.constant 0 : index
    %c0_39 = arith.constant 0 : index
    %c0_40 = arith.constant 0 : index
    %64 = vector.load %arg4[%c0_38, %c0_39, %c0_40] : memref<5x256x512xbf16, #tpu.memory_space<vmem>>, vector<1x256x512xbf16>
    %65 = vector.shape_cast %64 : vector<1x256x512xbf16> to vector<256x512xbf16>
    %cst_41 = arith.constant dense<0.000000e+00> : vector<32x512xf32>
    %66 = tpu.matmul %63, %65, %cst_41 {dimension_numbers = #tpu.dot_dimension_numbers<[1], [0], [0], [1], [0, 0, 1, 1], [], []>} : vector<32x256xbf16>, vector<256x512xbf16>, vector<32x512xf32> -> vector<32x512xf32>
    %67 = vector.extract_strided_slice %19 {offsets = [8, 0], sizes = [32, 256], strides = [1, 1]} : vector<48x256xbf16> to vector<32x256xbf16>
    %c1_42 = arith.constant 1 : index
    %c0_43 = arith.constant 0 : index
    %c0_44 = arith.constant 0 : index
    %68 = vector.load %arg4[%c1_42, %c0_43, %c0_44] : memref<5x256x512xbf16, #tpu.memory_space<vmem>>, vector<1x256x512xbf16>
    %69 = vector.shape_cast %68 : vector<1x256x512xbf16> to vector<256x512xbf16>
    %cst_45 = arith.constant dense<0.000000e+00> : vector<32x512xf32>
    %70 = tpu.matmul %67, %69, %cst_45 {dimension_numbers = #tpu.dot_dimension_numbers<[1], [0], [0], [1], [0, 0, 1, 1], [], []>} : vector<32x256xbf16>, vector<256x512xbf16>, vector<32x512xf32> -> vector<32x512xf32>
    %71 = arith.addf %66, %70 : vector<32x512xf32>
    %72 = vector.extract_strided_slice %37 {offsets = [8, 0], sizes = [32, 256], strides = [1, 1]} : vector<48x256xbf16> to vector<32x256xbf16>
    %c2_46 = arith.constant 2 : index
    %c0_47 = arith.constant 0 : index
    %c0_48 = arith.constant 0 : index
    %73 = vector.load %arg4[%c2_46, %c0_47, %c0_48] : memref<5x256x512xbf16, #tpu.memory_space<vmem>>, vector<1x256x512xbf16>
    %74 = vector.shape_cast %73 : vector<1x256x512xbf16> to vector<256x512xbf16>
    %cst_49 = arith.constant dense<0.000000e+00> : vector<32x512xf32>
    %75 = tpu.matmul %72, %74, %cst_49 {dimension_numbers = #tpu.dot_dimension_numbers<[1], [0], [0], [1], [0, 0, 1, 1], [], []>} : vector<32x256xbf16>, vector<256x512xbf16>, vector<32x512xf32> -> vector<32x512xf32>
    %76 = arith.addf %71, %75 : vector<32x512xf32>
    %77 = vector.extract_strided_slice %19 {offsets = [16, 0], sizes = [32, 256], strides = [1, 1]} : vector<48x256xbf16> to vector<32x256xbf16>
    %c3_50 = arith.constant 3 : index
    %c0_51 = arith.constant 0 : index
    %c0_52 = arith.constant 0 : index
    %78 = vector.load %arg4[%c3_50, %c0_51, %c0_52] : memref<5x256x512xbf16, #tpu.memory_space<vmem>>, vector<1x256x512xbf16>
    %79 = vector.shape_cast %78 : vector<1x256x512xbf16> to vector<256x512xbf16>
    %cst_53 = arith.constant dense<0.000000e+00> : vector<32x512xf32>
    %80 = tpu.matmul %77, %79, %cst_53 {dimension_numbers = #tpu.dot_dimension_numbers<[1], [0], [0], [1], [0, 0, 1, 1], [], []>} : vector<32x256xbf16>, vector<256x512xbf16>, vector<32x512xf32> -> vector<32x512xf32>
    %81 = arith.addf %76, %80 : vector<32x512xf32>
    %82 = vector.extract_strided_slice %37 {offsets = [16, 0], sizes = [32, 256], strides = [1, 1]} : vector<48x256xbf16> to vector<32x256xbf16>
    %c4_54 = arith.constant 4 : index
    %c0_55 = arith.constant 0 : index
    %c0_56 = arith.constant 0 : index
    %83 = vector.load %arg4[%c4_54, %c0_55, %c0_56] : memref<5x256x512xbf16, #tpu.memory_space<vmem>>, vector<1x256x512xbf16>
    %84 = vector.shape_cast %83 : vector<1x256x512xbf16> to vector<256x512xbf16>
    %cst_57 = arith.constant dense<0.000000e+00> : vector<32x512xf32>
    %85 = tpu.matmul %82, %84, %cst_57 {dimension_numbers = #tpu.dot_dimension_numbers<[1], [0], [0], [1], [0, 0, 1, 1], [], []>} : vector<32x256xbf16>, vector<256x512xbf16>, vector<32x512xf32> -> vector<32x512xf32>
    %86 = arith.addf %81, %85 : vector<32x512xf32>
    %87 = vector.extract_strided_slice %62 {offsets = [0, 0], sizes = [32, 256], strides = [1, 1]} : vector<32x512xf32> to vector<32x256xf32>
    %88 = vector.extract_strided_slice %62 {offsets = [0, 256], sizes = [32, 256], strides = [1, 1]} : vector<32x512xf32> to vector<32x256xf32>
    %89 = arith.maximumf %87, %88 : vector<32x256xf32>
    %90 = vector.extract_strided_slice %86 {offsets = [0, 0], sizes = [32, 256], strides = [1, 1]} : vector<32x512xf32> to vector<32x256xf32>
    %91 = vector.extract_strided_slice %86 {offsets = [0, 256], sizes = [32, 256], strides = [1, 1]} : vector<32x512xf32> to vector<32x256xf32>
    %92 = arith.maximumf %90, %91 : vector<32x256xf32>
    %93 = arith.maximumf %89, %92 : vector<32x256xf32>
    %94 = vector.broadcast %38 : vector<1x256xf32> to vector<32x256xf32>
    %95 = arith.addf %93, %94 : vector<32x256xf32>
    %cst_58 = arith.constant 0.000000e+00 : f32
    %96 = vector.broadcast %cst_58 : f32 to vector<32x256xf32>
    %97 = arith.maximumf %95, %96 : vector<32x256xf32>
    %98 = arith.truncf %97 : vector<32x256xf32> to vector<32x256xbf16>
    %99 = vector.extract_strided_slice %98 {offsets = [0, 0], sizes = [8, 256], strides = [1, 1]} : vector<32x256xbf16> to vector<8x256xbf16>
    %c0_59 = arith.constant 0 : index
    %c0_60 = arith.constant 0 : index
    %100 = vector.load %arg6[%c0_59, %c0_60] : memref<8x1024xbf16, #tpu.memory_space<vmem>>, vector<8x256xbf16>
    tpu.vector_store %arg6[%c0_59, %c0_60], %99 {strides = array<i32>} : memref<8x1024xbf16, #tpu.memory_space<vmem>>, vector<8x256xbf16>,
    %101 = vector.extract_strided_slice %98 {offsets = [8, 0], sizes = [8, 256], strides = [1, 1]} : vector<32x256xbf16> to vector<8x256xbf16>
    %c0_61 = arith.constant 0 : index
    %c256 = arith.constant 256 : index
    %102 = vector.load %arg6[%c0_61, %c256] : memref<8x1024xbf16, #tpu.memory_space<vmem>>, vector<8x256xbf16>
    tpu.vector_store %arg6[%c0_61, %c256], %101 {strides = array<i32>} : memref<8x1024xbf16, #tpu.memory_space<vmem>>, vector<8x256xbf16>,
    %103 = vector.extract_strided_slice %98 {offsets = [16, 0], sizes = [8, 256], strides = [1, 1]} : vector<32x256xbf16> to vector<8x256xbf16>
    %c0_62 = arith.constant 0 : index
    %c512 = arith.constant 512 : index
    %104 = vector.load %arg6[%c0_62, %c512] : memref<8x1024xbf16, #tpu.memory_space<vmem>>, vector<8x256xbf16>
    tpu.vector_store %arg6[%c0_62, %c512], %103 {strides = array<i32>} : memref<8x1024xbf16, #tpu.memory_space<vmem>>, vector<8x256xbf16>,
    %105 = vector.extract_strided_slice %98 {offsets = [24, 0], sizes = [8, 256], strides = [1, 1]} : vector<32x256xbf16> to vector<8x256xbf16>
    %c0_63 = arith.constant 0 : index
    %c768 = arith.constant 768 : index
    %106 = vector.load %arg6[%c0_63, %c768] : memref<8x1024xbf16, #tpu.memory_space<vmem>>, vector<8x256xbf16>
    tpu.vector_store %arg6[%c0_63, %c768], %105 {strides = array<i32>} : memref<8x1024xbf16, #tpu.memory_space<vmem>>, vector<8x256xbf16>,
    return
  }
  func.func @transform_0(%arg0: i32) -> (i32, i32, i32) {
    %c0_i32 = arith.constant 0 : i32
    %c0_i32_0 = arith.constant 0 : i32
    %c0_i32_1 = arith.constant 0 : i32
    return %c0_i32, %arg0, %c0_i32_0 : i32, i32, i32
  }
  func.func @transform_1(%arg0: i32) -> (i32, i32) {
    %c0_i32 = arith.constant 0 : i32
    %c0_i32_0 = arith.constant 0 : i32
    %c0_i32_1 = arith.constant 0 : i32
    return %c0_i32, %c0_i32_0 : i32, i32
  }
  func.func @transform_2(%arg0: i32) -> (i32, i32) {
    %c0_i32 = arith.constant 0 : i32
    %c0_i32_0 = arith.constant 0 : i32
    %c0_i32_1 = arith.constant 0 : i32
    return %c0_i32, %c0_i32_0 : i32, i32
  }
  func.func @transform_3(%arg0: i32) -> (i32, i32, i32) {
    %c0_i32 = arith.constant 0 : i32
    %c0_i32_0 = arith.constant 0 : i32
    %c0_i32_1 = arith.constant 0 : i32
    %c0_i32_2 = arith.constant 0 : i32
    return %c0_i32, %c0_i32_0, %c0_i32_1 : i32, i32, i32
  }
  func.func @transform_4(%arg0: i32) -> (i32, i32) {
    %c0_i32 = arith.constant 0 : i32
    %c0_i32_0 = arith.constant 0 : i32
    %c0_i32_1 = arith.constant 0 : i32
    return %c0_i32, %c0_i32_0 : i32, i32
  }
  func.func @transform_5(%arg0: i32) -> (i32, i32) {
    %c0_i32 = arith.constant 0 : i32
    %c0_i32_0 = arith.constant 0 : i32
    return %arg0, %c0_i32 : i32, i32
  }
}

module attributes {stable_mosaic.version = 11 : i64} {
  func.func @_fc_stage_kernel(%arg0: i32, %arg1: memref<8x1024xbf16, #tpu.memory_space<vmem>>, %arg2: memref<1024x512xbf16, #tpu.memory_space<vmem>>, %arg3: memref<1x512xf32, #tpu.memory_space<vmem>>, %arg4: memref<512x128xbf16, #tpu.memory_space<vmem>>, %arg5: memref<1x128xf32, #tpu.memory_space<vmem>>, %arg6: memref<8x128xf32, #tpu.memory_space<vmem>>) attributes {dimension_semantics = [#tpu.dimension_semantics<parallel>], iteration_bounds = array<i64: 1>, scalar_prefetch = 0 : i64, scratch_operands = 0 : i64, tpu.core_type = #tpu.core_type<tc>, window_params = [{transform_indices = @transform_0, window_bounds = array<i64: 8, 1024>}, {pipeline_mode = #tpu.pipeline_mode<synchronous>, transform_indices = @transform_1, window_bounds = array<i64: 1024, 512>}, {pipeline_mode = #tpu.pipeline_mode<synchronous>, transform_indices = @transform_2, window_bounds = array<i64: 1, 512>}, {pipeline_mode = #tpu.pipeline_mode<synchronous>, transform_indices = @transform_3, window_bounds = array<i64: 512, 128>}, {pipeline_mode = #tpu.pipeline_mode<synchronous>, transform_indices = @transform_4, window_bounds = array<i64: 1, 128>}, {transform_indices = @transform_5, window_bounds = array<i64: 8, 128>}]} {
    %c0 = arith.constant 0 : index
    %c0_0 = arith.constant 0 : index
    %0 = vector.load %arg1[%c0, %c0_0] : memref<8x1024xbf16, #tpu.memory_space<vmem>>, vector<8x1024xbf16>
    %c0_1 = arith.constant 0 : index
    %c0_2 = arith.constant 0 : index
    %1 = vector.load %arg2[%c0_1, %c0_2] : memref<1024x512xbf16, #tpu.memory_space<vmem>>, vector<1024x512xbf16>
    %cst = arith.constant dense<0.000000e+00> : vector<8x512xf32>
    %2 = tpu.matmul %0, %1, %cst {dimension_numbers = #tpu.dot_dimension_numbers<[1], [0], [0], [1], [0, 0, 1, 1], [], []>} : vector<8x1024xbf16>, vector<1024x512xbf16>, vector<8x512xf32> -> vector<8x512xf32>
    %c0_3 = arith.constant 0 : index
    %c0_4 = arith.constant 0 : index
    %3 = vector.load %arg3[%c0_3, %c0_4] : memref<1x512xf32, #tpu.memory_space<vmem>>, vector<1x512xf32>
    %4 = vector.broadcast %3 : vector<1x512xf32> to vector<8x512xf32>
    %5 = arith.addf %2, %4 : vector<8x512xf32>
    %cst_5 = arith.constant 0.000000e+00 : f32
    %6 = vector.broadcast %cst_5 : f32 to vector<8x512xf32>
    %7 = arith.maximumf %5, %6 : vector<8x512xf32>
    %8 = arith.truncf %7 : vector<8x512xf32> to vector<8x512xbf16>
    %c0_6 = arith.constant 0 : index
    %c0_7 = arith.constant 0 : index
    %9 = vector.load %arg4[%c0_6, %c0_7] : memref<512x128xbf16, #tpu.memory_space<vmem>>, vector<512x128xbf16>
    %cst_8 = arith.constant dense<0.000000e+00> : vector<8x128xf32>
    %10 = tpu.matmul %8, %9, %cst_8 {dimension_numbers = #tpu.dot_dimension_numbers<[1], [0], [0], [1], [0, 0, 1, 1], [], []>} : vector<8x512xbf16>, vector<512x128xbf16>, vector<8x128xf32> -> vector<8x128xf32>
    %c0_9 = arith.constant 0 : index
    %c0_10 = arith.constant 0 : index
    %11 = vector.load %arg5[%c0_9, %c0_10] : memref<1x128xf32, #tpu.memory_space<vmem>>, vector<1x128xf32>
    %12 = vector.broadcast %11 : vector<1x128xf32> to vector<8x128xf32>
    %13 = arith.addf %10, %12 : vector<8x128xf32>
    %cst_11 = arith.constant dense<0xFF800000> : vector<8xf32>
    %14 = vector.multi_reduction <maximumf>, %13, %cst_11 [1] : vector<8x128xf32> to vector<8xf32>
    %15 = vector.shape_cast %14 : vector<8xf32> to vector<8x1xf32>
    %16 = vector.broadcast %15 : vector<8x1xf32> to vector<8x128xf32>
    %17 = arith.subf %13, %16 : vector<8x128xf32>
    %18 = math.exp %17 : vector<8x128xf32>
    %cst_12 = arith.constant dense<0.000000e+00> : vector<8xf32>
    %19 = vector.multi_reduction <add>, %18, %cst_12 [1] : vector<8x128xf32> to vector<8xf32>
    %20 = vector.shape_cast %19 : vector<8xf32> to vector<8x1xf32>
    %21 = math.log %20 : vector<8x1xf32>
    %22 = vector.broadcast %21 : vector<8x1xf32> to vector<8x128xf32>
    %23 = arith.subf %17, %22 : vector<8x128xf32>
    %c0_13 = arith.constant 0 : index
    %c0_14 = arith.constant 0 : index
    %24 = vector.load %arg6[%c0_13, %c0_14] : memref<8x128xf32, #tpu.memory_space<vmem>>, vector<8x128xf32>
    tpu.vector_store %arg6[%c0_13, %c0_14], %23 {strides = array<i32>} : memref<8x128xf32, #tpu.memory_space<vmem>>, vector<8x128xf32>,
    return
  }
  func.func @transform_0(%arg0: i32) -> (i32, i32) {
    %c0_i32 = arith.constant 0 : i32
    %c0_i32_0 = arith.constant 0 : i32
    return %arg0, %c0_i32 : i32, i32
  }
  func.func @transform_1(%arg0: i32) -> (i32, i32) {
    %c0_i32 = arith.constant 0 : i32
    %c0_i32_0 = arith.constant 0 : i32
    %c0_i32_1 = arith.constant 0 : i32
    return %c0_i32, %c0_i32_0 : i32, i32
  }
  func.func @transform_2(%arg0: i32) -> (i32, i32) {
    %c0_i32 = arith.constant 0 : i32
    %c0_i32_0 = arith.constant 0 : i32
    %c0_i32_1 = arith.constant 0 : i32
    return %c0_i32, %c0_i32_0 : i32, i32
  }
  func.func @transform_3(%arg0: i32) -> (i32, i32) {
    %c0_i32 = arith.constant 0 : i32
    %c0_i32_0 = arith.constant 0 : i32
    %c0_i32_1 = arith.constant 0 : i32
    return %c0_i32, %c0_i32_0 : i32, i32
  }
  func.func @transform_4(%arg0: i32) -> (i32, i32) {
    %c0_i32 = arith.constant 0 : i32
    %c0_i32_0 = arith.constant 0 : i32
    %c0_i32_1 = arith.constant 0 : i32
    return %c0_i32, %c0_i32_0 : i32, i32
  }
  func.func @transform_5(%arg0: i32) -> (i32, i32) {
    %c0_i32 = arith.constant 0 : i32
    %c0_i32_0 = arith.constant 0 : i32
    return %arg0, %c0_i32 : i32, i32
  }
}

</mosaic_0001>

<llo_original>
// kernel: net_forward.3
$region0: #{net_forward.3}
  #allocation0 [shape = 'u32[]', space=smem, size = 0x4, offset = 0x4, fixed_abs, tag = 'smem constant byte address 0x4 - core index']
  #allocation1 [shape = 'u32[72,128]{1,0:T(1,128)}', space=vmem, size = 0x9000, scoped, tag = 'internal scratch']
  %s0 = inlined_call_operand.vmem [shape: bf16[8,1024], index: 0, kind: input, shape index: {}]
  %s1 = inlined_call_operand.hbm [shape: bf16[1024,512], index: 1, kind: input, shape index: {}]
  %s2 = inlined_call_operand.vmem [shape: f32[1,512], index: 2, kind: input, shape index: {}]
  %s3 = inlined_call_operand.vmem [shape: bf16[512,128], index: 3, kind: input, shape index: {}]
  %s4 = inlined_call_operand.vmem [shape: f32[1,128], index: 4, kind: input, shape index: {}]
  %s5 = inlined_call_operand.vmem [shape: f32[8,128], index: 5, kind: output, shape index: {}]
  %s6 = sld [smem:[#allocation0]]
  $region34: #{net_forward.3} parent=0
    _
  %s8 = ssub.s32 1, %s6
  %s9 = scalar_select 0, %s8, %s6
  $region1: #{net_forward.3} parent=0
    #allocation2 [shape = 'u8[1048576]{0}', space=vmem, size = 0x100000, scoped, tag = 'input window, operand 1, single buffered']
    #allocation3 [shape = 's32[1]{0}', space=sflag, size = 0x4, scoped, tag = 'scoped memory for net_forward.3']
    %10 = vsyncpa [#allocation3], 0
    // Predicated region
    $region2: #{net_forward.3} parent=1 // pred_check
      _
    $region3: #{net_forward.3} parent=1 // pred_check_branch
      %12 = sbr.rel (0) target = $region5
    $region4: #{net_forward.3} parent=1 // pred_region
      _
    $region5: #{net_forward.3} parent=1 // pred_fallthru
      _
    // Predicated region
    $region6: #{net_forward.3} parent=1 // pred_check
      _
    $region7: #{net_forward.3} parent=1 // pred_check_branch
      %14 = sbr.rel (0) target = $region9
    $region8: #{net_forward.3} parent=1 // pred_region
      %16 = vsyncadd [#allocation3], 0
      %s17 = sshll.u32 %s1, 4
      %s18 = int_to_ptr.hbm [resolvable:$true] %s17
      %s19 = sshll.u32 [#allocation2], 4
      %s20 = int_to_ptr.vmem [resolvable:$true] %s19
      %25 = dma.hbm_to_vmem [thread:$0]  %s18, 32768, %s20, [#allocation3], 256, 256, 16
    $region9: #{net_forward.3} parent=1 // pred_fallthru
      _
    // Predicated region
    $region10: #{net_forward.3} parent=1 // pred_check
      _
    $region11: #{net_forward.3} parent=1 // pred_check_branch
      %27 = sbr.rel (0) target = $region13
    $region12: #{net_forward.3} parent=1 // pred_region
      _
    $region13: #{net_forward.3} parent=1 // pred_fallthru
      _
    // Predicated region
    $region14: #{net_forward.3} parent=1 // pred_check
      _
    $region15: #{net_forward.3} parent=1 // pred_check_branch
      %29 = sbr.rel (0) target = $region17
    $region16: #{net_forward.3} parent=1 // pred_region
      _
    $region17: #{net_forward.3} parent=1 // pred_fallthru
      _
    // Predicated region
    $region18: #{net_forward.3} parent=1 // pred_check
      _
    $region19: #{net_forward.3} parent=1 // pred_check_branch
      %31 = sbr.rel (0) target = $region21
    $region20: #{net_forward.3} parent=1 // pred_region
      _
    $region21: #{net_forward.3} parent=1 // pred_fallthru
      _
    // Predicated region
    $region22: #{net_forward.3} parent=1 // pred_check
      _
    $region23: #{net_forward.3} parent=1 // pred_check_branch
      %33 = sbr.rel (0) target = $region25
    $region24: #{net_forward.3} parent=1 // pred_region
      %35 = dma.done [#allocation3], 32768
    $region25: #{net_forward.3} parent=1 // pred_fallthru
      _
    %v36 = vld [vmem:[%s0] sm:$0xff]
    %v37 = vld [vmem:[%s0 + $0x8] sm:$0xff]
    %v38 = vld [vmem:[%s0 + $0x10] sm:$0xff]
    %v39 = vld [vmem:[%s0 + $0x18] sm:$0xff]
    %v40 = vld [vmem:[#allocation2] sm:$0xff]
    %v41 = vld [vmem:[#allocation2 + $0x8] sm:$0xff]
    %v42 = vld [vmem:[#allocation2 + $0x10] sm:$0xff]
    %v43 = vld [vmem:[#allocation2 + $0x18] sm:$0xff]
    %v44 = vld [vmem:[#allocation2 + $0x20] sm:$0xff]
    %v45 = vld [vmem:[#allocation2 + $0x28] sm:$0xff]
    %v46 = vld [vmem:[#allocation2 + $0x30] sm:$0xff]
    %v47 = vld [vmem:[#allocation2 + $0x38] sm:$0xff]
    %v48 = vld [vmem:[#allocation2 + $0x40] sm:$0xff]
    %v49 = vld [vmem:[#allocation2 + $0x48] sm:$0xff]
    %v50 = vld [vmem:[#allocation2 + $0x50] sm:$0xff]
    %v51 = vld [vmem:[#allocation2 + $0x58] sm:$0xff]
    %v52 = vld [vmem:[#allocation2 + $0x60] sm:$0xff]
    %v53 = vld [vmem:[#allocation2 + $0x68] sm:$0xff]
    %v54 = vld [vmem:[#allocation2 + $0x70] sm:$0xff]
    %v55 = vld [vmem:[#allocation2 + $0x78] sm:$0xff]
    %v56 = vld [vmem:[#allocation2 + $0x80] sm:$0xff]
    %v57 = vld [vmem:[#allocation2 + $0x88] sm:$0xff]
    %v58 = vld [vmem:[#allocation2 + $0x90] sm:$0xff]
    %v59 = vld [vmem:[#allocation2 + $0x98] sm:$0xff]
    %v60 = vld [vmem:[#allocation2 + $0xa0] sm:$0xff]
    %v61 = vld [vmem:[#allocation2 + $0xa8] sm:$0xff]
    %v62 = vld [vmem:[#allocation2 + $0xb0] sm:$0xff]
    %v63 = vld [vmem:[#allocation2 + $0xb8] sm:$0xff]
    %v64 = vld [vmem:[#allocation2 + $0xc0] sm:$0xff]
    %v65 = vld [vmem:[#allocation2 + $0xc8] sm:$0xff]
    %v66 = vld [vmem:[#allocation2 + $0xd0] sm:$0xff]
    %v67 = vld [vmem:[#allocation2 + $0xd8] sm:$0xff]
    %v68 = vld [vmem:[#allocation2 + $0xe0] sm:$0xff]
    %v69 = vld [vmem:[#allocation2 + $0xe8] sm:$0xff]
    %v70 = vld [vmem:[#allocation2 + $0xf0] sm:$0xff]
    %v71 = vld [vmem:[#allocation2 + $0xf8] sm:$0xff]
    %v72 = vld [vmem:[#allocation2 + $0x100] sm:$0xff]
    %v73 = vld [vmem:[#allocation2 + $0x108] sm:$0xff]
    %v74 = vld [vmem:[#allocation2 + $0x110] sm:$0xff]
    %v75 = vld [vmem:[#allocation2 + $0x118] sm:$0xff]
    %v76 = vld [vmem:[#allocation2 + $0x120] sm:$0xff]
    %v77 = vld [vmem:[#allocation2 + $0x128] sm:$0xff]
    %v78 = vld [vmem:[#allocation2 + $0x130] sm:$0xff]
    %v79 = vld [vmem:[#allocation2 + $0x138] sm:$0xff]
    %v80 = vld [vmem:[#allocation2 + $0x140] sm:$0xff]
    %v81 = vld [vmem:[#allocation2 + $0x148] sm:$0xff]
    %v82 = vld [vmem:[#allocation2 + $0x150] sm:$0xff]
    %v83 = vld [vmem:[#allocation2 + $0x158] sm:$0xff]
    %v84 = vld [vmem:[#allocation2 + $0x160] sm:$0xff]
    %v85 = vld [vmem:[#allocation2 + $0x168] sm:$0xff]
    %v86 = vld [vmem:[#allocation2 + $0x170] sm:$0xff]
    %v87 = vld [vmem:[#allocation2 + $0x178] sm:$0xff]
    %v88 = vld [vmem:[#allocation2 + $0x180] sm:$0xff]
    %v89 = vld [vmem:[#allocation2 + $0x188] sm:$0xff]
    %v90 = vld [vmem:[#allocation2 + $0x190] sm:$0xff]
    %v91 = vld [vmem:[#allocation2 + $0x198] sm:$0xff]
    %v92 = vld [vmem:[#allocation2 + $0x1a0] sm:$0xff]
    %v93 = vld [vmem:[#allocation2 + $0x1a8] sm:$0xff]
    %v94 = vld [vmem:[#allocation2 + $0x1b0] sm:$0xff]
    %v95 = vld [vmem:[#allocation2 + $0x1b8] sm:$0xff]
    %v96 = vld [vmem:[#allocation2 + $0x1c0] sm:$0xff]
    %v97 = vld [vmem:[#allocation2 + $0x1c8] sm:$0xff]
    %v98 = vld [vmem:[#allocation2 + $0x1d0] sm:$0xff]
    %v99 = vld [vmem:[#allocation2 + $0x1d8] sm:$0xff]
    %v100 = vld [vmem:[#allocation2 + $0x1e0] sm:$0xff]
    %v101 = vld [vmem:[#allocation2 + $0x1e8] sm:$0xff]
    %v102 = vld [vmem:[#allocation2 + $0x1f0] sm:$0xff]
    %v103 = vld [vmem:[#allocation2 + $0x1f8] sm:$0xff]
    %v104 = vld [vmem:[#allocation2 + $0x200] sm:$0xff]
    %v105 = vld [vmem:[#allocation2 + $0x208] sm:$0xff]
    %v106 = vld [vmem:[#allocation2 + $0x210] sm:$0xff]
    %v107 = vld [vmem:[#allocation2 + $0x218] sm:$0xff]
    %v108 = vld [vmem:[#allocation2 + $0x220] sm:$0xff]
    %v109 = vld [vmem:[#allocation2 + $0x228] sm:$0xff]
    %v110 = vld [vmem:[#allocation2 + $0x230] sm:$0xff]
    %v111 = vld [vmem:[#allocation2 + $0x238] sm:$0xff]
    %v112 = vld [vmem:[#allocation2 + $0x240] sm:$0xff]
    %v113 = vld [vmem:[#allocation2 + $0x248] sm:$0xff]
    %v114 = vld [vmem:[#allocation2 + $0x250] sm:$0xff]
    %v115 = vld [vmem:[#allocation2 + $0x258] sm:$0xff]
    %v116 = vld [vmem:[#allocation2 + $0x260] sm:$0xff]
    %v117 = vld [vmem:[#allocation2 + $0x268] sm:$0xff]
    %v118 = vld [vmem:[#allocation2 + $0x270] sm:$0xff]
    %v119 = vld [vmem:[#allocation2 + $0x278] sm:$0xff]
    %v120 = vld [vmem:[#allocation2 + $0x280] sm:$0xff]
    %v121 = vld [vmem:[#allocation2 + $0x288] sm:$0xff]
    %v122 = vld [vmem:[#allocation2 + $0x290] sm:$0xff]
    %v123 = vld [vmem:[#allocation2 + $0x298] sm:$0xff]
    %v124 = vld [vmem:[#allocation2 + $0x2a0] sm:$0xff]
    %v125 = vld [vmem:[#allocation2 + $0x2a8] sm:$0xff]
    %v126 = vld [vmem:[#allocation2 + $0x2b0] sm:$0xff]
    %v127 = vld [vmem:[#allocation2 + $0x2b8] sm:$0xff]
    %v128 = vld [vmem:[#allocation2 + $0x2c0] sm:$0xff]
    %v129 = vld [vmem:[#allocation2 + $0x2c8] sm:$0xff]
    %v130 = vld [vmem:[#allocation2 + $0x2d0] sm:$0xff]
    %v131 = vld [vmem:[#allocation2 + $0x2d8] sm:$0xff]
    %v132 = vld [vmem:[#allocation2 + $0x2e0] sm:$0xff]
    %v133 = vld [vmem:[#allocation2 + $0x2e8] sm:$0xff]
    %v134 = vld [vmem:[#allocation2 + $0x2f0] sm:$0xff]
    %v135 = vld [vmem:[#allocation2 + $0x2f8] sm:$0xff]
    %v136 = vld [vmem:[#allocation2 + $0x300] sm:$0xff]
    %v137 = vld [vmem:[#allocation2 + $0x308] sm:$0xff]
    %v138 = vld [vmem:[#allocation2 + $0x310] sm:$0xff]
    %v139 = vld [vmem:[#allocation2 + $0x318] sm:$0xff]
    %v140 = vld [vmem:[#allocation2 + $0x320] sm:$0xff]
    %v141 = vld [vmem:[#allocation2 + $0x328] sm:$0xff]
    %v142 = vld [vmem:[#allocation2 + $0x330] sm:$0xff]
    %v143 = vld [vmem:[#allocation2 + $0x338] sm:$0xff]
    %v144 = vld [vmem:[#allocation2 + $0x340] sm:$0xff]
    %v145 = vld [vmem:[#allocation2 + $0x348] sm:$0xff]
    %v146 = vld [vmem:[#allocation2 + $0x350] sm:$0xff]
    %v147 = vld [vmem:[#allocation2 + $0x358] sm:$0xff]
    %v148 = vld [vmem:[#allocation2 + $0x360] sm:$0xff]
    %v149 = vld [vmem:[#allocation2 + $0x368] sm:$0xff]
    %v150 = vld [vmem:[#allocation2 + $0x370] sm:$0xff]
    %v151 = vld [vmem:[#allocation2 + $0x378] sm:$0xff]
    %v152 = vld [vmem:[#allocation2 + $0x380] sm:$0xff]
    %v153 = vld [vmem:[#allocation2 + $0x388] sm:$0xff]
    %v154 = vld [vmem:[#allocation2 + $0x390] sm:$0xff]
    %v155 = vld [vmem:[#allocation2 + $0x398] sm:$0xff]
    %v156 = vld [vmem:[#allocation2 + $0x3a0] sm:$0xff]
    %v157 = vld [vmem:[#allocation2 + $0x3a8] sm:$0xff]
    %v158 = vld [vmem:[#allocation2 + $0x3b0] sm:$0xff]
    %v159 = vld [vmem:[#allocation2 + $0x3b8] sm:$0xff]
    %v160 = vld [vmem:[#allocation2 + $0x3c0] sm:$0xff]
    %v161 = vld [vmem:[#allocation2 + $0x3c8] sm:$0xff]
    %v162 = vld [vmem:[#allocation2 + $0x3d0] sm:$0xff]
    %v163 = vld [vmem:[#allocation2 + $0x3d8] sm:$0xff]
    %v164 = vld [vmem:[#allocation2 + $0x3e0] sm:$0xff]
    %v165 = vld [vmem:[#allocation2 + $0x3e8] sm:$0xff]
    %v166 = vld [vmem:[#allocation2 + $0x3f0] sm:$0xff]
    %v167 = vld [vmem:[#allocation2 + $0x3f8] sm:$0xff]
    %v168 = vld [vmem:[#allocation2 + $0x400] sm:$0xff]
    %v169 = vld [vmem:[#allocation2 + $0x408] sm:$0xff]
    %v170 = vld [vmem:[#allocation2 + $0x410] sm:$0xff]
    %v171 = vld [vmem:[#allocation2 + $0x418] sm:$0xff]
    %v172 = vld [vmem:[#allocation2 + $0x420] sm:$0xff]
    %v173 = vld [vmem:[#allocation2 + $0x428] sm:$0xff]
    %v174 = vld [vmem:[#allocation2 + $0x430] sm:$0xff]
    %v175 = vld [vmem:[#allocation2 + $0x438] sm:$0xff]
    %v176 = vld [vmem:[#allocation2 + $0x440] sm:$0xff]
    %v177 = vld [vmem:[#allocation2 + $0x448] sm:$0xff]
    %v178 = vld [vmem:[#allocation2 + $0x450] sm:$0xff]
    %v179 = vld [vmem:[#allocation2 + $0x458] sm:$0xff]
    %v180 = vld [vmem:[#allocation2 + $0x460] sm:$0xff]
    %v181 = vld [vmem:[#allocation2 + $0x468] sm:$0xff]
    %v182 = vld [vmem:[#allocation2 + $0x470] sm:$0xff]
    %v183 = vld [vmem:[#allocation2 + $0x478] sm:$0xff]
    %v184 = vld [vmem:[#allocation2 + $0x480] sm:$0xff]
    %v185 = vld [vmem:[#allocation2 + $0x488] sm:$0xff]
    %v186 = vld [vmem:[#allocation2 + $0x490] sm:$0xff]
    %v187 = vld [vmem:[#allocation2 + $0x498] sm:$0xff]
    %v188 = vld [vmem:[#allocation2 + $0x4a0] sm:$0xff]
    %v189 = vld [vmem:[#allocation2 + $0x4a8] sm:$0xff]
    %v190 = vld [vmem:[#allocation2 + $0x4b0] sm:$0xff]
    %v191 = vld [vmem:[#allocation2 + $0x4b8] sm:$0xff]
    %v192 = vld [vmem:[#allocation2 + $0x4c0] sm:$0xff]
    %v193 = vld [vmem:[#allocation2 + $0x4c8] sm:$0xff]
    %v194 = vld [vmem:[#allocation2 + $0x4d0] sm:$0xff]
    %v195 = vld [vmem:[#allocation2 + $0x4d8] sm:$0xff]
    %v196 = vld [vmem:[#allocation2 + $0x4e0] sm:$0xff]
    %v197 = vld [vmem:[#allocation2 + $0x4e8] sm:$0xff]
    %v198 = vld [vmem:[#allocation2 + $0x4f0] sm:$0xff]
    %v199 = vld [vmem:[#allocation2 + $0x4f8] sm:$0xff]
    %v200 = vld [vmem:[#allocation2 + $0x500] sm:$0xff]
    %v201 = vld [vmem:[#allocation2 + $0x508] sm:$0xff]
    %v202 = vld [vmem:[#allocation2 + $0x510] sm:$0xff]
    %v203 = vld [vmem:[#allocation2 + $0x518] sm:$0xff]
    %v204 = vld [vmem:[#allocation2 + $0x520] sm:$0xff]
    %v205 = vld [vmem:[#allocation2 + $0x528] sm:$0xff]
    %v206 = vld [vmem:[#allocation2 + $0x530] sm:$0xff]
    %v207 = vld [vmem:[#allocation2 + $0x538] sm:$0xff]
    %v208 = vld [vmem:[#allocation2 + $0x540] sm:$0xff]
    %v209 = vld [vmem:[#allocation2 + $0x548] sm:$0xff]
    %v210 = vld [vmem:[#allocation2 + $0x550] sm:$0xff]
    %v211 = vld [vmem:[#allocation2 + $0x558] sm:$0xff]
    %v212 = vld [vmem:[#allocation2 + $0x560] sm:$0xff]
    %v213 = vld [vmem:[#allocation2 + $0x568] sm:$0xff]
    %v214 = vld [vmem:[#allocation2 + $0x570] sm:$0xff]
    %v215 = vld [vmem:[#allocation2 + $0x578] sm:$0xff]
    %v216 = vld [vmem:[#allocation2 + $0x580] sm:$0xff]
    %v217 = vld [vmem:[#allocation2 + $0x588] sm:$0xff]
    %v218 = vld [vmem:[#allocation2 + $0x590] sm:$0xff]
    %v219 = vld [vmem:[#allocation2 + $0x598] sm:$0xff]
    %v220 = vld [vmem:[#allocation2 + $0x5a0] sm:$0xff]
    %v221 = vld [vmem:[#allocation2 + $0x5a8] sm:$0xff]
    %v222 = vld [vmem:[#allocation2 + $0x5b0] sm:$0xff]
    %v223 = vld [vmem:[#allocation2 + $0x5b8] sm:$0xff]
    %v224 = vld [vmem:[#allocation2 + $0x5c0] sm:$0xff]
    %v225 = vld [vmem:[#allocation2 + $0x5c8] sm:$0xff]
    %v226 = vld [vmem:[#allocation2 + $0x5d0] sm:$0xff]
    %v227 = vld [vmem:[#allocation2 + $0x5d8] sm:$0xff]
    %v228 = vld [vmem:[#allocation2 + $0x5e0] sm:$0xff]
    %v229 = vld [vmem:[#allocation2 + $0x5e8] sm:$0xff]
    %v230 = vld [vmem:[#allocation2 + $0x5f0] sm:$0xff]
    %v231 = vld [vmem:[#allocation2 + $0x5f8] sm:$0xff]
    %v232 = vld [vmem:[#allocation2 + $0x600] sm:$0xff]
    %v233 = vld [vmem:[#allocation2 + $0x608] sm:$0xff]
    %v234 = vld [vmem:[#allocation2 + $0x610] sm:$0xff]
    %v235 = vld [vmem:[#allocation2 + $0x618] sm:$0xff]
    %v236 = vld [vmem:[#allocation2 + $0x620] sm:$0xff]
    %v237 = vld [vmem:[#allocation2 + $0x628] sm:$0xff]
    %v238 = vld [vmem:[#allocation2 + $0x630] sm:$0xff]
    %v239 = vld [vmem:[#allocation2 + $0x638] sm:$0xff]
    %v240 = vld [vmem:[#allocation2 + $0x640] sm:$0xff]
    %v241 = vld [vmem:[#allocation2 + $0x648] sm:$0xff]
    %v242 = vld [vmem:[#allocation2 + $0x650] sm:$0xff]
    %v243 = vld [vmem:[#allocation2 + $0x658] sm:$0xff]
    %v244 = vld [vmem:[#allocation2 + $0x660] sm:$0xff]
    %v245 = vld [vmem:[#allocation2 + $0x668] sm:$0xff]
    %v246 = vld [vmem:[#allocation2 + $0x670] sm:$0xff]
    %v247 = vld [vmem:[#allocation2 + $0x678] sm:$0xff]
    %v248 = vld [vmem:[#allocation2 + $0x680] sm:$0xff]
    %v249 = vld [vmem:[#allocation2 + $0x688] sm:$0xff]
    %v250 = vld [vmem:[#allocation2 + $0x690] sm:$0xff]
    %v251 = vld [vmem:[#allocation2 + $0x698] sm:$0xff]
    %v252 = vld [vmem:[#allocation2 + $0x6a0] sm:$0xff]
    %v253 = vld [vmem:[#allocation2 + $0x6a8] sm:$0xff]
    %v254 = vld [vmem:[#allocation2 + $0x6b0] sm:$0xff]
    %v255 = vld [vmem:[#allocation2 + $0x6b8] sm:$0xff]
    %v256 = vld [vmem:[#allocation2 + $0x6c0] sm:$0xff]
    %v257 = vld [vmem:[#allocation2 + $0x6c8] sm:$0xff]
    %v258 = vld [vmem:[#allocation2 + $0x6d0] sm:$0xff]
    %v259 = vld [vmem:[#allocation2 + $0x6d8] sm:$0xff]
    %v260 = vld [vmem:[#allocation2 + $0x6e0] sm:$0xff]
    %v261 = vld [vmem:[#allocation2 + $0x6e8] sm:$0xff]
    %v262 = vld [vmem:[#allocation2 + $0x6f0] sm:$0xff]
    %v263 = vld [vmem:[#allocation2 + $0x6f8] sm:$0xff]
    %v264 = vld [vmem:[#allocation2 + $0x700] sm:$0xff]
    %v265 = vld [vmem:[#allocation2 + $0x708] sm:$0xff]
    %v266 = vld [vmem:[#allocation2 + $0x710] sm:$0xff]
    %v267 = vld [vmem:[#allocation2 + $0x718] sm:$0xff]
    %v268 = vld [vmem:[#allocation2 + $0x720] sm:$0xff]
    %v269 = vld [vmem:[#allocation2 + $0x728] sm:$0xff]
    %v270 = vld [vmem:[#allocation2 + $0x730] sm:$0xff]
    %v271 = vld [vmem:[#allocation2 + $0x738] sm:$0xff]
    %v272 = vld [vmem:[#allocation2 + $0x740] sm:$0xff]
    %v273 = vld [vmem:[#allocation2 + $0x748] sm:$0xff]
    %v274 = vld [vmem:[#allocation2 + $0x750] sm:$0xff]
    %v275 = vld [vmem:[#allocation2 + $0x758] sm:$0xff]
    %v276 = vld [vmem:[#allocation2 + $0x760] sm:$0xff]
    %v277 = vld [vmem:[#allocation2 + $0x768] sm:$0xff]
    %v278 = vld [vmem:[#allocation2 + $0x770] sm:$0xff]
    %v279 = vld [vmem:[#allocation2 + $0x778] sm:$0xff]
    %v280 = vld [vmem:[#allocation2 + $0x780] sm:$0xff]
    %v281 = vld [vmem:[#allocation2 + $0x788] sm:$0xff]
    %v282 = vld [vmem:[#allocation2 + $0x790] sm:$0xff]
    %v283 = vld [vmem:[#allocation2 + $0x798] sm:$0xff]
    %v284 = vld [vmem:[#allocation2 + $0x7a0] sm:$0xff]
    %v285 = vld [vmem:[#allocation2 + $0x7a8] sm:$0xff]
    %v286 = vld [vmem:[#allocation2 + $0x7b0] sm:$0xff]
    %v287 = vld [vmem:[#allocation2 + $0x7b8] sm:$0xff]
    %v288 = vld [vmem:[#allocation2 + $0x7c0] sm:$0xff]
    %v289 = vld [vmem:[#allocation2 + $0x7c8] sm:$0xff]
    %v290 = vld [vmem:[#allocation2 + $0x7d0] sm:$0xff]
    %v291 = vld [vmem:[#allocation2 + $0x7d8] sm:$0xff]
    %v292 = vld [vmem:[#allocation2 + $0x7e0] sm:$0xff]
    %v293 = vld [vmem:[#allocation2 + $0x7e8] sm:$0xff]
    %v294 = vld [vmem:[#allocation2 + $0x7f0] sm:$0xff]
    %v295 = vld [vmem:[#allocation2 + $0x7f8] sm:$0xff]
    %v296 = vld [vmem:[%s2] sm:$0xf]
    %v298 = vperm.slane %v296, 0
    %v299 = vperm.slane %v296, 1
    %v300 = vperm.slane %v296, 2
    %v301 = vperm.slane %v296, 3
    %v310 = vunpack.c.l.b16 %v36
    %v311 = vunpack.c.h.b16 %v36
    %v312 = vunpack.c.l.b16 %v37
    %v313 = vunpack.c.h.b16 %v37
    %v314 = vunpack.c.l.b16 %v38
    %v315 = vunpack.c.h.b16 %v38
    %v316 = vunpack.c.l.b16 %v39
    %v317 = vunpack.c.h.b16 %v39
    %v318 = vpack.c.b16 %v310, %v310
    %v319 = vpack.c.b16 %v311, %v311
    %v320 = vpack.c.b16 %v312, %v312
    %v321 = vpack.c.b16 %v313, %v313
    %v322 = vpack.c.b16 %v314, %v314
    %v323 = vpack.c.b16 %v315, %v315
    %v324 = vpack.c.b16 %v316, %v316
    %v325 = vpack.c.b16 %v317, %v317
    %v590 = vunpack.c.l.b16 %v40
    %v591 = vunpack.c.h.b16 %v40
    %v592 = vunpack.c.l.b16 %v41
    %v593 = vunpack.c.h.b16 %v41
    %v594 = vunpack.c.l.b16 %v42
    %v595 = vunpack.c.h.b16 %v42
    %v596 = vunpack.c.l.b16 %v43
    %v597 = vunpack.c.h.b16 %v43
    %v598 = vunpack.c.l.b16 %v44
    %v599 = vunpack.c.h.b16 %v44
    %v600 = vunpack.c.l.b16 %v45
    %v601 = vunpack.c.h.b16 %v45
    %v602 = vunpack.c.l.b16 %v46
    %v603 = vunpack.c.h.b16 %v46
    %v604 = vunpack.c.l.b16 %v47
    %v605 = vunpack.c.h.b16 %v47
    %v606 = vunpack.c.l.b16 %v48
    %v607 = vunpack.c.h.b16 %v48
    %v608 = vunpack.c.l.b16 %v49
    %v609 = vunpack.c.h.b16 %v49
    %v610 = vunpack.c.l.b16 %v50
    %v611 = vunpack.c.h.b16 %v50
    %v612 = vunpack.c.l.b16 %v51
    %v613 = vunpack.c.h.b16 %v51
    %v614 = vunpack.c.l.b16 %v52
    %v615 = vunpack.c.h.b16 %v52
    %v616 = vunpack.c.l.b16 %v53
    %v617 = vunpack.c.h.b16 %v53
    %v618 = vunpack.c.l.b16 %v54
    %v619 = vunpack.c.h.b16 %v54
    %v620 = vunpack.c.l.b16 %v55
    %v621 = vunpack.c.h.b16 %v55
    %v622 = vunpack.c.l.b16 %v56
    %v623 = vunpack.c.h.b16 %v56
    %v624 = vunpack.c.l.b16 %v57
    %v625 = vunpack.c.h.b16 %v57
    %v626 = vunpack.c.l.b16 %v58
    %v627 = vunpack.c.h.b16 %v58
    %v628 = vunpack.c.l.b16 %v59
    %v629 = vunpack.c.h.b16 %v59
    %v630 = vunpack.c.l.b16 %v60
    %v631 = vunpack.c.h.b16 %v60
    %v632 = vunpack.c.l.b16 %v61
    %v633 = vunpack.c.h.b16 %v61
    %v634 = vunpack.c.l.b16 %v62
    %v635 = vunpack.c.h.b16 %v62
    %v636 = vunpack.c.l.b16 %v63
    %v637 = vunpack.c.h.b16 %v63
    %v638 = vunpack.c.l.b16 %v64
    %v639 = vunpack.c.h.b16 %v64
    %v640 = vunpack.c.l.b16 %v65
    %v641 = vunpack.c.h.b16 %v65
    %v642 = vunpack.c.l.b16 %v66
    %v643 = vunpack.c.h.b16 %v66
    %v644 = vunpack.c.l.b16 %v67
    %v645 = vunpack.c.h.b16 %v67
    %v646 = vunpack.c.l.b16 %v68
    %v647 = vunpack.c.h.b16 %v68
    %v648 = vunpack.c.l.b16 %v69
    %v649 = vunpack.c.h.b16 %v69
    %v650 = vunpack.c.l.b16 %v70
    %v651 = vunpack.c.h.b16 %v70
    %v652 = vunpack.c.l.b16 %v71
    %v653 = vunpack.c.h.b16 %v71
    %v654 = vunpack.c.l.b16 %v72
    %v655 = vunpack.c.h.b16 %v72
    %v656 = vunpack.c.l.b16 %v73
    %v657 = vunpack.c.h.b16 %v73
    %v658 = vunpack.c.l.b16 %v74
    %v659 = vunpack.c.h.b16 %v74
    %v660 = vunpack.c.l.b16 %v75
    %v661 = vunpack.c.h.b16 %v75
    %v662 = vunpack.c.l.b16 %v76
    %v663 = vunpack.c.h.b16 %v76
    %v664 = vunpack.c.l.b16 %v77
    %v665 = vunpack.c.h.b16 %v77
    %v666 = vunpack.c.l.b16 %v78
    %v667 = vunpack.c.h.b16 %v78
    %v668 = vunpack.c.l.b16 %v79
    %v669 = vunpack.c.h.b16 %v79
    %v670 = vunpack.c.l.b16 %v80
    %v671 = vunpack.c.h.b16 %v80
    %v672 = vunpack.c.l.b16 %v81
    %v673 = vunpack.c.h.b16 %v81
    %v674 = vunpack.c.l.b16 %v82
    %v675 = vunpack.c.h.b16 %v82
    %v676 = vunpack.c.l.b16 %v83
    %v677 = vunpack.c.h.b16 %v83
    %v678 = vunpack.c.l.b16 %v84
    %v679 = vunpack.c.h.b16 %v84
    %v680 = vunpack.c.l.b16 %v85
    %v681 = vunpack.c.h.b16 %v85
    %v682 = vunpack.c.l.b16 %v86
    %v683 = vunpack.c.h.b16 %v86
    %v684 = vunpack.c.l.b16 %v87
    %v685 = vunpack.c.h.b16 %v87
    %v686 = vunpack.c.l.b16 %v88
    %v687 = vunpack.c.h.b16 %v88
    %v688 = vunpack.c.l.b16 %v89
    %v689 = vunpack.c.h.b16 %v89
    %v690 = vunpack.c.l.b16 %v90
    %v691 = vunpack.c.h.b16 %v90
    %v692 = vunpack.c.l.b16 %v91
    %v693 = vunpack.c.h.b16 %v91
    %v694 = vunpack.c.l.b16 %v92
    %v695 = vunpack.c.h.b16 %v92
    %v696 = vunpack.c.l.b16 %v93
    %v697 = vunpack.c.h.b16 %v93
    %v698 = vunpack.c.l.b16 %v94
    %v699 = vunpack.c.h.b16 %v94
    %v700 = vunpack.c.l.b16 %v95
    %v701 = vunpack.c.h.b16 %v95
    %v702 = vunpack.c.l.b16 %v96
    %v703 = vunpack.c.h.b16 %v96
    %v704 = vunpack.c.l.b16 %v97
    %v705 = vunpack.c.h.b16 %v97
    %v706 = vunpack.c.l.b16 %v98
    %v707 = vunpack.c.h.b16 %v98
    %v708 = vunpack.c.l.b16 %v99
    %v709 = vunpack.c.h.b16 %v99
    %v710 = vunpack.c.l.b16 %v100
    %v711 = vunpack.c.h.b16 %v100
    %v712 = vunpack.c.l.b16 %v101
    %v713 = vunpack.c.h.b16 %v101
    %v714 = vunpack.c.l.b16 %v102
    %v715 = vunpack.c.h.b16 %v102
    %v716 = vunpack.c.l.b16 %v103
    %v717 = vunpack.c.h.b16 %v103
    %v718 = vunpack.c.l.b16 %v104
    %v719 = vunpack.c.h.b16 %v104
    %v720 = vunpack.c.l.b16 %v105
    %v721 = vunpack.c.h.b16 %v105
    %v722 = vunpack.c.l.b16 %v106
    %v723 = vunpack.c.h.b16 %v106
    %v724 = vunpack.c.l.b16 %v107
    %v725 = vunpack.c.h.b16 %v107
    %v726 = vunpack.c.l.b16 %v108
    %v727 = vunpack.c.h.b16 %v108
    %v728 = vunpack.c.l.b16 %v109
    %v729 = vunpack.c.h.b16 %v109
    %v730 = vunpack.c.l.b16 %v110
    %v731 = vunpack.c.h.b16 %v110
    %v732 = vunpack.c.l.b16 %v111
    %v733 = vunpack.c.h.b16 %v111
    %v734 = vunpack.c.l.b16 %v112
    %v735 = vunpack.c.h.b16 %v112
    %v736 = vunpack.c.l.b16 %v113
    %v737 = vunpack.c.h.b16 %v113
    %v738 = vunpack.c.l.b16 %v114
    %v739 = vunpack.c.h.b16 %v114
    %v740 = vunpack.c.l.b16 %v115
    %v741 = vunpack.c.h.b16 %v115
    %v742 = vunpack.c.l.b16 %v116
    %v743 = vunpack.c.h.b16 %v116
    %v744 = vunpack.c.l.b16 %v117
    %v745 = vunpack.c.h.b16 %v117
    %v746 = vunpack.c.l.b16 %v118
    %v747 = vunpack.c.h.b16 %v118
    %v748 = vunpack.c.l.b16 %v119
    %v749 = vunpack.c.h.b16 %v119
    %v750 = vunpack.c.l.b16 %v120
    %v751 = vunpack.c.h.b16 %v120
    %v752 = vunpack.c.l.b16 %v121
    %v753 = vunpack.c.h.b16 %v121
    %v754 = vunpack.c.l.b16 %v122
    %v755 = vunpack.c.h.b16 %v122
    %v756 = vunpack.c.l.b16 %v123
    %v757 = vunpack.c.h.b16 %v123
    %v758 = vunpack.c.l.b16 %v124
    %v759 = vunpack.c.h.b16 %v124
    %v760 = vunpack.c.l.b16 %v125
    %v761 = vunpack.c.h.b16 %v125
    %v762 = vunpack.c.l.b16 %v126
    %v763 = vunpack.c.h.b16 %v126
    %v764 = vunpack.c.l.b16 %v127
    %v765 = vunpack.c.h.b16 %v127
    %v766 = vunpack.c.l.b16 %v128
    %v767 = vunpack.c.h.b16 %v128
    %v768 = vunpack.c.l.b16 %v129
    %v769 = vunpack.c.h.b16 %v129
    %v770 = vunpack.c.l.b16 %v130
    %v771 = vunpack.c.h.b16 %v130
    %v772 = vunpack.c.l.b16 %v131
    %v773 = vunpack.c.h.b16 %v131
    %v774 = vunpack.c.l.b16 %v132
    %v775 = vunpack.c.h.b16 %v132
    %v776 = vunpack.c.l.b16 %v133
    %v777 = vunpack.c.h.b16 %v133
    %v778 = vunpack.c.l.b16 %v134
    %v779 = vunpack.c.h.b16 %v134
    %v780 = vunpack.c.l.b16 %v135
    %v781 = vunpack.c.h.b16 %v135
    %v782 = vunpack.c.l.b16 %v136
    %v783 = vunpack.c.h.b16 %v136
    %v784 = vunpack.c.l.b16 %v137
    %v785 = vunpack.c.h.b16 %v137
    %v786 = vunpack.c.l.b16 %v138
    %v787 = vunpack.c.h.b16 %v138
    %v788 = vunpack.c.l.b16 %v139
    %v789 = vunpack.c.h.b16 %v139
    %v790 = vunpack.c.l.b16 %v140
    %v791 = vunpack.c.h.b16 %v140
    %v792 = vunpack.c.l.b16 %v141
    %v793 = vunpack.c.h.b16 %v141
    %v794 = vunpack.c.l.b16 %v142
    %v795 = vunpack.c.h.b16 %v142
    %v796 = vunpack.c.l.b16 %v143
    %v797 = vunpack.c.h.b16 %v143
    %v798 = vunpack.c.l.b16 %v144
    %v799 = vunpack.c.h.b16 %v144
    %v800 = vunpack.c.l.b16 %v145
    %v801 = vunpack.c.h.b16 %v145
    %v802 = vunpack.c.l.b16 %v146
    %v803 = vunpack.c.h.b16 %v146
    %v804 = vunpack.c.l.b16 %v147
    %v805 = vunpack.c.h.b16 %v147
    %v806 = vunpack.c.l.b16 %v148
    %v807 = vunpack.c.h.b16 %v148
    %v808 = vunpack.c.l.b16 %v149
    %v809 = vunpack.c.h.b16 %v149
    %v810 = vunpack.c.l.b16 %v150
    %v811 = vunpack.c.h.b16 %v150
    %v812 = vunpack.c.l.b16 %v151
    %v813 = vunpack.c.h.b16 %v151
    %v814 = vunpack.c.l.b16 %v152
    %v815 = vunpack.c.h.b16 %v152
    %v816 = vunpack.c.l.b16 %v153
    %v817 = vunpack.c.h.b16 %v153
    %v818 = vunpack.c.l.b16 %v154
    %v819 = vunpack.c.h.b16 %v154
    %v820 = vunpack.c.l.b16 %v155
    %v821 = vunpack.c.h.b16 %v155
    %v822 = vunpack.c.l.b16 %v156
    %v823 = vunpack.c.h.b16 %v156
    %v824 = vunpack.c.l.b16 %v157
    %v825 = vunpack.c.h.b16 %v157
    %v826 = vunpack.c.l.b16 %v158
    %v827 = vunpack.c.h.b16 %v158
    %v828 = vunpack.c.l.b16 %v159
    %v829 = vunpack.c.h.b16 %v159
    %v830 = vunpack.c.l.b16 %v160
    %v831 = vunpack.c.h.b16 %v160
    %v832 = vunpack.c.l.b16 %v161
    %v833 = vunpack.c.h.b16 %v161
    %v834 = vunpack.c.l.b16 %v162
    %v835 = vunpack.c.h.b16 %v162
    %v836 = vunpack.c.l.b16 %v163
    %v837 = vunpack.c.h.b16 %v163
    %v838 = vunpack.c.l.b16 %v164
    %v839 = vunpack.c.h.b16 %v164
    %v840 = vunpack.c.l.b16 %v165
    %v841 = vunpack.c.h.b16 %v165
    %v842 = vunpack.c.l.b16 %v166
    %v843 = vunpack.c.h.b16 %v166
    %v844 = vunpack.c.l.b16 %v167
    %v845 = vunpack.c.h.b16 %v167
    %v846 = vunpack.c.l.b16 %v168
    %v847 = vunpack.c.h.b16 %v168
    %v848 = vunpack.c.l.b16 %v169
    %v849 = vunpack.c.h.b16 %v169
    %v850 = vunpack.c.l.b16 %v170
    %v851 = vunpack.c.h.b16 %v170
    %v852 = vunpack.c.l.b16 %v171
    %v853 = vunpack.c.h.b16 %v171
    %v854 = vunpack.c.l.b16 %v172
    %v855 = vunpack.c.h.b16 %v172
    %v856 = vunpack.c.l.b16 %v173
    %v857 = vunpack.c.h.b16 %v173
    %v858 = vunpack.c.l.b16 %v174
    %v859 = vunpack.c.h.b16 %v174
    %v860 = vunpack.c.l.b16 %v175
    %v861 = vunpack.c.h.b16 %v175
    %v862 = vunpack.c.l.b16 %v176
    %v863 = vunpack.c.h.b16 %v176
    %v864 = vunpack.c.l.b16 %v177
    %v865 = vunpack.c.h.b16 %v177
    %v866 = vunpack.c.l.b16 %v178
    %v867 = vunpack.c.h.b16 %v178
    %v868 = vunpack.c.l.b16 %v179
    %v869 = vunpack.c.h.b16 %v179
    %v870 = vunpack.c.l.b16 %v180
    %v871 = vunpack.c.h.b16 %v180
    %v872 = vunpack.c.l.b16 %v181
    %v873 = vunpack.c.h.b16 %v181
    %v874 = vunpack.c.l.b16 %v182
    %v875 = vunpack.c.h.b16 %v182
    %v876 = vunpack.c.l.b16 %v183
    %v877 = vunpack.c.h.b16 %v183
    %v878 = vunpack.c.l.b16 %v184
    %v879 = vunpack.c.h.b16 %v184
    %v880 = vunpack.c.l.b16 %v185
    %v881 = vunpack.c.h.b16 %v185
    %v882 = vunpack.c.l.b16 %v186
    %v883 = vunpack.c.h.b16 %v186
    %v884 = vunpack.c.l.b16 %v187
    %v885 = vunpack.c.h.b16 %v187
    %v886 = vunpack.c.l.b16 %v188
    %v887 = vunpack.c.h.b16 %v188
    %v888 = vunpack.c.l.b16 %v189
    %v889 = vunpack.c.h.b16 %v189
    %v890 = vunpack.c.l.b16 %v190
    %v891 = vunpack.c.h.b16 %v190
    %v892 = vunpack.c.l.b16 %v191
    %v893 = vunpack.c.h.b16 %v191
    %v894 = vunpack.c.l.b16 %v192
    %v895 = vunpack.c.h.b16 %v192
    %v896 = vunpack.c.l.b16 %v193
    %v897 = vunpack.c.h.b16 %v193
    %v898 = vunpack.c.l.b16 %v194
    %v899 = vunpack.c.h.b16 %v194
    %v900 = vunpack.c.l.b16 %v195
    %v901 = vunpack.c.h.b16 %v195
    %v902 = vunpack.c.l.b16 %v196
    %v903 = vunpack.c.h.b16 %v196
    %v904 = vunpack.c.l.b16 %v197
    %v905 = vunpack.c.h.b16 %v197
    %v906 = vunpack.c.l.b16 %v198
    %v907 = vunpack.c.h.b16 %v198
    %v908 = vunpack.c.l.b16 %v199
    %v909 = vunpack.c.h.b16 %v199
    %v910 = vunpack.c.l.b16 %v200
    %v911 = vunpack.c.h.b16 %v200
    %v912 = vunpack.c.l.b16 %v201
    %v913 = vunpack.c.h.b16 %v201
    %v914 = vunpack.c.l.b16 %v202
    %v915 = vunpack.c.h.b16 %v202
    %v916 = vunpack.c.l.b16 %v203
    %v917 = vunpack.c.h.b16 %v203
    %v918 = vunpack.c.l.b16 %v204
    %v919 = vunpack.c.h.b16 %v204
    %v920 = vunpack.c.l.b16 %v205
    %v921 = vunpack.c.h.b16 %v205
    %v922 = vunpack.c.l.b16 %v206
    %v923 = vunpack.c.h.b16 %v206
    %v924 = vunpack.c.l.b16 %v207
    %v925 = vunpack.c.h.b16 %v207
    %v926 = vunpack.c.l.b16 %v208
    %v927 = vunpack.c.h.b16 %v208
    %v928 = vunpack.c.l.b16 %v209
    %v929 = vunpack.c.h.b16 %v209
    %v930 = vunpack.c.l.b16 %v210
    %v931 = vunpack.c.h.b16 %v210
    %v932 = vunpack.c.l.b16 %v211
    %v933 = vunpack.c.h.b16 %v211
    %v934 = vunpack.c.l.b16 %v212
    %v935 = vunpack.c.h.b16 %v212
    %v936 = vunpack.c.l.b16 %v213
    %v937 = vunpack.c.h.b16 %v213
    %v938 = vunpack.c.l.b16 %v214
    %v939 = vunpack.c.h.b16 %v214
    %v940 = vunpack.c.l.b16 %v215
    %v941 = vunpack.c.h.b16 %v215
    %v942 = vunpack.c.l.b16 %v216
    %v943 = vunpack.c.h.b16 %v216
    %v944 = vunpack.c.l.b16 %v217
    %v945 = vunpack.c.h.b16 %v217
    %v946 = vunpack.c.l.b16 %v218
    %v947 = vunpack.c.h.b16 %v218
    %v948 = vunpack.c.l.b16 %v219
    %v949 = vunpack.c.h.b16 %v219
    %v950 = vunpack.c.l.b16 %v220
    %v951 = vunpack.c.h.b16 %v220
    %v952 = vunpack.c.l.b16 %v221
    %v953 = vunpack.c.h.b16 %v221
    %v954 = vunpack.c.l.b16 %v222
    %v955 = vunpack.c.h.b16 %v222
    %v956 = vunpack.c.l.b16 %v223
    %v957 = vunpack.c.h.b16 %v223
    %v958 = vunpack.c.l.b16 %v224
    %v959 = vunpack.c.h.b16 %v224
    %v960 = vunpack.c.l.b16 %v225
    %v961 = vunpack.c.h.b16 %v225
    %v962 = vunpack.c.l.b16 %v226
    %v963 = vunpack.c.h.b16 %v226
    %v964 = vunpack.c.l.b16 %v227
    %v965 = vunpack.c.h.b16 %v227
    %v966 = vunpack.c.l.b16 %v228
    %v967 = vunpack.c.h.b16 %v228
    %v968 = vunpack.c.l.b16 %v229
    %v969 = vunpack.c.h.b16 %v229
    %v970 = vunpack.c.l.b16 %v230
    %v971 = vunpack.c.h.b16 %v230
    %v972 = vunpack.c.l.b16 %v231
    %v973 = vunpack.c.h.b16 %v231
    %v974 = vunpack.c.l.b16 %v232
    %v975 = vunpack.c.h.b16 %v232
    %v976 = vunpack.c.l.b16 %v233
    %v977 = vunpack.c.h.b16 %v233
    %v978 = vunpack.c.l.b16 %v234
    %v979 = vunpack.c.h.b16 %v234
    %v980 = vunpack.c.l.b16 %v235
    %v981 = vunpack.c.h.b16 %v235
    %v982 = vunpack.c.l.b16 %v236
    %v983 = vunpack.c.h.b16 %v236
    %v984 = vunpack.c.l.b16 %v237
    %v985 = vunpack.c.h.b16 %v237
    %v986 = vunpack.c.l.b16 %v238
    %v987 = vunpack.c.h.b16 %v238
    %v988 = vunpack.c.l.b16 %v239
    %v989 = vunpack.c.h.b16 %v239
    %v990 = vunpack.c.l.b16 %v240
    %v991 = vunpack.c.h.b16 %v240
    %v992 = vunpack.c.l.b16 %v241
    %v993 = vunpack.c.h.b16 %v241
    %v994 = vunpack.c.l.b16 %v242
    %v995 = vunpack.c.h.b16 %v242
    %v996 = vunpack.c.l.b16 %v243
    %v997 = vunpack.c.h.b16 %v243
    %v998 = vunpack.c.l.b16 %v244
    %v999 = vunpack.c.h.b16 %v244
    %v1000 = vunpack.c.l.b16 %v245
    %v1001 = vunpack.c.h.b16 %v245
    %v1002 = vunpack.c.l.b16 %v246
    %v1003 = vunpack.c.h.b16 %v246
    %v1004 = vunpack.c.l.b16 %v247
    %v1005 = vunpack.c.h.b16 %v247
    %v1006 = vunpack.c.l.b16 %v248
    %v1007 = vunpack.c.h.b16 %v248
    %v1008 = vunpack.c.l.b16 %v249
    %v1009 = vunpack.c.h.b16 %v249
    %v1010 = vunpack.c.l.b16 %v250
    %v1011 = vunpack.c.h.b16 %v250
    %v1012 = vunpack.c.l.b16 %v251
    %v1013 = vunpack.c.h.b16 %v251
    %v1014 = vunpack.c.l.b16 %v252
    %v1015 = vunpack.c.h.b16 %v252
    %v1016 = vunpack.c.l.b16 %v253
    %v1017 = vunpack.c.h.b16 %v253
    %v1018 = vunpack.c.l.b16 %v254
    %v1019 = vunpack.c.h.b16 %v254
    %v1020 = vunpack.c.l.b16 %v255
    %v1021 = vunpack.c.h.b16 %v255
    %v1022 = vunpack.c.l.b16 %v256
    %v1023 = vunpack.c.h.b16 %v256
    %v1024 = vunpack.c.l.b16 %v257
    %v1025 = vunpack.c.h.b16 %v257
    %v1026 = vunpack.c.l.b16 %v258
    %v1027 = vunpack.c.h.b16 %v258
    %v1028 = vunpack.c.l.b16 %v259
    %v1029 = vunpack.c.h.b16 %v259
    %v1030 = vunpack.c.l.b16 %v260
    %v1031 = vunpack.c.h.b16 %v260
    %v1032 = vunpack.c.l.b16 %v261
    %v1033 = vunpack.c.h.b16 %v261
    %v1034 = vunpack.c.l.b16 %v262
    %v1035 = vunpack.c.h.b16 %v262
    %v1036 = vunpack.c.l.b16 %v263
    %v1037 = vunpack.c.h.b16 %v263
    %v1038 = vunpack.c.l.b16 %v264
    %v1039 = vunpack.c.h.b16 %v264
    %v1040 = vunpack.c.l.b16 %v265
    %v1041 = vunpack.c.h.b16 %v265
    %v1042 = vunpack.c.l.b16 %v266
    %v1043 = vunpack.c.h.b16 %v266
    %v1044 = vunpack.c.l.b16 %v267
    %v1045 = vunpack.c.h.b16 %v267
    %v1046 = vunpack.c.l.b16 %v268
    %v1047 = vunpack.c.h.b16 %v268
    %v1048 = vunpack.c.l.b16 %v269
    %v1049 = vunpack.c.h.b16 %v269
    %v1050 = vunpack.c.l.b16 %v270
    %v1051 = vunpack.c.h.b16 %v270
    %v1052 = vunpack.c.l.b16 %v271
    %v1053 = vunpack.c.h.b16 %v271
    %v1054 = vunpack.c.l.b16 %v272
    %v1055 = vunpack.c.h.b16 %v272
    %v1056 = vunpack.c.l.b16 %v273
    %v1057 = vunpack.c.h.b16 %v273
    %v1058 = vunpack.c.l.b16 %v274
    %v1059 = vunpack.c.h.b16 %v274
    %v1060 = vunpack.c.l.b16 %v275
    %v1061 = vunpack.c.h.b16 %v275
    %v1062 = vunpack.c.l.b16 %v276
    %v1063 = vunpack.c.h.b16 %v276
    %v1064 = vunpack.c.l.b16 %v277
    %v1065 = vunpack.c.h.b16 %v277
    %v1066 = vunpack.c.l.b16 %v278
    %v1067 = vunpack.c.h.b16 %v278
    %v1068 = vunpack.c.l.b16 %v279
    %v1069 = vunpack.c.h.b16 %v279
    %v1070 = vunpack.c.l.b16 %v280
    %v1071 = vunpack.c.h.b16 %v280
    %v1072 = vunpack.c.l.b16 %v281
    %v1073 = vunpack.c.h.b16 %v281
    %v1074 = vunpack.c.l.b16 %v282
    %v1075 = vunpack.c.h.b16 %v282
    %v1076 = vunpack.c.l.b16 %v283
    %v1077 = vunpack.c.h.b16 %v283
    %v1078 = vunpack.c.l.b16 %v284
    %v1079 = vunpack.c.h.b16 %v284
    %v1080 = vunpack.c.l.b16 %v285
    %v1081 = vunpack.c.h.b16 %v285
    %v1082 = vunpack.c.l.b16 %v286
    %v1083 = vunpack.c.h.b16 %v286
    %v1084 = vunpack.c.l.b16 %v287
    %v1085 = vunpack.c.h.b16 %v287
    %v1086 = vunpack.c.l.b16 %v288
    %v1087 = vunpack.c.h.b16 %v288
    %v1088 = vunpack.c.l.b16 %v289
    %v1089 = vunpack.c.h.b16 %v289
    %v1090 = vunpack.c.l.b16 %v290
    %v1091 = vunpack.c.h.b16 %v290
    %v1092 = vunpack.c.l.b16 %v291
    %v1093 = vunpack.c.h.b16 %v291
    %v1094 = vunpack.c.l.b16 %v292
    %v1095 = vunpack.c.h.b16 %v292
    %v1096 = vunpack.c.l.b16 %v293
    %v1097 = vunpack.c.h.b16 %v293
    %v1098 = vunpack.c.l.b16 %v294
    %v1099 = vunpack.c.h.b16 %v294
    %v1100 = vunpack.c.l.b16 %v295
    %v1101 = vunpack.c.h.b16 %v295
    %v1102 = vpack.c.b16 %v594, %v590
    %v1103 = vpack.c.b16 %v595, %v591
    %v1104 = vpack.c.b16 %v596, %v592
    %v1105 = vpack.c.b16 %v597, %v593
    %v1106 = vpack.c.b16 %v602, %v598
    %v1107 = vpack.c.b16 %v603, %v599
    %v1108 = vpack.c.b16 %v604, %v600
    %v1109 = vpack.c.b16 %v605, %v601
    %v1110 = vpack.c.b16 %v610, %v606
    %v1111 = vpack.c.b16 %v611, %v607
    %v1112 = vpack.c.b16 %v612, %v608
    %v1113 = vpack.c.b16 %v613, %v609
    %v1114 = vpack.c.b16 %v618, %v614
    %v1115 = vpack.c.b16 %v619, %v615
    %v1116 = vpack.c.b16 %v620, %v616
    %v1117 = vpack.c.b16 %v621, %v617
    %v1118 = vpack.c.b16 %v626, %v622
    %v1119 = vpack.c.b16 %v627, %v623
    %v1120 = vpack.c.b16 %v628, %v624
    %v1121 = vpack.c.b16 %v629, %v625
    %v1122 = vpack.c.b16 %v634, %v630
    %v1123 = vpack.c.b16 %v635, %v631
    %v1124 = vpack.c.b16 %v636, %v632
    %v1125 = vpack.c.b16 %v637, %v633
    %v1126 = vpack.c.b16 %v642, %v638
    %v1127 = vpack.c.b16 %v643, %v639
    %v1128 = vpack.c.b16 %v644, %v640
    %v1129 = vpack.c.b16 %v645, %v641
    %v1130 = vpack.c.b16 %v650, %v646
    %v1131 = vpack.c.b16 %v651, %v647
    %v1132 = vpack.c.b16 %v652, %v648
    %v1133 = vpack.c.b16 %v653, %v649
    %v1134 = vpack.c.b16 %v658, %v654
    %v1135 = vpack.c.b16 %v659, %v655
    %v1136 = vpack.c.b16 %v660, %v656
    %v1137 = vpack.c.b16 %v661, %v657
    %v1138 = vpack.c.b16 %v666, %v662
    %v1139 = vpack.c.b16 %v667, %v663
    %v1140 = vpack.c.b16 %v668, %v664
    %v1141 = vpack.c.b16 %v669, %v665
    %v1142 = vpack.c.b16 %v674, %v670
    %v1143 = vpack.c.b16 %v675, %v671
    %v1144 = vpack.c.b16 %v676, %v672
    %v1145 = vpack.c.b16 %v677, %v673
    %v1146 = vpack.c.b16 %v682, %v678
    %v1147 = vpack.c.b16 %v683, %v679
    %v1148 = vpack.c.b16 %v684, %v680
    %v1149 = vpack.c.b16 %v685, %v681
    %v1150 = vpack.c.b16 %v690, %v686
    %v1151 = vpack.c.b16 %v691, %v687
    %v1152 = vpack.c.b16 %v692, %v688
    %v1153 = vpack.c.b16 %v693, %v689
    %v1154 = vpack.c.b16 %v698, %v694
    %v1155 = vpack.c.b16 %v699, %v695
    %v1156 = vpack.c.b16 %v700, %v696
    %v1157 = vpack.c.b16 %v701, %v697
    %v1158 = vpack.c.b16 %v706, %v702
    %v1159 = vpack.c.b16 %v707, %v703
    %v1160 = vpack.c.b16 %v708, %v704
    %v1161 = vpack.c.b16 %v709, %v705
    %v1162 = vpack.c.b16 %v714, %v710
    %v1163 = vpack.c.b16 %v715, %v711
    %v1164 = vpack.c.b16 %v716, %v712
    %v1165 = vpack.c.b16 %v717, %v713
    %v1166 = vpack.c.b16 %v722, %v718
    %v1167 = vpack.c.b16 %v723, %v719
    %v1168 = vpack.c.b16 %v724, %v720
    %v1169 = vpack.c.b16 %v725, %v721
    %v1170 = vpack.c.b16 %v730, %v726
    %v1171 = vpack.c.b16 %v731, %v727
    %v1172 = vpack.c.b16 %v732, %v728
    %v1173 = vpack.c.b16 %v733, %v729
    %v1174 = vpack.c.b16 %v738, %v734
    %v1175 = vpack.c.b16 %v739, %v735
    %v1176 = vpack.c.b16 %v740, %v736
    %v1177 = vpack.c.b16 %v741, %v737
    %v1178 = vpack.c.b16 %v746, %v742
    %v1179 = vpack.c.b16 %v747, %v743
    %v1180 = vpack.c.b16 %v748, %v744
    %v1181 = vpack.c.b16 %v749, %v745
    %v1182 = vpack.c.b16 %v754, %v750
    %v1183 = vpack.c.b16 %v755, %v751
    %v1184 = vpack.c.b16 %v756, %v752
    %v1185 = vpack.c.b16 %v757, %v753
    %v1186 = vpack.c.b16 %v762, %v758
    %v1187 = vpack.c.b16 %v763, %v759
    %v1188 = vpack.c.b16 %v764, %v760
    %v1189 = vpack.c.b16 %v765, %v761
    %v1190 = vpack.c.b16 %v770, %v766
    %v1191 = vpack.c.b16 %v771, %v767
    %v1192 = vpack.c.b16 %v772, %v768
    %v1193 = vpack.c.b16 %v773, %v769
    %v1194 = vpack.c.b16 %v778, %v774
    %v1195 = vpack.c.b16 %v779, %v775
    %v1196 = vpack.c.b16 %v780, %v776
    %v1197 = vpack.c.b16 %v781, %v777
    %v1198 = vpack.c.b16 %v786, %v782
    %v1199 = vpack.c.b16 %v787, %v783
    %v1200 = vpack.c.b16 %v788, %v784
    %v1201 = vpack.c.b16 %v789, %v785
    %v1202 = vpack.c.b16 %v794, %v790
    %v1203 = vpack.c.b16 %v795, %v791
    %v1204 = vpack.c.b16 %v796, %v792
    %v1205 = vpack.c.b16 %v797, %v793
    %v1206 = vpack.c.b16 %v802, %v798
    %v1207 = vpack.c.b16 %v803, %v799
    %v1208 = vpack.c.b16 %v804, %v800
    %v1209 = vpack.c.b16 %v805, %v801
    %v1210 = vpack.c.b16 %v810, %v806
    %v1211 = vpack.c.b16 %v811, %v807
    %v1212 = vpack.c.b16 %v812, %v808
    %v1213 = vpack.c.b16 %v813, %v809
    %v1214 = vpack.c.b16 %v818, %v814
    %v1215 = vpack.c.b16 %v819, %v815
    %v1216 = vpack.c.b16 %v820, %v816
    %v1217 = vpack.c.b16 %v821, %v817
    %v1218 = vpack.c.b16 %v826, %v822
    %v1219 = vpack.c.b16 %v827, %v823
    %v1220 = vpack.c.b16 %v828, %v824
    %v1221 = vpack.c.b16 %v829, %v825
    %v1222 = vpack.c.b16 %v834, %v830
    %v1223 = vpack.c.b16 %v835, %v831
    %v1224 = vpack.c.b16 %v836, %v832
    %v1225 = vpack.c.b16 %v837, %v833
    %v1226 = vpack.c.b16 %v842, %v838
    %v1227 = vpack.c.b16 %v843, %v839
    %v1228 = vpack.c.b16 %v844, %v840
    %v1229 = vpack.c.b16 %v845, %v841
    %v1230 = vpack.c.b16 %v850, %v846
    %v1231 = vpack.c.b16 %v851, %v847
    %v1232 = vpack.c.b16 %v852, %v848
    %v1233 = vpack.c.b16 %v853, %v849
    %v1234 = vpack.c.b16 %v858, %v854
    %v1235 = vpack.c.b16 %v859, %v855
    %v1236 = vpack.c.b16 %v860, %v856
    %v1237 = vpack.c.b16 %v861, %v857
    %v1238 = vpack.c.b16 %v866, %v862
    %v1239 = vpack.c.b16 %v867, %v863
    %v1240 = vpack.c.b16 %v868, %v864
    %v1241 = vpack.c.b16 %v869, %v865
    %v1242 = vpack.c.b16 %v874, %v870
    %v1243 = vpack.c.b16 %v875, %v871
    %v1244 = vpack.c.b16 %v876, %v872
    %v1245 = vpack.c.b16 %v877, %v873
    %v1246 = vpack.c.b16 %v882, %v878
    %v1247 = vpack.c.b16 %v883, %v879
    %v1248 = vpack.c.b16 %v884, %v880
    %v1249 = vpack.c.b16 %v885, %v881
    %v1250 = vpack.c.b16 %v890, %v886
    %v1251 = vpack.c.b16 %v891, %v887
    %v1252 = vpack.c.b16 %v892, %v888
    %v1253 = vpack.c.b16 %v893, %v889
    %v1254 = vpack.c.b16 %v898, %v894
    %v1255 = vpack.c.b16 %v899, %v895
    %v1256 = vpack.c.b16 %v900, %v896
    %v1257 = vpack.c.b16 %v901, %v897
    %v1258 = vpack.c.b16 %v906, %v902
    %v1259 = vpack.c.b16 %v907, %v903
    %v1260 = vpack.c.b16 %v908, %v904
    %v1261 = vpack.c.b16 %v909, %v905
    %v1262 = vpack.c.b16 %v914, %v910
    %v1263 = vpack.c.b16 %v915, %v911
    %v1264 = vpack.c.b16 %v916, %v912
    %v1265 = vpack.c.b16 %v917, %v913
    %v1266 = vpack.c.b16 %v922, %v918
    %v1267 = vpack.c.b16 %v923, %v919
    %v1268 = vpack.c.b16 %v924, %v920
    %v1269 = vpack.c.b16 %v925, %v921
    %v1270 = vpack.c.b16 %v930, %v926
    %v1271 = vpack.c.b16 %v931, %v927
    %v1272 = vpack.c.b16 %v932, %v928
    %v1273 = vpack.c.b16 %v933, %v929
    %v1274 = vpack.c.b16 %v938, %v934
    %v1275 = vpack.c.b16 %v939, %v935
    %v1276 = vpack.c.b16 %v940, %v936
    %v1277 = vpack.c.b16 %v941, %v937
    %v1278 = vpack.c.b16 %v946, %v942
    %v1279 = vpack.c.b16 %v947, %v943
    %v1280 = vpack.c.b16 %v948, %v944
    %v1281 = vpack.c.b16 %v949, %v945
    %v1282 = vpack.c.b16 %v954, %v950
    %v1283 = vpack.c.b16 %v955, %v951
    %v1284 = vpack.c.b16 %v956, %v952
    %v1285 = vpack.c.b16 %v957, %v953
    %v1286 = vpack.c.b16 %v962, %v958
    %v1287 = vpack.c.b16 %v963, %v959
    %v1288 = vpack.c.b16 %v964, %v960
    %v1289 = vpack.c.b16 %v965, %v961
    %v1290 = vpack.c.b16 %v970, %v966
    %v1291 = vpack.c.b16 %v971, %v967
    %v1292 = vpack.c.b16 %v972, %v968
    %v1293 = vpack.c.b16 %v973, %v969
    %v1294 = vpack.c.b16 %v978, %v974
    %v1295 = vpack.c.b16 %v979, %v975
    %v1296 = vpack.c.b16 %v980, %v976
    %v1297 = vpack.c.b16 %v981, %v977
    %v1298 = vpack.c.b16 %v986, %v982
    %v1299 = vpack.c.b16 %v987, %v983
    %v1300 = vpack.c.b16 %v988, %v984
    %v1301 = vpack.c.b16 %v989, %v985
    %v1302 = vpack.c.b16 %v994, %v990
    %v1303 = vpack.c.b16 %v995, %v991
    %v1304 = vpack.c.b16 %v996, %v992
    %v1305 = vpack.c.b16 %v997, %v993
    %v1306 = vpack.c.b16 %v1002, %v998
    %v1307 = vpack.c.b16 %v1003, %v999
    %v1308 = vpack.c.b16 %v1004, %v1000
    %v1309 = vpack.c.b16 %v1005, %v1001
    %v1310 = vpack.c.b16 %v1010, %v1006
    %v1311 = vpack.c.b16 %v1011, %v1007
    %v1312 = vpack.c.b16 %v1012, %v1008
    %v1313 = vpack.c.b16 %v1013, %v1009
    %v1314 = vpack.c.b16 %v1018, %v1014
    %v1315 = vpack.c.b16 %v1019, %v1015
    %v1316 = vpack.c.b16 %v1020, %v1016
    %v1317 = vpack.c.b16 %v1021, %v1017
    %v1318 = vpack.c.b16 %v1026, %v1022
    %v1319 = vpack.c.b16 %v1027, %v1023
    %v1320 = vpack.c.b16 %v1028, %v1024
    %v1321 = vpack.c.b16 %v1029, %v1025
    %v1322 = vpack.c.b16 %v1034, %v1030
    %v1323 = vpack.c.b16 %v1035, %v1031
    %v1324 = vpack.c.b16 %v1036, %v1032
    %v1325 = vpack.c.b16 %v1037, %v1033
    %v1326 = vpack.c.b16 %v1042, %v1038
    %v1327 = vpack.c.b16 %v1043, %v1039
    %v1328 = vpack.c.b16 %v1044, %v1040
    %v1329 = vpack.c.b16 %v1045, %v1041
    %v1330 = vpack.c.b16 %v1050, %v1046
    %v1331 = vpack.c.b16 %v1051, %v1047
    %v1332 = vpack.c.b16 %v1052, %v1048
    %v1333 = vpack.c.b16 %v1053, %v1049
    %v1334 = vpack.c.b16 %v1058, %v1054
    %v1335 = vpack.c.b16 %v1059, %v1055
    %v1336 = vpack.c.b16 %v1060, %v1056
    %v1337 = vpack.c.b16 %v1061, %v1057
    %v1338 = vpack.c.b16 %v1066, %v1062
    %v1339 = vpack.c.b16 %v1067, %v1063
    %v1340 = vpack.c.b16 %v1068, %v1064
    %v1341 = vpack.c.b16 %v1069, %v1065
    %v1342 = vpack.c.b16 %v1074, %v1070
    %v1343 = vpack.c.b16 %v1075, %v1071
    %v1344 = vpack.c.b16 %v1076, %v1072
    %v1345 = vpack.c.b16 %v1077, %v1073
    %v1346 = vpack.c.b16 %v1082, %v1078
    %v1347 = vpack.c.b16 %v1083, %v1079
    %v1348 = vpack.c.b16 %v1084, %v1080
    %v1349 = vpack.c.b16 %v1085, %v1081
    %v1350 = vpack.c.b16 %v1090, %v1086
    %v1351 = vpack.c.b16 %v1091, %v1087
    %v1352 = vpack.c.b16 %v1092, %v1088
    %v1353 = vpack.c.b16 %v1093, %v1089
    %v1354 = vpack.c.b16 %v1098, %v1094
    %v1355 = vpack.c.b16 %v1099, %v1095
    %v1356 = vpack.c.b16 %v1100, %v1096
    %v1357 = vpack.c.b16 %v1101, %v1097
    %1614 = vmatpush.bf16.msra.mxu0 %v1130
    %1615 = vmatpush.bf16.msra.mxu0 %v1126
    %1616 = vmatpush.bf16.msra.mxu0 %v1122
    %1617 = vmatpush.bf16.msra.mxu0 %v1118
    %1618 = vmatpush.bf16.msra.mxu0 %v1114
    %1619 = vmatpush.bf16.msra.mxu0 %v1110
    %1620 = vmatpush.bf16.msra.mxu0 %v1106
    %1621 = vmatpush.bf16.msra.mxu0 %v1102
    %1622 = vmatmul.bf16.gmra.mxu0 %v318
    %v1623 = vpop.f32.mrf.mxu0
    %v1624 = vadd.f32 %v298, %v1623
    %v1625 = vpop.f32.mrf.mxu0
    %1626 = vdwg.mxu0
    %1627 = vmatpush.bf16.msra.mxu0 %v1162
    %1628 = vmatpush.bf16.msra.mxu0 %v1158
    %1629 = vmatpush.bf16.msra.mxu0 %v1154
    %1630 = vmatpush.bf16.msra.mxu0 %v1150
    %1631 = vmatpush.bf16.msra.mxu0 %v1146
    %1632 = vmatpush.bf16.msra.mxu0 %v1142
    %1633 = vmatpush.bf16.msra.mxu0 %v1138
    %1634 = vmatpush.bf16.msra.mxu0 %v1134
    %1635 = vmatmul.bf16.gmra.mxu0 %v319
    %v1636 = vpop.f32.mrf.mxu0
    %v1637 = vadd.f32 %v1624, %v1636
    %v1638 = vpop.f32.mrf.mxu0
    %1639 = vdwg.mxu0
    %1640 = vmatpush.bf16.msra.mxu0 %v1194
    %1641 = vmatpush.bf16.msra.mxu0 %v1190
    %1642 = vmatpush.bf16.msra.mxu0 %v1186
    %1643 = vmatpush.bf16.msra.mxu0 %v1182
    %1644 = vmatpush.bf16.msra.mxu0 %v1178
    %1645 = vmatpush.bf16.msra.mxu0 %v1174
    %1646 = vmatpush.bf16.msra.mxu0 %v1170
    %1647 = vmatpush.bf16.msra.mxu0 %v1166
    %1648 = vmatmul.bf16.gmra.mxu0 %v320
    %v1649 = vpop.f32.mrf.mxu0
    %v1650 = vadd.f32 %v1637, %v1649
    %v1651 = vpop.f32.mrf.mxu0
    %1652 = vdwg.mxu0
    %1653 = vmatpush.bf16.msra.mxu0 %v1226
    %1654 = vmatpush.bf16.msra.mxu0 %v1222
    %1655 = vmatpush.bf16.msra.mxu0 %v1218
    %1656 = vmatpush.bf16.msra.mxu0 %v1214
    %1657 = vmatpush.bf16.msra.mxu0 %v1210
    %1658 = vmatpush.bf16.msra.mxu0 %v1206
    %1659 = vmatpush.bf16.msra.mxu0 %v1202
    %1660 = vmatpush.bf16.msra.mxu0 %v1198
    %1661 = vmatmul.bf16.gmra.mxu0 %v321
    %v1662 = vpop.f32.mrf.mxu0
    %v1663 = vadd.f32 %v1650, %v1662
    %v1664 = vpop.f32.mrf.mxu0
    %1665 = vdwg.mxu0
    %1666 = vmatpush.bf16.msra.mxu0 %v1258
    %1667 = vmatpush.bf16.msra.mxu0 %v1254
    %1668 = vmatpush.bf16.msra.mxu0 %v1250
    %1669 = vmatpush.bf16.msra.mxu0 %v1246
    %1670 = vmatpush.bf16.msra.mxu0 %v1242
    %1671 = vmatpush.bf16.msra.mxu0 %v1238
    %1672 = vmatpush.bf16.msra.mxu0 %v1234
    %1673 = vmatpush.bf16.msra.mxu0 %v1230
    %1674 = vmatmul.bf16.gmra.mxu0 %v322
    %v1675 = vpop.f32.mrf.mxu0
    %v1676 = vadd.f32 %v1663, %v1675
    %v1677 = vpop.f32.mrf.mxu0
    %1678 = vdwg.mxu0
    %1679 = vmatpush.bf16.msra.mxu0 %v1290
    %1680 = vmatpush.bf16.msra.mxu0 %v1286
    %1681 = vmatpush.bf16.msra.mxu0 %v1282
    %1682 = vmatpush.bf16.msra.mxu0 %v1278
    %1683 = vmatpush.bf16.msra.mxu0 %v1274
    %1684 = vmatpush.bf16.msra.mxu0 %v1270
    %1685 = vmatpush.bf16.msra.mxu0 %v1266
    %1686 = vmatpush.bf16.msra.mxu0 %v1262
    %1687 = vmatmul.bf16.gmra.mxu0 %v323
    %v1688 = vpop.f32.mrf.mxu0
    %v1689 = vadd.f32 %v1676, %v1688
    %v1690 = vpop.f32.mrf.mxu0
    %1691 = vdwg.mxu0
    %1692 = vmatpush.bf16.msra.mxu0 %v1322
    %1693 = vmatpush.bf16.msra.mxu0 %v1318
    %1694 = vmatpush.bf16.msra.mxu0 %v1314
    %1695 = vmatpush.bf16.msra.mxu0 %v1310
    %1696 = vmatpush.bf16.msra.mxu0 %v1306
    %1697 = vmatpush.bf16.msra.mxu0 %v1302
    %1698 = vmatpush.bf16.msra.mxu0 %v1298
    %1699 = vmatpush.bf16.msra.mxu0 %v1294
    %1700 = vmatmul.bf16.gmra.mxu0 %v324
    %v1701 = vpop.f32.mrf.mxu0
    %v1702 = vadd.f32 %v1689, %v1701
    %v1703 = vpop.f32.mrf.mxu0
    %1704 = vdwg.mxu0
    %1705 = vmatpush.bf16.msra.mxu0 %v1354
    %1706 = vmatpush.bf16.msra.mxu0 %v1350
    %1707 = vmatpush.bf16.msra.mxu0 %v1346
    %1708 = vmatpush.bf16.msra.mxu0 %v1342
    %1709 = vmatpush.bf16.msra.mxu0 %v1338
    %1710 = vmatpush.bf16.msra.mxu0 %v1334
    %1711 = vmatpush.bf16.msra.mxu0 %v1330
    %1712 = vmatpush.bf16.msra.mxu0 %v1326
    %1713 = vmatmul.bf16.gmra.mxu0 %v325
    %v1714 = vpop.f32.mrf.mxu0
    %v1715 = vadd.f32 %v1702, %v1714
    %v1716 = vpop.f32.mrf.mxu0
    %1717 = vdwg.mxu0
    %1718 = vmatpush.bf16.msra.mxu0 %v1131
    %1719 = vmatpush.bf16.msra.mxu0 %v1127
    %1720 = vmatpush.bf16.msra.mxu0 %v1123
    %1721 = vmatpush.bf16.msra.mxu0 %v1119
    %1722 = vmatpush.bf16.msra.mxu0 %v1115
    %1723 = vmatpush.bf16.msra.mxu0 %v1111
    %1724 = vmatpush.bf16.msra.mxu0 %v1107
    %1725 = vmatpush.bf16.msra.mxu0 %v1103
    %1726 = vmatmul.bf16.gmra.mxu0 %v318
    %v1727 = vpop.f32.mrf.mxu0
    %v1728 = vadd.f32 %v299, %v1727
    %v1729 = vpop.f32.mrf.mxu0
    %1730 = vdwg.mxu0
    %1731 = vmatpush.bf16.msra.mxu0 %v1163
    %1732 = vmatpush.bf16.msra.mxu0 %v1159
    %1733 = vmatpush.bf16.msra.mxu0 %v1155
    %1734 = vmatpush.bf16.msra.mxu0 %v1151
    %1735 = vmatpush.bf16.msra.mxu0 %v1147
    %1736 = vmatpush.bf16.msra.mxu0 %v1143
    %1737 = vmatpush.bf16.msra.mxu0 %v1139
    %1738 = vmatpush.bf16.msra.mxu0 %v1135
    %1739 = vmatmul.bf16.gmra.mxu0 %v319
    %v1740 = vpop.f32.mrf.mxu0
    %v1741 = vadd.f32 %v1728, %v1740
    %v1742 = vpop.f32.mrf.mxu0
    %1743 = vdwg.mxu0
    %1744 = vmatpush.bf16.msra.mxu0 %v1195
    %1745 = vmatpush.bf16.msra.mxu0 %v1191
    %1746 = vmatpush.bf16.msra.mxu0 %v1187
    %1747 = vmatpush.bf16.msra.mxu0 %v1183
    %1748 = vmatpush.bf16.msra.mxu0 %v1179
    %1749 = vmatpush.bf16.msra.mxu0 %v1175
    %1750 = vmatpush.bf16.msra.mxu0 %v1171
    %1751 = vmatpush.bf16.msra.mxu0 %v1167
    %1752 = vmatmul.bf16.gmra.mxu0 %v320
    %v1753 = vpop.f32.mrf.mxu0
    %v1754 = vadd.f32 %v1741, %v1753
    %v1755 = vpop.f32.mrf.mxu0
    %1756 = vdwg.mxu0
    %1757 = vmatpush.bf16.msra.mxu0 %v1227
    %1758 = vmatpush.bf16.msra.mxu0 %v1223
    %1759 = vmatpush.bf16.msra.mxu0 %v1219
    %1760 = vmatpush.bf16.msra.mxu0 %v1215
    %1761 = vmatpush.bf16.msra.mxu0 %v1211
    %1762 = vmatpush.bf16.msra.mxu0 %v1207
    %1763 = vmatpush.bf16.msra.mxu0 %v1203
    %1764 = vmatpush.bf16.msra.mxu0 %v1199
    %1765 = vmatmul.bf16.gmra.mxu0 %v321
    %v1766 = vpop.f32.mrf.mxu0
    %v1767 = vadd.f32 %v1754, %v1766
    %v1768 = vpop.f32.mrf.mxu0
    %1769 = vdwg.mxu0
    %1770 = vmatpush.bf16.msra.mxu0 %v1259
    %1771 = vmatpush.bf16.msra.mxu0 %v1255
    %1772 = vmatpush.bf16.msra.mxu0 %v1251
    %1773 = vmatpush.bf16.msra.mxu0 %v1247
    %1774 = vmatpush.bf16.msra.mxu0 %v1243
    %1775 = vmatpush.bf16.msra.mxu0 %v1239
    %1776 = vmatpush.bf16.msra.mxu0 %v1235
    %1777 = vmatpush.bf16.msra.mxu0 %v1231
    %1778 = vmatmul.bf16.gmra.mxu0 %v322
    %v1779 = vpop.f32.mrf.mxu0
    %v1780 = vadd.f32 %v1767, %v1779
    %v1781 = vpop.f32.mrf.mxu0
    %1782 = vdwg.mxu0
    %1783 = vmatpush.bf16.msra.mxu0 %v1291
    %1784 = vmatpush.bf16.msra.mxu0 %v1287
    %1785 = vmatpush.bf16.msra.mxu0 %v1283
    %1786 = vmatpush.bf16.msra.mxu0 %v1279
    %1787 = vmatpush.bf16.msra.mxu0 %v1275
    %1788 = vmatpush.bf16.msra.mxu0 %v1271
    %1789 = vmatpush.bf16.msra.mxu0 %v1267
    %1790 = vmatpush.bf16.msra.mxu0 %v1263
    %1791 = vmatmul.bf16.gmra.mxu0 %v323
    %v1792 = vpop.f32.mrf.mxu0
    %v1793 = vadd.f32 %v1780, %v1792
    %v1794 = vpop.f32.mrf.mxu0
    %1795 = vdwg.mxu0
    %1796 = vmatpush.bf16.msra.mxu0 %v1323
    %1797 = vmatpush.bf16.msra.mxu0 %v1319
    %1798 = vmatpush.bf16.msra.mxu0 %v1315
    %1799 = vmatpush.bf16.msra.mxu0 %v1311
    %1800 = vmatpush.bf16.msra.mxu0 %v1307
    %1801 = vmatpush.bf16.msra.mxu0 %v1303
    %1802 = vmatpush.bf16.msra.mxu0 %v1299
    %1803 = vmatpush.bf16.msra.mxu0 %v1295
    %1804 = vmatmul.bf16.gmra.mxu0 %v324
    %v1805 = vpop.f32.mrf.mxu0
    %v1806 = vadd.f32 %v1793, %v1805
    %v1807 = vpop.f32.mrf.mxu0
    %1808 = vdwg.mxu0
    %1809 = vmatpush.bf16.msra.mxu0 %v1355
    %1810 = vmatpush.bf16.msra.mxu0 %v1351
    %1811 = vmatpush.bf16.msra.mxu0 %v1347
    %1812 = vmatpush.bf16.msra.mxu0 %v1343
    %1813 = vmatpush.bf16.msra.mxu0 %v1339
    %1814 = vmatpush.bf16.msra.mxu0 %v1335
    %1815 = vmatpush.bf16.msra.mxu0 %v1331
    %1816 = vmatpush.bf16.msra.mxu0 %v1327
    %1817 = vmatmul.bf16.gmra.mxu0 %v325
    %v1818 = vpop.f32.mrf.mxu0
    %v1819 = vadd.f32 %v1806, %v1818
    %v1820 = vpop.f32.mrf.mxu0
    %1821 = vdwg.mxu0
    %1822 = vmatpush.bf16.msra.mxu0 %v1132
    %1823 = vmatpush.bf16.msra.mxu0 %v1128
    %1824 = vmatpush.bf16.msra.mxu0 %v1124
    %1825 = vmatpush.bf16.msra.mxu0 %v1120
    %1826 = vmatpush.bf16.msra.mxu0 %v1116
    %1827 = vmatpush.bf16.msra.mxu0 %v1112
    %1828 = vmatpush.bf16.msra.mxu0 %v1108
    %1829 = vmatpush.bf16.msra.mxu0 %v1104
    %1830 = vmatmul.bf16.gmra.mxu0 %v318
    %v1831 = vpop.f32.mrf.mxu0
    %v1832 = vadd.f32 %v300, %v1831
    %v1833 = vpop.f32.mrf.mxu0
    %1834 = vdwg.mxu0
    %1835 = vmatpush.bf16.msra.mxu0 %v1164
    %1836 = vmatpush.bf16.msra.mxu0 %v1160
    %1837 = vmatpush.bf16.msra.mxu0 %v1156
    %1838 = vmatpush.bf16.msra.mxu0 %v1152
    %1839 = vmatpush.bf16.msra.mxu0 %v1148
    %1840 = vmatpush.bf16.msra.mxu0 %v1144
    %1841 = vmatpush.bf16.msra.mxu0 %v1140
    %1842 = vmatpush.bf16.msra.mxu0 %v1136
    %1843 = vmatmul.bf16.gmra.mxu0 %v319
    %v1844 = vpop.f32.mrf.mxu0
    %v1845 = vadd.f32 %v1832, %v1844
    %v1846 = vpop.f32.mrf.mxu0
    %1847 = vdwg.mxu0
    %1848 = vmatpush.bf16.msra.mxu0 %v1196
    %1849 = vmatpush.bf16.msra.mxu0 %v1192
    %1850 = vmatpush.bf16.msra.mxu0 %v1188
    %1851 = vmatpush.bf16.msra.mxu0 %v1184
    %1852 = vmatpush.bf16.msra.mxu0 %v1180
    %1853 = vmatpush.bf16.msra.mxu0 %v1176
    %1854 = vmatpush.bf16.msra.mxu0 %v1172
    %1855 = vmatpush.bf16.msra.mxu0 %v1168
    %1856 = vmatmul.bf16.gmra.mxu0 %v320
    %v1857 = vpop.f32.mrf.mxu0
    %v1858 = vadd.f32 %v1845, %v1857
    %v1859 = vpop.f32.mrf.mxu0
    %1860 = vdwg.mxu0
    %1861 = vmatpush.bf16.msra.mxu0 %v1228
    %1862 = vmatpush.bf16.msra.mxu0 %v1224
    %1863 = vmatpush.bf16.msra.mxu0 %v1220
    %1864 = vmatpush.bf16.msra.mxu0 %v1216
    %1865 = vmatpush.bf16.msra.mxu0 %v1212
    %1866 = vmatpush.bf16.msra.mxu0 %v1208
    %1867 = vmatpush.bf16.msra.mxu0 %v1204
    %1868 = vmatpush.bf16.msra.mxu0 %v1200
    %1869 = vmatmul.bf16.gmra.mxu0 %v321
    %v1870 = vpop.f32.mrf.mxu0
    %v1871 = vadd.f32 %v1858, %v1870
    %v1872 = vpop.f32.mrf.mxu0
    %1873 = vdwg.mxu0
    %1874 = vmatpush.bf16.msra.mxu0 %v1260
    %1875 = vmatpush.bf16.msra.mxu0 %v1256
    %1876 = vmatpush.bf16.msra.mxu0 %v1252
    %1877 = vmatpush.bf16.msra.mxu0 %v1248
    %1878 = vmatpush.bf16.msra.mxu0 %v1244
    %1879 = vmatpush.bf16.msra.mxu0 %v1240
    %1880 = vmatpush.bf16.msra.mxu0 %v1236
    %1881 = vmatpush.bf16.msra.mxu0 %v1232
    %1882 = vmatmul.bf16.gmra.mxu0 %v322
    %v1883 = vpop.f32.mrf.mxu0
    %v1884 = vadd.f32 %v1871, %v1883
    %v1885 = vpop.f32.mrf.mxu0
    %1886 = vdwg.mxu0
    %1887 = vmatpush.bf16.msra.mxu0 %v1292
    %1888 = vmatpush.bf16.msra.mxu0 %v1288
    %1889 = vmatpush.bf16.msra.mxu0 %v1284
    %1890 = vmatpush.bf16.msra.mxu0 %v1280
    %1891 = vmatpush.bf16.msra.mxu0 %v1276
    %1892 = vmatpush.bf16.msra.mxu0 %v1272
    %1893 = vmatpush.bf16.msra.mxu0 %v1268
    %1894 = vmatpush.bf16.msra.mxu0 %v1264
    %1895 = vmatmul.bf16.gmra.mxu0 %v323
    %v1896 = vpop.f32.mrf.mxu0
    %v1897 = vadd.f32 %v1884, %v1896
    %v1898 = vpop.f32.mrf.mxu0
    %1899 = vdwg.mxu0
    %1900 = vmatpush.bf16.msra.mxu0 %v1324
    %1901 = vmatpush.bf16.msra.mxu0 %v1320
    %1902 = vmatpush.bf16.msra.mxu0 %v1316
    %1903 = vmatpush.bf16.msra.mxu0 %v1312
    %1904 = vmatpush.bf16.msra.mxu0 %v1308
    %1905 = vmatpush.bf16.msra.mxu0 %v1304
    %1906 = vmatpush.bf16.msra.mxu0 %v1300
    %1907 = vmatpush.bf16.msra.mxu0 %v1296
    %1908 = vmatmul.bf16.gmra.mxu0 %v324
    %v1909 = vpop.f32.mrf.mxu0
    %v1910 = vadd.f32 %v1897, %v1909
    %v1911 = vpop.f32.mrf.mxu0
    %1912 = vdwg.mxu0
    %1913 = vmatpush.bf16.msra.mxu0 %v1356
    %1914 = vmatpush.bf16.msra.mxu0 %v1352
    %1915 = vmatpush.bf16.msra.mxu0 %v1348
    %1916 = vmatpush.bf16.msra.mxu0 %v1344
    %1917 = vmatpush.bf16.msra.mxu0 %v1340
    %1918 = vmatpush.bf16.msra.mxu0 %v1336
    %1919 = vmatpush.bf16.msra.mxu0 %v1332
    %1920 = vmatpush.bf16.msra.mxu0 %v1328
    %1921 = vmatmul.bf16.gmra.mxu0 %v325
    %v1922 = vpop.f32.mrf.mxu0
    %v1923 = vadd.f32 %v1910, %v1922
    %v1924 = vpop.f32.mrf.mxu0
    %1925 = vdwg.mxu0
    %1926 = vmatpush.bf16.msra.mxu0 %v1133
    %1927 = vmatpush.bf16.msra.mxu0 %v1129
    %1928 = vmatpush.bf16.msra.mxu0 %v1125
    %1929 = vmatpush.bf16.msra.mxu0 %v1121
    %1930 = vmatpush.bf16.msra.mxu0 %v1117
    %1931 = vmatpush.bf16.msra.mxu0 %v1113
    %1932 = vmatpush.bf16.msra.mxu0 %v1109
    %1933 = vmatpush.bf16.msra.mxu0 %v1105
    %1934 = vmatmul.bf16.gmra.mxu0 %v318
    %v1935 = vpop.f32.mrf.mxu0
    %v1936 = vadd.f32 %v301, %v1935
    %v1937 = vpop.f32.mrf.mxu0
    %1938 = vdwg.mxu0
    %1939 = vmatpush.bf16.msra.mxu0 %v1165
    %1940 = vmatpush.bf16.msra.mxu0 %v1161
    %1941 = vmatpush.bf16.msra.mxu0 %v1157
    %1942 = vmatpush.bf16.msra.mxu0 %v1153
    %1943 = vmatpush.bf16.msra.mxu0 %v1149
    %1944 = vmatpush.bf16.msra.mxu0 %v1145
    %1945 = vmatpush.bf16.msra.mxu0 %v1141
    %1946 = vmatpush.bf16.msra.mxu0 %v1137
    %1947 = vmatmul.bf16.gmra.mxu0 %v319
    %v1948 = vpop.f32.mrf.mxu0
    %v1949 = vadd.f32 %v1936, %v1948
    %v1950 = vpop.f32.mrf.mxu0
    %1951 = vdwg.mxu0
    %1952 = vmatpush.bf16.msra.mxu0 %v1197
    %1953 = vmatpush.bf16.msra.mxu0 %v1193
    %1954 = vmatpush.bf16.msra.mxu0 %v1189
    %1955 = vmatpush.bf16.msra.mxu0 %v1185
    %1956 = vmatpush.bf16.msra.mxu0 %v1181
    %1957 = vmatpush.bf16.msra.mxu0 %v1177
    %1958 = vmatpush.bf16.msra.mxu0 %v1173
    %1959 = vmatpush.bf16.msra.mxu0 %v1169
    %1960 = vmatmul.bf16.gmra.mxu0 %v320
    %v1961 = vpop.f32.mrf.mxu0
    %v1962 = vadd.f32 %v1949, %v1961
    %v1963 = vpop.f32.mrf.mxu0
    %1964 = vdwg.mxu0
    %1965 = vmatpush.bf16.msra.mxu0 %v1229
    %1966 = vmatpush.bf16.msra.mxu0 %v1225
    %1967 = vmatpush.bf16.msra.mxu0 %v1221
    %1968 = vmatpush.bf16.msra.mxu0 %v1217
    %1969 = vmatpush.bf16.msra.mxu0 %v1213
    %1970 = vmatpush.bf16.msra.mxu0 %v1209
    %1971 = vmatpush.bf16.msra.mxu0 %v1205
    %1972 = vmatpush.bf16.msra.mxu0 %v1201
    %1973 = vmatmul.bf16.gmra.mxu0 %v321
    %v1974 = vpop.f32.mrf.mxu0
    %v1975 = vadd.f32 %v1962, %v1974
    %v1976 = vpop.f32.mrf.mxu0
    %1977 = vdwg.mxu0
    %1978 = vmatpush.bf16.msra.mxu0 %v1261
    %1979 = vmatpush.bf16.msra.mxu0 %v1257
    %1980 = vmatpush.bf16.msra.mxu0 %v1253
    %1981 = vmatpush.bf16.msra.mxu0 %v1249
    %1982 = vmatpush.bf16.msra.mxu0 %v1245
    %1983 = vmatpush.bf16.msra.mxu0 %v1241
    %1984 = vmatpush.bf16.msra.mxu0 %v1237
    %1985 = vmatpush.bf16.msra.mxu0 %v1233
    %1986 = vmatmul.bf16.gmra.mxu0 %v322
    %v1987 = vpop.f32.mrf.mxu0
    %v1988 = vadd.f32 %v1975, %v1987
    %v1989 = vpop.f32.mrf.mxu0
    %1990 = vdwg.mxu0
    %1991 = vmatpush.bf16.msra.mxu0 %v1293
    %1992 = vmatpush.bf16.msra.mxu0 %v1289
    %1993 = vmatpush.bf16.msra.mxu0 %v1285
    %1994 = vmatpush.bf16.msra.mxu0 %v1281
    %1995 = vmatpush.bf16.msra.mxu0 %v1277
    %1996 = vmatpush.bf16.msra.mxu0 %v1273
    %1997 = vmatpush.bf16.msra.mxu0 %v1269
    %1998 = vmatpush.bf16.msra.mxu0 %v1265
    %1999 = vmatmul.bf16.gmra.mxu0 %v323
    %v2000 = vpop.f32.mrf.mxu0
    %v2001 = vadd.f32 %v1988, %v2000
    %v2002 = vpop.f32.mrf.mxu0
    %2003 = vdwg.mxu0
    %2004 = vmatpush.bf16.msra.mxu0 %v1325
    %2005 = vmatpush.bf16.msra.mxu0 %v1321
    %2006 = vmatpush.bf16.msra.mxu0 %v1317
    %2007 = vmatpush.bf16.msra.mxu0 %v1313
    %2008 = vmatpush.bf16.msra.mxu0 %v1309
    %2009 = vmatpush.bf16.msra.mxu0 %v1305
    %2010 = vmatpush.bf16.msra.mxu0 %v1301
    %2011 = vmatpush.bf16.msra.mxu0 %v1297
    %2012 = vmatmul.bf16.gmra.mxu0 %v324
    %v2013 = vpop.f32.mrf.mxu0
    %v2014 = vadd.f32 %v2001, %v2013
    %v2015 = vpop.f32.mrf.mxu0
    %2016 = vdwg.mxu0
    %2017 = vmatpush.bf16.msra.mxu0 %v1357
    %2018 = vmatpush.bf16.msra.mxu0 %v1353
    %2019 = vmatpush.bf16.msra.mxu0 %v1349
    %2020 = vmatpush.bf16.msra.mxu0 %v1345
    %2021 = vmatpush.bf16.msra.mxu0 %v1341
    %2022 = vmatpush.bf16.msra.mxu0 %v1337
    %2023 = vmatpush.bf16.msra.mxu0 %v1333
    %2024 = vmatpush.bf16.msra.mxu0 %v1329
    %2025 = vmatmul.bf16.gmra.mxu0 %v325
    %v2026 = vpop.f32.mrf.mxu0
    %v2027 = vadd.f32 %v2014, %v2026
    %v2028 = vpop.f32.mrf.mxu0
    %2029 = vdwg.mxu0
    %v2030 = vmax.f32 %v1715, 0.0
    %v2031 = vmax.f32 %v1819, 0.0
    %v2032 = vmax.f32 %v1923, 0.0
    %v2033 = vmax.f32 %v2027, 0.0
    %v2034 = vpack.c.bf16 %v2030, %v2030
    %v2035 = vpack.c.bf16 %v2031, %v2031
    %v2036 = vpack.c.bf16 %v2032, %v2032
    %v2037 = vpack.c.bf16 %v2033, %v2033
    %v2038 = vld [vmem:[%s3] sm:$0xf]
    %v2039 = vld [vmem:[%s3 + $0x4] sm:$0xf]
    %v2040 = vld [vmem:[%s3 + $0x8] sm:$0xf]
    %v2041 = vld [vmem:[%s3 + $0xc] sm:$0xf]
    %v2042 = vld [vmem:[%s3 + $0x10] sm:$0xf]
    %v2043 = vld [vmem:[%s3 + $0x14] sm:$0xf]
    %v2044 = vld [vmem:[%s3 + $0x18] sm:$0xf]
    %v2045 = vld [vmem:[%s3 + $0x1c] sm:$0xf]
    %v2046 = vld [vmem:[%s3 + $0x20] sm:$0xf]
    %v2047 = vld [vmem:[%s3 + $0x24] sm:$0xf]
    %v2048 = vld [vmem:[%s3 + $0x28] sm:$0xf]
    %v2049 = vld [vmem:[%s3 + $0x2c] sm:$0xf]
    %v2050 = vld [vmem:[%s3 + $0x30] sm:$0xf]
    %v2051 = vld [vmem:[%s3 + $0x34] sm:$0xf]
    %v2052 = vld [vmem:[%s3 + $0x38] sm:$0xf]
    %v2053 = vld [vmem:[%s3 + $0x3c] sm:$0xf]
    %v2054 = vld [vmem:[%s3 + $0x40] sm:$0xf]
    %v2055 = vld [vmem:[%s3 + $0x44] sm:$0xf]
    %v2056 = vld [vmem:[%s3 + $0x48] sm:$0xf]
    %v2057 = vld [vmem:[%s3 + $0x4c] sm:$0xf]
    %v2058 = vld [vmem:[%s3 + $0x50] sm:$0xf]
    %v2059 = vld [vmem:[%s3 + $0x54] sm:$0xf]
    %v2060 = vld [vmem:[%s3 + $0x58] sm:$0xf]
    %v2061 = vld [vmem:[%s3 + $0x5c] sm:$0xf]
    %v2062 = vld [vmem:[%s3 + $0x60] sm:$0xf]
    %v2063 = vld [vmem:[%s3 + $0x64] sm:$0xf]
    %v2064 = vld [vmem:[%s3 + $0x68] sm:$0xf]
    %v2065 = vld [vmem:[%s3 + $0x6c] sm:$0xf]
    %v2066 = vld [vmem:[%s3 + $0x70] sm:$0xf]
    %v2067 = vld [vmem:[%s3 + $0x74] sm:$0xf]
    %v2068 = vld [vmem:[%s3 + $0x78] sm:$0xf]
    %v2069 = vld [vmem:[%s3 + $0x7c] sm:$0xf]
    %v2070 = vld [vmem:[%s3 + $0x80] sm:$0xf]
    %v2071 = vld [vmem:[%s3 + $0x84] sm:$0xf]
    %v2072 = vld [vmem:[%s3 + $0x88] sm:$0xf]
    %v2073 = vld [vmem:[%s3 + $0x8c] sm:$0xf]
    %v2074 = vld [vmem:[%s3 + $0x90] sm:$0xf]
    %v2075 = vld [vmem:[%s3 + $0x94] sm:$0xf]
    %v2076 = vld [vmem:[%s3 + $0x98] sm:$0xf]
    %v2077 = vld [vmem:[%s3 + $0x9c] sm:$0xf]
    %v2078 = vld [vmem:[%s3 + $0xa0] sm:$0xf]
    %v2079 = vld [vmem:[%s3 + $0xa4] sm:$0xf]
    %v2080 = vld [vmem:[%s3 + $0xa8] sm:$0xf]
    %v2081 = vld [vmem:[%s3 + $0xac] sm:$0xf]
    %v2082 = vld [vmem:[%s3 + $0xb0] sm:$0xf]
    %v2083 = vld [vmem:[%s3 + $0xb4] sm:$0xf]
    %v2084 = vld [vmem:[%s3 + $0xb8] sm:$0xf]
    %v2085 = vld [vmem:[%s3 + $0xbc] sm:$0xf]
    %v2086 = vld [vmem:[%s3 + $0xc0] sm:$0xf]
    %v2087 = vld [vmem:[%s3 + $0xc4] sm:$0xf]
    %v2088 = vld [vmem:[%s3 + $0xc8] sm:$0xf]
    %v2089 = vld [vmem:[%s3 + $0xcc] sm:$0xf]
    %v2090 = vld [vmem:[%s3 + $0xd0] sm:$0xf]
    %v2091 = vld [vmem:[%s3 + $0xd4] sm:$0xf]
    %v2092 = vld [vmem:[%s3 + $0xd8] sm:$0xf]
    %v2093 = vld [vmem:[%s3 + $0xdc] sm:$0xf]
    %v2094 = vld [vmem:[%s3 + $0xe0] sm:$0xf]
    %v2095 = vld [vmem:[%s3 + $0xe4] sm:$0xf]
    %v2096 = vld [vmem:[%s3 + $0xe8] sm:$0xf]
    %v2097 = vld [vmem:[%s3 + $0xec] sm:$0xf]
    %v2098 = vld [vmem:[%s3 + $0xf0] sm:$0xf]
    %v2099 = vld [vmem:[%s3 + $0xf4] sm:$0xf]
    %v2100 = vld [vmem:[%s3 + $0xf8] sm:$0xf]
    %v2101 = vld [vmem:[%s3 + $0xfc] sm:$0xf]
    %v2102 = vld [vmem:[%s4] sm:$0x1]
    %v2104 = vperm.slane %v2102, 0
    %v2170 = vunpack.c.l.b16 %v2038
    %v2171 = vunpack.c.l.b16 %v2039
    %v2172 = vunpack.c.l.b16 %v2040
    %v2173 = vunpack.c.l.b16 %v2041
    %v2174 = vunpack.c.l.b16 %v2042
    %v2175 = vunpack.c.l.b16 %v2043
    %v2176 = vunpack.c.l.b16 %v2044
    %v2177 = vunpack.c.l.b16 %v2045
    %v2178 = vunpack.c.l.b16 %v2046
    %v2179 = vunpack.c.l.b16 %v2047
    %v2180 = vunpack.c.l.b16 %v2048
    %v2181 = vunpack.c.l.b16 %v2049
    %v2182 = vunpack.c.l.b16 %v2050
    %v2183 = vunpack.c.l.b16 %v2051
    %v2184 = vunpack.c.l.b16 %v2052
    %v2185 = vunpack.c.l.b16 %v2053
    %v2186 = vunpack.c.l.b16 %v2054
    %v2187 = vunpack.c.l.b16 %v2055
    %v2188 = vunpack.c.l.b16 %v2056
    %v2189 = vunpack.c.l.b16 %v2057
    %v2190 = vunpack.c.l.b16 %v2058
    %v2191 = vunpack.c.l.b16 %v2059
    %v2192 = vunpack.c.l.b16 %v2060
    %v2193 = vunpack.c.l.b16 %v2061
    %v2194 = vunpack.c.l.b16 %v2062
    %v2195 = vunpack.c.l.b16 %v2063
    %v2196 = vunpack.c.l.b16 %v2064
    %v2197 = vunpack.c.l.b16 %v2065
    %v2198 = vunpack.c.l.b16 %v2066
    %v2199 = vunpack.c.l.b16 %v2067
    %v2200 = vunpack.c.l.b16 %v2068
    %v2201 = vunpack.c.l.b16 %v2069
    %v2202 = vunpack.c.l.b16 %v2070
    %v2203 = vunpack.c.l.b16 %v2071
    %v2204 = vunpack.c.l.b16 %v2072
    %v2205 = vunpack.c.l.b16 %v2073
    %v2206 = vunpack.c.l.b16 %v2074
    %v2207 = vunpack.c.l.b16 %v2075
    %v2208 = vunpack.c.l.b16 %v2076
    %v2209 = vunpack.c.l.b16 %v2077
    %v2210 = vunpack.c.l.b16 %v2078
    %v2211 = vunpack.c.l.b16 %v2079
    %v2212 = vunpack.c.l.b16 %v2080
    %v2213 = vunpack.c.l.b16 %v2081
    %v2214 = vunpack.c.l.b16 %v2082
    %v2215 = vunpack.c.l.b16 %v2083
    %v2216 = vunpack.c.l.b16 %v2084
    %v2217 = vunpack.c.l.b16 %v2085
    %v2218 = vunpack.c.l.b16 %v2086
    %v2219 = vunpack.c.l.b16 %v2087
    %v2220 = vunpack.c.l.b16 %v2088
    %v2221 = vunpack.c.l.b16 %v2089
    %v2222 = vunpack.c.l.b16 %v2090
    %v2223 = vunpack.c.l.b16 %v2091
    %v2224 = vunpack.c.l.b16 %v2092
    %v2225 = vunpack.c.l.b16 %v2093
    %v2226 = vunpack.c.l.b16 %v2094
    %v2227 = vunpack.c.l.b16 %v2095
    %v2228 = vunpack.c.l.b16 %v2096
    %v2229 = vunpack.c.l.b16 %v2097
    %v2230 = vunpack.c.l.b16 %v2098
    %v2231 = vunpack.c.l.b16 %v2099
    %v2232 = vunpack.c.l.b16 %v2100
    %v2233 = vunpack.c.l.b16 %v2101
    %v2234 = vpack.c.b16 %v2171, %v2170
    %v2235 = vpack.c.b16 %v2173, %v2172
    %v2236 = vpack.c.b16 %v2175, %v2174
    %v2237 = vpack.c.b16 %v2177, %v2176
    %v2238 = vpack.c.b16 %v2179, %v2178
    %v2239 = vpack.c.b16 %v2181, %v2180
    %v2240 = vpack.c.b16 %v2183, %v2182
    %v2241 = vpack.c.b16 %v2185, %v2184
    %v2242 = vpack.c.b16 %v2187, %v2186
    %v2243 = vpack.c.b16 %v2189, %v2188
    %v2244 = vpack.c.b16 %v2191, %v2190
    %v2245 = vpack.c.b16 %v2193, %v2192
    %v2246 = vpack.c.b16 %v2195, %v2194
    %v2247 = vpack.c.b16 %v2197, %v2196
    %v2248 = vpack.c.b16 %v2199, %v2198
    %v2249 = vpack.c.b16 %v2201, %v2200
    %v2250 = vpack.c.b16 %v2203, %v2202
    %v2251 = vpack.c.b16 %v2205, %v2204
    %v2252 = vpack.c.b16 %v2207, %v2206
    %v2253 = vpack.c.b16 %v2209, %v2208
    %v2254 = vpack.c.b16 %v2211, %v2210
    %v2255 = vpack.c.b16 %v2213, %v2212
    %v2256 = vpack.c.b16 %v2215, %v2214
    %v2257 = vpack.c.b16 %v2217, %v2216
    %v2258 = vpack.c.b16 %v2219, %v2218
    %v2259 = vpack.c.b16 %v2221, %v2220
    %v2260 = vpack.c.b16 %v2223, %v2222
    %v2261 = vpack.c.b16 %v2225, %v2224
    %v2262 = vpack.c.b16 %v2227, %v2226
    %v2263 = vpack.c.b16 %v2229, %v2228
    %v2264 = vpack.c.b16 %v2231, %v2230
    %v2265 = vpack.c.b16 %v2233, %v2232
    %2298 = vmatpush.bf16.msra.mxu0 %v2241
    %2299 = vmatpush.bf16.msra.mxu0 %v2240
    %2300 = vmatpush.bf16.msra.mxu0 %v2239
    %2301 = vmatpush.bf16.msra.mxu0 %v2238
    %2302 = vmatpush.bf16.msra.mxu0 %v2237
    %2303 = vmatpush.bf16.msra.mxu0 %v2236
    %2304 = vmatpush.bf16.msra.mxu0 %v2235
    %2305 = vmatpush.bf16.msra.mxu0 %v2234
    %2306 = vmatmul.bf16.gmra.mxu0 %v2034
    %v2307 = vpop.f32.mrf.mxu0
    %v2308 = vadd.f32 %v2104, %v2307
    %v2309 = vpop.f32.mrf.mxu0
    %2310 = vdwg.mxu0
    %2311 = vmatpush.bf16.msra.mxu0 %v2249
    %2312 = vmatpush.bf16.msra.mxu0 %v2248
    %2313 = vmatpush.bf16.msra.mxu0 %v2247
    %2314 = vmatpush.bf16.msra.mxu0 %v2246
    %2315 = vmatpush.bf16.msra.mxu0 %v2245
    %2316 = vmatpush.bf16.msra.mxu0 %v2244
    %2317 = vmatpush.bf16.msra.mxu0 %v2243
    %2318 = vmatpush.bf16.msra.mxu0 %v2242
    %2319 = vmatmul.bf16.gmra.mxu0 %v2035
    %v2320 = vpop.f32.mrf.mxu0
    %v2321 = vadd.f32 %v2308, %v2320
    %v2322 = vpop.f32.mrf.mxu0
    %2323 = vdwg.mxu0
    %2324 = vmatpush.bf16.msra.mxu0 %v2257
    %2325 = vmatpush.bf16.msra.mxu0 %v2256
    %2326 = vmatpush.bf16.msra.mxu0 %v2255
    %2327 = vmatpush.bf16.msra.mxu0 %v2254
    %2328 = vmatpush.bf16.msra.mxu0 %v2253
    %2329 = vmatpush.bf16.msra.mxu0 %v2252
    %2330 = vmatpush.bf16.msra.mxu0 %v2251
    %2331 = vmatpush.bf16.msra.mxu0 %v2250
    %2332 = vmatmul.bf16.gmra.mxu0 %v2036
    %v2333 = vpop.f32.mrf.mxu0
    %v2334 = vadd.f32 %v2321, %v2333
    %v2335 = vpop.f32.mrf.mxu0
    %2336 = vdwg.mxu0
    %2337 = vmatpush.bf16.msra.mxu0 %v2265
    %2338 = vmatpush.bf16.msra.mxu0 %v2264
    %2339 = vmatpush.bf16.msra.mxu0 %v2263
    %2340 = vmatpush.bf16.msra.mxu0 %v2262
    %2341 = vmatpush.bf16.msra.mxu0 %v2261
    %2342 = vmatpush.bf16.msra.mxu0 %v2260
    %2343 = vmatpush.bf16.msra.mxu0 %v2259
    %2344 = vmatpush.bf16.msra.mxu0 %v2258
    %2345 = vmatmul.bf16.gmra.mxu0 %v2037
    %v2346 = vpop.f32.mrf.mxu0
    %v2347 = vadd.f32 %v2334, %v2346
    %v2348 = vpop.f32.mrf.mxu0
    %2349 = vdwg.mxu0
    %2350 = vmax.xlane.f32.xlu0 %v2347
    %v2351 = vpop.xlane.xlu0 %2350
    %v2352 = vsub.f32 %v2347, %v2351
    %v2353 = vmul.f32 %v2352, 1.442695
    %v2354 = vpow.pop %v2353
    %2355 = vadd.xlane.f32.xlu0 %v2354
    %v2356 = vpop.xlane.xlu0 %2355
    %v2357 = vlog2.pop %v2356
    %v2358 = vmul.f32 %v2357, 0.6931472
    %v2359 = vsub.f32 %v2352, %v2358
    %2360 = vst [vmem:[%s5] sm:$0xff] %v2359
    // Predicated region
    $region26: #{net_forward.3} parent=1 // pred_check
      _
    $region27: #{net_forward.3} parent=1 // pred_check_branch
      %2362 = sbr.rel (0) target = $region29
    $region28: #{net_forward.3} parent=1 // pred_region
      _
    $region29: #{net_forward.3} parent=1 // pred_fallthru
      _
    // Predicated region
    $region30: #{net_forward.3} parent=1 // pred_check
      _
    $region31: #{net_forward.3} parent=1 // pred_check_branch
      %2364 = sbr.rel (0) target = $region33
    $region32: #{net_forward.3} parent=1 // pred_region
      _
    $region33: #{net_forward.3} parent=1 // pred_fallthru
      _
    %2365 = vsyncpa [#allocation3], 1

// kernel: net_forward.2
$region0: #{net_forward.2}
  #allocation0 [shape = 'u32[]', space=smem, size = 0x4, offset = 0x4, fixed_abs, tag = 'smem constant byte address 0x4 - core index']
  #allocation1 [shape = 'u32[72,128]{1,0:T(1,128)}', space=vmem, size = 0x9000, scoped, tag = 'internal scratch']
  %s0 = inlined_call_operand.vmem [shape: bf16[4,48,256], index: 0, kind: input, shape index: {}]
  %s1 = inlined_call_operand.vmem [shape: bf16[256,512], index: 1, kind: input, shape index: {}]
  %s2 = inlined_call_operand.vmem [shape: f32[1,256], index: 2, kind: input, shape index: {}]
  %s3 = inlined_call_operand.vmem [shape: bf16[5,256,512], index: 3, kind: input, shape index: {}]
  %s4 = inlined_call_operand.vmem [shape: f32[1,256], index: 4, kind: input, shape index: {}]
  %s5 = inlined_call_operand.vmem [shape: bf16[8,1024], index: 5, kind: output, shape index: {}]
  %s6 = sld [smem:[#allocation0]]
  $region30: #{net_forward.2} parent=0
    _
  %s8 = ssub.s32 1, %s6
  %s9 = scalar_select 0, %s8, %s6
  // Predicated region
  $region2: #{net_forward.2} parent=0 // pred_check
    _
  $region3: #{net_forward.2} parent=0 // pred_check_branch
    %11 = sbr.rel (0) target = $region5
  $region4: #{net_forward.2} parent=0 // pred_region
    _
  $region5: #{net_forward.2} parent=0 // pred_fallthru
    _
  // Predicated region
  $region6: #{net_forward.2} parent=0 // pred_check
    _
  $region7: #{net_forward.2} parent=0 // pred_check_branch
    %13 = sbr.rel (0) target = $region9
  $region8: #{net_forward.2} parent=0 // pred_region
    _
  $region9: #{net_forward.2} parent=0 // pred_fallthru
    _
  // Predicated region
  $region10: #{net_forward.2} parent=0 // pred_check
    _
  $region11: #{net_forward.2} parent=0 // pred_check_branch
    %15 = sbr.rel (0) target = $region13
  $region12: #{net_forward.2} parent=0 // pred_region
    _
  $region13: #{net_forward.2} parent=0 // pred_fallthru
    _
  // Predicated region
  $region14: #{net_forward.2} parent=0 // pred_check
    _
  $region15: #{net_forward.2} parent=0 // pred_check_branch
    %17 = sbr.rel (0) target = $region17
  $region16: #{net_forward.2} parent=0 // pred_region
    _
  $region17: #{net_forward.2} parent=0 // pred_fallthru
    _
  // Predicated region
  $region18: #{net_forward.2} parent=0 // pred_check
    _
  $region19: #{net_forward.2} parent=0 // pred_check_branch
    %19 = sbr.rel (0) target = $region21
  $region20: #{net_forward.2} parent=0 // pred_region
    _
  $region21: #{net_forward.2} parent=0 // pred_fallthru
    _
  %v20 = vld [vmem:[%s1] sm:$0xff]
  %v21 = vld [vmem:[%s1 + $0x8] sm:$0xff]
  %v22 = vld [vmem:[%s1 + $0x10] sm:$0xff]
  %v23 = vld [vmem:[%s1 + $0x18] sm:$0xff]
  %v24 = vld [vmem:[%s1 + $0x20] sm:$0xff]
  %v25 = vld [vmem:[%s1 + $0x28] sm:$0xff]
  %v26 = vld [vmem:[%s1 + $0x30] sm:$0xff]
  %v27 = vld [vmem:[%s1 + $0x38] sm:$0xff]
  %v28 = vld [vmem:[%s1 + $0x40] sm:$0xff]
  %v29 = vld [vmem:[%s1 + $0x48] sm:$0xff]
  %v30 = vld [vmem:[%s1 + $0x50] sm:$0xff]
  %v31 = vld [vmem:[%s1 + $0x58] sm:$0xff]
  %v32 = vld [vmem:[%s1 + $0x60] sm:$0xff]
  %v33 = vld [vmem:[%s1 + $0x68] sm:$0xff]
  %v34 = vld [vmem:[%s1 + $0x70] sm:$0xff]
  %v35 = vld [vmem:[%s1 + $0x78] sm:$0xff]
  %v36 = vld [vmem:[%s1 + $0x80] sm:$0xff]
  %v37 = vld [vmem:[%s1 + $0x88] sm:$0xff]
  %v38 = vld [vmem:[%s1 + $0x90] sm:$0xff]
  %v39 = vld [vmem:[%s1 + $0x98] sm:$0xff]
  %v40 = vld [vmem:[%s1 + $0xa0] sm:$0xff]
  %v41 = vld [vmem:[%s1 + $0xa8] sm:$0xff]
  %v42 = vld [vmem:[%s1 + $0xb0] sm:$0xff]
  %v43 = vld [vmem:[%s1 + $0xb8] sm:$0xff]
  %v44 = vld [vmem:[%s1 + $0xc0] sm:$0xff]
  %v45 = vld [vmem:[%s1 + $0xc8] sm:$0xff]
  %v46 = vld [vmem:[%s1 + $0xd0] sm:$0xff]
  %v47 = vld [vmem:[%s1 + $0xd8] sm:$0xff]
  %v48 = vld [vmem:[%s1 + $0xe0] sm:$0xff]
  %v49 = vld [vmem:[%s1 + $0xe8] sm:$0xff]
  %v50 = vld [vmem:[%s1 + $0xf0] sm:$0xff]
  %v51 = vld [vmem:[%s1 + $0xf8] sm:$0xff]
  %v52 = vld [vmem:[%s1 + $0x100] sm:$0xff]
  %v53 = vld [vmem:[%s1 + $0x108] sm:$0xff]
  %v54 = vld [vmem:[%s1 + $0x110] sm:$0xff]
  %v55 = vld [vmem:[%s1 + $0x118] sm:$0xff]
  %v56 = vld [vmem:[%s1 + $0x120] sm:$0xff]
  %v57 = vld [vmem:[%s1 + $0x128] sm:$0xff]
  %v58 = vld [vmem:[%s1 + $0x130] sm:$0xff]
  %v59 = vld [vmem:[%s1 + $0x138] sm:$0xff]
  %v60 = vld [vmem:[%s1 + $0x140] sm:$0xff]
  %v61 = vld [vmem:[%s1 + $0x148] sm:$0xff]
  %v62 = vld [vmem:[%s1 + $0x150] sm:$0xff]
  %v63 = vld [vmem:[%s1 + $0x158] sm:$0xff]
  %v64 = vld [vmem:[%s1 + $0x160] sm:$0xff]
  %v65 = vld [vmem:[%s1 + $0x168] sm:$0xff]
  %v66 = vld [vmem:[%s1 + $0x170] sm:$0xff]
  %v67 = vld [vmem:[%s1 + $0x178] sm:$0xff]
  %v68 = vld [vmem:[%s1 + $0x180] sm:$0xff]
  %v69 = vld [vmem:[%s1 + $0x188] sm:$0xff]
  %v70 = vld [vmem:[%s1 + $0x190] sm:$0xff]
  %v71 = vld [vmem:[%s1 + $0x198] sm:$0xff]
  %v72 = vld [vmem:[%s1 + $0x1a0] sm:$0xff]
  %v73 = vld [vmem:[%s1 + $0x1a8] sm:$0xff]
  %v74 = vld [vmem:[%s1 + $0x1b0] sm:$0xff]
  %v75 = vld [vmem:[%s1 + $0x1b8] sm:$0xff]
  %v76 = vld [vmem:[%s1 + $0x1c0] sm:$0xff]
  %v77 = vld [vmem:[%s1 + $0x1c8] sm:$0xff]
  %v78 = vld [vmem:[%s1 + $0x1d0] sm:$0xff]
  %v79 = vld [vmem:[%s1 + $0x1d8] sm:$0xff]
  %v80 = vld [vmem:[%s1 + $0x1e0] sm:$0xff]
  %v81 = vld [vmem:[%s1 + $0x1e8] sm:$0xff]
  %v82 = vld [vmem:[%s1 + $0x1f0] sm:$0xff]
  %v83 = vld [vmem:[%s1 + $0x1f8] sm:$0xff]
  %v84 = vld [vmem:[%s2] sm:$0x3]
  %v85 = vld [vmem:[%s0] sm:$0xff]
  %v86 = vld [vmem:[%s0 + $0x8] sm:$0xff]
  %v87 = vld [vmem:[%s0 + $0x10] sm:$0xff]
  %v88 = vld [vmem:[%s0 + $0x18] sm:$0xff]
  %v89 = vld [vmem:[%s0 + $0x20] sm:$0xff]
  %v90 = vld [vmem:[%s0 + $0x28] sm:$0xff]
  %v97 = vunpack.c.l.b16 %v85
  %v98 = vunpack.c.h.b16 %v85
  %v99 = vunpack.c.l.b16 %v86
  %v100 = vunpack.c.h.b16 %v86
  %v101 = vunpack.c.l.b16 %v87
  %v102 = vunpack.c.h.b16 %v87
  %v103 = vunpack.c.l.b16 %v88
  %v104 = vunpack.c.h.b16 %v88
  %v105 = vunpack.c.l.b16 %v89
  %v106 = vunpack.c.h.b16 %v89
  %v107 = vunpack.c.l.b16 %v90
  %v108 = vunpack.c.h.b16 %v90
  %v109 = vpack.c.b16 %v99, %v97
  %v110 = vpack.c.b16 %v100, %v98
  %v111 = vpack.c.b16 %v103, %v101
  %v112 = vpack.c.b16 %v104, %v102
  %v113 = vpack.c.b16 %v107, %v105
  %v114 = vpack.c.b16 %v108, %v106
  %v185 = vunpack.c.l.b16 %v20
  %v186 = vunpack.c.h.b16 %v20
  %v187 = vunpack.c.l.b16 %v21
  %v188 = vunpack.c.h.b16 %v21
  %v189 = vunpack.c.l.b16 %v22
  %v190 = vunpack.c.h.b16 %v22
  %v191 = vunpack.c.l.b16 %v23
  %v192 = vunpack.c.h.b16 %v23
  %v193 = vunpack.c.l.b16 %v24
  %v194 = vunpack.c.h.b16 %v24
  %v195 = vunpack.c.l.b16 %v25
  %v196 = vunpack.c.h.b16 %v25
  %v197 = vunpack.c.l.b16 %v26
  %v198 = vunpack.c.h.b16 %v26
  %v199 = vunpack.c.l.b16 %v27
  %v200 = vunpack.c.h.b16 %v27
  %v201 = vunpack.c.l.b16 %v28
  %v202 = vunpack.c.h.b16 %v28
  %v203 = vunpack.c.l.b16 %v29
  %v204 = vunpack.c.h.b16 %v29
  %v205 = vunpack.c.l.b16 %v30
  %v206 = vunpack.c.h.b16 %v30
  %v207 = vunpack.c.l.b16 %v31
  %v208 = vunpack.c.h.b16 %v31
  %v209 = vunpack.c.l.b16 %v32
  %v210 = vunpack.c.h.b16 %v32
  %v211 = vunpack.c.l.b16 %v33
  %v212 = vunpack.c.h.b16 %v33
  %v213 = vunpack.c.l.b16 %v34
  %v214 = vunpack.c.h.b16 %v34
  %v215 = vunpack.c.l.b16 %v35
  %v216 = vunpack.c.h.b16 %v35
  %v217 = vunpack.c.l.b16 %v36
  %v218 = vunpack.c.h.b16 %v36
  %v219 = vunpack.c.l.b16 %v37
  %v220 = vunpack.c.h.b16 %v37
  %v221 = vunpack.c.l.b16 %v38
  %v222 = vunpack.c.h.b16 %v38
  %v223 = vunpack.c.l.b16 %v39
  %v224 = vunpack.c.h.b16 %v39
  %v225 = vunpack.c.l.b16 %v40
  %v226 = vunpack.c.h.b16 %v40
  %v227 = vunpack.c.l.b16 %v41
  %v228 = vunpack.c.h.b16 %v41
  %v229 = vunpack.c.l.b16 %v42
  %v230 = vunpack.c.h.b16 %v42
  %v231 = vunpack.c.l.b16 %v43
  %v232 = vunpack.c.h.b16 %v43
  %v233 = vunpack.c.l.b16 %v44
  %v234 = vunpack.c.h.b16 %v44
  %v235 = vunpack.c.l.b16 %v45
  %v236 = vunpack.c.h.b16 %v45
  %v237 = vunpack.c.l.b16 %v46
  %v238 = vunpack.c.h.b16 %v46
  %v239 = vunpack.c.l.b16 %v47
  %v240 = vunpack.c.h.b16 %v47
  %v241 = vunpack.c.l.b16 %v48
  %v242 = vunpack.c.h.b16 %v48
  %v243 = vunpack.c.l.b16 %v49
  %v244 = vunpack.c.h.b16 %v49
  %v245 = vunpack.c.l.b16 %v50
  %v246 = vunpack.c.h.b16 %v50
  %v247 = vunpack.c.l.b16 %v51
  %v248 = vunpack.c.h.b16 %v51
  %v249 = vunpack.c.l.b16 %v52
  %v250 = vunpack.c.h.b16 %v52
  %v251 = vunpack.c.l.b16 %v53
  %v252 = vunpack.c.h.b16 %v53
  %v253 = vunpack.c.l.b16 %v54
  %v254 = vunpack.c.h.b16 %v54
  %v255 = vunpack.c.l.b16 %v55
  %v256 = vunpack.c.h.b16 %v55
  %v257 = vunpack.c.l.b16 %v56
  %v258 = vunpack.c.h.b16 %v56
  %v259 = vunpack.c.l.b16 %v57
  %v260 = vunpack.c.h.b16 %v57
  %v261 = vunpack.c.l.b16 %v58
  %v262 = vunpack.c.h.b16 %v58
  %v263 = vunpack.c.l.b16 %v59
  %v264 = vunpack.c.h.b16 %v59
  %v265 = vunpack.c.l.b16 %v60
  %v266 = vunpack.c.h.b16 %v60
  %v267 = vunpack.c.l.b16 %v61
  %v268 = vunpack.c.h.b16 %v61
  %v269 = vunpack.c.l.b16 %v62
  %v270 = vunpack.c.h.b16 %v62
  %v271 = vunpack.c.l.b16 %v63
  %v272 = vunpack.c.h.b16 %v63
  %v273 = vunpack.c.l.b16 %v64
  %v274 = vunpack.c.h.b16 %v64
  %v275 = vunpack.c.l.b16 %v65
  %v276 = vunpack.c.h.b16 %v65
  %v277 = vunpack.c.l.b16 %v66
  %v278 = vunpack.c.h.b16 %v66
  %v279 = vunpack.c.l.b16 %v67
  %v280 = vunpack.c.h.b16 %v67
  %v281 = vunpack.c.l.b16 %v68
  %v282 = vunpack.c.h.b16 %v68
  %v283 = vunpack.c.l.b16 %v69
  %v284 = vunpack.c.h.b16 %v69
  %v285 = vunpack.c.l.b16 %v70
  %v286 = vunpack.c.h.b16 %v70
  %v287 = vunpack.c.l.b16 %v71
  %v288 = vunpack.c.h.b16 %v71
  %v289 = vunpack.c.l.b16 %v72
  %v290 = vunpack.c.h.b16 %v72
  %v291 = vunpack.c.l.b16 %v73
  %v292 = vunpack.c.h.b16 %v73
  %v293 = vunpack.c.l.b16 %v74
  %v294 = vunpack.c.h.b16 %v74
  %v295 = vunpack.c.l.b16 %v75
  %v296 = vunpack.c.h.b16 %v75
  %v297 = vunpack.c.l.b16 %v76
  %v298 = vunpack.c.h.b16 %v76
  %v299 = vunpack.c.l.b16 %v77
  %v300 = vunpack.c.h.b16 %v77
  %v301 = vunpack.c.l.b16 %v78
  %v302 = vunpack.c.h.b16 %v78
  %v303 = vunpack.c.l.b16 %v79
  %v304 = vunpack.c.h.b16 %v79
  %v305 = vunpack.c.l.b16 %v80
  %v306 = vunpack.c.h.b16 %v80
  %v307 = vunpack.c.l.b16 %v81
  %v308 = vunpack.c.h.b16 %v81
  %v309 = vunpack.c.l.b16 %v82
  %v310 = vunpack.c.h.b16 %v82
  %v311 = vunpack.c.l.b16 %v83
  %v312 = vunpack.c.h.b16 %v83
  %v313 = vpack.c.b16 %v189, %v185
  %v314 = vpack.c.b16 %v190, %v186
  %v315 = vpack.c.b16 %v191, %v187
  %v316 = vpack.c.b16 %v192, %v188
  %v317 = vpack.c.b16 %v197, %v193
  %v318 = vpack.c.b16 %v198, %v194
  %v319 = vpack.c.b16 %v199, %v195
  %v320 = vpack.c.b16 %v200, %v196
  %v321 = vpack.c.b16 %v205, %v201
  %v322 = vpack.c.b16 %v206, %v202
  %v323 = vpack.c.b16 %v207, %v203
  %v324 = vpack.c.b16 %v208, %v204
  %v325 = vpack.c.b16 %v213, %v209
  %v326 = vpack.c.b16 %v214, %v210
  %v327 = vpack.c.b16 %v215, %v211
  %v328 = vpack.c.b16 %v216, %v212
  %v329 = vpack.c.b16 %v221, %v217
  %v330 = vpack.c.b16 %v222, %v218
  %v331 = vpack.c.b16 %v223, %v219
  %v332 = vpack.c.b16 %v224, %v220
  %v333 = vpack.c.b16 %v229, %v225
  %v334 = vpack.c.b16 %v230, %v226
  %v335 = vpack.c.b16 %v231, %v227
  %v336 = vpack.c.b16 %v232, %v228
  %v337 = vpack.c.b16 %v237, %v233
  %v338 = vpack.c.b16 %v238, %v234
  %v339 = vpack.c.b16 %v239, %v235
  %v340 = vpack.c.b16 %v240, %v236
  %v341 = vpack.c.b16 %v245, %v241
  %v342 = vpack.c.b16 %v246, %v242
  %v343 = vpack.c.b16 %v247, %v243
  %v344 = vpack.c.b16 %v248, %v244
  %v345 = vpack.c.b16 %v253, %v249
  %v346 = vpack.c.b16 %v254, %v250
  %v347 = vpack.c.b16 %v255, %v251
  %v348 = vpack.c.b16 %v256, %v252
  %v349 = vpack.c.b16 %v261, %v257
  %v350 = vpack.c.b16 %v262, %v258
  %v351 = vpack.c.b16 %v263, %v259
  %v352 = vpack.c.b16 %v264, %v260
  %v353 = vpack.c.b16 %v269, %v265
  %v354 = vpack.c.b16 %v270, %v266
  %v355 = vpack.c.b16 %v271, %v267
  %v356 = vpack.c.b16 %v272, %v268
  %v357 = vpack.c.b16 %v277, %v273
  %v358 = vpack.c.b16 %v278, %v274
  %v359 = vpack.c.b16 %v279, %v275
  %v360 = vpack.c.b16 %v280, %v276
  %v361 = vpack.c.b16 %v285, %v281
  %v362 = vpack.c.b16 %v286, %v282
  %v363 = vpack.c.b16 %v287, %v283
  %v364 = vpack.c.b16 %v288, %v284
  %v365 = vpack.c.b16 %v293, %v289
  %v366 = vpack.c.b16 %v294, %v290
  %v367 = vpack.c.b16 %v295, %v291
  %v368 = vpack.c.b16 %v296, %v292
  %v369 = vpack.c.b16 %v301, %v297
  %v370 = vpack.c.b16 %v302, %v298
  %v371 = vpack.c.b16 %v303, %v299
  %v372 = vpack.c.b16 %v304, %v300
  %v373 = vpack.c.b16 %v309, %v305
  %v374 = vpack.c.b16 %v310, %v306
  %v375 = vpack.c.b16 %v311, %v307
  %v376 = vpack.c.b16 %v312, %v308
  %441 = vmatpush.bf16.msra.mxu0 %v341
  %442 = vmatpush.bf16.msra.mxu0 %v337
  %443 = vmatpush.bf16.msra.mxu0 %v333
  %444 = vmatpush.bf16.msra.mxu0 %v329
  %445 = vmatpush.bf16.msra.mxu0 %v325
  %446 = vmatpush.bf16.msra.mxu0 %v321
  %447 = vmatpush.bf16.msra.mxu0 %v317
  %448 = vmatpush.bf16.msra.mxu0 %v313
  %449 = vmatmul.bf16.gmra.mxu0 %v109
  %v450 = vpop.f32.mrf.mxu0
  %v451 = vadd.f32 0.0, %v450
  %v452 = vpop.f32.mrf.mxu0
  %v453 = vadd.f32 0.0, %v452
  %454 = vmatmul.bf16.gmra.mxu0 %v111
  %v455 = vpop.f32.mrf.mxu0
  %v456 = vadd.f32 0.0, %v455
  %v457 = vpop.f32.mrf.mxu0
  %v458 = vadd.f32 0.0, %v457
  %459 = vmatmul.bf16.gmra.mxu0 %v113
  %v460 = vpop.f32.mrf.mxu0
  %v461 = vadd.f32 0.0, %v460
  %v462 = vpop.f32.mrf.mxu0
  %v463 = vadd.f32 0.0, %v462
  %464 = vdwg.mxu0
  %465 = vmatpush.bf16.msra.mxu0 %v373
  %466 = vmatpush.bf16.msra.mxu0 %v369
  %467 = vmatpush.bf16.msra.mxu0 %v365
  %468 = vmatpush.bf16.msra.mxu0 %v361
  %469 = vmatpush.bf16.msra.mxu0 %v357
  %470 = vmatpush.bf16.msra.mxu0 %v353
  %471 = vmatpush.bf16.msra.mxu0 %v349
  %472 = vmatpush.bf16.msra.mxu0 %v345
  %473 = vmatmul.bf16.gmra.mxu0 %v110
  %v474 = vpop.f32.mrf.mxu0
  %v475 = vadd.f32 %v451, %v474
  %v476 = vpop.f32.mrf.mxu0
  %v477 = vadd.f32 %v453, %v476
  %478 = vmatmul.bf16.gmra.mxu0 %v112
  %v479 = vpop.f32.mrf.mxu0
  %v480 = vadd.f32 %v456, %v479
  %v481 = vpop.f32.mrf.mxu0
  %v482 = vadd.f32 %v458, %v481
  %483 = vmatmul.bf16.gmra.mxu0 %v114
  %v484 = vpop.f32.mrf.mxu0
  %v485 = vadd.f32 %v461, %v484
  %v486 = vpop.f32.mrf.mxu0
  %v487 = vadd.f32 %v463, %v486
  %488 = vdwg.mxu0
  %489 = vmatpush.bf16.msra.mxu0 %v342
  %490 = vmatpush.bf16.msra.mxu0 %v338
  %491 = vmatpush.bf16.msra.mxu0 %v334
  %492 = vmatpush.bf16.msra.mxu0 %v330
  %493 = vmatpush.bf16.msra.mxu0 %v326
  %494 = vmatpush.bf16.msra.mxu0 %v322
  %495 = vmatpush.bf16.msra.mxu0 %v318
  %496 = vmatpush.bf16.msra.mxu0 %v314
  %497 = vmatmul.bf16.gmra.mxu0 %v109
  %v498 = vpop.f32.mrf.mxu0
  %v499 = vadd.f32 0.0, %v498
  %v500 = vpop.f32.mrf.mxu0
  %v501 = vadd.f32 0.0, %v500
  %502 = vmatmul.bf16.gmra.mxu0 %v111
  %v503 = vpop.f32.mrf.mxu0
  %v504 = vadd.f32 0.0, %v503
  %v505 = vpop.f32.mrf.mxu0
  %v506 = vadd.f32 0.0, %v505
  %507 = vmatmul.bf16.gmra.mxu0 %v113
  %v508 = vpop.f32.mrf.mxu0
  %v509 = vadd.f32 0.0, %v508
  %v510 = vpop.f32.mrf.mxu0
  %v511 = vadd.f32 0.0, %v510
  %512 = vdwg.mxu0
  %513 = vmatpush.bf16.msra.mxu0 %v374
  %514 = vmatpush.bf16.msra.mxu0 %v370
  %515 = vmatpush.bf16.msra.mxu0 %v366
  %516 = vmatpush.bf16.msra.mxu0 %v362
  %517 = vmatpush.bf16.msra.mxu0 %v358
  %518 = vmatpush.bf16.msra.mxu0 %v354
  %519 = vmatpush.bf16.msra.mxu0 %v350
  %520 = vmatpush.bf16.msra.mxu0 %v346
  %521 = vmatmul.bf16.gmra.mxu0 %v110
  %v522 = vpop.f32.mrf.mxu0
  %v523 = vadd.f32 %v499, %v522
  %v524 = vpop.f32.mrf.mxu0
  %v525 = vadd.f32 %v501, %v524
  %526 = vmatmul.bf16.gmra.mxu0 %v112
  %v527 = vpop.f32.mrf.mxu0
  %v528 = vadd.f32 %v504, %v527
  %v529 = vpop.f32.mrf.mxu0
  %v530 = vadd.f32 %v506, %v529
  %531 = vmatmul.bf16.gmra.mxu0 %v114
  %v532 = vpop.f32.mrf.mxu0
  %v533 = vadd.f32 %v509, %v532
  %v534 = vpop.f32.mrf.mxu0
  %v535 = vadd.f32 %v511, %v534
  %536 = vdwg.mxu0
  %537 = vmatpush.bf16.msra.mxu0 %v343
  %538 = vmatpush.bf16.msra.mxu0 %v339
  %539 = vmatpush.bf16.msra.mxu0 %v335
  %540 = vmatpush.bf16.msra.mxu0 %v331
  %541 = vmatpush.bf16.msra.mxu0 %v327
  %542 = vmatpush.bf16.msra.mxu0 %v323
  %543 = vmatpush.bf16.msra.mxu0 %v319
  %544 = vmatpush.bf16.msra.mxu0 %v315
  %545 = vmatmul.bf16.gmra.mxu0 %v109
  %v546 = vpop.f32.mrf.mxu0
  %v547 = vadd.f32 0.0, %v546
  %v548 = vpop.f32.mrf.mxu0
  %v549 = vadd.f32 0.0, %v548
  %550 = vmatmul.bf16.gmra.mxu0 %v111
  %v551 = vpop.f32.mrf.mxu0
  %v552 = vadd.f32 0.0, %v551
  %v553 = vpop.f32.mrf.mxu0
  %v554 = vadd.f32 0.0, %v553
  %555 = vmatmul.bf16.gmra.mxu0 %v113
  %v556 = vpop.f32.mrf.mxu0
  %v557 = vadd.f32 0.0, %v556
  %v558 = vpop.f32.mrf.mxu0
  %v559 = vadd.f32 0.0, %v558
  %560 = vdwg.mxu0
  %561 = vmatpush.bf16.msra.mxu0 %v375
  %562 = vmatpush.bf16.msra.mxu0 %v371
  %563 = vmatpush.bf16.msra.mxu0 %v367
  %564 = vmatpush.bf16.msra.mxu0 %v363
  %565 = vmatpush.bf16.msra.mxu0 %v359
  %566 = vmatpush.bf16.msra.mxu0 %v355
  %567 = vmatpush.bf16.msra.mxu0 %v351
  %568 = vmatpush.bf16.msra.mxu0 %v347
  %569 = vmatmul.bf16.gmra.mxu0 %v110
  %v570 = vpop.f32.mrf.mxu0
  %v571 = vadd.f32 %v547, %v570
  %v572 = vpop.f32.mrf.mxu0
  %v573 = vadd.f32 %v549, %v572
  %574 = vmatmul.bf16.gmra.mxu0 %v112
  %v575 = vpop.f32.mrf.mxu0
  %v576 = vadd.f32 %v552, %v575
  %v577 = vpop.f32.mrf.mxu0
  %v578 = vadd.f32 %v554, %v577
  %579 = vmatmul.bf16.gmra.mxu0 %v114
  %v580 = vpop.f32.mrf.mxu0
  %v581 = vadd.f32 %v557, %v580
  %v582 = vpop.f32.mrf.mxu0
  %v583 = vadd.f32 %v559, %v582
  %584 = vdwg.mxu0
  %585 = vmatpush.bf16.msra.mxu0 %v344
  %586 = vmatpush.bf16.msra.mxu0 %v340
  %587 = vmatpush.bf16.msra.mxu0 %v336
  %588 = vmatpush.bf16.msra.mxu0 %v332
  %589 = vmatpush.bf16.msra.mxu0 %v328
  %590 = vmatpush.bf16.msra.mxu0 %v324
  %591 = vmatpush.bf16.msra.mxu0 %v320
  %592 = vmatpush.bf16.msra.mxu0 %v316
  %593 = vmatmul.bf16.gmra.mxu0 %v109
  %v594 = vpop.f32.mrf.mxu0
  %v595 = vadd.f32 0.0, %v594
  %v596 = vpop.f32.mrf.mxu0
  %v597 = vadd.f32 0.0, %v596
  %598 = vmatmul.bf16.gmra.mxu0 %v111
  %v599 = vpop.f32.mrf.mxu0
  %v600 = vadd.f32 0.0, %v599
  %v601 = vpop.f32.mrf.mxu0
  %v602 = vadd.f32 0.0, %v601
  %603 = vmatmul.bf16.gmra.mxu0 %v113
  %v604 = vpop.f32.mrf.mxu0
  %v605 = vadd.f32 0.0, %v604
  %v606 = vpop.f32.mrf.mxu0
  %v607 = vadd.f32 0.0, %v606
  %608 = vdwg.mxu0
  %609 = vmatpush.bf16.msra.mxu0 %v376
  %610 = vmatpush.bf16.msra.mxu0 %v372
  %611 = vmatpush.bf16.msra.mxu0 %v368
  %612 = vmatpush.bf16.msra.mxu0 %v364
  %613 = vmatpush.bf16.msra.mxu0 %v360
  %614 = vmatpush.bf16.msra.mxu0 %v356
  %615 = vmatpush.bf16.msra.mxu0 %v352
  %616 = vmatpush.bf16.msra.mxu0 %v348
  %617 = vmatmul.bf16.gmra.mxu0 %v110
  %v618 = vpop.f32.mrf.mxu0
  %v619 = vadd.f32 %v595, %v618
  %v620 = vpop.f32.mrf.mxu0
  %v621 = vadd.f32 %v597, %v620
  %622 = vmatmul.bf16.gmra.mxu0 %v112
  %v623 = vpop.f32.mrf.mxu0
  %v624 = vadd.f32 %v600, %v623
  %v625 = vpop.f32.mrf.mxu0
  %v626 = vadd.f32 %v602, %v625
  %627 = vmatmul.bf16.gmra.mxu0 %v114
  %v628 = vpop.f32.mrf.mxu0
  %v629 = vadd.f32 %v605, %v628
  %v630 = vpop.f32.mrf.mxu0
  %v631 = vadd.f32 %v607, %v630
  %632 = vdwg.mxu0
  %s633 = scalar_lea.vmem %s0, 48
  %v634 = vld [vmem:[%s633] sm:$0xff]
  %v635 = vld [vmem:[%s633 + $0x8] sm:$0xff]
  %v636 = vld [vmem:[%s633 + $0x10] sm:$0xff]
  %v637 = vld [vmem:[%s633 + $0x18] sm:$0xff]
  %v638 = vld [vmem:[%s633 + $0x20] sm:$0xff]
  %v639 = vld [vmem:[%s633 + $0x28] sm:$0xff]
  %v646 = vunpack.c.l.b16 %v634
  %v647 = vunpack.c.h.b16 %v634
  %v648 = vunpack.c.l.b16 %v635
  %v649 = vunpack.c.h.b16 %v635
  %v650 = vunpack.c.l.b16 %v636
  %v651 = vunpack.c.h.b16 %v636
  %v652 = vunpack.c.l.b16 %v637
  %v653 = vunpack.c.h.b16 %v637
  %v654 = vunpack.c.l.b16 %v638
  %v655 = vunpack.c.h.b16 %v638
  %v656 = vunpack.c.l.b16 %v639
  %v657 = vunpack.c.h.b16 %v639
  %v658 = vpack.c.b16 %v648, %v646
  %v659 = vpack.c.b16 %v649, %v647
  %v660 = vpack.c.b16 %v652, %v650
  %v661 = vpack.c.b16 %v653, %v651
  %v662 = vpack.c.b16 %v656, %v654
  %v663 = vpack.c.b16 %v657, %v655
  %670 = vmatpush.bf16.msra.mxu0 %v341
  %671 = vmatpush.bf16.msra.mxu0 %v337
  %672 = vmatpush.bf16.msra.mxu0 %v333
  %673 = vmatpush.bf16.msra.mxu0 %v329
  %674 = vmatpush.bf16.msra.mxu0 %v325
  %675 = vmatpush.bf16.msra.mxu0 %v321
  %676 = vmatpush.bf16.msra.mxu0 %v317
  %677 = vmatpush.bf16.msra.mxu0 %v313
  %678 = vmatmul.bf16.gmra.mxu0 %v658
  %v679 = vpop.f32.mrf.mxu0
  %v680 = vadd.f32 0.0, %v679
  %v681 = vpop.f32.mrf.mxu0
  %v682 = vadd.f32 0.0, %v681
  %683 = vmatmul.bf16.gmra.mxu0 %v660
  %v684 = vpop.f32.mrf.mxu0
  %v685 = vadd.f32 0.0, %v684
  %v686 = vpop.f32.mrf.mxu0
  %v687 = vadd.f32 0.0, %v686
  %688 = vmatmul.bf16.gmra.mxu0 %v662
  %v689 = vpop.f32.mrf.mxu0
  %v690 = vadd.f32 0.0, %v689
  %v691 = vpop.f32.mrf.mxu0
  %v692 = vadd.f32 0.0, %v691
  %693 = vdwg.mxu0
  %694 = vmatpush.bf16.msra.mxu0 %v373
  %695 = vmatpush.bf16.msra.mxu0 %v369
  %696 = vmatpush.bf16.msra.mxu0 %v365
  %697 = vmatpush.bf16.msra.mxu0 %v361
  %698 = vmatpush.bf16.msra.mxu0 %v357
  %699 = vmatpush.bf16.msra.mxu0 %v353
  %700 = vmatpush.bf16.msra.mxu0 %v349
  %701 = vmatpush.bf16.msra.mxu0 %v345
  %702 = vmatmul.bf16.gmra.mxu0 %v659
  %v703 = vpop.f32.mrf.mxu0
  %v704 = vadd.f32 %v680, %v703
  %v705 = vpop.f32.mrf.mxu0
  %v706 = vadd.f32 %v682, %v705
  %707 = vmatmul.bf16.gmra.mxu0 %v661
  %v708 = vpop.f32.mrf.mxu0
  %v709 = vadd.f32 %v685, %v708
  %v710 = vpop.f32.mrf.mxu0
  %v711 = vadd.f32 %v687, %v710
  %712 = vmatmul.bf16.gmra.mxu0 %v663
  %v713 = vpop.f32.mrf.mxu0
  %v714 = vadd.f32 %v690, %v713
  %v715 = vpop.f32.mrf.mxu0
  %v716 = vadd.f32 %v692, %v715
  %717 = vdwg.mxu0
  %718 = vmatpush.bf16.msra.mxu0 %v342
  %719 = vmatpush.bf16.msra.mxu0 %v338
  %720 = vmatpush.bf16.msra.mxu0 %v334
  %721 = vmatpush.bf16.msra.mxu0 %v330
  %722 = vmatpush.bf16.msra.mxu0 %v326
  %723 = vmatpush.bf16.msra.mxu0 %v322
  %724 = vmatpush.bf16.msra.mxu0 %v318
  %725 = vmatpush.bf16.msra.mxu0 %v314
  %726 = vmatmul.bf16.gmra.mxu0 %v658
  %v727 = vpop.f32.mrf.mxu0
  %v728 = vadd.f32 0.0, %v727
  %v729 = vpop.f32.mrf.mxu0
  %v730 = vadd.f32 0.0, %v729
  %731 = vmatmul.bf16.gmra.mxu0 %v660
  %v732 = vpop.f32.mrf.mxu0
  %v733 = vadd.f32 0.0, %v732
  %v734 = vpop.f32.mrf.mxu0
  %v735 = vadd.f32 0.0, %v734
  %736 = vmatmul.bf16.gmra.mxu0 %v662
  %v737 = vpop.f32.mrf.mxu0
  %v738 = vadd.f32 0.0, %v737
  %v739 = vpop.f32.mrf.mxu0
  %v740 = vadd.f32 0.0, %v739
  %741 = vdwg.mxu0
  %742 = vmatpush.bf16.msra.mxu0 %v374
  %743 = vmatpush.bf16.msra.mxu0 %v370
  %744 = vmatpush.bf16.msra.mxu0 %v366
  %745 = vmatpush.bf16.msra.mxu0 %v362
  %746 = vmatpush.bf16.msra.mxu0 %v358
  %747 = vmatpush.bf16.msra.mxu0 %v354
  %748 = vmatpush.bf16.msra.mxu0 %v350
  %749 = vmatpush.bf16.msra.mxu0 %v346
  %750 = vmatmul.bf16.gmra.mxu0 %v659
  %v751 = vpop.f32.mrf.mxu0
  %v752 = vadd.f32 %v728, %v751
  %v753 = vpop.f32.mrf.mxu0
  %v754 = vadd.f32 %v730, %v753
  %755 = vmatmul.bf16.gmra.mxu0 %v661
  %v756 = vpop.f32.mrf.mxu0
  %v757 = vadd.f32 %v733, %v756
  %v758 = vpop.f32.mrf.mxu0
  %v759 = vadd.f32 %v735, %v758
  %760 = vmatmul.bf16.gmra.mxu0 %v663
  %v761 = vpop.f32.mrf.mxu0
  %v762 = vadd.f32 %v738, %v761
  %v763 = vpop.f32.mrf.mxu0
  %v764 = vadd.f32 %v740, %v763
  %765 = vdwg.mxu0
  %766 = vmatpush.bf16.msra.mxu0 %v343
  %767 = vmatpush.bf16.msra.mxu0 %v339
  %768 = vmatpush.bf16.msra.mxu0 %v335
  %769 = vmatpush.bf16.msra.mxu0 %v331
  %770 = vmatpush.bf16.msra.mxu0 %v327
  %771 = vmatpush.bf16.msra.mxu0 %v323
  %772 = vmatpush.bf16.msra.mxu0 %v319
  %773 = vmatpush.bf16.msra.mxu0 %v315
  %774 = vmatmul.bf16.gmra.mxu0 %v658
  %v775 = vpop.f32.mrf.mxu0
  %v776 = vadd.f32 0.0, %v775
  %v777 = vpop.f32.mrf.mxu0
  %v778 = vadd.f32 0.0, %v777
  %779 = vmatmul.bf16.gmra.mxu0 %v660
  %v780 = vpop.f32.mrf.mxu0
  %v781 = vadd.f32 0.0, %v780
  %v782 = vpop.f32.mrf.mxu0
  %v783 = vadd.f32 0.0, %v782
  %784 = vmatmul.bf16.gmra.mxu0 %v662
  %v785 = vpop.f32.mrf.mxu0
  %v786 = vadd.f32 0.0, %v785
  %v787 = vpop.f32.mrf.mxu0
  %v788 = vadd.f32 0.0, %v787
  %789 = vdwg.mxu0
  %790 = vmatpush.bf16.msra.mxu0 %v375
  %791 = vmatpush.bf16.msra.mxu0 %v371
  %792 = vmatpush.bf16.msra.mxu0 %v367
  %793 = vmatpush.bf16.msra.mxu0 %v363
  %794 = vmatpush.bf16.msra.mxu0 %v359
  %795 = vmatpush.bf16.msra.mxu0 %v355
  %796 = vmatpush.bf16.msra.mxu0 %v351
  %797 = vmatpush.bf16.msra.mxu0 %v347
  %798 = vmatmul.bf16.gmra.mxu0 %v659
  %v799 = vpop.f32.mrf.mxu0
  %v800 = vadd.f32 %v776, %v799
  %v801 = vpop.f32.mrf.mxu0
  %v802 = vadd.f32 %v778, %v801
  %803 = vmatmul.bf16.gmra.mxu0 %v661
  %v804 = vpop.f32.mrf.mxu0
  %v805 = vadd.f32 %v781, %v804
  %v806 = vpop.f32.mrf.mxu0
  %v807 = vadd.f32 %v783, %v806
  %808 = vmatmul.bf16.gmra.mxu0 %v663
  %v809 = vpop.f32.mrf.mxu0
  %v810 = vadd.f32 %v786, %v809
  %v811 = vpop.f32.mrf.mxu0
  %v812 = vadd.f32 %v788, %v811
  %813 = vdwg.mxu0
  %814 = vmatpush.bf16.msra.mxu0 %v344
  %815 = vmatpush.bf16.msra.mxu0 %v340
  %816 = vmatpush.bf16.msra.mxu0 %v336
  %817 = vmatpush.bf16.msra.mxu0 %v332
  %818 = vmatpush.bf16.msra.mxu0 %v328
  %819 = vmatpush.bf16.msra.mxu0 %v324
  %820 = vmatpush.bf16.msra.mxu0 %v320
  %821 = vmatpush.bf16.msra.mxu0 %v316
  %822 = vmatmul.bf16.gmra.mxu0 %v658
  %v823 = vpop.f32.mrf.mxu0
  %v824 = vadd.f32 0.0, %v823
  %v825 = vpop.f32.mrf.mxu0
  %v826 = vadd.f32 0.0, %v825
  %827 = vmatmul.bf16.gmra.mxu0 %v660
  %v828 = vpop.f32.mrf.mxu0
  %v829 = vadd.f32 0.0, %v828
  %v830 = vpop.f32.mrf.mxu0
  %v831 = vadd.f32 0.0, %v830
  %832 = vmatmul.bf16.gmra.mxu0 %v662
  %v833 = vpop.f32.mrf.mxu0
  %v834 = vadd.f32 0.0, %v833
  %v835 = vpop.f32.mrf.mxu0
  %v836 = vadd.f32 0.0, %v835
  %837 = vdwg.mxu0
  %838 = vmatpush.bf16.msra.mxu0 %v376
  %839 = vmatpush.bf16.msra.mxu0 %v372
  %840 = vmatpush.bf16.msra.mxu0 %v368
  %841 = vmatpush.bf16.msra.mxu0 %v364
  %842 = vmatpush.bf16.msra.mxu0 %v360
  %843 = vmatpush.bf16.msra.mxu0 %v356
  %844 = vmatpush.bf16.msra.mxu0 %v352
  %845 = vmatpush.bf16.msra.mxu0 %v348
  %846 = vmatmul.bf16.gmra.mxu0 %v659
  %v847 = vpop.f32.mrf.mxu0
  %v848 = vadd.f32 %v824, %v847
  %v849 = vpop.f32.mrf.mxu0
  %v850 = vadd.f32 %v826, %v849
  %851 = vmatmul.bf16.gmra.mxu0 %v661
  %v852 = vpop.f32.mrf.mxu0
  %v853 = vadd.f32 %v829, %v852
  %v854 = vpop.f32.mrf.mxu0
  %v855 = vadd.f32 %v831, %v854
  %856 = vmatmul.bf16.gmra.mxu0 %v663
  %v857 = vpop.f32.mrf.mxu0
  %v858 = vadd.f32 %v834, %v857
  %v859 = vpop.f32.mrf.mxu0
  %v860 = vadd.f32 %v836, %v859
  %861 = vdwg.mxu0
  %v862 = vmax.f32 %v475, %v571
  %v863 = vmax.f32 %v523, %v619
  %v864 = vmax.f32 %v477, %v573
  %v865 = vmax.f32 %v525, %v621
  %v866 = vmax.f32 %v480, %v576
  %v867 = vmax.f32 %v528, %v624
  %v868 = vmax.f32 %v482, %v578
  %v869 = vmax.f32 %v530, %v626
  %v870 = vmax.f32 %v485, %v581
  %v871 = vmax.f32 %v533, %v629
  %v872 = vmax.f32 %v487, %v583
  %v873 = vmax.f32 %v535, %v631
  %v874 = vmax.f32 %v704, %v800
  %v875 = vmax.f32 %v752, %v848
  %v876 = vmax.f32 %v706, %v802
  %v877 = vmax.f32 %v754, %v850
  %v878 = vmax.f32 %v709, %v805
  %v879 = vmax.f32 %v757, %v853
  %v880 = vmax.f32 %v711, %v807
  %v881 = vmax.f32 %v759, %v855
  %v882 = vmax.f32 %v714, %v810
  %v883 = vmax.f32 %v762, %v858
  %v884 = vmax.f32 %v716, %v812
  %v885 = vmax.f32 %v764, %v860
  %v886 = vmax.f32 %v862, %v874
  %v887 = vmax.f32 %v863, %v875
  %v888 = vmax.f32 %v864, %v876
  %v889 = vmax.f32 %v865, %v877
  %v890 = vmax.f32 %v866, %v878
  %v891 = vmax.f32 %v867, %v879
  %v892 = vmax.f32 %v868, %v880
  %v893 = vmax.f32 %v869, %v881
  %v894 = vmax.f32 %v870, %v882
  %v895 = vmax.f32 %v871, %v883
  %v896 = vmax.f32 %v872, %v884
  %v897 = vmax.f32 %v873, %v885
  %v899 = vperm.slane %v84, 0
  %v900 = vperm.slane %v84, 1
  %v903 = vadd.f32 %v886, %v899
  %v904 = vadd.f32 %v887, %v900
  %v905 = vadd.f32 %v888, %v899
  %v906 = vadd.f32 %v889, %v900
  %v907 = vadd.f32 %v890, %v899
  %v908 = vadd.f32 %v891, %v900
  %v909 = vadd.f32 %v892, %v899
  %v910 = vadd.f32 %v893, %v900
  %v911 = vadd.f32 %v894, %v899
  %v912 = vadd.f32 %v895, %v900
  %v913 = vadd.f32 %v896, %v899
  %v914 = vadd.f32 %v897, %v900
  %v915 = vmax.f32 %v903, 0.0
  %v916 = vmax.f32 %v904, 0.0
  %v917 = vmax.f32 %v905, 0.0
  %v918 = vmax.f32 %v906, 0.0
  %v919 = vmax.f32 %v907, 0.0
  %v920 = vmax.f32 %v908, 0.0
  %v921 = vmax.f32 %v909, 0.0
  %v922 = vmax.f32 %v910, 0.0
  %v923 = vmax.f32 %v911, 0.0
  %v924 = vmax.f32 %v912, 0.0
  %v925 = vmax.f32 %v913, 0.0
  %v926 = vmax.f32 %v914, 0.0
  %v927 = vpack.c.bf16 %v916, %v915
  %v928 = vpack.c.bf16 %v918, %v917
  %v929 = vpack.c.bf16 %v920, %v919
  %v930 = vpack.c.bf16 %v922, %v921
  %v931 = vpack.c.bf16 %v924, %v923
  %v932 = vpack.c.bf16 %v926, %v925
  %s933 = scalar_lea.vmem %s0, 96
  %v934 = vld [vmem:[%s933] sm:$0xff]
  %v935 = vld [vmem:[%s933 + $0x8] sm:$0xff]
  %v936 = vld [vmem:[%s933 + $0x10] sm:$0xff]
  %v937 = vld [vmem:[%s933 + $0x18] sm:$0xff]
  %v938 = vld [vmem:[%s933 + $0x20] sm:$0xff]
  %v939 = vld [vmem:[%s933 + $0x28] sm:$0xff]
  %v946 = vunpack.c.l.b16 %v934
  %v947 = vunpack.c.h.b16 %v934
  %v948 = vunpack.c.l.b16 %v935
  %v949 = vunpack.c.h.b16 %v935
  %v950 = vunpack.c.l.b16 %v936
  %v951 = vunpack.c.h.b16 %v936
  %v952 = vunpack.c.l.b16 %v937
  %v953 = vunpack.c.h.b16 %v937
  %v954 = vunpack.c.l.b16 %v938
  %v955 = vunpack.c.h.b16 %v938
  %v956 = vunpack.c.l.b16 %v939
  %v957 = vunpack.c.h.b16 %v939
  %v958 = vpack.c.b16 %v948, %v946
  %v959 = vpack.c.b16 %v949, %v947
  %v960 = vpack.c.b16 %v952, %v950
  %v961 = vpack.c.b16 %v953, %v951
  %v962 = vpack.c.b16 %v956, %v954
  %v963 = vpack.c.b16 %v957, %v955
  %970 = vmatpush.bf16.msra.mxu0 %v341
  %971 = vmatpush.bf16.msra.mxu0 %v337
  %972 = vmatpush.bf16.msra.mxu0 %v333
  %973 = vmatpush.bf16.msra.mxu0 %v329
  %974 = vmatpush.bf16.msra.mxu0 %v325
  %975 = vmatpush.bf16.msra.mxu0 %v321
  %976 = vmatpush.bf16.msra.mxu0 %v317
  %977 = vmatpush.bf16.msra.mxu0 %v313
  %978 = vmatmul.bf16.gmra.mxu0 %v958
  %v979 = vpop.f32.mrf.mxu0
  %v980 = vadd.f32 0.0, %v979
  %v981 = vpop.f32.mrf.mxu0
  %v982 = vadd.f32 0.0, %v981
  %983 = vmatmul.bf16.gmra.mxu0 %v960
  %v984 = vpop.f32.mrf.mxu0
  %v985 = vadd.f32 0.0, %v984
  %v986 = vpop.f32.mrf.mxu0
  %v987 = vadd.f32 0.0, %v986
  %988 = vmatmul.bf16.gmra.mxu0 %v962
  %v989 = vpop.f32.mrf.mxu0
  %v990 = vadd.f32 0.0, %v989
  %v991 = vpop.f32.mrf.mxu0
  %v992 = vadd.f32 0.0, %v991
  %993 = vdwg.mxu0
  %994 = vmatpush.bf16.msra.mxu0 %v373
  %995 = vmatpush.bf16.msra.mxu0 %v369
  %996 = vmatpush.bf16.msra.mxu0 %v365
  %997 = vmatpush.bf16.msra.mxu0 %v361
  %998 = vmatpush.bf16.msra.mxu0 %v357
  %999 = vmatpush.bf16.msra.mxu0 %v353
  %1000 = vmatpush.bf16.msra.mxu0 %v349
  %1001 = vmatpush.bf16.msra.mxu0 %v345
  %1002 = vmatmul.bf16.gmra.mxu0 %v959
  %v1003 = vpop.f32.mrf.mxu0
  %v1004 = vadd.f32 %v980, %v1003
  %v1005 = vpop.f32.mrf.mxu0
  %v1006 = vadd.f32 %v982, %v1005
  %1007 = vmatmul.bf16.gmra.mxu0 %v961
  %v1008 = vpop.f32.mrf.mxu0
  %v1009 = vadd.f32 %v985, %v1008
  %v1010 = vpop.f32.mrf.mxu0
  %v1011 = vadd.f32 %v987, %v1010
  %1012 = vmatmul.bf16.gmra.mxu0 %v963
  %v1013 = vpop.f32.mrf.mxu0
  %v1014 = vadd.f32 %v990, %v1013
  %v1015 = vpop.f32.mrf.mxu0
  %v1016 = vadd.f32 %v992, %v1015
  %1017 = vdwg.mxu0
  %1018 = vmatpush.bf16.msra.mxu0 %v342
  %1019 = vmatpush.bf16.msra.mxu0 %v338
  %1020 = vmatpush.bf16.msra.mxu0 %v334
  %1021 = vmatpush.bf16.msra.mxu0 %v330
  %1022 = vmatpush.bf16.msra.mxu0 %v326
  %1023 = vmatpush.bf16.msra.mxu0 %v322
  %1024 = vmatpush.bf16.msra.mxu0 %v318
  %1025 = vmatpush.bf16.msra.mxu0 %v314
  %1026 = vmatmul.bf16.gmra.mxu0 %v958
  %v1027 = vpop.f32.mrf.mxu0
  %v1028 = vadd.f32 0.0, %v1027
  %v1029 = vpop.f32.mrf.mxu0
  %v1030 = vadd.f32 0.0, %v1029
  %1031 = vmatmul.bf16.gmra.mxu0 %v960
  %v1032 = vpop.f32.mrf.mxu0
  %v1033 = vadd.f32 0.0, %v1032
  %v1034 = vpop.f32.mrf.mxu0
  %v1035 = vadd.f32 0.0, %v1034
  %1036 = vmatmul.bf16.gmra.mxu0 %v962
  %v1037 = vpop.f32.mrf.mxu0
  %v1038 = vadd.f32 0.0, %v1037
  %v1039 = vpop.f32.mrf.mxu0
  %v1040 = vadd.f32 0.0, %v1039
  %1041 = vdwg.mxu0
  %1042 = vmatpush.bf16.msra.mxu0 %v374
  %1043 = vmatpush.bf16.msra.mxu0 %v370
  %1044 = vmatpush.bf16.msra.mxu0 %v366
  %1045 = vmatpush.bf16.msra.mxu0 %v362
  %1046 = vmatpush.bf16.msra.mxu0 %v358
  %1047 = vmatpush.bf16.msra.mxu0 %v354
  %1048 = vmatpush.bf16.msra.mxu0 %v350
  %1049 = vmatpush.bf16.msra.mxu0 %v346
  %1050 = vmatmul.bf16.gmra.mxu0 %v959
  %v1051 = vpop.f32.mrf.mxu0
  %v1052 = vadd.f32 %v1028, %v1051
  %v1053 = vpop.f32.mrf.mxu0
  %v1054 = vadd.f32 %v1030, %v1053
  %1055 = vmatmul.bf16.gmra.mxu0 %v961
  %v1056 = vpop.f32.mrf.mxu0
  %v1057 = vadd.f32 %v1033, %v1056
  %v1058 = vpop.f32.mrf.mxu0
  %v1059 = vadd.f32 %v1035, %v1058
  %1060 = vmatmul.bf16.gmra.mxu0 %v963
  %v1061 = vpop.f32.mrf.mxu0
  %v1062 = vadd.f32 %v1038, %v1061
  %v1063 = vpop.f32.mrf.mxu0
  %v1064 = vadd.f32 %v1040, %v1063
  %1065 = vdwg.mxu0
  %1066 = vmatpush.bf16.msra.mxu0 %v343
  %1067 = vmatpush.bf16.msra.mxu0 %v339
  %1068 = vmatpush.bf16.msra.mxu0 %v335
  %1069 = vmatpush.bf16.msra.mxu0 %v331
  %1070 = vmatpush.bf16.msra.mxu0 %v327
  %1071 = vmatpush.bf16.msra.mxu0 %v323
  %1072 = vmatpush.bf16.msra.mxu0 %v319
  %1073 = vmatpush.bf16.msra.mxu0 %v315
  %1074 = vmatmul.bf16.gmra.mxu0 %v958
  %v1075 = vpop.f32.mrf.mxu0
  %v1076 = vadd.f32 0.0, %v1075
  %v1077 = vpop.f32.mrf.mxu0
  %v1078 = vadd.f32 0.0, %v1077
  %1079 = vmatmul.bf16.gmra.mxu0 %v960
  %v1080 = vpop.f32.mrf.mxu0
  %v1081 = vadd.f32 0.0, %v1080
  %v1082 = vpop.f32.mrf.mxu0
  %v1083 = vadd.f32 0.0, %v1082
  %1084 = vmatmul.bf16.gmra.mxu0 %v962
  %v1085 = vpop.f32.mrf.mxu0
  %v1086 = vadd.f32 0.0, %v1085
  %v1087 = vpop.f32.mrf.mxu0
  %v1088 = vadd.f32 0.0, %v1087
  %1089 = vdwg.mxu0
  %1090 = vmatpush.bf16.msra.mxu0 %v375
  %1091 = vmatpush.bf16.msra.mxu0 %v371
  %1092 = vmatpush.bf16.msra.mxu0 %v367
  %1093 = vmatpush.bf16.msra.mxu0 %v363
  %1094 = vmatpush.bf16.msra.mxu0 %v359
  %1095 = vmatpush.bf16.msra.mxu0 %v355
  %1096 = vmatpush.bf16.msra.mxu0 %v351
  %1097 = vmatpush.bf16.msra.mxu0 %v347
  %1098 = vmatmul.bf16.gmra.mxu0 %v959
  %v1099 = vpop.f32.mrf.mxu0
  %v1100 = vadd.f32 %v1076, %v1099
  %v1101 = vpop.f32.mrf.mxu0
  %v1102 = vadd.f32 %v1078, %v1101
  %1103 = vmatmul.bf16.gmra.mxu0 %v961
  %v1104 = vpop.f32.mrf.mxu0
  %v1105 = vadd.f32 %v1081, %v1104
  %v1106 = vpop.f32.mrf.mxu0
  %v1107 = vadd.f32 %v1083, %v1106
  %1108 = vmatmul.bf16.gmra.mxu0 %v963
  %v1109 = vpop.f32.mrf.mxu0
  %v1110 = vadd.f32 %v1086, %v1109
  %v1111 = vpop.f32.mrf.mxu0
  %v1112 = vadd.f32 %v1088, %v1111
  %1113 = vdwg.mxu0
  %1114 = vmatpush.bf16.msra.mxu0 %v344
  %1115 = vmatpush.bf16.msra.mxu0 %v340
  %1116 = vmatpush.bf16.msra.mxu0 %v336
  %1117 = vmatpush.bf16.msra.mxu0 %v332
  %1118 = vmatpush.bf16.msra.mxu0 %v328
  %1119 = vmatpush.bf16.msra.mxu0 %v324
  %1120 = vmatpush.bf16.msra.mxu0 %v320
  %1121 = vmatpush.bf16.msra.mxu0 %v316
  %1122 = vmatmul.bf16.gmra.mxu0 %v958
  %v1123 = vpop.f32.mrf.mxu0
  %v1124 = vadd.f32 0.0, %v1123
  %v1125 = vpop.f32.mrf.mxu0
  %v1126 = vadd.f32 0.0, %v1125
  %1127 = vmatmul.bf16.gmra.mxu0 %v960
  %v1128 = vpop.f32.mrf.mxu0
  %v1129 = vadd.f32 0.0, %v1128
  %v1130 = vpop.f32.mrf.mxu0
  %v1131 = vadd.f32 0.0, %v1130
  %1132 = vmatmul.bf16.gmra.mxu0 %v962
  %v1133 = vpop.f32.mrf.mxu0
  %v1134 = vadd.f32 0.0, %v1133
  %v1135 = vpop.f32.mrf.mxu0
  %v1136 = vadd.f32 0.0, %v1135
  %1137 = vdwg.mxu0
  %1138 = vmatpush.bf16.msra.mxu0 %v376
  %1139 = vmatpush.bf16.msra.mxu0 %v372
  %1140 = vmatpush.bf16.msra.mxu0 %v368
  %1141 = vmatpush.bf16.msra.mxu0 %v364
  %1142 = vmatpush.bf16.msra.mxu0 %v360
  %1143 = vmatpush.bf16.msra.mxu0 %v356
  %1144 = vmatpush.bf16.msra.mxu0 %v352
  %1145 = vmatpush.bf16.msra.mxu0 %v348
  %1146 = vmatmul.bf16.gmra.mxu0 %v959
  %v1147 = vpop.f32.mrf.mxu0
  %v1148 = vadd.f32 %v1124, %v1147
  %v1149 = vpop.f32.mrf.mxu0
  %v1150 = vadd.f32 %v1126, %v1149
  %1151 = vmatmul.bf16.gmra.mxu0 %v961
  %v1152 = vpop.f32.mrf.mxu0
  %v1153 = vadd.f32 %v1129, %v1152
  %v1154 = vpop.f32.mrf.mxu0
  %v1155 = vadd.f32 %v1131, %v1154
  %1156 = vmatmul.bf16.gmra.mxu0 %v963
  %v1157 = vpop.f32.mrf.mxu0
  %v1158 = vadd.f32 %v1134, %v1157
  %v1159 = vpop.f32.mrf.mxu0
  %v1160 = vadd.f32 %v1136, %v1159
  %1161 = vdwg.mxu0
  %s1162 = scalar_lea.vmem %s0, 144
  %v1163 = vld [vmem:[%s1162] sm:$0xff]
  %v1164 = vld [vmem:[%s1162 + $0x8] sm:$0xff]
  %v1165 = vld [vmem:[%s1162 + $0x10] sm:$0xff]
  %v1166 = vld [vmem:[%s1162 + $0x18] sm:$0xff]
  %v1167 = vld [vmem:[%s1162 + $0x20] sm:$0xff]
  %v1168 = vld [vmem:[%s1162 + $0x28] sm:$0xff]
  %v1175 = vunpack.c.l.b16 %v1163
  %v1176 = vunpack.c.h.b16 %v1163
  %v1177 = vunpack.c.l.b16 %v1164
  %v1178 = vunpack.c.h.b16 %v1164
  %v1179 = vunpack.c.l.b16 %v1165
  %v1180 = vunpack.c.h.b16 %v1165
  %v1181 = vunpack.c.l.b16 %v1166
  %v1182 = vunpack.c.h.b16 %v1166
  %v1183 = vunpack.c.l.b16 %v1167
  %v1184 = vunpack.c.h.b16 %v1167
  %v1185 = vunpack.c.l.b16 %v1168
  %v1186 = vunpack.c.h.b16 %v1168
  %v1187 = vpack.c.b16 %v1177, %v1175
  %v1188 = vpack.c.b16 %v1178, %v1176
  %v1189 = vpack.c.b16 %v1181, %v1179
  %v1190 = vpack.c.b16 %v1182, %v1180
  %v1191 = vpack.c.b16 %v1185, %v1183
  %v1192 = vpack.c.b16 %v1186, %v1184
  %1199 = vmatpush.bf16.msra.mxu0 %v341
  %1200 = vmatpush.bf16.msra.mxu0 %v337
  %1201 = vmatpush.bf16.msra.mxu0 %v333
  %1202 = vmatpush.bf16.msra.mxu0 %v329
  %1203 = vmatpush.bf16.msra.mxu0 %v325
  %1204 = vmatpush.bf16.msra.mxu0 %v321
  %1205 = vmatpush.bf16.msra.mxu0 %v317
  %1206 = vmatpush.bf16.msra.mxu0 %v313
  %1207 = vmatmul.bf16.gmra.mxu0 %v1187
  %v1208 = vpop.f32.mrf.mxu0
  %v1209 = vadd.f32 0.0, %v1208
  %v1210 = vpop.f32.mrf.mxu0
  %v1211 = vadd.f32 0.0, %v1210
  %1212 = vmatmul.bf16.gmra.mxu0 %v1189
  %v1213 = vpop.f32.mrf.mxu0
  %v1214 = vadd.f32 0.0, %v1213
  %v1215 = vpop.f32.mrf.mxu0
  %v1216 = vadd.f32 0.0, %v1215
  %1217 = vmatmul.bf16.gmra.mxu0 %v1191
  %v1218 = vpop.f32.mrf.mxu0
  %v1219 = vadd.f32 0.0, %v1218
  %v1220 = vpop.f32.mrf.mxu0
  %v1221 = vadd.f32 0.0, %v1220
  %1222 = vdwg.mxu0
  %1223 = vmatpush.bf16.msra.mxu0 %v373
  %1224 = vmatpush.bf16.msra.mxu0 %v369
  %1225 = vmatpush.bf16.msra.mxu0 %v365
  %1226 = vmatpush.bf16.msra.mxu0 %v361
  %1227 = vmatpush.bf16.msra.mxu0 %v357
  %1228 = vmatpush.bf16.msra.mxu0 %v353
  %1229 = vmatpush.bf16.msra.mxu0 %v349
  %1230 = vmatpush.bf16.msra.mxu0 %v345
  %1231 = vmatmul.bf16.gmra.mxu0 %v1188
  %v1232 = vpop.f32.mrf.mxu0
  %v1233 = vadd.f32 %v1209, %v1232
  %v1234 = vpop.f32.mrf.mxu0
  %v1235 = vadd.f32 %v1211, %v1234
  %1236 = vmatmul.bf16.gmra.mxu0 %v1190
  %v1237 = vpop.f32.mrf.mxu0
  %v1238 = vadd.f32 %v1214, %v1237
  %v1239 = vpop.f32.mrf.mxu0
  %v1240 = vadd.f32 %v1216, %v1239
  %1241 = vmatmul.bf16.gmra.mxu0 %v1192
  %v1242 = vpop.f32.mrf.mxu0
  %v1243 = vadd.f32 %v1219, %v1242
  %v1244 = vpop.f32.mrf.mxu0
  %v1245 = vadd.f32 %v1221, %v1244
  %1246 = vdwg.mxu0
  %1247 = vmatpush.bf16.msra.mxu0 %v342
  %1248 = vmatpush.bf16.msra.mxu0 %v338
  %1249 = vmatpush.bf16.msra.mxu0 %v334
  %1250 = vmatpush.bf16.msra.mxu0 %v330
  %1251 = vmatpush.bf16.msra.mxu0 %v326
  %1252 = vmatpush.bf16.msra.mxu0 %v322
  %1253 = vmatpush.bf16.msra.mxu0 %v318
  %1254 = vmatpush.bf16.msra.mxu0 %v314
  %1255 = vmatmul.bf16.gmra.mxu0 %v1187
  %v1256 = vpop.f32.mrf.mxu0
  %v1257 = vadd.f32 0.0, %v1256
  %v1258 = vpop.f32.mrf.mxu0
  %v1259 = vadd.f32 0.0, %v1258
  %1260 = vmatmul.bf16.gmra.mxu0 %v1189
  %v1261 = vpop.f32.mrf.mxu0
  %v1262 = vadd.f32 0.0, %v1261
  %v1263 = vpop.f32.mrf.mxu0
  %v1264 = vadd.f32 0.0, %v1263
  %1265 = vmatmul.bf16.gmra.mxu0 %v1191
  %v1266 = vpop.f32.mrf.mxu0
  %v1267 = vadd.f32 0.0, %v1266
  %v1268 = vpop.f32.mrf.mxu0
  %v1269 = vadd.f32 0.0, %v1268
  %1270 = vdwg.mxu0
  %1271 = vmatpush.bf16.msra.mxu0 %v374
  %1272 = vmatpush.bf16.msra.mxu0 %v370
  %1273 = vmatpush.bf16.msra.mxu0 %v366
  %1274 = vmatpush.bf16.msra.mxu0 %v362
  %1275 = vmatpush.bf16.msra.mxu0 %v358
  %1276 = vmatpush.bf16.msra.mxu0 %v354
  %1277 = vmatpush.bf16.msra.mxu0 %v350
  %1278 = vmatpush.bf16.msra.mxu0 %v346
  %1279 = vmatmul.bf16.gmra.mxu0 %v1188
  %v1280 = vpop.f32.mrf.mxu0
  %v1281 = vadd.f32 %v1257, %v1280
  %v1282 = vpop.f32.mrf.mxu0
  %v1283 = vadd.f32 %v1259, %v1282
  %1284 = vmatmul.bf16.gmra.mxu0 %v1190
  %v1285 = vpop.f32.mrf.mxu0
  %v1286 = vadd.f32 %v1262, %v1285
  %v1287 = vpop.f32.mrf.mxu0
  %v1288 = vadd.f32 %v1264, %v1287
  %1289 = vmatmul.bf16.gmra.mxu0 %v1192
  %v1290 = vpop.f32.mrf.mxu0
  %v1291 = vadd.f32 %v1267, %v1290
  %v1292 = vpop.f32.mrf.mxu0
  %v1293 = vadd.f32 %v1269, %v1292
  %1294 = vdwg.mxu0
  %1295 = vmatpush.bf16.msra.mxu0 %v343
  %1296 = vmatpush.bf16.msra.mxu0 %v339
  %1297 = vmatpush.bf16.msra.mxu0 %v335
  %1298 = vmatpush.bf16.msra.mxu0 %v331
  %1299 = vmatpush.bf16.msra.mxu0 %v327
  %1300 = vmatpush.bf16.msra.mxu0 %v323
  %1301 = vmatpush.bf16.msra.mxu0 %v319
  %1302 = vmatpush.bf16.msra.mxu0 %v315
  %1303 = vmatmul.bf16.gmra.mxu0 %v1187
  %v1304 = vpop.f32.mrf.mxu0
  %v1305 = vadd.f32 0.0, %v1304
  %v1306 = vpop.f32.mrf.mxu0
  %v1307 = vadd.f32 0.0, %v1306
  %1308 = vmatmul.bf16.gmra.mxu0 %v1189
  %v1309 = vpop.f32.mrf.mxu0
  %v1310 = vadd.f32 0.0, %v1309
  %v1311 = vpop.f32.mrf.mxu0
  %v1312 = vadd.f32 0.0, %v1311
  %1313 = vmatmul.bf16.gmra.mxu0 %v1191
  %v1314 = vpop.f32.mrf.mxu0
  %v1315 = vadd.f32 0.0, %v1314
  %v1316 = vpop.f32.mrf.mxu0
  %v1317 = vadd.f32 0.0, %v1316
  %1318 = vdwg.mxu0
  %1319 = vmatpush.bf16.msra.mxu0 %v375
  %1320 = vmatpush.bf16.msra.mxu0 %v371
  %1321 = vmatpush.bf16.msra.mxu0 %v367
  %1322 = vmatpush.bf16.msra.mxu0 %v363
  %1323 = vmatpush.bf16.msra.mxu0 %v359
  %1324 = vmatpush.bf16.msra.mxu0 %v355
  %1325 = vmatpush.bf16.msra.mxu0 %v351
  %1326 = vmatpush.bf16.msra.mxu0 %v347
  %1327 = vmatmul.bf16.gmra.mxu0 %v1188
  %v1328 = vpop.f32.mrf.mxu0
  %v1329 = vadd.f32 %v1305, %v1328
  %v1330 = vpop.f32.mrf.mxu0
  %v1331 = vadd.f32 %v1307, %v1330
  %1332 = vmatmul.bf16.gmra.mxu0 %v1190
  %v1333 = vpop.f32.mrf.mxu0
  %v1334 = vadd.f32 %v1310, %v1333
  %v1335 = vpop.f32.mrf.mxu0
  %v1336 = vadd.f32 %v1312, %v1335
  %1337 = vmatmul.bf16.gmra.mxu0 %v1192
  %v1338 = vpop.f32.mrf.mxu0
  %v1339 = vadd.f32 %v1315, %v1338
  %v1340 = vpop.f32.mrf.mxu0
  %v1341 = vadd.f32 %v1317, %v1340
  %1342 = vdwg.mxu0
  %1343 = vmatpush.bf16.msra.mxu0 %v344
  %1344 = vmatpush.bf16.msra.mxu0 %v340
  %1345 = vmatpush.bf16.msra.mxu0 %v336
  %1346 = vmatpush.bf16.msra.mxu0 %v332
  %1347 = vmatpush.bf16.msra.mxu0 %v328
  %1348 = vmatpush.bf16.msra.mxu0 %v324
  %1349 = vmatpush.bf16.msra.mxu0 %v320
  %1350 = vmatpush.bf16.msra.mxu0 %v316
  %1351 = vmatmul.bf16.gmra.mxu0 %v1187
  %v1352 = vpop.f32.mrf.mxu0
  %v1353 = vadd.f32 0.0, %v1352
  %v1354 = vpop.f32.mrf.mxu0
  %v1355 = vadd.f32 0.0, %v1354
  %1356 = vmatmul.bf16.gmra.mxu0 %v1189
  %v1357 = vpop.f32.mrf.mxu0
  %v1358 = vadd.f32 0.0, %v1357
  %v1359 = vpop.f32.mrf.mxu0
  %v1360 = vadd.f32 0.0, %v1359
  %1361 = vmatmul.bf16.gmra.mxu0 %v1191
  %v1362 = vpop.f32.mrf.mxu0
  %v1363 = vadd.f32 0.0, %v1362
  %v1364 = vpop.f32.mrf.mxu0
  %v1365 = vadd.f32 0.0, %v1364
  %1366 = vdwg.mxu0
  %1367 = vmatpush.bf16.msra.mxu0 %v376
  %1368 = vmatpush.bf16.msra.mxu0 %v372
  %1369 = vmatpush.bf16.msra.mxu0 %v368
  %1370 = vmatpush.bf16.msra.mxu0 %v364
  %1371 = vmatpush.bf16.msra.mxu0 %v360
  %1372 = vmatpush.bf16.msra.mxu0 %v356
  %1373 = vmatpush.bf16.msra.mxu0 %v352
  %1374 = vmatpush.bf16.msra.mxu0 %v348
  %1375 = vmatmul.bf16.gmra.mxu0 %v1188
  %v1376 = vpop.f32.mrf.mxu0
  %v1377 = vadd.f32 %v1353, %v1376
  %v1378 = vpop.f32.mrf.mxu0
  %v1379 = vadd.f32 %v1355, %v1378
  %1380 = vmatmul.bf16.gmra.mxu0 %v1190
  %v1381 = vpop.f32.mrf.mxu0
  %v1382 = vadd.f32 %v1358, %v1381
  %v1383 = vpop.f32.mrf.mxu0
  %v1384 = vadd.f32 %v1360, %v1383
  %1385 = vmatmul.bf16.gmra.mxu0 %v1192
  %v1386 = vpop.f32.mrf.mxu0
  %v1387 = vadd.f32 %v1363, %v1386
  %v1388 = vpop.f32.mrf.mxu0
  %v1389 = vadd.f32 %v1365, %v1388
  %1390 = vdwg.mxu0
  %v1391 = vmax.f32 %v1004, %v1100
  %v1392 = vmax.f32 %v1052, %v1148
  %v1393 = vmax.f32 %v1006, %v1102
  %v1394 = vmax.f32 %v1054, %v1150
  %v1395 = vmax.f32 %v1009, %v1105
  %v1396 = vmax.f32 %v1057, %v1153
  %v1397 = vmax.f32 %v1011, %v1107
  %v1398 = vmax.f32 %v1059, %v1155
  %v1399 = vmax.f32 %v1014, %v1110
  %v1400 = vmax.f32 %v1062, %v1158
  %v1401 = vmax.f32 %v1016, %v1112
  %v1402 = vmax.f32 %v1064, %v1160
  %v1403 = vmax.f32 %v1233, %v1329
  %v1404 = vmax.f32 %v1281, %v1377
  %v1405 = vmax.f32 %v1235, %v1331
  %v1406 = vmax.f32 %v1283, %v1379
  %v1407 = vmax.f32 %v1238, %v1334
  %v1408 = vmax.f32 %v1286, %v1382
  %v1409 = vmax.f32 %v1240, %v1336
  %v1410 = vmax.f32 %v1288, %v1384
  %v1411 = vmax.f32 %v1243, %v1339
  %v1412 = vmax.f32 %v1291, %v1387
  %v1413 = vmax.f32 %v1245, %v1341
  %v1414 = vmax.f32 %v1293, %v1389
  %v1415 = vmax.f32 %v1391, %v1403
  %v1416 = vmax.f32 %v1392, %v1404
  %v1417 = vmax.f32 %v1393, %v1405
  %v1418 = vmax.f32 %v1394, %v1406
  %v1419 = vmax.f32 %v1395, %v1407
  %v1420 = vmax.f32 %v1396, %v1408
  %v1421 = vmax.f32 %v1397, %v1409
  %v1422 = vmax.f32 %v1398, %v1410
  %v1423 = vmax.f32 %v1399, %v1411
  %v1424 = vmax.f32 %v1400, %v1412
  %v1425 = vmax.f32 %v1401, %v1413
  %v1426 = vmax.f32 %v1402, %v1414
  %v1427 = vadd.f32 %v1415, %v899
  %v1428 = vadd.f32 %v1416, %v900
  %v1429 = vadd.f32 %v1417, %v899
  %v1430 = vadd.f32 %v1418, %v900
  %v1431 = vadd.f32 %v1419, %v899
  %v1432 = vadd.f32 %v1420, %v900
  %v1433 = vadd.f32 %v1421, %v899
  %v1434 = vadd.f32 %v1422, %v900
  %v1435 = vadd.f32 %v1423, %v899
  %v1436 = vadd.f32 %v1424, %v900
  %v1437 = vadd.f32 %v1425, %v899
  %v1438 = vadd.f32 %v1426, %v900
  %v1439 = vmax.f32 %v1427, 0.0
  %v1440 = vmax.f32 %v1428, 0.0
  %v1441 = vmax.f32 %v1429, 0.0
  %v1442 = vmax.f32 %v1430, 0.0
  %v1443 = vmax.f32 %v1431, 0.0
  %v1444 = vmax.f32 %v1432, 0.0
  %v1445 = vmax.f32 %v1433, 0.0
  %v1446 = vmax.f32 %v1434, 0.0
  %v1447 = vmax.f32 %v1435, 0.0
  %v1448 = vmax.f32 %v1436, 0.0
  %v1449 = vmax.f32 %v1437, 0.0
  %v1450 = vmax.f32 %v1438, 0.0
  %v1451 = vpack.c.bf16 %v1440, %v1439
  %v1452 = vpack.c.bf16 %v1442, %v1441
  %v1453 = vpack.c.bf16 %v1444, %v1443
  %v1454 = vpack.c.bf16 %v1446, %v1445
  %v1455 = vpack.c.bf16 %v1448, %v1447
  %v1456 = vpack.c.bf16 %v1450, %v1449
  %v1457 = vld [vmem:[%s4] sm:$0x3]
  %v1458 = vld [vmem:[%s3] sm:$0xff]
  %v1459 = vld [vmem:[%s3 + $0x8] sm:$0xff]
  %v1460 = vld [vmem:[%s3 + $0x10] sm:$0xff]
  %v1461 = vld [vmem:[%s3 + $0x18] sm:$0xff]
  %v1462 = vld [vmem:[%s3 + $0x20] sm:$0xff]
  %v1463 = vld [vmem:[%s3 + $0x28] sm:$0xff]
  %v1464 = vld [vmem:[%s3 + $0x30] sm:$0xff]
  %v1465 = vld [vmem:[%s3 + $0x38] sm:$0xff]
  %v1466 = vld [vmem:[%s3 + $0x40] sm:$0xff]
  %v1467 = vld [vmem:[%s3 + $0x48] sm:$0xff]
  %v1468 = vld [vmem:[%s3 + $0x50] sm:$0xff]
  %v1469 = vld [vmem:[%s3 + $0x58] sm:$0xff]
  %v1470 = vld [vmem:[%s3 + $0x60] sm:$0xff]
  %v1471 = vld [vmem:[%s3 + $0x68] sm:$0xff]
  %v1472 = vld [vmem:[%s3 + $0x70] sm:$0xff]
  %v1473 = vld [vmem:[%s3 + $0x78] sm:$0xff]
  %v1474 = vld [vmem:[%s3 + $0x80] sm:$0xff]
  %v1475 = vld [vmem:[%s3 + $0x88] sm:$0xff]
  %v1476 = vld [vmem:[%s3 + $0x90] sm:$0xff]
  %v1477 = vld [vmem:[%s3 + $0x98] sm:$0xff]
  %v1478 = vld [vmem:[%s3 + $0xa0] sm:$0xff]
  %v1479 = vld [vmem:[%s3 + $0xa8] sm:$0xff]
  %v1480 = vld [vmem:[%s3 + $0xb0] sm:$0xff]
  %v1481 = vld [vmem:[%s3 + $0xb8] sm:$0xff]
  %v1482 = vld [vmem:[%s3 + $0xc0] sm:$0xff]
  %v1483 = vld [vmem:[%s3 + $0xc8] sm:$0xff]
  %v1484 = vld [vmem:[%s3 + $0xd0] sm:$0xff]
  %v1485 = vld [vmem:[%s3 + $0xd8] sm:$0xff]
  %v1486 = vld [vmem:[%s3 + $0xe0] sm:$0xff]
  %v1487 = vld [vmem:[%s3 + $0xe8] sm:$0xff]
  %v1488 = vld [vmem:[%s3 + $0xf0] sm:$0xff]
  %v1489 = vld [vmem:[%s3 + $0xf8] sm:$0xff]
  %v1490 = vld [vmem:[%s3 + $0x100] sm:$0xff]
  %v1491 = vld [vmem:[%s3 + $0x108] sm:$0xff]
  %v1492 = vld [vmem:[%s3 + $0x110] sm:$0xff]
  %v1493 = vld [vmem:[%s3 + $0x118] sm:$0xff]
  %v1494 = vld [vmem:[%s3 + $0x120] sm:$0xff]
  %v1495 = vld [vmem:[%s3 + $0x128] sm:$0xff]
  %v1496 = vld [vmem:[%s3 + $0x130] sm:$0xff]
  %v1497 = vld [vmem:[%s3 + $0x138] sm:$0xff]
  %v1498 = vld [vmem:[%s3 + $0x140] sm:$0xff]
  %v1499 = vld [vmem:[%s3 + $0x148] sm:$0xff]
  %v1500 = vld [vmem:[%s3 + $0x150] sm:$0xff]
  %v1501 = vld [vmem:[%s3 + $0x158] sm:$0xff]
  %v1502 = vld [vmem:[%s3 + $0x160] sm:$0xff]
  %v1503 = vld [vmem:[%s3 + $0x168] sm:$0xff]
  %v1504 = vld [vmem:[%s3 + $0x170] sm:$0xff]
  %v1505 = vld [vmem:[%s3 + $0x178] sm:$0xff]
  %v1506 = vld [vmem:[%s3 + $0x180] sm:$0xff]
  %v1507 = vld [vmem:[%s3 + $0x188] sm:$0xff]
  %v1508 = vld [vmem:[%s3 + $0x190] sm:$0xff]
  %v1509 = vld [vmem:[%s3 + $0x198] sm:$0xff]
  %v1510 = vld [vmem:[%s3 + $0x1a0] sm:$0xff]
  %v1511 = vld [vmem:[%s3 + $0x1a8] sm:$0xff]
  %v1512 = vld [vmem:[%s3 + $0x1b0] sm:$0xff]
  %v1513 = vld [vmem:[%s3 + $0x1b8] sm:$0xff]
  %v1514 = vld [vmem:[%s3 + $0x1c0] sm:$0xff]
  %v1515 = vld [vmem:[%s3 + $0x1c8] sm:$0xff]
  %v1516 = vld [vmem:[%s3 + $0x1d0] sm:$0xff]
  %v1517 = vld [vmem:[%s3 + $0x1d8] sm:$0xff]
  %v1518 = vld [vmem:[%s3 + $0x1e0] sm:$0xff]
  %v1519 = vld [vmem:[%s3 + $0x1e8] sm:$0xff]
  %v1520 = vld [vmem:[%s3 + $0x1f0] sm:$0xff]
  %v1521 = vld [vmem:[%s3 + $0x1f8] sm:$0xff]
  %s1522 = scalar_lea.vmem %s3, 512
  %v1523 = vld [vmem:[%s1522] sm:$0xff]
  %v1524 = vld [vmem:[%s1522 + $0x8] sm:$0xff]
  %v1525 = vld [vmem:[%s1522 + $0x10] sm:$0xff]
  %v1526 = vld [vmem:[%s1522 + $0x18] sm:$0xff]
  %v1527 = vld [vmem:[%s1522 + $0x20] sm:$0xff]
  %v1528 = vld [vmem:[%s1522 + $0x28] sm:$0xff]
  %v1529 = vld [vmem:[%s1522 + $0x30] sm:$0xff]
  %v1530 = vld [vmem:[%s1522 + $0x38] sm:$0xff]
  %v1531 = vld [vmem:[%s1522 + $0x40] sm:$0xff]
  %v1532 = vld [vmem:[%s1522 + $0x48] sm:$0xff]
  %v1533 = vld [vmem:[%s1522 + $0x50] sm:$0xff]
  %v1534 = vld [vmem:[%s1522 + $0x58] sm:$0xff]
  %v1535 = vld [vmem:[%s1522 + $0x60] sm:$0xff]
  %v1536 = vld [vmem:[%s1522 + $0x68] sm:$0xff]
  %v1537 = vld [vmem:[%s1522 + $0x70] sm:$0xff]
  %v1538 = vld [vmem:[%s1522 + $0x78] sm:$0xff]
  %v1539 = vld [vmem:[%s1522 + $0x80] sm:$0xff]
  %v1540 = vld [vmem:[%s1522 + $0x88] sm:$0xff]
  %v1541 = vld [vmem:[%s1522 + $0x90] sm:$0xff]
  %v1542 = vld [vmem:[%s1522 + $0x98] sm:$0xff]
  %v1543 = vld [vmem:[%s1522 + $0xa0] sm:$0xff]
  %v1544 = vld [vmem:[%s1522 + $0xa8] sm:$0xff]
  %v1545 = vld [vmem:[%s1522 + $0xb0] sm:$0xff]
  %v1546 = vld [vmem:[%s1522 + $0xb8] sm:$0xff]
  %v1547 = vld [vmem:[%s1522 + $0xc0] sm:$0xff]
  %v1548 = vld [vmem:[%s1522 + $0xc8] sm:$0xff]
  %v1549 = vld [vmem:[%s1522 + $0xd0] sm:$0xff]
  %v1550 = vld [vmem:[%s1522 + $0xd8] sm:$0xff]
  %v1551 = vld [vmem:[%s1522 + $0xe0] sm:$0xff]
  %v1552 = vld [vmem:[%s1522 + $0xe8] sm:$0xff]
  %v1553 = vld [vmem:[%s1522 + $0xf0] sm:$0xff]
  %v1554 = vld [vmem:[%s1522 + $0xf8] sm:$0xff]
  %v1555 = vld [vmem:[%s1522 + $0x100] sm:$0xff]
  %v1556 = vld [vmem:[%s1522 + $0x108] sm:$0xff]
  %v1557 = vld [vmem:[%s1522 + $0x110] sm:$0xff]
  %v1558 = vld [vmem:[%s1522 + $0x118] sm:$0xff]
  %v1559 = vld [vmem:[%s1522 + $0x120] sm:$0xff]
  %v1560 = vld [vmem:[%s1522 + $0x128] sm:$0xff]
  %v1561 = vld [vmem:[%s1522 + $0x130] sm:$0xff]
  %v1562 = vld [vmem:[%s1522 + $0x138] sm:$0xff]
  %v1563 = vld [vmem:[%s1522 + $0x140] sm:$0xff]
  %v1564 = vld [vmem:[%s1522 + $0x148] sm:$0xff]
  %v1565 = vld [vmem:[%s1522 + $0x150] sm:$0xff]
  %v1566 = vld [vmem:[%s1522 + $0x158] sm:$0xff]
  %v1567 = vld [vmem:[%s1522 + $0x160] sm:$0xff]
  %v1568 = vld [vmem:[%s1522 + $0x168] sm:$0xff]
  %v1569 = vld [vmem:[%s1522 + $0x170] sm:$0xff]
  %v1570 = vld [vmem:[%s1522 + $0x178] sm:$0xff]
  %v1571 = vld [vmem:[%s1522 + $0x180] sm:$0xff]
  %v1572 = vld [vmem:[%s1522 + $0x188] sm:$0xff]
  %v1573 = vld [vmem:[%s1522 + $0x190] sm:$0xff]
  %v1574 = vld [vmem:[%s1522 + $0x198] sm:$0xff]
  %v1575 = vld [vmem:[%s1522 + $0x1a0] sm:$0xff]
  %v1576 = vld [vmem:[%s1522 + $0x1a8] sm:$0xff]
  %v1577 = vld [vmem:[%s1522 + $0x1b0] sm:$0xff]
  %v1578 = vld [vmem:[%s1522 + $0x1b8] sm:$0xff]
  %v1579 = vld [vmem:[%s1522 + $0x1c0] sm:$0xff]
  %v1580 = vld [vmem:[%s1522 + $0x1c8] sm:$0xff]
  %v1581 = vld [vmem:[%s1522 + $0x1d0] sm:$0xff]
  %v1582 = vld [vmem:[%s1522 + $0x1d8] sm:$0xff]
  %v1583 = vld [vmem:[%s1522 + $0x1e0] sm:$0xff]
  %v1584 = vld [vmem:[%s1522 + $0x1e8] sm:$0xff]
  %v1585 = vld [vmem:[%s1522 + $0x1f0] sm:$0xff]
  %v1586 = vld [vmem:[%s1522 + $0x1f8] sm:$0xff]
  %v1591 = vunpack.c.l.b16 %v1451
  %v1592 = vunpack.c.h.b16 %v1451
  %v1593 = vunpack.c.l.b16 %v1452
  %v1594 = vunpack.c.h.b16 %v1452
  %v1595 = vunpack.c.l.b16 %v1453
  %v1596 = vunpack.c.h.b16 %v1453
  %v1597 = vunpack.c.l.b16 %v1454
  %v1598 = vunpack.c.h.b16 %v1454
  %v1599 = vpack.c.b16 %v1593, %v1591
  %v1600 = vpack.c.b16 %v1594, %v1592
  %v1601 = vpack.c.b16 %v1597, %v1595
  %v1602 = vpack.c.b16 %v1598, %v1596
  %v1671 = vunpack.c.l.b16 %v1523
  %v1672 = vunpack.c.h.b16 %v1523
  %v1673 = vunpack.c.l.b16 %v1524
  %v1674 = vunpack.c.h.b16 %v1524
  %v1675 = vunpack.c.l.b16 %v1525
  %v1676 = vunpack.c.h.b16 %v1525
  %v1677 = vunpack.c.l.b16 %v1526
  %v1678 = vunpack.c.h.b16 %v1526
  %v1679 = vunpack.c.l.b16 %v1527
  %v1680 = vunpack.c.h.b16 %v1527
  %v1681 = vunpack.c.l.b16 %v1528
  %v1682 = vunpack.c.h.b16 %v1528
  %v1683 = vunpack.c.l.b16 %v1529
  %v1684 = vunpack.c.h.b16 %v1529
  %v1685 = vunpack.c.l.b16 %v1530
  %v1686 = vunpack.c.h.b16 %v1530
  %v1687 = vunpack.c.l.b16 %v1531
  %v1688 = vunpack.c.h.b16 %v1531
  %v1689 = vunpack.c.l.b16 %v1532
  %v1690 = vunpack.c.h.b16 %v1532
  %v1691 = vunpack.c.l.b16 %v1533
  %v1692 = vunpack.c.h.b16 %v1533
  %v1693 = vunpack.c.l.b16 %v1534
  %v1694 = vunpack.c.h.b16 %v1534
  %v1695 = vunpack.c.l.b16 %v1535
  %v1696 = vunpack.c.h.b16 %v1535
  %v1697 = vunpack.c.l.b16 %v1536
  %v1698 = vunpack.c.h.b16 %v1536
  %v1699 = vunpack.c.l.b16 %v1537
  %v1700 = vunpack.c.h.b16 %v1537
  %v1701 = vunpack.c.l.b16 %v1538
  %v1702 = vunpack.c.h.b16 %v1538
  %v1703 = vunpack.c.l.b16 %v1539
  %v1704 = vunpack.c.h.b16 %v1539
  %v1705 = vunpack.c.l.b16 %v1540
  %v1706 = vunpack.c.h.b16 %v1540
  %v1707 = vunpack.c.l.b16 %v1541
  %v1708 = vunpack.c.h.b16 %v1541
  %v1709 = vunpack.c.l.b16 %v1542
  %v1710 = vunpack.c.h.b16 %v1542
  %v1711 = vunpack.c.l.b16 %v1543
  %v1712 = vunpack.c.h.b16 %v1543
  %v1713 = vunpack.c.l.b16 %v1544
  %v1714 = vunpack.c.h.b16 %v1544
  %v1715 = vunpack.c.l.b16 %v1545
  %v1716 = vunpack.c.h.b16 %v1545
  %v1717 = vunpack.c.l.b16 %v1546
  %v1718 = vunpack.c.h.b16 %v1546
  %v1719 = vunpack.c.l.b16 %v1547
  %v1720 = vunpack.c.h.b16 %v1547
  %v1721 = vunpack.c.l.b16 %v1548
  %v1722 = vunpack.c.h.b16 %v1548
  %v1723 = vunpack.c.l.b16 %v1549
  %v1724 = vunpack.c.h.b16 %v1549
  %v1725 = vunpack.c.l.b16 %v1550
  %v1726 = vunpack.c.h.b16 %v1550
  %v1727 = vunpack.c.l.b16 %v1551
  %v1728 = vunpack.c.h.b16 %v1551
  %v1729 = vunpack.c.l.b16 %v1552
  %v1730 = vunpack.c.h.b16 %v1552
  %v1731 = vunpack.c.l.b16 %v1553
  %v1732 = vunpack.c.h.b16 %v1553
  %v1733 = vunpack.c.l.b16 %v1554
  %v1734 = vunpack.c.h.b16 %v1554
  %v1735 = vunpack.c.l.b16 %v1555
  %v1736 = vunpack.c.h.b16 %v1555
  %v1737 = vunpack.c.l.b16 %v1556
  %v1738 = vunpack.c.h.b16 %v1556
  %v1739 = vunpack.c.l.b16 %v1557
  %v1740 = vunpack.c.h.b16 %v1557
  %v1741 = vunpack.c.l.b16 %v1558
  %v1742 = vunpack.c.h.b16 %v1558
  %v1743 = vunpack.c.l.b16 %v1559
  %v1744 = vunpack.c.h.b16 %v1559
  %v1745 = vunpack.c.l.b16 %v1560
  %v1746 = vunpack.c.h.b16 %v1560
  %v1747 = vunpack.c.l.b16 %v1561
  %v1748 = vunpack.c.h.b16 %v1561
  %v1749 = vunpack.c.l.b16 %v1562
  %v1750 = vunpack.c.h.b16 %v1562
  %v1751 = vunpack.c.l.b16 %v1563
  %v1752 = vunpack.c.h.b16 %v1563
  %v1753 = vunpack.c.l.b16 %v1564
  %v1754 = vunpack.c.h.b16 %v1564
  %v1755 = vunpack.c.l.b16 %v1565
  %v1756 = vunpack.c.h.b16 %v1565
  %v1757 = vunpack.c.l.b16 %v1566
  %v1758 = vunpack.c.h.b16 %v1566
  %v1759 = vunpack.c.l.b16 %v1567
  %v1760 = vunpack.c.h.b16 %v1567
  %v1761 = vunpack.c.l.b16 %v1568
  %v1762 = vunpack.c.h.b16 %v1568
  %v1763 = vunpack.c.l.b16 %v1569
  %v1764 = vunpack.c.h.b16 %v1569
  %v1765 = vunpack.c.l.b16 %v1570
  %v1766 = vunpack.c.h.b16 %v1570
  %v1767 = vunpack.c.l.b16 %v1571
  %v1768 = vunpack.c.h.b16 %v1571
  %v1769 = vunpack.c.l.b16 %v1572
  %v1770 = vunpack.c.h.b16 %v1572
  %v1771 = vunpack.c.l.b16 %v1573
  %v1772 = vunpack.c.h.b16 %v1573
  %v1773 = vunpack.c.l.b16 %v1574
  %v1774 = vunpack.c.h.b16 %v1574
  %v1775 = vunpack.c.l.b16 %v1575
  %v1776 = vunpack.c.h.b16 %v1575
  %v1777 = vunpack.c.l.b16 %v1576
  %v1778 = vunpack.c.h.b16 %v1576
  %v1779 = vunpack.c.l.b16 %v1577
  %v1780 = vunpack.c.h.b16 %v1577
  %v1781 = vunpack.c.l.b16 %v1578
  %v1782 = vunpack.c.h.b16 %v1578
  %v1783 = vunpack.c.l.b16 %v1579
  %v1784 = vunpack.c.h.b16 %v1579
  %v1785 = vunpack.c.l.b16 %v1580
  %v1786 = vunpack.c.h.b16 %v1580
  %v1787 = vunpack.c.l.b16 %v1581
  %v1788 = vunpack.c.h.b16 %v1581
  %v1789 = vunpack.c.l.b16 %v1582
  %v1790 = vunpack.c.h.b16 %v1582
  %v1791 = vunpack.c.l.b16 %v1583
  %v1792 = vunpack.c.h.b16 %v1583
  %v1793 = vunpack.c.l.b16 %v1584
  %v1794 = vunpack.c.h.b16 %v1584
  %v1795 = vunpack.c.l.b16 %v1585
  %v1796 = vunpack.c.h.b16 %v1585
  %v1797 = vunpack.c.l.b16 %v1586
  %v1798 = vunpack.c.h.b16 %v1586
  %v1799 = vpack.c.b16 %v1675, %v1671
  %v1800 = vpack.c.b16 %v1676, %v1672
  %v1801 = vpack.c.b16 %v1677, %v1673
  %v1802 = vpack.c.b16 %v1678, %v1674
  %v1803 = vpack.c.b16 %v1683, %v1679
  %v1804 = vpack.c.b16 %v1684, %v1680
  %v1805 = vpack.c.b16 %v1685, %v1681
  %v1806 = vpack.c.b16 %v1686, %v1682
  %v1807 = vpack.c.b16 %v1691, %v1687
  %v1808 = vpack.c.b16 %v1692, %v1688
  %v1809 = vpack.c.b16 %v1693, %v1689
  %v1810 = vpack.c.b16 %v1694, %v1690
  %v1811 = vpack.c.b16 %v1699, %v1695
  %v1812 = vpack.c.b16 %v1700, %v1696
  %v1813 = vpack.c.b16 %v1701, %v1697
  %v1814 = vpack.c.b16 %v1702, %v1698
  %v1815 = vpack.c.b16 %v1707, %v1703
  %v1816 = vpack.c.b16 %v1708, %v1704
  %v1817 = vpack.c.b16 %v1709, %v1705
  %v1818 = vpack.c.b16 %v1710, %v1706
  %v1819 = vpack.c.b16 %v1715, %v1711
  %v1820 = vpack.c.b16 %v1716, %v1712
  %v1821 = vpack.c.b16 %v1717, %v1713
  %v1822 = vpack.c.b16 %v1718, %v1714
  %v1823 = vpack.c.b16 %v1723, %v1719
  %v1824 = vpack.c.b16 %v1724, %v1720
  %v1825 = vpack.c.b16 %v1725, %v1721
  %v1826 = vpack.c.b16 %v1726, %v1722
  %v1827 = vpack.c.b16 %v1731, %v1727
  %v1828 = vpack.c.b16 %v1732, %v1728
  %v1829 = vpack.c.b16 %v1733, %v1729
  %v1830 = vpack.c.b16 %v1734, %v1730
  %v1831 = vpack.c.b16 %v1739, %v1735
  %v1832 = vpack.c.b16 %v1740, %v1736
  %v1833 = vpack.c.b16 %v1741, %v1737
  %v1834 = vpack.c.b16 %v1742, %v1738
  %v1835 = vpack.c.b16 %v1747, %v1743
  %v1836 = vpack.c.b16 %v1748, %v1744
  %v1837 = vpack.c.b16 %v1749, %v1745
  %v1838 = vpack.c.b16 %v1750, %v1746
  %v1839 = vpack.c.b16 %v1755, %v1751
  %v1840 = vpack.c.b16 %v1756, %v1752
  %v1841 = vpack.c.b16 %v1757, %v1753
  %v1842 = vpack.c.b16 %v1758, %v1754
  %v1843 = vpack.c.b16 %v1763, %v1759
  %v1844 = vpack.c.b16 %v1764, %v1760
  %v1845 = vpack.c.b16 %v1765, %v1761
  %v1846 = vpack.c.b16 %v1766, %v1762
  %v1847 = vpack.c.b16 %v1771, %v1767
  %v1848 = vpack.c.b16 %v1772, %v1768
  %v1849 = vpack.c.b16 %v1773, %v1769
  %v1850 = vpack.c.b16 %v1774, %v1770
  %v1851 = vpack.c.b16 %v1779, %v1775
  %v1852 = vpack.c.b16 %v1780, %v1776
  %v1853 = vpack.c.b16 %v1781, %v1777
  %v1854 = vpack.c.b16 %v1782, %v1778
  %v1855 = vpack.c.b16 %v1787, %v1783
  %v1856 = vpack.c.b16 %v1788, %v1784
  %v1857 = vpack.c.b16 %v1789, %v1785
  %v1858 = vpack.c.b16 %v1790, %v1786
  %v1859 = vpack.c.b16 %v1795, %v1791
  %v1860 = vpack.c.b16 %v1796, %v1792
  %v1861 = vpack.c.b16 %v1797, %v1793
  %v1862 = vpack.c.b16 %v1798, %v1794
  %1927 = vmatpush.bf16.msra.mxu0 %v1827
  %1928 = vmatpush.bf16.msra.mxu0 %v1823
  %1929 = vmatpush.bf16.msra.mxu0 %v1819
  %1930 = vmatpush.bf16.msra.mxu0 %v1815
  %1931 = vmatpush.bf16.msra.mxu0 %v1811
  %1932 = vmatpush.bf16.msra.mxu0 %v1807
  %1933 = vmatpush.bf16.msra.mxu0 %v1803
  %1934 = vmatpush.bf16.msra.mxu0 %v1799
  %1935 = vmatmul.bf16.gmra.mxu0 %v1599
  %v1936 = vpop.f32.mrf.mxu0
  %v1937 = vadd.f32 0.0, %v1936
  %v1938 = vpop.f32.mrf.mxu0
  %v1939 = vadd.f32 0.0, %v1938
  %1940 = vmatmul.bf16.gmra.mxu0 %v1601
  %v1941 = vpop.f32.mrf.mxu0
  %v1942 = vadd.f32 0.0, %v1941
  %v1943 = vpop.f32.mrf.mxu0
  %v1944 = vadd.f32 0.0, %v1943
  %1945 = vdwg.mxu0
  %1946 = vmatpush.bf16.msra.mxu0 %v1859
  %1947 = vmatpush.bf16.msra.mxu0 %v1855
  %1948 = vmatpush.bf16.msra.mxu0 %v1851
  %1949 = vmatpush.bf16.msra.mxu0 %v1847
  %1950 = vmatpush.bf16.msra.mxu0 %v1843
  %1951 = vmatpush.bf16.msra.mxu0 %v1839
  %1952 = vmatpush.bf16.msra.mxu0 %v1835
  %1953 = vmatpush.bf16.msra.mxu0 %v1831
  %1954 = vmatmul.bf16.gmra.mxu0 %v1600
  %v1955 = vpop.f32.mrf.mxu0
  %v1956 = vadd.f32 %v1937, %v1955
  %v1957 = vpop.f32.mrf.mxu0
  %v1958 = vadd.f32 %v1939, %v1957
  %1959 = vmatmul.bf16.gmra.mxu0 %v1602
  %v1960 = vpop.f32.mrf.mxu0
  %v1961 = vadd.f32 %v1942, %v1960
  %v1962 = vpop.f32.mrf.mxu0
  %v1963 = vadd.f32 %v1944, %v1962
  %1964 = vdwg.mxu0
  %1965 = vmatpush.bf16.msra.mxu0 %v1828
  %1966 = vmatpush.bf16.msra.mxu0 %v1824
  %1967 = vmatpush.bf16.msra.mxu0 %v1820
  %1968 = vmatpush.bf16.msra.mxu0 %v1816
  %1969 = vmatpush.bf16.msra.mxu0 %v1812
  %1970 = vmatpush.bf16.msra.mxu0 %v1808
  %1971 = vmatpush.bf16.msra.mxu0 %v1804
  %1972 = vmatpush.bf16.msra.mxu0 %v1800
  %1973 = vmatmul.bf16.gmra.mxu0 %v1599
  %v1974 = vpop.f32.mrf.mxu0
  %v1975 = vadd.f32 0.0, %v1974
  %v1976 = vpop.f32.mrf.mxu0
  %v1977 = vadd.f32 0.0, %v1976
  %1978 = vmatmul.bf16.gmra.mxu0 %v1601
  %v1979 = vpop.f32.mrf.mxu0
  %v1980 = vadd.f32 0.0, %v1979
  %v1981 = vpop.f32.mrf.mxu0
  %v1982 = vadd.f32 0.0, %v1981
  %1983 = vdwg.mxu0
  %1984 = vmatpush.bf16.msra.mxu0 %v1860
  %1985 = vmatpush.bf16.msra.mxu0 %v1856
  %1986 = vmatpush.bf16.msra.mxu0 %v1852
  %1987 = vmatpush.bf16.msra.mxu0 %v1848
  %1988 = vmatpush.bf16.msra.mxu0 %v1844
  %1989 = vmatpush.bf16.msra.mxu0 %v1840
  %1990 = vmatpush.bf16.msra.mxu0 %v1836
  %1991 = vmatpush.bf16.msra.mxu0 %v1832
  %1992 = vmatmul.bf16.gmra.mxu0 %v1600
  %v1993 = vpop.f32.mrf.mxu0
  %v1994 = vadd.f32 %v1975, %v1993
  %v1995 = vpop.f32.mrf.mxu0
  %v1996 = vadd.f32 %v1977, %v1995
  %1997 = vmatmul.bf16.gmra.mxu0 %v1602
  %v1998 = vpop.f32.mrf.mxu0
  %v1999 = vadd.f32 %v1980, %v1998
  %v2000 = vpop.f32.mrf.mxu0
  %v2001 = vadd.f32 %v1982, %v2000
  %2002 = vdwg.mxu0
  %2003 = vmatpush.bf16.msra.mxu0 %v1829
  %2004 = vmatpush.bf16.msra.mxu0 %v1825
  %2005 = vmatpush.bf16.msra.mxu0 %v1821
  %2006 = vmatpush.bf16.msra.mxu0 %v1817
  %2007 = vmatpush.bf16.msra.mxu0 %v1813
  %2008 = vmatpush.bf16.msra.mxu0 %v1809
  %2009 = vmatpush.bf16.msra.mxu0 %v1805
  %2010 = vmatpush.bf16.msra.mxu0 %v1801
  %2011 = vmatmul.bf16.gmra.mxu0 %v1599
  %v2012 = vpop.f32.mrf.mxu0
  %v2013 = vadd.f32 0.0, %v2012
  %v2014 = vpop.f32.mrf.mxu0
  %v2015 = vadd.f32 0.0, %v2014
  %2016 = vmatmul.bf16.gmra.mxu0 %v1601
  %v2017 = vpop.f32.mrf.mxu0
  %v2018 = vadd.f32 0.0, %v2017
  %v2019 = vpop.f32.mrf.mxu0
  %v2020 = vadd.f32 0.0, %v2019
  %2021 = vdwg.mxu0
  %2022 = vmatpush.bf16.msra.mxu0 %v1861
  %2023 = vmatpush.bf16.msra.mxu0 %v1857
  %2024 = vmatpush.bf16.msra.mxu0 %v1853
  %2025 = vmatpush.bf16.msra.mxu0 %v1849
  %2026 = vmatpush.bf16.msra.mxu0 %v1845
  %2027 = vmatpush.bf16.msra.mxu0 %v1841
  %2028 = vmatpush.bf16.msra.mxu0 %v1837
  %2029 = vmatpush.bf16.msra.mxu0 %v1833
  %2030 = vmatmul.bf16.gmra.mxu0 %v1600
  %v2031 = vpop.f32.mrf.mxu0
  %v2032 = vadd.f32 %v2013, %v2031
  %v2033 = vpop.f32.mrf.mxu0
  %v2034 = vadd.f32 %v2015, %v2033
  %2035 = vmatmul.bf16.gmra.mxu0 %v1602
  %v2036 = vpop.f32.mrf.mxu0
  %v2037 = vadd.f32 %v2018, %v2036
  %v2038 = vpop.f32.mrf.mxu0
  %v2039 = vadd.f32 %v2020, %v2038
  %2040 = vdwg.mxu0
  %2041 = vmatpush.bf16.msra.mxu0 %v1830
  %2042 = vmatpush.bf16.msra.mxu0 %v1826
  %2043 = vmatpush.bf16.msra.mxu0 %v1822
  %2044 = vmatpush.bf16.msra.mxu0 %v1818
  %2045 = vmatpush.bf16.msra.mxu0 %v1814
  %2046 = vmatpush.bf16.msra.mxu0 %v1810
  %2047 = vmatpush.bf16.msra.mxu0 %v1806
  %2048 = vmatpush.bf16.msra.mxu0 %v1802
  %2049 = vmatmul.bf16.gmra.mxu0 %v1599
  %v2050 = vpop.f32.mrf.mxu0
  %v2051 = vadd.f32 0.0, %v2050
  %v2052 = vpop.f32.mrf.mxu0
  %v2053 = vadd.f32 0.0, %v2052
  %2054 = vmatmul.bf16.gmra.mxu0 %v1601
  %v2055 = vpop.f32.mrf.mxu0
  %v2056 = vadd.f32 0.0, %v2055
  %v2057 = vpop.f32.mrf.mxu0
  %v2058 = vadd.f32 0.0, %v2057
  %2059 = vdwg.mxu0
  %2060 = vmatpush.bf16.msra.mxu0 %v1862
  %2061 = vmatpush.bf16.msra.mxu0 %v1858
  %2062 = vmatpush.bf16.msra.mxu0 %v1854
  %2063 = vmatpush.bf16.msra.mxu0 %v1850
  %2064 = vmatpush.bf16.msra.mxu0 %v1846
  %2065 = vmatpush.bf16.msra.mxu0 %v1842
  %2066 = vmatpush.bf16.msra.mxu0 %v1838
  %2067 = vmatpush.bf16.msra.mxu0 %v1834
  %2068 = vmatmul.bf16.gmra.mxu0 %v1600
  %v2069 = vpop.f32.mrf.mxu0
  %v2070 = vadd.f32 %v2051, %v2069
  %v2071 = vpop.f32.mrf.mxu0
  %v2072 = vadd.f32 %v2053, %v2071
  %2073 = vmatmul.bf16.gmra.mxu0 %v1602
  %v2074 = vpop.f32.mrf.mxu0
  %v2075 = vadd.f32 %v2056, %v2074
  %v2076 = vpop.f32.mrf.mxu0
  %v2077 = vadd.f32 %v2058, %v2076
  %2078 = vdwg.mxu0
  %v2083 = vunpack.c.l.b16 %v927
  %v2084 = vunpack.c.h.b16 %v927
  %v2085 = vunpack.c.l.b16 %v928
  %v2086 = vunpack.c.h.b16 %v928
  %v2087 = vunpack.c.l.b16 %v929
  %v2088 = vunpack.c.h.b16 %v929
  %v2089 = vunpack.c.l.b16 %v930
  %v2090 = vunpack.c.h.b16 %v930
  %v2091 = vpack.c.b16 %v2085, %v2083
  %v2092 = vpack.c.b16 %v2086, %v2084
  %v2093 = vpack.c.b16 %v2089, %v2087
  %v2094 = vpack.c.b16 %v2090, %v2088
  %v2163 = vunpack.c.l.b16 %v1458
  %v2164 = vunpack.c.h.b16 %v1458
  %v2165 = vunpack.c.l.b16 %v1459
  %v2166 = vunpack.c.h.b16 %v1459
  %v2167 = vunpack.c.l.b16 %v1460
  %v2168 = vunpack.c.h.b16 %v1460
  %v2169 = vunpack.c.l.b16 %v1461
  %v2170 = vunpack.c.h.b16 %v1461
  %v2171 = vunpack.c.l.b16 %v1462
  %v2172 = vunpack.c.h.b16 %v1462
  %v2173 = vunpack.c.l.b16 %v1463
  %v2174 = vunpack.c.h.b16 %v1463
  %v2175 = vunpack.c.l.b16 %v1464
  %v2176 = vunpack.c.h.b16 %v1464
  %v2177 = vunpack.c.l.b16 %v1465
  %v2178 = vunpack.c.h.b16 %v1465
  %v2179 = vunpack.c.l.b16 %v1466
  %v2180 = vunpack.c.h.b16 %v1466
  %v2181 = vunpack.c.l.b16 %v1467
  %v2182 = vunpack.c.h.b16 %v1467
  %v2183 = vunpack.c.l.b16 %v1468
  %v2184 = vunpack.c.h.b16 %v1468
  %v2185 = vunpack.c.l.b16 %v1469
  %v2186 = vunpack.c.h.b16 %v1469
  %v2187 = vunpack.c.l.b16 %v1470
  %v2188 = vunpack.c.h.b16 %v1470
  %v2189 = vunpack.c.l.b16 %v1471
  %v2190 = vunpack.c.h.b16 %v1471
  %v2191 = vunpack.c.l.b16 %v1472
  %v2192 = vunpack.c.h.b16 %v1472
  %v2193 = vunpack.c.l.b16 %v1473
  %v2194 = vunpack.c.h.b16 %v1473
  %v2195 = vunpack.c.l.b16 %v1474
  %v2196 = vunpack.c.h.b16 %v1474
  %v2197 = vunpack.c.l.b16 %v1475
  %v2198 = vunpack.c.h.b16 %v1475
  %v2199 = vunpack.c.l.b16 %v1476
  %v2200 = vunpack.c.h.b16 %v1476
  %v2201 = vunpack.c.l.b16 %v1477
  %v2202 = vunpack.c.h.b16 %v1477
  %v2203 = vunpack.c.l.b16 %v1478
  %v2204 = vunpack.c.h.b16 %v1478
  %v2205 = vunpack.c.l.b16 %v1479
  %v2206 = vunpack.c.h.b16 %v1479
  %v2207 = vunpack.c.l.b16 %v1480
  %v2208 = vunpack.c.h.b16 %v1480
  %v2209 = vunpack.c.l.b16 %v1481
  %v2210 = vunpack.c.h.b16 %v1481
  %v2211 = vunpack.c.l.b16 %v1482
  %v2212 = vunpack.c.h.b16 %v1482
  %v2213 = vunpack.c.l.b16 %v1483
  %v2214 = vunpack.c.h.b16 %v1483
  %v2215 = vunpack.c.l.b16 %v1484
  %v2216 = vunpack.c.h.b16 %v1484
  %v2217 = vunpack.c.l.b16 %v1485
  %v2218 = vunpack.c.h.b16 %v1485
  %v2219 = vunpack.c.l.b16 %v1486
  %v2220 = vunpack.c.h.b16 %v1486
  %v2221 = vunpack.c.l.b16 %v1487
  %v2222 = vunpack.c.h.b16 %v1487
  %v2223 = vunpack.c.l.b16 %v1488
  %v2224 = vunpack.c.h.b16 %v1488
  %v2225 = vunpack.c.l.b16 %v1489
  %v2226 = vunpack.c.h.b16 %v1489
  %v2227 = vunpack.c.l.b16 %v1490
  %v2228 = vunpack.c.h.b16 %v1490
  %v2229 = vunpack.c.l.b16 %v1491
  %v2230 = vunpack.c.h.b16 %v1491
  %v2231 = vunpack.c.l.b16 %v1492
  %v2232 = vunpack.c.h.b16 %v1492
  %v2233 = vunpack.c.l.b16 %v1493
  %v2234 = vunpack.c.h.b16 %v1493
  %v2235 = vunpack.c.l.b16 %v1494
  %v2236 = vunpack.c.h.b16 %v1494
  %v2237 = vunpack.c.l.b16 %v1495
  %v2238 = vunpack.c.h.b16 %v1495
  %v2239 = vunpack.c.l.b16 %v1496
  %v2240 = vunpack.c.h.b16 %v1496
  %v2241 = vunpack.c.l.b16 %v1497
  %v2242 = vunpack.c.h.b16 %v1497
  %v2243 = vunpack.c.l.b16 %v1498
  %v2244 = vunpack.c.h.b16 %v1498
  %v2245 = vunpack.c.l.b16 %v1499
  %v2246 = vunpack.c.h.b16 %v1499
  %v2247 = vunpack.c.l.b16 %v1500
  %v2248 = vunpack.c.h.b16 %v1500
  %v2249 = vunpack.c.l.b16 %v1501
  %v2250 = vunpack.c.h.b16 %v1501
  %v2251 = vunpack.c.l.b16 %v1502
  %v2252 = vunpack.c.h.b16 %v1502
  %v2253 = vunpack.c.l.b16 %v1503
  %v2254 = vunpack.c.h.b16 %v1503
  %v2255 = vunpack.c.l.b16 %v1504
  %v2256 = vunpack.c.h.b16 %v1504
  %v2257 = vunpack.c.l.b16 %v1505
  %v2258 = vunpack.c.h.b16 %v1505
  %v2259 = vunpack.c.l.b16 %v1506
  %v2260 = vunpack.c.h.b16 %v1506
  %v2261 = vunpack.c.l.b16 %v1507
  %v2262 = vunpack.c.h.b16 %v1507
  %v2263 = vunpack.c.l.b16 %v1508
  %v2264 = vunpack.c.h.b16 %v1508
  %v2265 = vunpack.c.l.b16 %v1509
  %v2266 = vunpack.c.h.b16 %v1509
  %v2267 = vunpack.c.l.b16 %v1510
  %v2268 = vunpack.c.h.b16 %v1510
  %v2269 = vunpack.c.l.b16 %v1511
  %v2270 = vunpack.c.h.b16 %v1511
  %v2271 = vunpack.c.l.b16 %v1512
  %v2272 = vunpack.c.h.b16 %v1512
  %v2273 = vunpack.c.l.b16 %v1513
  %v2274 = vunpack.c.h.b16 %v1513
  %v2275 = vunpack.c.l.b16 %v1514
  %v2276 = vunpack.c.h.b16 %v1514
  %v2277 = vunpack.c.l.b16 %v1515
  %v2278 = vunpack.c.h.b16 %v1515
  %v2279 = vunpack.c.l.b16 %v1516
  %v2280 = vunpack.c.h.b16 %v1516
  %v2281 = vunpack.c.l.b16 %v1517
  %v2282 = vunpack.c.h.b16 %v1517
  %v2283 = vunpack.c.l.b16 %v1518
  %v2284 = vunpack.c.h.b16 %v1518
  %v2285 = vunpack.c.l.b16 %v1519
  %v2286 = vunpack.c.h.b16 %v1519
  %v2287 = vunpack.c.l.b16 %v1520
  %v2288 = vunpack.c.h.b16 %v1520
  %v2289 = vunpack.c.l.b16 %v1521
  %v2290 = vunpack.c.h.b16 %v1521
  %v2291 = vpack.c.b16 %v2167, %v2163
  %v2292 = vpack.c.b16 %v2168, %v2164
  %v2293 = vpack.c.b16 %v2169, %v2165
  %v2294 = vpack.c.b16 %v2170, %v2166
  %v2295 = vpack.c.b16 %v2175, %v2171
  %v2296 = vpack.c.b16 %v2176, %v2172
  %v2297 = vpack.c.b16 %v2177, %v2173
  %v2298 = vpack.c.b16 %v2178, %v2174
  %v2299 = vpack.c.b16 %v2183, %v2179
  %v2300 = vpack.c.b16 %v2184, %v2180
  %v2301 = vpack.c.b16 %v2185, %v2181
  %v2302 = vpack.c.b16 %v2186, %v2182
  %v2303 = vpack.c.b16 %v2191, %v2187
  %v2304 = vpack.c.b16 %v2192, %v2188
  %v2305 = vpack.c.b16 %v2193, %v2189
  %v2306 = vpack.c.b16 %v2194, %v2190
  %v2307 = vpack.c.b16 %v2199, %v2195
  %v2308 = vpack.c.b16 %v2200, %v2196
  %v2309 = vpack.c.b16 %v2201, %v2197
  %v2310 = vpack.c.b16 %v2202, %v2198
  %v2311 = vpack.c.b16 %v2207, %v2203
  %v2312 = vpack.c.b16 %v2208, %v2204
  %v2313 = vpack.c.b16 %v2209, %v2205
  %v2314 = vpack.c.b16 %v2210, %v2206
  %v2315 = vpack.c.b16 %v2215, %v2211
  %v2316 = vpack.c.b16 %v2216, %v2212
  %v2317 = vpack.c.b16 %v2217, %v2213
  %v2318 = vpack.c.b16 %v2218, %v2214
  %v2319 = vpack.c.b16 %v2223, %v2219
  %v2320 = vpack.c.b16 %v2224, %v2220
  %v2321 = vpack.c.b16 %v2225, %v2221
  %v2322 = vpack.c.b16 %v2226, %v2222
  %v2323 = vpack.c.b16 %v2231, %v2227
  %v2324 = vpack.c.b16 %v2232, %v2228
  %v2325 = vpack.c.b16 %v2233, %v2229
  %v2326 = vpack.c.b16 %v2234, %v2230
  %v2327 = vpack.c.b16 %v2239, %v2235
  %v2328 = vpack.c.b16 %v2240, %v2236
  %v2329 = vpack.c.b16 %v2241, %v2237
  %v2330 = vpack.c.b16 %v2242, %v2238
  %v2331 = vpack.c.b16 %v2247, %v2243
  %v2332 = vpack.c.b16 %v2248, %v2244
  %v2333 = vpack.c.b16 %v2249, %v2245
  %v2334 = vpack.c.b16 %v2250, %v2246
  %v2335 = vpack.c.b16 %v2255, %v2251
  %v2336 = vpack.c.b16 %v2256, %v2252
  %v2337 = vpack.c.b16 %v2257, %v2253
  %v2338 = vpack.c.b16 %v2258, %v2254
  %v2339 = vpack.c.b16 %v2263, %v2259
  %v2340 = vpack.c.b16 %v2264, %v2260
  %v2341 = vpack.c.b16 %v2265, %v2261
  %v2342 = vpack.c.b16 %v2266, %v2262
  %v2343 = vpack.c.b16 %v2271, %v2267
  %v2344 = vpack.c.b16 %v2272, %v2268
  %v2345 = vpack.c.b16 %v2273, %v2269
  %v2346 = vpack.c.b16 %v2274, %v2270
  %v2347 = vpack.c.b16 %v2279, %v2275
  %v2348 = vpack.c.b16 %v2280, %v2276
  %v2349 = vpack.c.b16 %v2281, %v2277
  %v2350 = vpack.c.b16 %v2282, %v2278
  %v2351 = vpack.c.b16 %v2287, %v2283
  %v2352 = vpack.c.b16 %v2288, %v2284
  %v2353 = vpack.c.b16 %v2289, %v2285
  %v2354 = vpack.c.b16 %v2290, %v2286
  %2419 = vmatpush.bf16.msra.mxu0 %v2319
  %2420 = vmatpush.bf16.msra.mxu0 %v2315
  %2421 = vmatpush.bf16.msra.mxu0 %v2311
  %2422 = vmatpush.bf16.msra.mxu0 %v2307
  %2423 = vmatpush.bf16.msra.mxu0 %v2303
  %2424 = vmatpush.bf16.msra.mxu0 %v2299
  %2425 = vmatpush.bf16.msra.mxu0 %v2295
  %2426 = vmatpush.bf16.msra.mxu0 %v2291
  %2427 = vmatmul.bf16.gmra.mxu0 %v2091
  %v2428 = vpop.f32.mrf.mxu0
  %v2429 = vadd.f32 %v1956, %v2428
  %v2430 = vpop.f32.mrf.mxu0
  %v2431 = vadd.f32 %v1958, %v2430
  %2432 = vmatmul.bf16.gmra.mxu0 %v2093
  %v2433 = vpop.f32.mrf.mxu0
  %v2434 = vadd.f32 %v1961, %v2433
  %v2435 = vpop.f32.mrf.mxu0
  %v2436 = vadd.f32 %v1963, %v2435
  %2437 = vdwg.mxu0
  %2438 = vmatpush.bf16.msra.mxu0 %v2351
  %2439 = vmatpush.bf16.msra.mxu0 %v2347
  %2440 = vmatpush.bf16.msra.mxu0 %v2343
  %2441 = vmatpush.bf16.msra.mxu0 %v2339
  %2442 = vmatpush.bf16.msra.mxu0 %v2335
  %2443 = vmatpush.bf16.msra.mxu0 %v2331
  %2444 = vmatpush.bf16.msra.mxu0 %v2327
  %2445 = vmatpush.bf16.msra.mxu0 %v2323
  %2446 = vmatmul.bf16.gmra.mxu0 %v2092
  %v2447 = vpop.f32.mrf.mxu0
  %v2448 = vadd.f32 %v2429, %v2447
  %v2449 = vpop.f32.mrf.mxu0
  %v2450 = vadd.f32 %v2431, %v2449
  %2451 = vmatmul.bf16.gmra.mxu0 %v2094
  %v2452 = vpop.f32.mrf.mxu0
  %v2453 = vadd.f32 %v2434, %v2452
  %v2454 = vpop.f32.mrf.mxu0
  %v2455 = vadd.f32 %v2436, %v2454
  %2456 = vdwg.mxu0
  %2457 = vmatpush.bf16.msra.mxu0 %v2320
  %2458 = vmatpush.bf16.msra.mxu0 %v2316
  %2459 = vmatpush.bf16.msra.mxu0 %v2312
  %2460 = vmatpush.bf16.msra.mxu0 %v2308
  %2461 = vmatpush.bf16.msra.mxu0 %v2304
  %2462 = vmatpush.bf16.msra.mxu0 %v2300
  %2463 = vmatpush.bf16.msra.mxu0 %v2296
  %2464 = vmatpush.bf16.msra.mxu0 %v2292
  %2465 = vmatmul.bf16.gmra.mxu0 %v2091
  %v2466 = vpop.f32.mrf.mxu0
  %v2467 = vadd.f32 %v1994, %v2466
  %v2468 = vpop.f32.mrf.mxu0
  %v2469 = vadd.f32 %v1996, %v2468
  %2470 = vmatmul.bf16.gmra.mxu0 %v2093
  %v2471 = vpop.f32.mrf.mxu0
  %v2472 = vadd.f32 %v1999, %v2471
  %v2473 = vpop.f32.mrf.mxu0
  %v2474 = vadd.f32 %v2001, %v2473
  %2475 = vdwg.mxu0
  %2476 = vmatpush.bf16.msra.mxu0 %v2352
  %2477 = vmatpush.bf16.msra.mxu0 %v2348
  %2478 = vmatpush.bf16.msra.mxu0 %v2344
  %2479 = vmatpush.bf16.msra.mxu0 %v2340
  %2480 = vmatpush.bf16.msra.mxu0 %v2336
  %2481 = vmatpush.bf16.msra.mxu0 %v2332
  %2482 = vmatpush.bf16.msra.mxu0 %v2328
  %2483 = vmatpush.bf16.msra.mxu0 %v2324
  %2484 = vmatmul.bf16.gmra.mxu0 %v2092
  %v2485 = vpop.f32.mrf.mxu0
  %v2486 = vadd.f32 %v2467, %v2485
  %v2487 = vpop.f32.mrf.mxu0
  %v2488 = vadd.f32 %v2469, %v2487
  %2489 = vmatmul.bf16.gmra.mxu0 %v2094
  %v2490 = vpop.f32.mrf.mxu0
  %v2491 = vadd.f32 %v2472, %v2490
  %v2492 = vpop.f32.mrf.mxu0
  %v2493 = vadd.f32 %v2474, %v2492
  %2494 = vdwg.mxu0
  %2495 = vmatpush.bf16.msra.mxu0 %v2321
  %2496 = vmatpush.bf16.msra.mxu0 %v2317
  %2497 = vmatpush.bf16.msra.mxu0 %v2313
  %2498 = vmatpush.bf16.msra.mxu0 %v2309
  %2499 = vmatpush.bf16.msra.mxu0 %v2305
  %2500 = vmatpush.bf16.msra.mxu0 %v2301
  %2501 = vmatpush.bf16.msra.mxu0 %v2297
  %2502 = vmatpush.bf16.msra.mxu0 %v2293
  %2503 = vmatmul.bf16.gmra.mxu0 %v2091
  %v2504 = vpop.f32.mrf.mxu0
  %v2505 = vadd.f32 %v2032, %v2504
  %v2506 = vpop.f32.mrf.mxu0
  %v2507 = vadd.f32 %v2034, %v2506
  %2508 = vmatmul.bf16.gmra.mxu0 %v2093
  %v2509 = vpop.f32.mrf.mxu0
  %v2510 = vadd.f32 %v2037, %v2509
  %v2511 = vpop.f32.mrf.mxu0
  %v2512 = vadd.f32 %v2039, %v2511
  %2513 = vdwg.mxu0
  %2514 = vmatpush.bf16.msra.mxu0 %v2353
  %2515 = vmatpush.bf16.msra.mxu0 %v2349
  %2516 = vmatpush.bf16.msra.mxu0 %v2345
  %2517 = vmatpush.bf16.msra.mxu0 %v2341
  %2518 = vmatpush.bf16.msra.mxu0 %v2337
  %2519 = vmatpush.bf16.msra.mxu0 %v2333
  %2520 = vmatpush.bf16.msra.mxu0 %v2329
  %2521 = vmatpush.bf16.msra.mxu0 %v2325
  %2522 = vmatmul.bf16.gmra.mxu0 %v2092
  %v2523 = vpop.f32.mrf.mxu0
  %v2524 = vadd.f32 %v2505, %v2523
  %v2525 = vpop.f32.mrf.mxu0
  %v2526 = vadd.f32 %v2507, %v2525
  %2527 = vmatmul.bf16.gmra.mxu0 %v2094
  %v2528 = vpop.f32.mrf.mxu0
  %v2529 = vadd.f32 %v2510, %v2528
  %v2530 = vpop.f32.mrf.mxu0
  %v2531 = vadd.f32 %v2512, %v2530
  %2532 = vdwg.mxu0
  %2533 = vmatpush.bf16.msra.mxu0 %v2322
  %2534 = vmatpush.bf16.msra.mxu0 %v2318
  %2535 = vmatpush.bf16.msra.mxu0 %v2314
  %2536 = vmatpush.bf16.msra.mxu0 %v2310
  %2537 = vmatpush.bf16.msra.mxu0 %v2306
  %2538 = vmatpush.bf16.msra.mxu0 %v2302
  %2539 = vmatpush.bf16.msra.mxu0 %v2298
  %2540 = vmatpush.bf16.msra.mxu0 %v2294
  %2541 = vmatmul.bf16.gmra.mxu0 %v2091
  %v2542 = vpop.f32.mrf.mxu0
  %v2543 = vadd.f32 %v2070, %v2542
  %v2544 = vpop.f32.mrf.mxu0
  %v2545 = vadd.f32 %v2072, %v2544
  %2546 = vmatmul.bf16.gmra.mxu0 %v2093
  %v2547 = vpop.f32.mrf.mxu0
  %v2548 = vadd.f32 %v2075, %v2547
  %v2549 = vpop.f32.mrf.mxu0
  %v2550 = vadd.f32 %v2077, %v2549
  %2551 = vdwg.mxu0
  %2552 = vmatpush.bf16.msra.mxu0 %v2354
  %2553 = vmatpush.bf16.msra.mxu0 %v2350
  %2554 = vmatpush.bf16.msra.mxu0 %v2346
  %2555 = vmatpush.bf16.msra.mxu0 %v2342
  %2556 = vmatpush.bf16.msra.mxu0 %v2338
  %2557 = vmatpush.bf16.msra.mxu0 %v2334
  %2558 = vmatpush.bf16.msra.mxu0 %v2330
  %2559 = vmatpush.bf16.msra.mxu0 %v2326
  %2560 = vmatmul.bf16.gmra.mxu0 %v2092
  %v2561 = vpop.f32.mrf.mxu0
  %v2562 = vadd.f32 %v2543, %v2561
  %v2563 = vpop.f32.mrf.mxu0
  %v2564 = vadd.f32 %v2545, %v2563
  %2565 = vmatmul.bf16.gmra.mxu0 %v2094
  %v2566 = vpop.f32.mrf.mxu0
  %v2567 = vadd.f32 %v2548, %v2566
  %v2568 = vpop.f32.mrf.mxu0
  %v2569 = vadd.f32 %v2550, %v2568
  %2570 = vdwg.mxu0
  %s2571 = scalar_lea.vmem %s3, 1024
  %v2572 = vld [vmem:[%s2571] sm:$0xff]
  %v2573 = vld [vmem:[%s2571 + $0x8] sm:$0xff]
  %v2574 = vld [vmem:[%s2571 + $0x10] sm:$0xff]
  %v2575 = vld [vmem:[%s2571 + $0x18] sm:$0xff]
  %v2576 = vld [vmem:[%s2571 + $0x20] sm:$0xff]
  %v2577 = vld [vmem:[%s2571 + $0x28] sm:$0xff]
  %v2578 = vld [vmem:[%s2571 + $0x30] sm:$0xff]
  %v2579 = vld [vmem:[%s2571 + $0x38] sm:$0xff]
  %v2580 = vld [vmem:[%s2571 + $0x40] sm:$0xff]
  %v2581 = vld [vmem:[%s2571 + $0x48] sm:$0xff]
  %v2582 = vld [vmem:[%s2571 + $0x50] sm:$0xff]
  %v2583 = vld [vmem:[%s2571 + $0x58] sm:$0xff]
  %v2584 = vld [vmem:[%s2571 + $0x60] sm:$0xff]
  %v2585 = vld [vmem:[%s2571 + $0x68] sm:$0xff]
  %v2586 = vld [vmem:[%s2571 + $0x70] sm:$0xff]
  %v2587 = vld [vmem:[%s2571 + $0x78] sm:$0xff]
  %v2588 = vld [vmem:[%s2571 + $0x80] sm:$0xff]
  %v2589 = vld [vmem:[%s2571 + $0x88] sm:$0xff]
  %v2590 = vld [vmem:[%s2571 + $0x90] sm:$0xff]
  %v2591 = vld [vmem:[%s2571 + $0x98] sm:$0xff]
  %v2592 = vld [vmem:[%s2571 + $0xa0] sm:$0xff]
  %v2593 = vld [vmem:[%s2571 + $0xa8] sm:$0xff]
  %v2594 = vld [vmem:[%s2571 + $0xb0] sm:$0xff]
  %v2595 = vld [vmem:[%s2571 + $0xb8] sm:$0xff]
  %v2596 = vld [vmem:[%s2571 + $0xc0] sm:$0xff]
  %v2597 = vld [vmem:[%s2571 + $0xc8] sm:$0xff]
  %v2598 = vld [vmem:[%s2571 + $0xd0] sm:$0xff]
  %v2599 = vld [vmem:[%s2571 + $0xd8] sm:$0xff]
  %v2600 = vld [vmem:[%s2571 + $0xe0] sm:$0xff]
  %v2601 = vld [vmem:[%s2571 + $0xe8] sm:$0xff]
  %v2602 = vld [vmem:[%s2571 + $0xf0] sm:$0xff]
  %v2603 = vld [vmem:[%s2571 + $0xf8] sm:$0xff]
  %v2604 = vld [vmem:[%s2571 + $0x100] sm:$0xff]
  %v2605 = vld [vmem:[%s2571 + $0x108] sm:$0xff]
  %v2606 = vld [vmem:[%s2571 + $0x110] sm:$0xff]
  %v2607 = vld [vmem:[%s2571 + $0x118] sm:$0xff]
  %v2608 = vld [vmem:[%s2571 + $0x120] sm:$0xff]
  %v2609 = vld [vmem:[%s2571 + $0x128] sm:$0xff]
  %v2610 = vld [vmem:[%s2571 + $0x130] sm:$0xff]
  %v2611 = vld [vmem:[%s2571 + $0x138] sm:$0xff]
  %v2612 = vld [vmem:[%s2571 + $0x140] sm:$0xff]
  %v2613 = vld [vmem:[%s2571 + $0x148] sm:$0xff]
  %v2614 = vld [vmem:[%s2571 + $0x150] sm:$0xff]
  %v2615 = vld [vmem:[%s2571 + $0x158] sm:$0xff]
  %v2616 = vld [vmem:[%s2571 + $0x160] sm:$0xff]
  %v2617 = vld [vmem:[%s2571 + $0x168] sm:$0xff]
  %v2618 = vld [vmem:[%s2571 + $0x170] sm:$0xff]
  %v2619 = vld [vmem:[%s2571 + $0x178] sm:$0xff]
  %v2620 = vld [vmem:[%s2571 + $0x180] sm:$0xff]
  %v2621 = vld [vmem:[%s2571 + $0x188] sm:$0xff]
  %v2622 = vld [vmem:[%s2571 + $0x190] sm:$0xff]
  %v2623 = vld [vmem:[%s2571 + $0x198] sm:$0xff]
  %v2624 = vld [vmem:[%s2571 + $0x1a0] sm:$0xff]
  %v2625 = vld [vmem:[%s2571 + $0x1a8] sm:$0xff]
  %v2626 = vld [vmem:[%s2571 + $0x1b0] sm:$0xff]
  %v2627 = vld [vmem:[%s2571 + $0x1b8] sm:$0xff]
  %v2628 = vld [vmem:[%s2571 + $0x1c0] sm:$0xff]
  %v2629 = vld [vmem:[%s2571 + $0x1c8] sm:$0xff]
  %v2630 = vld [vmem:[%s2571 + $0x1d0] sm:$0xff]
  %v2631 = vld [vmem:[%s2571 + $0x1d8] sm:$0xff]
  %v2632 = vld [vmem:[%s2571 + $0x1e0] sm:$0xff]
  %v2633 = vld [vmem:[%s2571 + $0x1e8] sm:$0xff]
  %v2634 = vld [vmem:[%s2571 + $0x1f0] sm:$0xff]
  %v2635 = vld [vmem:[%s2571 + $0x1f8] sm:$0xff]
  %v2637 = vunpack.c.l.b16 %v931
  %v2638 = vunpack.c.h.b16 %v931
  %v2639 = vpack.c.b16 %v2087, %v2085
  %v2640 = vpack.c.b16 %v2088, %v2086
  %v2641 = vpack.c.b16 %v2637, %v2089
  %v2642 = vpack.c.b16 %v2638, %v2090
  %v2711 = vunpack.c.l.b16 %v2572
  %v2712 = vunpack.c.h.b16 %v2572
  %v2713 = vunpack.c.l.b16 %v2573
  %v2714 = vunpack.c.h.b16 %v2573
  %v2715 = vunpack.c.l.b16 %v2574
  %v2716 = vunpack.c.h.b16 %v2574
  %v2717 = vunpack.c.l.b16 %v2575
  %v2718 = vunpack.c.h.b16 %v2575
  %v2719 = vunpack.c.l.b16 %v2576
  %v2720 = vunpack.c.h.b16 %v2576
  %v2721 = vunpack.c.l.b16 %v2577
  %v2722 = vunpack.c.h.b16 %v2577
  %v2723 = vunpack.c.l.b16 %v2578
  %v2724 = vunpack.c.h.b16 %v2578
  %v2725 = vunpack.c.l.b16 %v2579
  %v2726 = vunpack.c.h.b16 %v2579
  %v2727 = vunpack.c.l.b16 %v2580
  %v2728 = vunpack.c.h.b16 %v2580
  %v2729 = vunpack.c.l.b16 %v2581
  %v2730 = vunpack.c.h.b16 %v2581
  %v2731 = vunpack.c.l.b16 %v2582
  %v2732 = vunpack.c.h.b16 %v2582
  %v2733 = vunpack.c.l.b16 %v2583
  %v2734 = vunpack.c.h.b16 %v2583
  %v2735 = vunpack.c.l.b16 %v2584
  %v2736 = vunpack.c.h.b16 %v2584
  %v2737 = vunpack.c.l.b16 %v2585
  %v2738 = vunpack.c.h.b16 %v2585
  %v2739 = vunpack.c.l.b16 %v2586
  %v2740 = vunpack.c.h.b16 %v2586
  %v2741 = vunpack.c.l.b16 %v2587
  %v2742 = vunpack.c.h.b16 %v2587
  %v2743 = vunpack.c.l.b16 %v2588
  %v2744 = vunpack.c.h.b16 %v2588
  %v2745 = vunpack.c.l.b16 %v2589
  %v2746 = vunpack.c.h.b16 %v2589
  %v2747 = vunpack.c.l.b16 %v2590
  %v2748 = vunpack.c.h.b16 %v2590
  %v2749 = vunpack.c.l.b16 %v2591
  %v2750 = vunpack.c.h.b16 %v2591
  %v2751 = vunpack.c.l.b16 %v2592
  %v2752 = vunpack.c.h.b16 %v2592
  %v2753 = vunpack.c.l.b16 %v2593
  %v2754 = vunpack.c.h.b16 %v2593
  %v2755 = vunpack.c.l.b16 %v2594
  %v2756 = vunpack.c.h.b16 %v2594
  %v2757 = vunpack.c.l.b16 %v2595
  %v2758 = vunpack.c.h.b16 %v2595
  %v2759 = vunpack.c.l.b16 %v2596
  %v2760 = vunpack.c.h.b16 %v2596
  %v2761 = vunpack.c.l.b16 %v2597
  %v2762 = vunpack.c.h.b16 %v2597
  %v2763 = vunpack.c.l.b16 %v2598
  %v2764 = vunpack.c.h.b16 %v2598
  %v2765 = vunpack.c.l.b16 %v2599
  %v2766 = vunpack.c.h.b16 %v2599
  %v2767 = vunpack.c.l.b16 %v2600
  %v2768 = vunpack.c.h.b16 %v2600
  %v2769 = vunpack.c.l.b16 %v2601
  %v2770 = vunpack.c.h.b16 %v2601
  %v2771 = vunpack.c.l.b16 %v2602
  %v2772 = vunpack.c.h.b16 %v2602
  %v2773 = vunpack.c.l.b16 %v2603
  %v2774 = vunpack.c.h.b16 %v2603
  %v2775 = vunpack.c.l.b16 %v2604
  %v2776 = vunpack.c.h.b16 %v2604
  %v2777 = vunpack.c.l.b16 %v2605
  %v2778 = vunpack.c.h.b16 %v2605
  %v2779 = vunpack.c.l.b16 %v2606
  %v2780 = vunpack.c.h.b16 %v2606
  %v2781 = vunpack.c.l.b16 %v2607
  %v2782 = vunpack.c.h.b16 %v2607
  %v2783 = vunpack.c.l.b16 %v2608
  %v2784 = vunpack.c.h.b16 %v2608
  %v2785 = vunpack.c.l.b16 %v2609
  %v2786 = vunpack.c.h.b16 %v2609
  %v2787 = vunpack.c.l.b16 %v2610
  %v2788 = vunpack.c.h.b16 %v2610
  %v2789 = vunpack.c.l.b16 %v2611
  %v2790 = vunpack.c.h.b16 %v2611
  %v2791 = vunpack.c.l.b16 %v2612
  %v2792 = vunpack.c.h.b16 %v2612
  %v2793 = vunpack.c.l.b16 %v2613
  %v2794 = vunpack.c.h.b16 %v2613
  %v2795 = vunpack.c.l.b16 %v2614
  %v2796 = vunpack.c.h.b16 %v2614
  %v2797 = vunpack.c.l.b16 %v2615
  %v2798 = vunpack.c.h.b16 %v2615
  %v2799 = vunpack.c.l.b16 %v2616
  %v2800 = vunpack.c.h.b16 %v2616
  %v2801 = vunpack.c.l.b16 %v2617
  %v2802 = vunpack.c.h.b16 %v2617
  %v2803 = vunpack.c.l.b16 %v2618
  %v2804 = vunpack.c.h.b16 %v2618
  %v2805 = vunpack.c.l.b16 %v2619
  %v2806 = vunpack.c.h.b16 %v2619
  %v2807 = vunpack.c.l.b16 %v2620
  %v2808 = vunpack.c.h.b16 %v2620
  %v2809 = vunpack.c.l.b16 %v2621
  %v2810 = vunpack.c.h.b16 %v2621
  %v2811 = vunpack.c.l.b16 %v2622
  %v2812 = vunpack.c.h.b16 %v2622
  %v2813 = vunpack.c.l.b16 %v2623
  %v2814 = vunpack.c.h.b16 %v2623
  %v2815 = vunpack.c.l.b16 %v2624
  %v2816 = vunpack.c.h.b16 %v2624
  %v2817 = vunpack.c.l.b16 %v2625
  %v2818 = vunpack.c.h.b16 %v2625
  %v2819 = vunpack.c.l.b16 %v2626
  %v2820 = vunpack.c.h.b16 %v2626
  %v2821 = vunpack.c.l.b16 %v2627
  %v2822 = vunpack.c.h.b16 %v2627
  %v2823 = vunpack.c.l.b16 %v2628
  %v2824 = vunpack.c.h.b16 %v2628
  %v2825 = vunpack.c.l.b16 %v2629
  %v2826 = vunpack.c.h.b16 %v2629
  %v2827 = vunpack.c.l.b16 %v2630
  %v2828 = vunpack.c.h.b16 %v2630
  %v2829 = vunpack.c.l.b16 %v2631
  %v2830 = vunpack.c.h.b16 %v2631
  %v2831 = vunpack.c.l.b16 %v2632
  %v2832 = vunpack.c.h.b16 %v2632
  %v2833 = vunpack.c.l.b16 %v2633
  %v2834 = vunpack.c.h.b16 %v2633
  %v2835 = vunpack.c.l.b16 %v2634
  %v2836 = vunpack.c.h.b16 %v2634
  %v2837 = vunpack.c.l.b16 %v2635
  %v2838 = vunpack.c.h.b16 %v2635
  %v2839 = vpack.c.b16 %v2715, %v2711
  %v2840 = vpack.c.b16 %v2716, %v2712
  %v2841 = vpack.c.b16 %v2717, %v2713
  %v2842 = vpack.c.b16 %v2718, %v2714
  %v2843 = vpack.c.b16 %v2723, %v2719
  %v2844 = vpack.c.b16 %v2724, %v2720
  %v2845 = vpack.c.b16 %v2725, %v2721
  %v2846 = vpack.c.b16 %v2726, %v2722
  %v2847 = vpack.c.b16 %v2731, %v2727
  %v2848 = vpack.c.b16 %v2732, %v2728
  %v2849 = vpack.c.b16 %v2733, %v2729
  %v2850 = vpack.c.b16 %v2734, %v2730
  %v2851 = vpack.c.b16 %v2739, %v2735
  %v2852 = vpack.c.b16 %v2740, %v2736
  %v2853 = vpack.c.b16 %v2741, %v2737
  %v2854 = vpack.c.b16 %v2742, %v2738
  %v2855 = vpack.c.b16 %v2747, %v2743
  %v2856 = vpack.c.b16 %v2748, %v2744
  %v2857 = vpack.c.b16 %v2749, %v2745
  %v2858 = vpack.c.b16 %v2750, %v2746
  %v2859 = vpack.c.b16 %v2755, %v2751
  %v2860 = vpack.c.b16 %v2756, %v2752
  %v2861 = vpack.c.b16 %v2757, %v2753
  %v2862 = vpack.c.b16 %v2758, %v2754
  %v2863 = vpack.c.b16 %v2763, %v2759
  %v2864 = vpack.c.b16 %v2764, %v2760
  %v2865 = vpack.c.b16 %v2765, %v2761
  %v2866 = vpack.c.b16 %v2766, %v2762
  %v2867 = vpack.c.b16 %v2771, %v2767
  %v2868 = vpack.c.b16 %v2772, %v2768
  %v2869 = vpack.c.b16 %v2773, %v2769
  %v2870 = vpack.c.b16 %v2774, %v2770
  %v2871 = vpack.c.b16 %v2779, %v2775
  %v2872 = vpack.c.b16 %v2780, %v2776
  %v2873 = vpack.c.b16 %v2781, %v2777
  %v2874 = vpack.c.b16 %v2782, %v2778
  %v2875 = vpack.c.b16 %v2787, %v2783
  %v2876 = vpack.c.b16 %v2788, %v2784
  %v2877 = vpack.c.b16 %v2789, %v2785
  %v2878 = vpack.c.b16 %v2790, %v2786
  %v2879 = vpack.c.b16 %v2795, %v2791
  %v2880 = vpack.c.b16 %v2796, %v2792
  %v2881 = vpack.c.b16 %v2797, %v2793
  %v2882 = vpack.c.b16 %v2798, %v2794
  %v2883 = vpack.c.b16 %v2803, %v2799
  %v2884 = vpack.c.b16 %v2804, %v2800
  %v2885 = vpack.c.b16 %v2805, %v2801
  %v2886 = vpack.c.b16 %v2806, %v2802
  %v2887 = vpack.c.b16 %v2811, %v2807
  %v2888 = vpack.c.b16 %v2812, %v2808
  %v2889 = vpack.c.b16 %v2813, %v2809
  %v2890 = vpack.c.b16 %v2814, %v2810
  %v2891 = vpack.c.b16 %v2819, %v2815
  %v2892 = vpack.c.b16 %v2820, %v2816
  %v2893 = vpack.c.b16 %v2821, %v2817
  %v2894 = vpack.c.b16 %v2822, %v2818
  %v2895 = vpack.c.b16 %v2827, %v2823
  %v2896 = vpack.c.b16 %v2828, %v2824
  %v2897 = vpack.c.b16 %v2829, %v2825
  %v2898 = vpack.c.b16 %v2830, %v2826
  %v2899 = vpack.c.b16 %v2835, %v2831
  %v2900 = vpack.c.b16 %v2836, %v2832
  %v2901 = vpack.c.b16 %v2837, %v2833
  %v2902 = vpack.c.b16 %v2838, %v2834
  %2967 = vmatpush.bf16.msra.mxu0 %v2867
  %2968 = vmatpush.bf16.msra.mxu0 %v2863
  %2969 = vmatpush.bf16.msra.mxu0 %v2859
  %2970 = vmatpush.bf16.msra.mxu0 %v2855
  %2971 = vmatpush.bf16.msra.mxu0 %v2851
  %2972 = vmatpush.bf16.msra.mxu0 %v2847
  %2973 = vmatpush.bf16.msra.mxu0 %v2843
  %2974 = vmatpush.bf16.msra.mxu0 %v2839
  %2975 = vmatmul.bf16.gmra.mxu0 %v2639
  %v2976 = vpop.f32.mrf.mxu0
  %v2977 = vadd.f32 0.0, %v2976
  %v2978 = vpop.f32.mrf.mxu0
  %v2979 = vadd.f32 0.0, %v2978
  %2980 = vmatmul.bf16.gmra.mxu0 %v2641
  %v2981 = vpop.f32.mrf.mxu0
  %v2982 = vadd.f32 0.0, %v2981
  %v2983 = vpop.f32.mrf.mxu0
  %v2984 = vadd.f32 0.0, %v2983
  %2985 = vdwg.mxu0
  %2986 = vmatpush.bf16.msra.mxu0 %v2899
  %2987 = vmatpush.bf16.msra.mxu0 %v2895
  %2988 = vmatpush.bf16.msra.mxu0 %v2891
  %2989 = vmatpush.bf16.msra.mxu0 %v2887
  %2990 = vmatpush.bf16.msra.mxu0 %v2883
  %2991 = vmatpush.bf16.msra.mxu0 %v2879
  %2992 = vmatpush.bf16.msra.mxu0 %v2875
  %2993 = vmatpush.bf16.msra.mxu0 %v2871
  %2994 = vmatmul.bf16.gmra.mxu0 %v2640
  %v2995 = vpop.f32.mrf.mxu0
  %v2996 = vadd.f32 %v2977, %v2995
  %v2997 = vpop.f32.mrf.mxu0
  %v2998 = vadd.f32 %v2979, %v2997
  %2999 = vmatmul.bf16.gmra.mxu0 %v2642
  %v3000 = vpop.f32.mrf.mxu0
  %v3001 = vadd.f32 %v2982, %v3000
  %v3002 = vpop.f32.mrf.mxu0
  %v3003 = vadd.f32 %v2984, %v3002
  %3004 = vdwg.mxu0
  %3005 = vmatpush.bf16.msra.mxu0 %v2868
  %3006 = vmatpush.bf16.msra.mxu0 %v2864
  %3007 = vmatpush.bf16.msra.mxu0 %v2860
  %3008 = vmatpush.bf16.msra.mxu0 %v2856
  %3009 = vmatpush.bf16.msra.mxu0 %v2852
  %3010 = vmatpush.bf16.msra.mxu0 %v2848
  %3011 = vmatpush.bf16.msra.mxu0 %v2844
  %3012 = vmatpush.bf16.msra.mxu0 %v2840
  %3013 = vmatmul.bf16.gmra.mxu0 %v2639
  %v3014 = vpop.f32.mrf.mxu0
  %v3015 = vadd.f32 0.0, %v3014
  %v3016 = vpop.f32.mrf.mxu0
  %v3017 = vadd.f32 0.0, %v3016
  %3018 = vmatmul.bf16.gmra.mxu0 %v2641
  %v3019 = vpop.f32.mrf.mxu0
  %v3020 = vadd.f32 0.0, %v3019
  %v3021 = vpop.f32.mrf.mxu0
  %v3022 = vadd.f32 0.0, %v3021
  %3023 = vdwg.mxu0
  %3024 = vmatpush.bf16.msra.mxu0 %v2900
  %3025 = vmatpush.bf16.msra.mxu0 %v2896
  %3026 = vmatpush.bf16.msra.mxu0 %v2892
  %3027 = vmatpush.bf16.msra.mxu0 %v2888
  %3028 = vmatpush.bf16.msra.mxu0 %v2884
  %3029 = vmatpush.bf16.msra.mxu0 %v2880
  %3030 = vmatpush.bf16.msra.mxu0 %v2876
  %3031 = vmatpush.bf16.msra.mxu0 %v2872
  %3032 = vmatmul.bf16.gmra.mxu0 %v2640
  %v3033 = vpop.f32.mrf.mxu0
  %v3034 = vadd.f32 %v3015, %v3033
  %v3035 = vpop.f32.mrf.mxu0
  %v3036 = vadd.f32 %v3017, %v3035
  %3037 = vmatmul.bf16.gmra.mxu0 %v2642
  %v3038 = vpop.f32.mrf.mxu0
  %v3039 = vadd.f32 %v3020, %v3038
  %v3040 = vpop.f32.mrf.mxu0
  %v3041 = vadd.f32 %v3022, %v3040
  %3042 = vdwg.mxu0
  %3043 = vmatpush.bf16.msra.mxu0 %v2869
  %3044 = vmatpush.bf16.msra.mxu0 %v2865
  %3045 = vmatpush.bf16.msra.mxu0 %v2861
  %3046 = vmatpush.bf16.msra.mxu0 %v2857
  %3047 = vmatpush.bf16.msra.mxu0 %v2853
  %3048 = vmatpush.bf16.msra.mxu0 %v2849
  %3049 = vmatpush.bf16.msra.mxu0 %v2845
  %3050 = vmatpush.bf16.msra.mxu0 %v2841
  %3051 = vmatmul.bf16.gmra.mxu0 %v2639
  %v3052 = vpop.f32.mrf.mxu0
  %v3053 = vadd.f32 0.0, %v3052
  %v3054 = vpop.f32.mrf.mxu0
  %v3055 = vadd.f32 0.0, %v3054
  %3056 = vmatmul.bf16.gmra.mxu0 %v2641
  %v3057 = vpop.f32.mrf.mxu0
  %v3058 = vadd.f32 0.0, %v3057
  %v3059 = vpop.f32.mrf.mxu0
  %v3060 = vadd.f32 0.0, %v3059
  %3061 = vdwg.mxu0
  %3062 = vmatpush.bf16.msra.mxu0 %v2901
  %3063 = vmatpush.bf16.msra.mxu0 %v2897
  %3064 = vmatpush.bf16.msra.mxu0 %v2893
  %3065 = vmatpush.bf16.msra.mxu0 %v2889
  %3066 = vmatpush.bf16.msra.mxu0 %v2885
  %3067 = vmatpush.bf16.msra.mxu0 %v2881
  %3068 = vmatpush.bf16.msra.mxu0 %v2877
  %3069 = vmatpush.bf16.msra.mxu0 %v2873
  %3070 = vmatmul.bf16.gmra.mxu0 %v2640
  %v3071 = vpop.f32.mrf.mxu0
  %v3072 = vadd.f32 %v3053, %v3071
  %v3073 = vpop.f32.mrf.mxu0
  %v3074 = vadd.f32 %v3055, %v3073
  %3075 = vmatmul.bf16.gmra.mxu0 %v2642
  %v3076 = vpop.f32.mrf.mxu0
  %v3077 = vadd.f32 %v3058, %v3076
  %v3078 = vpop.f32.mrf.mxu0
  %v3079 = vadd.f32 %v3060, %v3078
  %3080 = vdwg.mxu0
  %3081 = vmatpush.bf16.msra.mxu0 %v2870
  %3082 = vmatpush.bf16.msra.mxu0 %v2866
  %3083 = vmatpush.bf16.msra.mxu0 %v2862
  %3084 = vmatpush.bf16.msra.mxu0 %v2858
  %3085 = vmatpush.bf16.msra.mxu0 %v2854
  %3086 = vmatpush.bf16.msra.mxu0 %v2850
  %3087 = vmatpush.bf16.msra.mxu0 %v2846
  %3088 = vmatpush.bf16.msra.mxu0 %v2842
  %3089 = vmatmul.bf16.gmra.mxu0 %v2639
  %v3090 = vpop.f32.mrf.mxu0
  %v3091 = vadd.f32 0.0, %v3090
  %v3092 = vpop.f32.mrf.mxu0
  %v3093 = vadd.f32 0.0, %v3092
  %3094 = vmatmul.bf16.gmra.mxu0 %v2641
  %v3095 = vpop.f32.mrf.mxu0
  %v3096 = vadd.f32 0.0, %v3095
  %v3097 = vpop.f32.mrf.mxu0
  %v3098 = vadd.f32 0.0, %v3097
  %3099 = vdwg.mxu0
  %3100 = vmatpush.bf16.msra.mxu0 %v2902
  %3101 = vmatpush.bf16.msra.mxu0 %v2898
  %3102 = vmatpush.bf16.msra.mxu0 %v2894
  %3103 = vmatpush.bf16.msra.mxu0 %v2890
  %3104 = vmatpush.bf16.msra.mxu0 %v2886
  %3105 = vmatpush.bf16.msra.mxu0 %v2882
  %3106 = vmatpush.bf16.msra.mxu0 %v2878
  %3107 = vmatpush.bf16.msra.mxu0 %v2874
  %3108 = vmatmul.bf16.gmra.mxu0 %v2640
  %v3109 = vpop.f32.mrf.mxu0
  %v3110 = vadd.f32 %v3091, %v3109
  %v3111 = vpop.f32.mrf.mxu0
  %v3112 = vadd.f32 %v3093, %v3111
  %3113 = vmatmul.bf16.gmra.mxu0 %v2642
  %v3114 = vpop.f32.mrf.mxu0
  %v3115 = vadd.f32 %v3096, %v3114
  %v3116 = vpop.f32.mrf.mxu0
  %v3117 = vadd.f32 %v3098, %v3116
  %3118 = vdwg.mxu0
  %v3119 = vadd.f32 %v2448, %v2996
  %v3120 = vadd.f32 %v2486, %v3034
  %v3121 = vadd.f32 %v2524, %v3072
  %v3122 = vadd.f32 %v2562, %v3110
  %v3123 = vadd.f32 %v2450, %v2998
  %v3124 = vadd.f32 %v2488, %v3036
  %v3125 = vadd.f32 %v2526, %v3074
  %v3126 = vadd.f32 %v2564, %v3112
  %v3127 = vadd.f32 %v2453, %v3001
  %v3128 = vadd.f32 %v2491, %v3039
  %v3129 = vadd.f32 %v2529, %v3077
  %v3130 = vadd.f32 %v2567, %v3115
  %v3131 = vadd.f32 %v2455, %v3003
  %v3132 = vadd.f32 %v2493, %v3041
  %v3133 = vadd.f32 %v2531, %v3079
  %v3134 = vadd.f32 %v2569, %v3117
  %s3135 = scalar_lea.vmem %s3, 1536
  %v3136 = vld [vmem:[%s3135] sm:$0xff]
  %v3137 = vld [vmem:[%s3135 + $0x8] sm:$0xff]
  %v3138 = vld [vmem:[%s3135 + $0x10] sm:$0xff]
  %v3139 = vld [vmem:[%s3135 + $0x18] sm:$0xff]
  %v3140 = vld [vmem:[%s3135 + $0x20] sm:$0xff]
  %v3141 = vld [vmem:[%s3135 + $0x28] sm:$0xff]
  %v3142 = vld [vmem:[%s3135 + $0x30] sm:$0xff]
  %v3143 = vld [vmem:[%s3135 + $0x38] sm:$0xff]
  %v3144 = vld [vmem:[%s3135 + $0x40] sm:$0xff]
  %v3145 = vld [vmem:[%s3135 + $0x48] sm:$0xff]
  %v3146 = vld [vmem:[%s3135 + $0x50] sm:$0xff]
  %v3147 = vld [vmem:[%s3135 + $0x58] sm:$0xff]
  %v3148 = vld [vmem:[%s3135 + $0x60] sm:$0xff]
  %v3149 = vld [vmem:[%s3135 + $0x68] sm:$0xff]
  %v3150 = vld [vmem:[%s3135 + $0x70] sm:$0xff]
  %v3151 = vld [vmem:[%s3135 + $0x78] sm:$0xff]
  %v3152 = vld [vmem:[%s3135 + $0x80] sm:$0xff]
  %v3153 = vld [vmem:[%s3135 + $0x88] sm:$0xff]
  %v3154 = vld [vmem:[%s3135 + $0x90] sm:$0xff]
  %v3155 = vld [vmem:[%s3135 + $0x98] sm:$0xff]
  %v3156 = vld [vmem:[%s3135 + $0xa0] sm:$0xff]
  %v3157 = vld [vmem:[%s3135 + $0xa8] sm:$0xff]
  %v3158 = vld [vmem:[%s3135 + $0xb0] sm:$0xff]
  %v3159 = vld [vmem:[%s3135 + $0xb8] sm:$0xff]
  %v3160 = vld [vmem:[%s3135 + $0xc0] sm:$0xff]
  %v3161 = vld [vmem:[%s3135 + $0xc8] sm:$0xff]
  %v3162 = vld [vmem:[%s3135 + $0xd0] sm:$0xff]
  %v3163 = vld [vmem:[%s3135 + $0xd8] sm:$0xff]
  %v3164 = vld [vmem:[%s3135 + $0xe0] sm:$0xff]
  %v3165 = vld [vmem:[%s3135 + $0xe8] sm:$0xff]
  %v3166 = vld [vmem:[%s3135 + $0xf0] sm:$0xff]
  %v3167 = vld [vmem:[%s3135 + $0xf8] sm:$0xff]
  %v3168 = vld [vmem:[%s3135 + $0x100] sm:$0xff]
  %v3169 = vld [vmem:[%s3135 + $0x108] sm:$0xff]
  %v3170 = vld [vmem:[%s3135 + $0x110] sm:$0xff]
  %v3171 = vld [vmem:[%s3135 + $0x118] sm:$0xff]
  %v3172 = vld [vmem:[%s3135 + $0x120] sm:$0xff]
  %v3173 = vld [vmem:[%s3135 + $0x128] sm:$0xff]
  %v3174 = vld [vmem:[%s3135 + $0x130] sm:$0xff]
  %v3175 = vld [vmem:[%s3135 + $0x138] sm:$0xff]
  %v3176 = vld [vmem:[%s3135 + $0x140] sm:$0xff]
  %v3177 = vld [vmem:[%s3135 + $0x148] sm:$0xff]
  %v3178 = vld [vmem:[%s3135 + $0x150] sm:$0xff]
  %v3179 = vld [vmem:[%s3135 + $0x158] sm:$0xff]
  %v3180 = vld [vmem:[%s3135 + $0x160] sm:$0xff]
  %v3181 = vld [vmem:[%s3135 + $0x168] sm:$0xff]
  %v3182 = vld [vmem:[%s3135 + $0x170] sm:$0xff]
  %v3183 = vld [vmem:[%s3135 + $0x178] sm:$0xff]
  %v3184 = vld [vmem:[%s3135 + $0x180] sm:$0xff]
  %v3185 = vld [vmem:[%s3135 + $0x188] sm:$0xff]
  %v3186 = vld [vmem:[%s3135 + $0x190] sm:$0xff]
  %v3187 = vld [vmem:[%s3135 + $0x198] sm:$0xff]
  %v3188 = vld [vmem:[%s3135 + $0x1a0] sm:$0xff]
  %v3189 = vld [vmem:[%s3135 + $0x1a8] sm:$0xff]
  %v3190 = vld [vmem:[%s3135 + $0x1b0] sm:$0xff]
  %v3191 = vld [vmem:[%s3135 + $0x1b8] sm:$0xff]
  %v3192 = vld [vmem:[%s3135 + $0x1c0] sm:$0xff]
  %v3193 = vld [vmem:[%s3135 + $0x1c8] sm:$0xff]
  %v3194 = vld [vmem:[%s3135 + $0x1d0] sm:$0xff]
  %v3195 = vld [vmem:[%s3135 + $0x1d8] sm:$0xff]
  %v3196 = vld [vmem:[%s3135 + $0x1e0] sm:$0xff]
  %v3197 = vld [vmem:[%s3135 + $0x1e8] sm:$0xff]
  %v3198 = vld [vmem:[%s3135 + $0x1f0] sm:$0xff]
  %v3199 = vld [vmem:[%s3135 + $0x1f8] sm:$0xff]
  %v3201 = vunpack.c.l.b16 %v1455
  %v3202 = vunpack.c.h.b16 %v1455
  %v3203 = vpack.c.b16 %v1595, %v1593
  %v3204 = vpack.c.b16 %v1596, %v1594
  %v3205 = vpack.c.b16 %v3201, %v1597
  %v3206 = vpack.c.b16 %v3202, %v1598
  %v3275 = vunpack.c.l.b16 %v3136
  %v3276 = vunpack.c.h.b16 %v3136
  %v3277 = vunpack.c.l.b16 %v3137
  %v3278 = vunpack.c.h.b16 %v3137
  %v3279 = vunpack.c.l.b16 %v3138
  %v3280 = vunpack.c.h.b16 %v3138
  %v3281 = vunpack.c.l.b16 %v3139
  %v3282 = vunpack.c.h.b16 %v3139
  %v3283 = vunpack.c.l.b16 %v3140
  %v3284 = vunpack.c.h.b16 %v3140
  %v3285 = vunpack.c.l.b16 %v3141
  %v3286 = vunpack.c.h.b16 %v3141
  %v3287 = vunpack.c.l.b16 %v3142
  %v3288 = vunpack.c.h.b16 %v3142
  %v3289 = vunpack.c.l.b16 %v3143
  %v3290 = vunpack.c.h.b16 %v3143
  %v3291 = vunpack.c.l.b16 %v3144
  %v3292 = vunpack.c.h.b16 %v3144
  %v3293 = vunpack.c.l.b16 %v3145
  %v3294 = vunpack.c.h.b16 %v3145
  %v3295 = vunpack.c.l.b16 %v3146
  %v3296 = vunpack.c.h.b16 %v3146
  %v3297 = vunpack.c.l.b16 %v3147
  %v3298 = vunpack.c.h.b16 %v3147
  %v3299 = vunpack.c.l.b16 %v3148
  %v3300 = vunpack.c.h.b16 %v3148
  %v3301 = vunpack.c.l.b16 %v3149
  %v3302 = vunpack.c.h.b16 %v3149
  %v3303 = vunpack.c.l.b16 %v3150
  %v3304 = vunpack.c.h.b16 %v3150
  %v3305 = vunpack.c.l.b16 %v3151
  %v3306 = vunpack.c.h.b16 %v3151
  %v3307 = vunpack.c.l.b16 %v3152
  %v3308 = vunpack.c.h.b16 %v3152
  %v3309 = vunpack.c.l.b16 %v3153
  %v3310 = vunpack.c.h.b16 %v3153
  %v3311 = vunpack.c.l.b16 %v3154
  %v3312 = vunpack.c.h.b16 %v3154
  %v3313 = vunpack.c.l.b16 %v3155
  %v3314 = vunpack.c.h.b16 %v3155
  %v3315 = vunpack.c.l.b16 %v3156
  %v3316 = vunpack.c.h.b16 %v3156
  %v3317 = vunpack.c.l.b16 %v3157
  %v3318 = vunpack.c.h.b16 %v3157
  %v3319 = vunpack.c.l.b16 %v3158
  %v3320 = vunpack.c.h.b16 %v3158
  %v3321 = vunpack.c.l.b16 %v3159
  %v3322 = vunpack.c.h.b16 %v3159
  %v3323 = vunpack.c.l.b16 %v3160
  %v3324 = vunpack.c.h.b16 %v3160
  %v3325 = vunpack.c.l.b16 %v3161
  %v3326 = vunpack.c.h.b16 %v3161
  %v3327 = vunpack.c.l.b16 %v3162
  %v3328 = vunpack.c.h.b16 %v3162
  %v3329 = vunpack.c.l.b16 %v3163
  %v3330 = vunpack.c.h.b16 %v3163
  %v3331 = vunpack.c.l.b16 %v3164
  %v3332 = vunpack.c.h.b16 %v3164
  %v3333 = vunpack.c.l.b16 %v3165
  %v3334 = vunpack.c.h.b16 %v3165
  %v3335 = vunpack.c.l.b16 %v3166
  %v3336 = vunpack.c.h.b16 %v3166
  %v3337 = vunpack.c.l.b16 %v3167
  %v3338 = vunpack.c.h.b16 %v3167
  %v3339 = vunpack.c.l.b16 %v3168
  %v3340 = vunpack.c.h.b16 %v3168
  %v3341 = vunpack.c.l.b16 %v3169
  %v3342 = vunpack.c.h.b16 %v3169
  %v3343 = vunpack.c.l.b16 %v3170
  %v3344 = vunpack.c.h.b16 %v3170
  %v3345 = vunpack.c.l.b16 %v3171
  %v3346 = vunpack.c.h.b16 %v3171
  %v3347 = vunpack.c.l.b16 %v3172
  %v3348 = vunpack.c.h.b16 %v3172
  %v3349 = vunpack.c.l.b16 %v3173
  %v3350 = vunpack.c.h.b16 %v3173
  %v3351 = vunpack.c.l.b16 %v3174
  %v3352 = vunpack.c.h.b16 %v3174
  %v3353 = vunpack.c.l.b16 %v3175
  %v3354 = vunpack.c.h.b16 %v3175
  %v3355 = vunpack.c.l.b16 %v3176
  %v3356 = vunpack.c.h.b16 %v3176
  %v3357 = vunpack.c.l.b16 %v3177
  %v3358 = vunpack.c.h.b16 %v3177
  %v3359 = vunpack.c.l.b16 %v3178
  %v3360 = vunpack.c.h.b16 %v3178
  %v3361 = vunpack.c.l.b16 %v3179
  %v3362 = vunpack.c.h.b16 %v3179
  %v3363 = vunpack.c.l.b16 %v3180
  %v3364 = vunpack.c.h.b16 %v3180
  %v3365 = vunpack.c.l.b16 %v3181
  %v3366 = vunpack.c.h.b16 %v3181
  %v3367 = vunpack.c.l.b16 %v3182
  %v3368 = vunpack.c.h.b16 %v3182
  %v3369 = vunpack.c.l.b16 %v3183
  %v3370 = vunpack.c.h.b16 %v3183
  %v3371 = vunpack.c.l.b16 %v3184
  %v3372 = vunpack.c.h.b16 %v3184
  %v3373 = vunpack.c.l.b16 %v3185
  %v3374 = vunpack.c.h.b16 %v3185
  %v3375 = vunpack.c.l.b16 %v3186
  %v3376 = vunpack.c.h.b16 %v3186
  %v3377 = vunpack.c.l.b16 %v3187
  %v3378 = vunpack.c.h.b16 %v3187
  %v3379 = vunpack.c.l.b16 %v3188
  %v3380 = vunpack.c.h.b16 %v3188
  %v3381 = vunpack.c.l.b16 %v3189
  %v3382 = vunpack.c.h.b16 %v3189
  %v3383 = vunpack.c.l.b16 %v3190
  %v3384 = vunpack.c.h.b16 %v3190
  %v3385 = vunpack.c.l.b16 %v3191
  %v3386 = vunpack.c.h.b16 %v3191
  %v3387 = vunpack.c.l.b16 %v3192
  %v3388 = vunpack.c.h.b16 %v3192
  %v3389 = vunpack.c.l.b16 %v3193
  %v3390 = vunpack.c.h.b16 %v3193
  %v3391 = vunpack.c.l.b16 %v3194
  %v3392 = vunpack.c.h.b16 %v3194
  %v3393 = vunpack.c.l.b16 %v3195
  %v3394 = vunpack.c.h.b16 %v3195
  %v3395 = vunpack.c.l.b16 %v3196
  %v3396 = vunpack.c.h.b16 %v3196
  %v3397 = vunpack.c.l.b16 %v3197
  %v3398 = vunpack.c.h.b16 %v3197
  %v3399 = vunpack.c.l.b16 %v3198
  %v3400 = vunpack.c.h.b16 %v3198
  %v3401 = vunpack.c.l.b16 %v3199
  %v3402 = vunpack.c.h.b16 %v3199
  %v3403 = vpack.c.b16 %v3279, %v3275
  %v3404 = vpack.c.b16 %v3280, %v3276
  %v3405 = vpack.c.b16 %v3281, %v3277
  %v3406 = vpack.c.b16 %v3282, %v3278
  %v3407 = vpack.c.b16 %v3287, %v3283
  %v3408 = vpack.c.b16 %v3288, %v3284
  %v3409 = vpack.c.b16 %v3289, %v3285
  %v3410 = vpack.c.b16 %v3290, %v3286
  %v3411 = vpack.c.b16 %v3295, %v3291
  %v3412 = vpack.c.b16 %v3296, %v3292
  %v3413 = vpack.c.b16 %v3297, %v3293
  %v3414 = vpack.c.b16 %v3298, %v3294
  %v3415 = vpack.c.b16 %v3303, %v3299
  %v3416 = vpack.c.b16 %v3304, %v3300
  %v3417 = vpack.c.b16 %v3305, %v3301
  %v3418 = vpack.c.b16 %v3306, %v3302
  %v3419 = vpack.c.b16 %v3311, %v3307
  %v3420 = vpack.c.b16 %v3312, %v3308
  %v3421 = vpack.c.b16 %v3313, %v3309
  %v3422 = vpack.c.b16 %v3314, %v3310
  %v3423 = vpack.c.b16 %v3319, %v3315
  %v3424 = vpack.c.b16 %v3320, %v3316
  %v3425 = vpack.c.b16 %v3321, %v3317
  %v3426 = vpack.c.b16 %v3322, %v3318
  %v3427 = vpack.c.b16 %v3327, %v3323
  %v3428 = vpack.c.b16 %v3328, %v3324
  %v3429 = vpack.c.b16 %v3329, %v3325
  %v3430 = vpack.c.b16 %v3330, %v3326
  %v3431 = vpack.c.b16 %v3335, %v3331
  %v3432 = vpack.c.b16 %v3336, %v3332
  %v3433 = vpack.c.b16 %v3337, %v3333
  %v3434 = vpack.c.b16 %v3338, %v3334
  %v3435 = vpack.c.b16 %v3343, %v3339
  %v3436 = vpack.c.b16 %v3344, %v3340
  %v3437 = vpack.c.b16 %v3345, %v3341
  %v3438 = vpack.c.b16 %v3346, %v3342
  %v3439 = vpack.c.b16 %v3351, %v3347
  %v3440 = vpack.c.b16 %v3352, %v3348
  %v3441 = vpack.c.b16 %v3353, %v3349
  %v3442 = vpack.c.b16 %v3354, %v3350
  %v3443 = vpack.c.b16 %v3359, %v3355
  %v3444 = vpack.c.b16 %v3360, %v3356
  %v3445 = vpack.c.b16 %v3361, %v3357
  %v3446 = vpack.c.b16 %v3362, %v3358
  %v3447 = vpack.c.b16 %v3367, %v3363
  %v3448 = vpack.c.b16 %v3368, %v3364
  %v3449 = vpack.c.b16 %v3369, %v3365
  %v3450 = vpack.c.b16 %v3370, %v3366
  %v3451 = vpack.c.b16 %v3375, %v3371
  %v3452 = vpack.c.b16 %v3376, %v3372
  %v3453 = vpack.c.b16 %v3377, %v3373
  %v3454 = vpack.c.b16 %v3378, %v3374
  %v3455 = vpack.c.b16 %v3383, %v3379
  %v3456 = vpack.c.b16 %v3384, %v3380
  %v3457 = vpack.c.b16 %v3385, %v3381
  %v3458 = vpack.c.b16 %v3386, %v3382
  %v3459 = vpack.c.b16 %v3391, %v3387
  %v3460 = vpack.c.b16 %v3392, %v3388
  %v3461 = vpack.c.b16 %v3393, %v3389
  %v3462 = vpack.c.b16 %v3394, %v3390
  %v3463 = vpack.c.b16 %v3399, %v3395
  %v3464 = vpack.c.b16 %v3400, %v3396
  %v3465 = vpack.c.b16 %v3401, %v3397
  %v3466 = vpack.c.b16 %v3402, %v3398
  %3531 = vmatpush.bf16.msra.mxu0 %v3431
  %3532 = vmatpush.bf16.msra.mxu0 %v3427
  %3533 = vmatpush.bf16.msra.mxu0 %v3423
  %3534 = vmatpush.bf16.msra.mxu0 %v3419
  %3535 = vmatpush.bf16.msra.mxu0 %v3415
  %3536 = vmatpush.bf16.msra.mxu0 %v3411
  %3537 = vmatpush.bf16.msra.mxu0 %v3407
  %3538 = vmatpush.bf16.msra.mxu0 %v3403
  %3539 = vmatmul.bf16.gmra.mxu0 %v3203
  %v3540 = vpop.f32.mrf.mxu0
  %v3541 = vadd.f32 0.0, %v3540
  %v3542 = vpop.f32.mrf.mxu0
  %v3543 = vadd.f32 0.0, %v3542
  %3544 = vmatmul.bf16.gmra.mxu0 %v3205
  %v3545 = vpop.f32.mrf.mxu0
  %v3546 = vadd.f32 0.0, %v3545
  %v3547 = vpop.f32.mrf.mxu0
  %v3548 = vadd.f32 0.0, %v3547
  %3549 = vdwg.mxu0
  %3550 = vmatpush.bf16.msra.mxu0 %v3463
  %3551 = vmatpush.bf16.msra.mxu0 %v3459
  %3552 = vmatpush.bf16.msra.mxu0 %v3455
  %3553 = vmatpush.bf16.msra.mxu0 %v3451
  %3554 = vmatpush.bf16.msra.mxu0 %v3447
  %3555 = vmatpush.bf16.msra.mxu0 %v3443
  %3556 = vmatpush.bf16.msra.mxu0 %v3439
  %3557 = vmatpush.bf16.msra.mxu0 %v3435
  %3558 = vmatmul.bf16.gmra.mxu0 %v3204
  %v3559 = vpop.f32.mrf.mxu0
  %v3560 = vadd.f32 %v3541, %v3559
  %v3561 = vpop.f32.mrf.mxu0
  %v3562 = vadd.f32 %v3543, %v3561
  %3563 = vmatmul.bf16.gmra.mxu0 %v3206
  %v3564 = vpop.f32.mrf.mxu0
  %v3565 = vadd.f32 %v3546, %v3564
  %v3566 = vpop.f32.mrf.mxu0
  %v3567 = vadd.f32 %v3548, %v3566
  %3568 = vdwg.mxu0
  %3569 = vmatpush.bf16.msra.mxu0 %v3432
  %3570 = vmatpush.bf16.msra.mxu0 %v3428
  %3571 = vmatpush.bf16.msra.mxu0 %v3424
  %3572 = vmatpush.bf16.msra.mxu0 %v3420
  %3573 = vmatpush.bf16.msra.mxu0 %v3416
  %3574 = vmatpush.bf16.msra.mxu0 %v3412
  %3575 = vmatpush.bf16.msra.mxu0 %v3408
  %3576 = vmatpush.bf16.msra.mxu0 %v3404
  %3577 = vmatmul.bf16.gmra.mxu0 %v3203
  %v3578 = vpop.f32.mrf.mxu0
  %v3579 = vadd.f32 0.0, %v3578
  %v3580 = vpop.f32.mrf.mxu0
  %v3581 = vadd.f32 0.0, %v3580
  %3582 = vmatmul.bf16.gmra.mxu0 %v3205
  %v3583 = vpop.f32.mrf.mxu0
  %v3584 = vadd.f32 0.0, %v3583
  %v3585 = vpop.f32.mrf.mxu0
  %v3586 = vadd.f32 0.0, %v3585
  %3587 = vdwg.mxu0
  %3588 = vmatpush.bf16.msra.mxu0 %v3464
  %3589 = vmatpush.bf16.msra.mxu0 %v3460
  %3590 = vmatpush.bf16.msra.mxu0 %v3456
  %3591 = vmatpush.bf16.msra.mxu0 %v3452
  %3592 = vmatpush.bf16.msra.mxu0 %v3448
  %3593 = vmatpush.bf16.msra.mxu0 %v3444
  %3594 = vmatpush.bf16.msra.mxu0 %v3440
  %3595 = vmatpush.bf16.msra.mxu0 %v3436
  %3596 = vmatmul.bf16.gmra.mxu0 %v3204
  %v3597 = vpop.f32.mrf.mxu0
  %v3598 = vadd.f32 %v3579, %v3597
  %v3599 = vpop.f32.mrf.mxu0
  %v3600 = vadd.f32 %v3581, %v3599
  %3601 = vmatmul.bf16.gmra.mxu0 %v3206
  %v3602 = vpop.f32.mrf.mxu0
  %v3603 = vadd.f32 %v3584, %v3602
  %v3604 = vpop.f32.mrf.mxu0
  %v3605 = vadd.f32 %v3586, %v3604
  %3606 = vdwg.mxu0
  %3607 = vmatpush.bf16.msra.mxu0 %v3433
  %3608 = vmatpush.bf16.msra.mxu0 %v3429
  %3609 = vmatpush.bf16.msra.mxu0 %v3425
  %3610 = vmatpush.bf16.msra.mxu0 %v3421
  %3611 = vmatpush.bf16.msra.mxu0 %v3417
  %3612 = vmatpush.bf16.msra.mxu0 %v3413
  %3613 = vmatpush.bf16.msra.mxu0 %v3409
  %3614 = vmatpush.bf16.msra.mxu0 %v3405
  %3615 = vmatmul.bf16.gmra.mxu0 %v3203
  %v3616 = vpop.f32.mrf.mxu0
  %v3617 = vadd.f32 0.0, %v3616
  %v3618 = vpop.f32.mrf.mxu0
  %v3619 = vadd.f32 0.0, %v3618
  %3620 = vmatmul.bf16.gmra.mxu0 %v3205
  %v3621 = vpop.f32.mrf.mxu0
  %v3622 = vadd.f32 0.0, %v3621
  %v3623 = vpop.f32.mrf.mxu0
  %v3624 = vadd.f32 0.0, %v3623
  %3625 = vdwg.mxu0
  %3626 = vmatpush.bf16.msra.mxu0 %v3465
  %3627 = vmatpush.bf16.msra.mxu0 %v3461
  %3628 = vmatpush.bf16.msra.mxu0 %v3457
  %3629 = vmatpush.bf16.msra.mxu0 %v3453
  %3630 = vmatpush.bf16.msra.mxu0 %v3449
  %3631 = vmatpush.bf16.msra.mxu0 %v3445
  %3632 = vmatpush.bf16.msra.mxu0 %v3441
  %3633 = vmatpush.bf16.msra.mxu0 %v3437
  %3634 = vmatmul.bf16.gmra.mxu0 %v3204
  %v3635 = vpop.f32.mrf.mxu0
  %v3636 = vadd.f32 %v3617, %v3635
  %v3637 = vpop.f32.mrf.mxu0
  %v3638 = vadd.f32 %v3619, %v3637
  %3639 = vmatmul.bf16.gmra.mxu0 %v3206
  %v3640 = vpop.f32.mrf.mxu0
  %v3641 = vadd.f32 %v3622, %v3640
  %v3642 = vpop.f32.mrf.mxu0
  %v3643 = vadd.f32 %v3624, %v3642
  %3644 = vdwg.mxu0
  %3645 = vmatpush.bf16.msra.mxu0 %v3434
  %3646 = vmatpush.bf16.msra.mxu0 %v3430
  %3647 = vmatpush.bf16.msra.mxu0 %v3426
  %3648 = vmatpush.bf16.msra.mxu0 %v3422
  %3649 = vmatpush.bf16.msra.mxu0 %v3418
  %3650 = vmatpush.bf16.msra.mxu0 %v3414
  %3651 = vmatpush.bf16.msra.mxu0 %v3410
  %3652 = vmatpush.bf16.msra.mxu0 %v3406
  %3653 = vmatmul.bf16.gmra.mxu0 %v3203
  %v3654 = vpop.f32.mrf.mxu0
  %v3655 = vadd.f32 0.0, %v3654
  %v3656 = vpop.f32.mrf.mxu0
  %v3657 = vadd.f32 0.0, %v3656
  %3658 = vmatmul.bf16.gmra.mxu0 %v3205
  %v3659 = vpop.f32.mrf.mxu0
  %v3660 = vadd.f32 0.0, %v3659
  %v3661 = vpop.f32.mrf.mxu0
  %v3662 = vadd.f32 0.0, %v3661
  %3663 = vdwg.mxu0
  %3664 = vmatpush.bf16.msra.mxu0 %v3466
  %3665 = vmatpush.bf16.msra.mxu0 %v3462
  %3666 = vmatpush.bf16.msra.mxu0 %v3458
  %3667 = vmatpush.bf16.msra.mxu0 %v3454
  %3668 = vmatpush.bf16.msra.mxu0 %v3450
  %3669 = vmatpush.bf16.msra.mxu0 %v3446
  %3670 = vmatpush.bf16.msra.mxu0 %v3442
  %3671 = vmatpush.bf16.msra.mxu0 %v3438
  %3672 = vmatmul.bf16.gmra.mxu0 %v3204
  %v3673 = vpop.f32.mrf.mxu0
  %v3674 = vadd.f32 %v3655, %v3673
  %v3675 = vpop.f32.mrf.mxu0
  %v3676 = vadd.f32 %v3657, %v3675
  %3677 = vmatmul.bf16.gmra.mxu0 %v3206
  %v3678 = vpop.f32.mrf.mxu0
  %v3679 = vadd.f32 %v3660, %v3678
  %v3680 = vpop.f32.mrf.mxu0
  %v3681 = vadd.f32 %v3662, %v3680
  %3682 = vdwg.mxu0
  %v3683 = vadd.f32 %v3119, %v3560
  %v3684 = vadd.f32 %v3120, %v3598
  %v3685 = vadd.f32 %v3121, %v3636
  %v3686 = vadd.f32 %v3122, %v3674
  %v3687 = vadd.f32 %v3123, %v3562
  %v3688 = vadd.f32 %v3124, %v3600
  %v3689 = vadd.f32 %v3125, %v3638
  %v3690 = vadd.f32 %v3126, %v3676
  %v3691 = vadd.f32 %v3127, %v3565
  %v3692 = vadd.f32 %v3128, %v3603
  %v3693 = vadd.f32 %v3129, %v3641
  %v3694 = vadd.f32 %v3130, %v3679
  %v3695 = vadd.f32 %v3131, %v3567
  %v3696 = vadd.f32 %v3132, %v3605
  %v3697 = vadd.f32 %v3133, %v3643
  %v3698 = vadd.f32 %v3134, %v3681
  %s3699 = scalar_lea.vmem %s3, 2048
  %v3700 = vld [vmem:[%s3699] sm:$0xff]
  %v3701 = vld [vmem:[%s3699 + $0x8] sm:$0xff]
  %v3702 = vld [vmem:[%s3699 + $0x10] sm:$0xff]
  %v3703 = vld [vmem:[%s3699 + $0x18] sm:$0xff]
  %v3704 = vld [vmem:[%s3699 + $0x20] sm:$0xff]
  %v3705 = vld [vmem:[%s3699 + $0x28] sm:$0xff]
  %v3706 = vld [vmem:[%s3699 + $0x30] sm:$0xff]
  %v3707 = vld [vmem:[%s3699 + $0x38] sm:$0xff]
  %v3708 = vld [vmem:[%s3699 + $0x40] sm:$0xff]
  %v3709 = vld [vmem:[%s3699 + $0x48] sm:$0xff]
  %v3710 = vld [vmem:[%s3699 + $0x50] sm:$0xff]
  %v3711 = vld [vmem:[%s3699 + $0x58] sm:$0xff]
  %v3712 = vld [vmem:[%s3699 + $0x60] sm:$0xff]
  %v3713 = vld [vmem:[%s3699 + $0x68] sm:$0xff]
  %v3714 = vld [vmem:[%s3699 + $0x70] sm:$0xff]
  %v3715 = vld [vmem:[%s3699 + $0x78] sm:$0xff]
  %v3716 = vld [vmem:[%s3699 + $0x80] sm:$0xff]
  %v3717 = vld [vmem:[%s3699 + $0x88] sm:$0xff]
  %v3718 = vld [vmem:[%s3699 + $0x90] sm:$0xff]
  %v3719 = vld [vmem:[%s3699 + $0x98] sm:$0xff]
  %v3720 = vld [vmem:[%s3699 + $0xa0] sm:$0xff]
  %v3721 = vld [vmem:[%s3699 + $0xa8] sm:$0xff]
  %v3722 = vld [vmem:[%s3699 + $0xb0] sm:$0xff]
  %v3723 = vld [vmem:[%s3699 + $0xb8] sm:$0xff]
  %v3724 = vld [vmem:[%s3699 + $0xc0] sm:$0xff]
  %v3725 = vld [vmem:[%s3699 + $0xc8] sm:$0xff]
  %v3726 = vld [vmem:[%s3699 + $0xd0] sm:$0xff]
  %v3727 = vld [vmem:[%s3699 + $0xd8] sm:$0xff]
  %v3728 = vld [vmem:[%s3699 + $0xe0] sm:$0xff]
  %v3729 = vld [vmem:[%s3699 + $0xe8] sm:$0xff]
  %v3730 = vld [vmem:[%s3699 + $0xf0] sm:$0xff]
  %v3731 = vld [vmem:[%s3699 + $0xf8] sm:$0xff]
  %v3732 = vld [vmem:[%s3699 + $0x100] sm:$0xff]
  %v3733 = vld [vmem:[%s3699 + $0x108] sm:$0xff]
  %v3734 = vld [vmem:[%s3699 + $0x110] sm:$0xff]
  %v3735 = vld [vmem:[%s3699 + $0x118] sm:$0xff]
  %v3736 = vld [vmem:[%s3699 + $0x120] sm:$0xff]
  %v3737 = vld [vmem:[%s3699 + $0x128] sm:$0xff]
  %v3738 = vld [vmem:[%s3699 + $0x130] sm:$0xff]
  %v3739 = vld [vmem:[%s3699 + $0x138] sm:$0xff]
  %v3740 = vld [vmem:[%s3699 + $0x140] sm:$0xff]
  %v3741 = vld [vmem:[%s3699 + $0x148] sm:$0xff]
  %v3742 = vld [vmem:[%s3699 + $0x150] sm:$0xff]
  %v3743 = vld [vmem:[%s3699 + $0x158] sm:$0xff]
  %v3744 = vld [vmem:[%s3699 + $0x160] sm:$0xff]
  %v3745 = vld [vmem:[%s3699 + $0x168] sm:$0xff]
  %v3746 = vld [vmem:[%s3699 + $0x170] sm:$0xff]
  %v3747 = vld [vmem:[%s3699 + $0x178] sm:$0xff]
  %v3748 = vld [vmem:[%s3699 + $0x180] sm:$0xff]
  %v3749 = vld [vmem:[%s3699 + $0x188] sm:$0xff]
  %v3750 = vld [vmem:[%s3699 + $0x190] sm:$0xff]
  %v3751 = vld [vmem:[%s3699 + $0x198] sm:$0xff]
  %v3752 = vld [vmem:[%s3699 + $0x1a0] sm:$0xff]
  %v3753 = vld [vmem:[%s3699 + $0x1a8] sm:$0xff]
  %v3754 = vld [vmem:[%s3699 + $0x1b0] sm:$0xff]
  %v3755 = vld [vmem:[%s3699 + $0x1b8] sm:$0xff]
  %v3756 = vld [vmem:[%s3699 + $0x1c0] sm:$0xff]
  %v3757 = vld [vmem:[%s3699 + $0x1c8] sm:$0xff]
  %v3758 = vld [vmem:[%s3699 + $0x1d0] sm:$0xff]
  %v3759 = vld [vmem:[%s3699 + $0x1d8] sm:$0xff]
  %v3760 = vld [vmem:[%s3699 + $0x1e0] sm:$0xff]
  %v3761 = vld [vmem:[%s3699 + $0x1e8] sm:$0xff]
  %v3762 = vld [vmem:[%s3699 + $0x1f0] sm:$0xff]
  %v3763 = vld [vmem:[%s3699 + $0x1f8] sm:$0xff]
  %v3765 = vunpack.c.l.b16 %v932
  %v3766 = vunpack.c.h.b16 %v932
  %v3767 = vpack.c.b16 %v3765, %v2637
  %v3768 = vpack.c.b16 %v3766, %v2638
  %v3835 = vunpack.c.l.b16 %v3700
  %v3836 = vunpack.c.h.b16 %v3700
  %v3837 = vunpack.c.l.b16 %v3701
  %v3838 = vunpack.c.h.b16 %v3701
  %v3839 = vunpack.c.l.b16 %v3702
  %v3840 = vunpack.c.h.b16 %v3702
  %v3841 = vunpack.c.l.b16 %v3703
  %v3842 = vunpack.c.h.b16 %v3703
  %v3843 = vunpack.c.l.b16 %v3704
  %v3844 = vunpack.c.h.b16 %v3704
  %v3845 = vunpack.c.l.b16 %v3705
  %v3846 = vunpack.c.h.b16 %v3705
  %v3847 = vunpack.c.l.b16 %v3706
  %v3848 = vunpack.c.h.b16 %v3706
  %v3849 = vunpack.c.l.b16 %v3707
  %v3850 = vunpack.c.h.b16 %v3707
  %v3851 = vunpack.c.l.b16 %v3708
  %v3852 = vunpack.c.h.b16 %v3708
  %v3853 = vunpack.c.l.b16 %v3709
  %v3854 = vunpack.c.h.b16 %v3709
  %v3855 = vunpack.c.l.b16 %v3710
  %v3856 = vunpack.c.h.b16 %v3710
  %v3857 = vunpack.c.l.b16 %v3711
  %v3858 = vunpack.c.h.b16 %v3711
  %v3859 = vunpack.c.l.b16 %v3712
  %v3860 = vunpack.c.h.b16 %v3712
  %v3861 = vunpack.c.l.b16 %v3713
  %v3862 = vunpack.c.h.b16 %v3713
  %v3863 = vunpack.c.l.b16 %v3714
  %v3864 = vunpack.c.h.b16 %v3714
  %v3865 = vunpack.c.l.b16 %v3715
  %v3866 = vunpack.c.h.b16 %v3715
  %v3867 = vunpack.c.l.b16 %v3716
  %v3868 = vunpack.c.h.b16 %v3716
  %v3869 = vunpack.c.l.b16 %v3717
  %v3870 = vunpack.c.h.b16 %v3717
  %v3871 = vunpack.c.l.b16 %v3718
  %v3872 = vunpack.c.h.b16 %v3718
  %v3873 = vunpack.c.l.b16 %v3719
  %v3874 = vunpack.c.h.b16 %v3719
  %v3875 = vunpack.c.l.b16 %v3720
  %v3876 = vunpack.c.h.b16 %v3720
  %v3877 = vunpack.c.l.b16 %v3721
  %v3878 = vunpack.c.h.b16 %v3721
  %v3879 = vunpack.c.l.b16 %v3722
  %v3880 = vunpack.c.h.b16 %v3722
  %v3881 = vunpack.c.l.b16 %v3723
  %v3882 = vunpack.c.h.b16 %v3723
  %v3883 = vunpack.c.l.b16 %v3724
  %v3884 = vunpack.c.h.b16 %v3724
  %v3885 = vunpack.c.l.b16 %v3725
  %v3886 = vunpack.c.h.b16 %v3725
  %v3887 = vunpack.c.l.b16 %v3726
  %v3888 = vunpack.c.h.b16 %v3726
  %v3889 = vunpack.c.l.b16 %v3727
  %v3890 = vunpack.c.h.b16 %v3727
  %v3891 = vunpack.c.l.b16 %v3728
  %v3892 = vunpack.c.h.b16 %v3728
  %v3893 = vunpack.c.l.b16 %v3729
  %v3894 = vunpack.c.h.b16 %v3729
  %v3895 = vunpack.c.l.b16 %v3730
  %v3896 = vunpack.c.h.b16 %v3730
  %v3897 = vunpack.c.l.b16 %v3731
  %v3898 = vunpack.c.h.b16 %v3731
  %v3899 = vunpack.c.l.b16 %v3732
  %v3900 = vunpack.c.h.b16 %v3732
  %v3901 = vunpack.c.l.b16 %v3733
  %v3902 = vunpack.c.h.b16 %v3733
  %v3903 = vunpack.c.l.b16 %v3734
  %v3904 = vunpack.c.h.b16 %v3734
  %v3905 = vunpack.c.l.b16 %v3735
  %v3906 = vunpack.c.h.b16 %v3735
  %v3907 = vunpack.c.l.b16 %v3736
  %v3908 = vunpack.c.h.b16 %v3736
  %v3909 = vunpack.c.l.b16 %v3737
  %v3910 = vunpack.c.h.b16 %v3737
  %v3911 = vunpack.c.l.b16 %v3738
  %v3912 = vunpack.c.h.b16 %v3738
  %v3913 = vunpack.c.l.b16 %v3739
  %v3914 = vunpack.c.h.b16 %v3739
  %v3915 = vunpack.c.l.b16 %v3740
  %v3916 = vunpack.c.h.b16 %v3740
  %v3917 = vunpack.c.l.b16 %v3741
  %v3918 = vunpack.c.h.b16 %v3741
  %v3919 = vunpack.c.l.b16 %v3742
  %v3920 = vunpack.c.h.b16 %v3742
  %v3921 = vunpack.c.l.b16 %v3743
  %v3922 = vunpack.c.h.b16 %v3743
  %v3923 = vunpack.c.l.b16 %v3744
  %v3924 = vunpack.c.h.b16 %v3744
  %v3925 = vunpack.c.l.b16 %v3745
  %v3926 = vunpack.c.h.b16 %v3745
  %v3927 = vunpack.c.l.b16 %v3746
  %v3928 = vunpack.c.h.b16 %v3746
  %v3929 = vunpack.c.l.b16 %v3747
  %v3930 = vunpack.c.h.b16 %v3747
  %v3931 = vunpack.c.l.b16 %v3748
  %v3932 = vunpack.c.h.b16 %v3748
  %v3933 = vunpack.c.l.b16 %v3749
  %v3934 = vunpack.c.h.b16 %v3749
  %v3935 = vunpack.c.l.b16 %v3750
  %v3936 = vunpack.c.h.b16 %v3750
  %v3937 = vunpack.c.l.b16 %v3751
  %v3938 = vunpack.c.h.b16 %v3751
  %v3939 = vunpack.c.l.b16 %v3752
  %v3940 = vunpack.c.h.b16 %v3752
  %v3941 = vunpack.c.l.b16 %v3753
  %v3942 = vunpack.c.h.b16 %v3753
  %v3943 = vunpack.c.l.b16 %v3754
  %v3944 = vunpack.c.h.b16 %v3754
  %v3945 = vunpack.c.l.b16 %v3755
  %v3946 = vunpack.c.h.b16 %v3755
  %v3947 = vunpack.c.l.b16 %v3756
  %v3948 = vunpack.c.h.b16 %v3756
  %v3949 = vunpack.c.l.b16 %v3757
  %v3950 = vunpack.c.h.b16 %v3757
  %v3951 = vunpack.c.l.b16 %v3758
  %v3952 = vunpack.c.h.b16 %v3758
  %v3953 = vunpack.c.l.b16 %v3759
  %v3954 = vunpack.c.h.b16 %v3759
  %v3955 = vunpack.c.l.b16 %v3760
  %v3956 = vunpack.c.h.b16 %v3760
  %v3957 = vunpack.c.l.b16 %v3761
  %v3958 = vunpack.c.h.b16 %v3761
  %v3959 = vunpack.c.l.b16 %v3762
  %v3960 = vunpack.c.h.b16 %v3762
  %v3961 = vunpack.c.l.b16 %v3763
  %v3962 = vunpack.c.h.b16 %v3763
  %v3963 = vpack.c.b16 %v3839, %v3835
  %v3964 = vpack.c.b16 %v3840, %v3836
  %v3965 = vpack.c.b16 %v3841, %v3837
  %v3966 = vpack.c.b16 %v3842, %v3838
  %v3967 = vpack.c.b16 %v3847, %v3843
  %v3968 = vpack.c.b16 %v3848, %v3844
  %v3969 = vpack.c.b16 %v3849, %v3845
  %v3970 = vpack.c.b16 %v3850, %v3846
  %v3971 = vpack.c.b16 %v3855, %v3851
  %v3972 = vpack.c.b16 %v3856, %v3852
  %v3973 = vpack.c.b16 %v3857, %v3853
  %v3974 = vpack.c.b16 %v3858, %v3854
  %v3975 = vpack.c.b16 %v3863, %v3859
  %v3976 = vpack.c.b16 %v3864, %v3860
  %v3977 = vpack.c.b16 %v3865, %v3861
  %v3978 = vpack.c.b16 %v3866, %v3862
  %v3979 = vpack.c.b16 %v3871, %v3867
  %v3980 = vpack.c.b16 %v3872, %v3868
  %v3981 = vpack.c.b16 %v3873, %v3869
  %v3982 = vpack.c.b16 %v3874, %v3870
  %v3983 = vpack.c.b16 %v3879, %v3875
  %v3984 = vpack.c.b16 %v3880, %v3876
  %v3985 = vpack.c.b16 %v3881, %v3877
  %v3986 = vpack.c.b16 %v3882, %v3878
  %v3987 = vpack.c.b16 %v3887, %v3883
  %v3988 = vpack.c.b16 %v3888, %v3884
  %v3989 = vpack.c.b16 %v3889, %v3885
  %v3990 = vpack.c.b16 %v3890, %v3886
  %v3991 = vpack.c.b16 %v3895, %v3891
  %v3992 = vpack.c.b16 %v3896, %v3892
  %v3993 = vpack.c.b16 %v3897, %v3893
  %v3994 = vpack.c.b16 %v3898, %v3894
  %v3995 = vpack.c.b16 %v3903, %v3899
  %v3996 = vpack.c.b16 %v3904, %v3900
  %v3997 = vpack.c.b16 %v3905, %v3901
  %v3998 = vpack.c.b16 %v3906, %v3902
  %v3999 = vpack.c.b16 %v3911, %v3907
  %v4000 = vpack.c.b16 %v3912, %v3908
  %v4001 = vpack.c.b16 %v3913, %v3909
  %v4002 = vpack.c.b16 %v3914, %v3910
  %v4003 = vpack.c.b16 %v3919, %v3915
  %v4004 = vpack.c.b16 %v3920, %v3916
  %v4005 = vpack.c.b16 %v3921, %v3917
  %v4006 = vpack.c.b16 %v3922, %v3918
  %v4007 = vpack.c.b16 %v3927, %v3923
  %v4008 = vpack.c.b16 %v3928, %v3924
  %v4009 = vpack.c.b16 %v3929, %v3925
  %v4010 = vpack.c.b16 %v3930, %v3926
  %v4011 = vpack.c.b16 %v3935, %v3931
  %v4012 = vpack.c.b16 %v3936, %v3932
  %v4013 = vpack.c.b16 %v3937, %v3933
  %v4014 = vpack.c.b16 %v3938, %v3934
  %v4015 = vpack.c.b16 %v3943, %v3939
  %v4016 = vpack.c.b16 %v3944, %v3940
  %v4017 = vpack.c.b16 %v3945, %v3941
  %v4018 = vpack.c.b16 %v3946, %v3942
  %v4019 = vpack.c.b16 %v3951, %v3947
  %v4020 = vpack.c.b16 %v3952, %v3948
  %v4021 = vpack.c.b16 %v3953, %v3949
  %v4022 = vpack.c.b16 %v3954, %v3950
  %v4023 = vpack.c.b16 %v3959, %v3955
  %v4024 = vpack.c.b16 %v3960, %v3956
  %v4025 = vpack.c.b16 %v3961, %v3957
  %v4026 = vpack.c.b16 %v3962, %v3958
  %4091 = vmatpush.bf16.msra.mxu0 %v3991
  %4092 = vmatpush.bf16.msra.mxu0 %v3987
  %4093 = vmatpush.bf16.msra.mxu0 %v3983
  %4094 = vmatpush.bf16.msra.mxu0 %v3979
  %4095 = vmatpush.bf16.msra.mxu0 %v3975
  %4096 = vmatpush.bf16.msra.mxu0 %v3971
  %4097 = vmatpush.bf16.msra.mxu0 %v3967
  %4098 = vmatpush.bf16.msra.mxu0 %v3963
  %4099 = vmatmul.bf16.gmra.mxu0 %v2093
  %v4100 = vpop.f32.mrf.mxu0
  %v4101 = vadd.f32 0.0, %v4100
  %v4102 = vpop.f32.mrf.mxu0
  %v4103 = vadd.f32 0.0, %v4102
  %4104 = vmatmul.bf16.gmra.mxu0 %v3767
  %v4105 = vpop.f32.mrf.mxu0
  %v4106 = vadd.f32 0.0, %v4105
  %v4107 = vpop.f32.mrf.mxu0
  %v4108 = vadd.f32 0.0, %v4107
  %4109 = vdwg.mxu0
  %4110 = vmatpush.bf16.msra.mxu0 %v4023
  %4111 = vmatpush.bf16.msra.mxu0 %v4019
  %4112 = vmatpush.bf16.msra.mxu0 %v4015
  %4113 = vmatpush.bf16.msra.mxu0 %v4011
  %4114 = vmatpush.bf16.msra.mxu0 %v4007
  %4115 = vmatpush.bf16.msra.mxu0 %v4003
  %4116 = vmatpush.bf16.msra.mxu0 %v3999
  %4117 = vmatpush.bf16.msra.mxu0 %v3995
  %4118 = vmatmul.bf16.gmra.mxu0 %v2094
  %v4119 = vpop.f32.mrf.mxu0
  %v4120 = vadd.f32 %v4101, %v4119
  %v4121 = vpop.f32.mrf.mxu0
  %v4122 = vadd.f32 %v4103, %v4121
  %4123 = vmatmul.bf16.gmra.mxu0 %v3768
  %v4124 = vpop.f32.mrf.mxu0
  %v4125 = vadd.f32 %v4106, %v4124
  %v4126 = vpop.f32.mrf.mxu0
  %v4127 = vadd.f32 %v4108, %v4126
  %4128 = vdwg.mxu0
  %4129 = vmatpush.bf16.msra.mxu0 %v3992
  %4130 = vmatpush.bf16.msra.mxu0 %v3988
  %4131 = vmatpush.bf16.msra.mxu0 %v3984
  %4132 = vmatpush.bf16.msra.mxu0 %v3980
  %4133 = vmatpush.bf16.msra.mxu0 %v3976
  %4134 = vmatpush.bf16.msra.mxu0 %v3972
  %4135 = vmatpush.bf16.msra.mxu0 %v3968
  %4136 = vmatpush.bf16.msra.mxu0 %v3964
  %4137 = vmatmul.bf16.gmra.mxu0 %v2093
  %v4138 = vpop.f32.mrf.mxu0
  %v4139 = vadd.f32 0.0, %v4138
  %v4140 = vpop.f32.mrf.mxu0
  %v4141 = vadd.f32 0.0, %v4140
  %4142 = vmatmul.bf16.gmra.mxu0 %v3767
  %v4143 = vpop.f32.mrf.mxu0
  %v4144 = vadd.f32 0.0, %v4143
  %v4145 = vpop.f32.mrf.mxu0
  %v4146 = vadd.f32 0.0, %v4145
  %4147 = vdwg.mxu0
  %4148 = vmatpush.bf16.msra.mxu0 %v4024
  %4149 = vmatpush.bf16.msra.mxu0 %v4020
  %4150 = vmatpush.bf16.msra.mxu0 %v4016
  %4151 = vmatpush.bf16.msra.mxu0 %v4012
  %4152 = vmatpush.bf16.msra.mxu0 %v4008
  %4153 = vmatpush.bf16.msra.mxu0 %v4004
  %4154 = vmatpush.bf16.msra.mxu0 %v4000
  %4155 = vmatpush.bf16.msra.mxu0 %v3996
  %4156 = vmatmul.bf16.gmra.mxu0 %v2094
  %v4157 = vpop.f32.mrf.mxu0
  %v4158 = vadd.f32 %v4139, %v4157
  %v4159 = vpop.f32.mrf.mxu0
  %v4160 = vadd.f32 %v4141, %v4159
  %4161 = vmatmul.bf16.gmra.mxu0 %v3768
  %v4162 = vpop.f32.mrf.mxu0
  %v4163 = vadd.f32 %v4144, %v4162
  %v4164 = vpop.f32.mrf.mxu0
  %v4165 = vadd.f32 %v4146, %v4164
  %4166 = vdwg.mxu0
  %4167 = vmatpush.bf16.msra.mxu0 %v3993
  %4168 = vmatpush.bf16.msra.mxu0 %v3989
  %4169 = vmatpush.bf16.msra.mxu0 %v3985
  %4170 = vmatpush.bf16.msra.mxu0 %v3981
  %4171 = vmatpush.bf16.msra.mxu0 %v3977
  %4172 = vmatpush.bf16.msra.mxu0 %v3973
  %4173 = vmatpush.bf16.msra.mxu0 %v3969
  %4174 = vmatpush.bf16.msra.mxu0 %v3965
  %4175 = vmatmul.bf16.gmra.mxu0 %v2093
  %v4176 = vpop.f32.mrf.mxu0
  %v4177 = vadd.f32 0.0, %v4176
  %v4178 = vpop.f32.mrf.mxu0
  %v4179 = vadd.f32 0.0, %v4178
  %4180 = vmatmul.bf16.gmra.mxu0 %v3767
  %v4181 = vpop.f32.mrf.mxu0
  %v4182 = vadd.f32 0.0, %v4181
  %v4183 = vpop.f32.mrf.mxu0
  %v4184 = vadd.f32 0.0, %v4183
  %4185 = vdwg.mxu0
  %4186 = vmatpush.bf16.msra.mxu0 %v4025
  %4187 = vmatpush.bf16.msra.mxu0 %v4021
  %4188 = vmatpush.bf16.msra.mxu0 %v4017
  %4189 = vmatpush.bf16.msra.mxu0 %v4013
  %4190 = vmatpush.bf16.msra.mxu0 %v4009
  %4191 = vmatpush.bf16.msra.mxu0 %v4005
  %4192 = vmatpush.bf16.msra.mxu0 %v4001
  %4193 = vmatpush.bf16.msra.mxu0 %v3997
  %4194 = vmatmul.bf16.gmra.mxu0 %v2094
  %v4195 = vpop.f32.mrf.mxu0
  %v4196 = vadd.f32 %v4177, %v4195
  %v4197 = vpop.f32.mrf.mxu0
  %v4198 = vadd.f32 %v4179, %v4197
  %4199 = vmatmul.bf16.gmra.mxu0 %v3768
  %v4200 = vpop.f32.mrf.mxu0
  %v4201 = vadd.f32 %v4182, %v4200
  %v4202 = vpop.f32.mrf.mxu0
  %v4203 = vadd.f32 %v4184, %v4202
  %4204 = vdwg.mxu0
  %4205 = vmatpush.bf16.msra.mxu0 %v3994
  %4206 = vmatpush.bf16.msra.mxu0 %v3990
  %4207 = vmatpush.bf16.msra.mxu0 %v3986
  %4208 = vmatpush.bf16.msra.mxu0 %v3982
  %4209 = vmatpush.bf16.msra.mxu0 %v3978
  %4210 = vmatpush.bf16.msra.mxu0 %v3974
  %4211 = vmatpush.bf16.msra.mxu0 %v3970
  %4212 = vmatpush.bf16.msra.mxu0 %v3966
  %4213 = vmatmul.bf16.gmra.mxu0 %v2093
  %v4214 = vpop.f32.mrf.mxu0
  %v4215 = vadd.f32 0.0, %v4214
  %v4216 = vpop.f32.mrf.mxu0
  %v4217 = vadd.f32 0.0, %v4216
  %4218 = vmatmul.bf16.gmra.mxu0 %v3767
  %v4219 = vpop.f32.mrf.mxu0
  %v4220 = vadd.f32 0.0, %v4219
  %v4221 = vpop.f32.mrf.mxu0
  %v4222 = vadd.f32 0.0, %v4221
  %4223 = vdwg.mxu0
  %4224 = vmatpush.bf16.msra.mxu0 %v4026
  %4225 = vmatpush.bf16.msra.mxu0 %v4022
  %4226 = vmatpush.bf16.msra.mxu0 %v4018
  %4227 = vmatpush.bf16.msra.mxu0 %v4014
  %4228 = vmatpush.bf16.msra.mxu0 %v4010
  %4229 = vmatpush.bf16.msra.mxu0 %v4006
  %4230 = vmatpush.bf16.msra.mxu0 %v4002
  %4231 = vmatpush.bf16.msra.mxu0 %v3998
  %4232 = vmatmul.bf16.gmra.mxu0 %v2094
  %v4233 = vpop.f32.mrf.mxu0
  %v4234 = vadd.f32 %v4215, %v4233
  %v4235 = vpop.f32.mrf.mxu0
  %v4236 = vadd.f32 %v4217, %v4235
  %4237 = vmatmul.bf16.gmra.mxu0 %v3768
  %v4238 = vpop.f32.mrf.mxu0
  %v4239 = vadd.f32 %v4220, %v4238
  %v4240 = vpop.f32.mrf.mxu0
  %v4241 = vadd.f32 %v4222, %v4240
  %4242 = vdwg.mxu0
  %v4243 = vadd.f32 %v3683, %v4120
  %v4244 = vadd.f32 %v3684, %v4158
  %v4245 = vadd.f32 %v3685, %v4196
  %v4246 = vadd.f32 %v3686, %v4234
  %v4247 = vadd.f32 %v3687, %v4122
  %v4248 = vadd.f32 %v3688, %v4160
  %v4249 = vadd.f32 %v3689, %v4198
  %v4250 = vadd.f32 %v3690, %v4236
  %v4251 = vadd.f32 %v3691, %v4125
  %v4252 = vadd.f32 %v3692, %v4163
  %v4253 = vadd.f32 %v3693, %v4201
  %v4254 = vadd.f32 %v3694, %v4239
  %v4255 = vadd.f32 %v3695, %v4127
  %v4256 = vadd.f32 %v3696, %v4165
  %v4257 = vadd.f32 %v3697, %v4203
  %v4258 = vadd.f32 %v3698, %v4241
  %4259 = vmatpush.bf16.msra.mxu0 %v1827
  %4260 = vmatpush.bf16.msra.mxu0 %v1823
  %4261 = vmatpush.bf16.msra.mxu0 %v1819
  %4262 = vmatpush.bf16.msra.mxu0 %v1815
  %4263 = vmatpush.bf16.msra.mxu0 %v1811
  %4264 = vmatpush.bf16.msra.mxu0 %v1807
  %4265 = vmatpush.bf16.msra.mxu0 %v1803
  %4266 = vmatpush.bf16.msra.mxu0 %v1799
  %4267 = vmatmul.bf16.gmra.mxu0 %v2639
  %v4268 = vpop.f32.mrf.mxu0
  %v4269 = vadd.f32 0.0, %v4268
  %v4270 = vpop.f32.mrf.mxu0
  %v4271 = vadd.f32 0.0, %v4270
  %4272 = vmatmul.bf16.gmra.mxu0 %v2641
  %v4273 = vpop.f32.mrf.mxu0
  %v4274 = vadd.f32 0.0, %v4273
  %v4275 = vpop.f32.mrf.mxu0
  %v4276 = vadd.f32 0.0, %v4275
  %4277 = vdwg.mxu0
  %4278 = vmatpush.bf16.msra.mxu0 %v1859
  %4279 = vmatpush.bf16.msra.mxu0 %v1855
  %4280 = vmatpush.bf16.msra.mxu0 %v1851
  %4281 = vmatpush.bf16.msra.mxu0 %v1847
  %4282 = vmatpush.bf16.msra.mxu0 %v1843
  %4283 = vmatpush.bf16.msra.mxu0 %v1839
  %4284 = vmatpush.bf16.msra.mxu0 %v1835
  %4285 = vmatpush.bf16.msra.mxu0 %v1831
  %4286 = vmatmul.bf16.gmra.mxu0 %v2640
  %v4287 = vpop.f32.mrf.mxu0
  %v4288 = vadd.f32 %v4269, %v4287
  %v4289 = vpop.f32.mrf.mxu0
  %v4290 = vadd.f32 %v4271, %v4289
  %4291 = vmatmul.bf16.gmra.mxu0 %v2642
  %v4292 = vpop.f32.mrf.mxu0
  %v4293 = vadd.f32 %v4274, %v4292
  %v4294 = vpop.f32.mrf.mxu0
  %v4295 = vadd.f32 %v4276, %v4294
  %4296 = vdwg.mxu0
  %4297 = vmatpush.bf16.msra.mxu0 %v1828
  %4298 = vmatpush.bf16.msra.mxu0 %v1824
  %4299 = vmatpush.bf16.msra.mxu0 %v1820
  %4300 = vmatpush.bf16.msra.mxu0 %v1816
  %4301 = vmatpush.bf16.msra.mxu0 %v1812
  %4302 = vmatpush.bf16.msra.mxu0 %v1808
  %4303 = vmatpush.bf16.msra.mxu0 %v1804
  %4304 = vmatpush.bf16.msra.mxu0 %v1800
  %4305 = vmatmul.bf16.gmra.mxu0 %v2639
  %v4306 = vpop.f32.mrf.mxu0
  %v4307 = vadd.f32 0.0, %v4306
  %v4308 = vpop.f32.mrf.mxu0
  %v4309 = vadd.f32 0.0, %v4308
  %4310 = vmatmul.bf16.gmra.mxu0 %v2641
  %v4311 = vpop.f32.mrf.mxu0
  %v4312 = vadd.f32 0.0, %v4311
  %v4313 = vpop.f32.mrf.mxu0
  %v4314 = vadd.f32 0.0, %v4313
  %4315 = vdwg.mxu0
  %4316 = vmatpush.bf16.msra.mxu0 %v1860
  %4317 = vmatpush.bf16.msra.mxu0 %v1856
  %4318 = vmatpush.bf16.msra.mxu0 %v1852
  %4319 = vmatpush.bf16.msra.mxu0 %v1848
  %4320 = vmatpush.bf16.msra.mxu0 %v1844
  %4321 = vmatpush.bf16.msra.mxu0 %v1840
  %4322 = vmatpush.bf16.msra.mxu0 %v1836
  %4323 = vmatpush.bf16.msra.mxu0 %v1832
  %4324 = vmatmul.bf16.gmra.mxu0 %v2640
  %v4325 = vpop.f32.mrf.mxu0
  %v4326 = vadd.f32 %v4307, %v4325
  %v4327 = vpop.f32.mrf.mxu0
  %v4328 = vadd.f32 %v4309, %v4327
  %4329 = vmatmul.bf16.gmra.mxu0 %v2642
  %v4330 = vpop.f32.mrf.mxu0
  %v4331 = vadd.f32 %v4312, %v4330
  %v4332 = vpop.f32.mrf.mxu0
  %v4333 = vadd.f32 %v4314, %v4332
  %4334 = vdwg.mxu0
  %4335 = vmatpush.bf16.msra.mxu0 %v1829
  %4336 = vmatpush.bf16.msra.mxu0 %v1825
  %4337 = vmatpush.bf16.msra.mxu0 %v1821
  %4338 = vmatpush.bf16.msra.mxu0 %v1817
  %4339 = vmatpush.bf16.msra.mxu0 %v1813
  %4340 = vmatpush.bf16.msra.mxu0 %v1809
  %4341 = vmatpush.bf16.msra.mxu0 %v1805
  %4342 = vmatpush.bf16.msra.mxu0 %v1801
  %4343 = vmatmul.bf16.gmra.mxu0 %v2639
  %v4344 = vpop.f32.mrf.mxu0
  %v4345 = vadd.f32 0.0, %v4344
  %v4346 = vpop.f32.mrf.mxu0
  %v4347 = vadd.f32 0.0, %v4346
  %4348 = vmatmul.bf16.gmra.mxu0 %v2641
  %v4349 = vpop.f32.mrf.mxu0
  %v4350 = vadd.f32 0.0, %v4349
  %v4351 = vpop.f32.mrf.mxu0
  %v4352 = vadd.f32 0.0, %v4351
  %4353 = vdwg.mxu0
  %4354 = vmatpush.bf16.msra.mxu0 %v1861
  %4355 = vmatpush.bf16.msra.mxu0 %v1857
  %4356 = vmatpush.bf16.msra.mxu0 %v1853
  %4357 = vmatpush.bf16.msra.mxu0 %v1849
  %4358 = vmatpush.bf16.msra.mxu0 %v1845
  %4359 = vmatpush.bf16.msra.mxu0 %v1841
  %4360 = vmatpush.bf16.msra.mxu0 %v1837
  %4361 = vmatpush.bf16.msra.mxu0 %v1833
  %4362 = vmatmul.bf16.gmra.mxu0 %v2640
  %v4363 = vpop.f32.mrf.mxu0
  %v4364 = vadd.f32 %v4345, %v4363
  %v4365 = vpop.f32.mrf.mxu0
  %v4366 = vadd.f32 %v4347, %v4365
  %4367 = vmatmul.bf16.gmra.mxu0 %v2642
  %v4368 = vpop.f32.mrf.mxu0
  %v4369 = vadd.f32 %v4350, %v4368
  %v4370 = vpop.f32.mrf.mxu0
  %v4371 = vadd.f32 %v4352, %v4370
  %4372 = vdwg.mxu0
  %4373 = vmatpush.bf16.msra.mxu0 %v1830
  %4374 = vmatpush.bf16.msra.mxu0 %v1826
  %4375 = vmatpush.bf16.msra.mxu0 %v1822
  %4376 = vmatpush.bf16.msra.mxu0 %v1818
  %4377 = vmatpush.bf16.msra.mxu0 %v1814
  %4378 = vmatpush.bf16.msra.mxu0 %v1810
  %4379 = vmatpush.bf16.msra.mxu0 %v1806
  %4380 = vmatpush.bf16.msra.mxu0 %v1802
  %4381 = vmatmul.bf16.gmra.mxu0 %v2639
  %v4382 = vpop.f32.mrf.mxu0
  %v4383 = vadd.f32 0.0, %v4382
  %v4384 = vpop.f32.mrf.mxu0
  %v4385 = vadd.f32 0.0, %v4384
  %4386 = vmatmul.bf16.gmra.mxu0 %v2641
  %v4387 = vpop.f32.mrf.mxu0
  %v4388 = vadd.f32 0.0, %v4387
  %v4389 = vpop.f32.mrf.mxu0
  %v4390 = vadd.f32 0.0, %v4389
  %4391 = vdwg.mxu0
  %4392 = vmatpush.bf16.msra.mxu0 %v1862
  %4393 = vmatpush.bf16.msra.mxu0 %v1858
  %4394 = vmatpush.bf16.msra.mxu0 %v1854
  %4395 = vmatpush.bf16.msra.mxu0 %v1850
  %4396 = vmatpush.bf16.msra.mxu0 %v1846
  %4397 = vmatpush.bf16.msra.mxu0 %v1842
  %4398 = vmatpush.bf16.msra.mxu0 %v1838
  %4399 = vmatpush.bf16.msra.mxu0 %v1834
  %4400 = vmatmul.bf16.gmra.mxu0 %v2640
  %v4401 = vpop.f32.mrf.mxu0
  %v4402 = vadd.f32 %v4383, %v4401
  %v4403 = vpop.f32.mrf.mxu0
  %v4404 = vadd.f32 %v4385, %v4403
  %4405 = vmatmul.bf16.gmra.mxu0 %v2642
  %v4406 = vpop.f32.mrf.mxu0
  %v4407 = vadd.f32 %v4388, %v4406
  %v4408 = vpop.f32.mrf.mxu0
  %v4409 = vadd.f32 %v4390, %v4408
  %4410 = vdwg.mxu0
  %4411 = vmatpush.bf16.msra.mxu0 %v2319
  %4412 = vmatpush.bf16.msra.mxu0 %v2315
  %4413 = vmatpush.bf16.msra.mxu0 %v2311
  %4414 = vmatpush.bf16.msra.mxu0 %v2307
  %4415 = vmatpush.bf16.msra.mxu0 %v2303
  %4416 = vmatpush.bf16.msra.mxu0 %v2299
  %4417 = vmatpush.bf16.msra.mxu0 %v2295
  %4418 = vmatpush.bf16.msra.mxu0 %v2291
  %4419 = vmatmul.bf16.gmra.mxu0 %v1599
  %v4420 = vpop.f32.mrf.mxu0
  %v4421 = vadd.f32 %v4288, %v4420
  %v4422 = vpop.f32.mrf.mxu0
  %v4423 = vadd.f32 %v4290, %v4422
  %4424 = vmatmul.bf16.gmra.mxu0 %v1601
  %v4425 = vpop.f32.mrf.mxu0
  %v4426 = vadd.f32 %v4293, %v4425
  %v4427 = vpop.f32.mrf.mxu0
  %v4428 = vadd.f32 %v4295, %v4427
  %4429 = vdwg.mxu0
  %4430 = vmatpush.bf16.msra.mxu0 %v2351
  %4431 = vmatpush.bf16.msra.mxu0 %v2347
  %4432 = vmatpush.bf16.msra.mxu0 %v2343
  %4433 = vmatpush.bf16.msra.mxu0 %v2339
  %4434 = vmatpush.bf16.msra.mxu0 %v2335
  %4435 = vmatpush.bf16.msra.mxu0 %v2331
  %4436 = vmatpush.bf16.msra.mxu0 %v2327
  %4437 = vmatpush.bf16.msra.mxu0 %v2323
  %4438 = vmatmul.bf16.gmra.mxu0 %v1600
  %v4439 = vpop.f32.mrf.mxu0
  %v4440 = vadd.f32 %v4421, %v4439
  %v4441 = vpop.f32.mrf.mxu0
  %v4442 = vadd.f32 %v4423, %v4441
  %4443 = vmatmul.bf16.gmra.mxu0 %v1602
  %v4444 = vpop.f32.mrf.mxu0
  %v4445 = vadd.f32 %v4426, %v4444
  %v4446 = vpop.f32.mrf.mxu0
  %v4447 = vadd.f32 %v4428, %v4446
  %4448 = vdwg.mxu0
  %4449 = vmatpush.bf16.msra.mxu0 %v2320
  %4450 = vmatpush.bf16.msra.mxu0 %v2316
  %4451 = vmatpush.bf16.msra.mxu0 %v2312
  %4452 = vmatpush.bf16.msra.mxu0 %v2308
  %4453 = vmatpush.bf16.msra.mxu0 %v2304
  %4454 = vmatpush.bf16.msra.mxu0 %v2300
  %4455 = vmatpush.bf16.msra.mxu0 %v2296
  %4456 = vmatpush.bf16.msra.mxu0 %v2292
  %4457 = vmatmul.bf16.gmra.mxu0 %v1599
  %v4458 = vpop.f32.mrf.mxu0
  %v4459 = vadd.f32 %v4326, %v4458
  %v4460 = vpop.f32.mrf.mxu0
  %v4461 = vadd.f32 %v4328, %v4460
  %4462 = vmatmul.bf16.gmra.mxu0 %v1601
  %v4463 = vpop.f32.mrf.mxu0
  %v4464 = vadd.f32 %v4331, %v4463
  %v4465 = vpop.f32.mrf.mxu0
  %v4466 = vadd.f32 %v4333, %v4465
  %4467 = vdwg.mxu0
  %4468 = vmatpush.bf16.msra.mxu0 %v2352
  %4469 = vmatpush.bf16.msra.mxu0 %v2348
  %4470 = vmatpush.bf16.msra.mxu0 %v2344
  %4471 = vmatpush.bf16.msra.mxu0 %v2340
  %4472 = vmatpush.bf16.msra.mxu0 %v2336
  %4473 = vmatpush.bf16.msra.mxu0 %v2332
  %4474 = vmatpush.bf16.msra.mxu0 %v2328
  %4475 = vmatpush.bf16.msra.mxu0 %v2324
  %4476 = vmatmul.bf16.gmra.mxu0 %v1600
  %v4477 = vpop.f32.mrf.mxu0
  %v4478 = vadd.f32 %v4459, %v4477
  %v4479 = vpop.f32.mrf.mxu0
  %v4480 = vadd.f32 %v4461, %v4479
  %4481 = vmatmul.bf16.gmra.mxu0 %v1602
  %v4482 = vpop.f32.mrf.mxu0
  %v4483 = vadd.f32 %v4464, %v4482
  %v4484 = vpop.f32.mrf.mxu0
  %v4485 = vadd.f32 %v4466, %v4484
  %4486 = vdwg.mxu0
  %4487 = vmatpush.bf16.msra.mxu0 %v2321
  %4488 = vmatpush.bf16.msra.mxu0 %v2317
  %4489 = vmatpush.bf16.msra.mxu0 %v2313
  %4490 = vmatpush.bf16.msra.mxu0 %v2309
  %4491 = vmatpush.bf16.msra.mxu0 %v2305
  %4492 = vmatpush.bf16.msra.mxu0 %v2301
  %4493 = vmatpush.bf16.msra.mxu0 %v2297
  %4494 = vmatpush.bf16.msra.mxu0 %v2293
  %4495 = vmatmul.bf16.gmra.mxu0 %v1599
  %v4496 = vpop.f32.mrf.mxu0
  %v4497 = vadd.f32 %v4364, %v4496
  %v4498 = vpop.f32.mrf.mxu0
  %v4499 = vadd.f32 %v4366, %v4498
  %4500 = vmatmul.bf16.gmra.mxu0 %v1601
  %v4501 = vpop.f32.mrf.mxu0
  %v4502 = vadd.f32 %v4369, %v4501
  %v4503 = vpop.f32.mrf.mxu0
  %v4504 = vadd.f32 %v4371, %v4503
  %4505 = vdwg.mxu0
  %4506 = vmatpush.bf16.msra.mxu0 %v2353
  %4507 = vmatpush.bf16.msra.mxu0 %v2349
  %4508 = vmatpush.bf16.msra.mxu0 %v2345
  %4509 = vmatpush.bf16.msra.mxu0 %v2341
  %4510 = vmatpush.bf16.msra.mxu0 %v2337
  %4511 = vmatpush.bf16.msra.mxu0 %v2333
  %4512 = vmatpush.bf16.msra.mxu0 %v2329
  %4513 = vmatpush.bf16.msra.mxu0 %v2325
  %4514 = vmatmul.bf16.gmra.mxu0 %v1600
  %v4515 = vpop.f32.mrf.mxu0
  %v4516 = vadd.f32 %v4497, %v4515
  %v4517 = vpop.f32.mrf.mxu0
  %v4518 = vadd.f32 %v4499, %v4517
  %4519 = vmatmul.bf16.gmra.mxu0 %v1602
  %v4520 = vpop.f32.mrf.mxu0
  %v4521 = vadd.f32 %v4502, %v4520
  %v4522 = vpop.f32.mrf.mxu0
  %v4523 = vadd.f32 %v4504, %v4522
  %4524 = vdwg.mxu0
  %4525 = vmatpush.bf16.msra.mxu0 %v2322
  %4526 = vmatpush.bf16.msra.mxu0 %v2318
  %4527 = vmatpush.bf16.msra.mxu0 %v2314
  %4528 = vmatpush.bf16.msra.mxu0 %v2310
  %4529 = vmatpush.bf16.msra.mxu0 %v2306
  %4530 = vmatpush.bf16.msra.mxu0 %v2302
  %4531 = vmatpush.bf16.msra.mxu0 %v2298
  %4532 = vmatpush.bf16.msra.mxu0 %v2294
  %4533 = vmatmul.bf16.gmra.mxu0 %v1599
  %v4534 = vpop.f32.mrf.mxu0
  %v4535 = vadd.f32 %v4402, %v4534
  %v4536 = vpop.f32.mrf.mxu0
  %v4537 = vadd.f32 %v4404, %v4536
  %4538 = vmatmul.bf16.gmra.mxu0 %v1601
  %v4539 = vpop.f32.mrf.mxu0
  %v4540 = vadd.f32 %v4407, %v4539
  %v4541 = vpop.f32.mrf.mxu0
  %v4542 = vadd.f32 %v4409, %v4541
  %4543 = vdwg.mxu0
  %4544 = vmatpush.bf16.msra.mxu0 %v2354
  %4545 = vmatpush.bf16.msra.mxu0 %v2350
  %4546 = vmatpush.bf16.msra.mxu0 %v2346
  %4547 = vmatpush.bf16.msra.mxu0 %v2342
  %4548 = vmatpush.bf16.msra.mxu0 %v2338
  %4549 = vmatpush.bf16.msra.mxu0 %v2334
  %4550 = vmatpush.bf16.msra.mxu0 %v2330
  %4551 = vmatpush.bf16.msra.mxu0 %v2326
  %4552 = vmatmul.bf16.gmra.mxu0 %v1600
  %v4553 = vpop.f32.mrf.mxu0
  %v4554 = vadd.f32 %v4535, %v4553
  %v4555 = vpop.f32.mrf.mxu0
  %v4556 = vadd.f32 %v4537, %v4555
  %4557 = vmatmul.bf16.gmra.mxu0 %v1602
  %v4558 = vpop.f32.mrf.mxu0
  %v4559 = vadd.f32 %v4540, %v4558
  %v4560 = vpop.f32.mrf.mxu0
  %v4561 = vadd.f32 %v4542, %v4560
  %4562 = vdwg.mxu0
  %4563 = vmatpush.bf16.msra.mxu0 %v2867
  %4564 = vmatpush.bf16.msra.mxu0 %v2863
  %4565 = vmatpush.bf16.msra.mxu0 %v2859
  %4566 = vmatpush.bf16.msra.mxu0 %v2855
  %4567 = vmatpush.bf16.msra.mxu0 %v2851
  %4568 = vmatpush.bf16.msra.mxu0 %v2847
  %4569 = vmatpush.bf16.msra.mxu0 %v2843
  %4570 = vmatpush.bf16.msra.mxu0 %v2839
  %4571 = vmatmul.bf16.gmra.mxu0 %v3203
  %v4572 = vpop.f32.mrf.mxu0
  %v4573 = vadd.f32 0.0, %v4572
  %v4574 = vpop.f32.mrf.mxu0
  %v4575 = vadd.f32 0.0, %v4574
  %4576 = vmatmul.bf16.gmra.mxu0 %v3205
  %v4577 = vpop.f32.mrf.mxu0
  %v4578 = vadd.f32 0.0, %v4577
  %v4579 = vpop.f32.mrf.mxu0
  %v4580 = vadd.f32 0.0, %v4579
  %4581 = vdwg.mxu0
  %4582 = vmatpush.bf16.msra.mxu0 %v2899
  %4583 = vmatpush.bf16.msra.mxu0 %v2895
  %4584 = vmatpush.bf16.msra.mxu0 %v2891
  %4585 = vmatpush.bf16.msra.mxu0 %v2887
  %4586 = vmatpush.bf16.msra.mxu0 %v2883
  %4587 = vmatpush.bf16.msra.mxu0 %v2879
  %4588 = vmatpush.bf16.msra.mxu0 %v2875
  %4589 = vmatpush.bf16.msra.mxu0 %v2871
  %4590 = vmatmul.bf16.gmra.mxu0 %v3204
  %v4591 = vpop.f32.mrf.mxu0
  %v4592 = vadd.f32 %v4573, %v4591
  %v4593 = vpop.f32.mrf.mxu0
  %v4594 = vadd.f32 %v4575, %v4593
  %4595 = vmatmul.bf16.gmra.mxu0 %v3206
  %v4596 = vpop.f32.mrf.mxu0
  %v4597 = vadd.f32 %v4578, %v4596
  %v4598 = vpop.f32.mrf.mxu0
  %v4599 = vadd.f32 %v4580, %v4598
  %4600 = vdwg.mxu0
  %4601 = vmatpush.bf16.msra.mxu0 %v2868
  %4602 = vmatpush.bf16.msra.mxu0 %v2864
  %4603 = vmatpush.bf16.msra.mxu0 %v2860
  %4604 = vmatpush.bf16.msra.mxu0 %v2856
  %4605 = vmatpush.bf16.msra.mxu0 %v2852
  %4606 = vmatpush.bf16.msra.mxu0 %v2848
  %4607 = vmatpush.bf16.msra.mxu0 %v2844
  %4608 = vmatpush.bf16.msra.mxu0 %v2840
  %4609 = vmatmul.bf16.gmra.mxu0 %v3203
  %v4610 = vpop.f32.mrf.mxu0
  %v4611 = vadd.f32 0.0, %v4610
  %v4612 = vpop.f32.mrf.mxu0
  %v4613 = vadd.f32 0.0, %v4612
  %4614 = vmatmul.bf16.gmra.mxu0 %v3205
  %v4615 = vpop.f32.mrf.mxu0
  %v4616 = vadd.f32 0.0, %v4615
  %v4617 = vpop.f32.mrf.mxu0
  %v4618 = vadd.f32 0.0, %v4617
  %4619 = vdwg.mxu0
  %4620 = vmatpush.bf16.msra.mxu0 %v2900
  %4621 = vmatpush.bf16.msra.mxu0 %v2896
  %4622 = vmatpush.bf16.msra.mxu0 %v2892
  %4623 = vmatpush.bf16.msra.mxu0 %v2888
  %4624 = vmatpush.bf16.msra.mxu0 %v2884
  %4625 = vmatpush.bf16.msra.mxu0 %v2880
  %4626 = vmatpush.bf16.msra.mxu0 %v2876
  %4627 = vmatpush.bf16.msra.mxu0 %v2872
  %4628 = vmatmul.bf16.gmra.mxu0 %v3204
  %v4629 = vpop.f32.mrf.mxu0
  %v4630 = vadd.f32 %v4611, %v4629
  %v4631 = vpop.f32.mrf.mxu0
  %v4632 = vadd.f32 %v4613, %v4631
  %4633 = vmatmul.bf16.gmra.mxu0 %v3206
  %v4634 = vpop.f32.mrf.mxu0
  %v4635 = vadd.f32 %v4616, %v4634
  %v4636 = vpop.f32.mrf.mxu0
  %v4637 = vadd.f32 %v4618, %v4636
  %4638 = vdwg.mxu0
  %4639 = vmatpush.bf16.msra.mxu0 %v2869
  %4640 = vmatpush.bf16.msra.mxu0 %v2865
  %4641 = vmatpush.bf16.msra.mxu0 %v2861
  %4642 = vmatpush.bf16.msra.mxu0 %v2857
  %4643 = vmatpush.bf16.msra.mxu0 %v2853
  %4644 = vmatpush.bf16.msra.mxu0 %v2849
  %4645 = vmatpush.bf16.msra.mxu0 %v2845
  %4646 = vmatpush.bf16.msra.mxu0 %v2841
  %4647 = vmatmul.bf16.gmra.mxu0 %v3203
  %v4648 = vpop.f32.mrf.mxu0
  %v4649 = vadd.f32 0.0, %v4648
  %v4650 = vpop.f32.mrf.mxu0
  %v4651 = vadd.f32 0.0, %v4650
  %4652 = vmatmul.bf16.gmra.mxu0 %v3205
  %v4653 = vpop.f32.mrf.mxu0
  %v4654 = vadd.f32 0.0, %v4653
  %v4655 = vpop.f32.mrf.mxu0
  %v4656 = vadd.f32 0.0, %v4655
  %4657 = vdwg.mxu0
  %4658 = vmatpush.bf16.msra.mxu0 %v2901
  %4659 = vmatpush.bf16.msra.mxu0 %v2897
  %4660 = vmatpush.bf16.msra.mxu0 %v2893
  %4661 = vmatpush.bf16.msra.mxu0 %v2889
  %4662 = vmatpush.bf16.msra.mxu0 %v2885
  %4663 = vmatpush.bf16.msra.mxu0 %v2881
  %4664 = vmatpush.bf16.msra.mxu0 %v2877
  %4665 = vmatpush.bf16.msra.mxu0 %v2873
  %4666 = vmatmul.bf16.gmra.mxu0 %v3204
  %v4667 = vpop.f32.mrf.mxu0
  %v4668 = vadd.f32 %v4649, %v4667
  %v4669 = vpop.f32.mrf.mxu0
  %v4670 = vadd.f32 %v4651, %v4669
  %4671 = vmatmul.bf16.gmra.mxu0 %v3206
  %v4672 = vpop.f32.mrf.mxu0
  %v4673 = vadd.f32 %v4654, %v4672
  %v4674 = vpop.f32.mrf.mxu0
  %v4675 = vadd.f32 %v4656, %v4674
  %4676 = vdwg.mxu0
  %4677 = vmatpush.bf16.msra.mxu0 %v2870
  %4678 = vmatpush.bf16.msra.mxu0 %v2866
  %4679 = vmatpush.bf16.msra.mxu0 %v2862
  %4680 = vmatpush.bf16.msra.mxu0 %v2858
  %4681 = vmatpush.bf16.msra.mxu0 %v2854
  %4682 = vmatpush.bf16.msra.mxu0 %v2850
  %4683 = vmatpush.bf16.msra.mxu0 %v2846
  %4684 = vmatpush.bf16.msra.mxu0 %v2842
  %4685 = vmatmul.bf16.gmra.mxu0 %v3203
  %v4686 = vpop.f32.mrf.mxu0
  %v4687 = vadd.f32 0.0, %v4686
  %v4688 = vpop.f32.mrf.mxu0
  %v4689 = vadd.f32 0.0, %v4688
  %4690 = vmatmul.bf16.gmra.mxu0 %v3205
  %v4691 = vpop.f32.mrf.mxu0
  %v4692 = vadd.f32 0.0, %v4691
  %v4693 = vpop.f32.mrf.mxu0
  %v4694 = vadd.f32 0.0, %v4693
  %4695 = vdwg.mxu0
  %4696 = vmatpush.bf16.msra.mxu0 %v2902
  %4697 = vmatpush.bf16.msra.mxu0 %v2898
  %4698 = vmatpush.bf16.msra.mxu0 %v2894
  %4699 = vmatpush.bf16.msra.mxu0 %v2890
  %4700 = vmatpush.bf16.msra.mxu0 %v2886
  %4701 = vmatpush.bf16.msra.mxu0 %v2882
  %4702 = vmatpush.bf16.msra.mxu0 %v2878
  %4703 = vmatpush.bf16.msra.mxu0 %v2874
  %4704 = vmatmul.bf16.gmra.mxu0 %v3204
  %v4705 = vpop.f32.mrf.mxu0
  %v4706 = vadd.f32 %v4687, %v4705
  %v4707 = vpop.f32.mrf.mxu0
  %v4708 = vadd.f32 %v4689, %v4707
  %4709 = vmatmul.bf16.gmra.mxu0 %v3206
  %v4710 = vpop.f32.mrf.mxu0
  %v4711 = vadd.f32 %v4692, %v4710
  %v4712 = vpop.f32.mrf.mxu0
  %v4713 = vadd.f32 %v4694, %v4712
  %4714 = vdwg.mxu0
  %v4715 = vadd.f32 %v4440, %v4592
  %v4716 = vadd.f32 %v4478, %v4630
  %v4717 = vadd.f32 %v4516, %v4668
  %v4718 = vadd.f32 %v4554, %v4706
  %v4719 = vadd.f32 %v4442, %v4594
  %v4720 = vadd.f32 %v4480, %v4632
  %v4721 = vadd.f32 %v4518, %v4670
  %v4722 = vadd.f32 %v4556, %v4708
  %v4723 = vadd.f32 %v4445, %v4597
  %v4724 = vadd.f32 %v4483, %v4635
  %v4725 = vadd.f32 %v4521, %v4673
  %v4726 = vadd.f32 %v4559, %v4711
  %v4727 = vadd.f32 %v4447, %v4599
  %v4728 = vadd.f32 %v4485, %v4637
  %v4729 = vadd.f32 %v4523, %v4675
  %v4730 = vadd.f32 %v4561, %v4713
  %4731 = vmatpush.bf16.msra.mxu0 %v3431
  %4732 = vmatpush.bf16.msra.mxu0 %v3427
  %4733 = vmatpush.bf16.msra.mxu0 %v3423
  %4734 = vmatpush.bf16.msra.mxu0 %v3419
  %4735 = vmatpush.bf16.msra.mxu0 %v3415
  %4736 = vmatpush.bf16.msra.mxu0 %v3411
  %4737 = vmatpush.bf16.msra.mxu0 %v3407
  %4738 = vmatpush.bf16.msra.mxu0 %v3403
  %4739 = vmatmul.bf16.gmra.mxu0 %v2093
  %v4740 = vpop.f32.mrf.mxu0
  %v4741 = vadd.f32 0.0, %v4740
  %v4742 = vpop.f32.mrf.mxu0
  %v4743 = vadd.f32 0.0, %v4742
  %4744 = vmatmul.bf16.gmra.mxu0 %v3767
  %v4745 = vpop.f32.mrf.mxu0
  %v4746 = vadd.f32 0.0, %v4745
  %v4747 = vpop.f32.mrf.mxu0
  %v4748 = vadd.f32 0.0, %v4747
  %4749 = vdwg.mxu0
  %4750 = vmatpush.bf16.msra.mxu0 %v3463
  %4751 = vmatpush.bf16.msra.mxu0 %v3459
  %4752 = vmatpush.bf16.msra.mxu0 %v3455
  %4753 = vmatpush.bf16.msra.mxu0 %v3451
  %4754 = vmatpush.bf16.msra.mxu0 %v3447
  %4755 = vmatpush.bf16.msra.mxu0 %v3443
  %4756 = vmatpush.bf16.msra.mxu0 %v3439
  %4757 = vmatpush.bf16.msra.mxu0 %v3435
  %4758 = vmatmul.bf16.gmra.mxu0 %v2094
  %v4759 = vpop.f32.mrf.mxu0
  %v4760 = vadd.f32 %v4741, %v4759
  %v4761 = vpop.f32.mrf.mxu0
  %v4762 = vadd.f32 %v4743, %v4761
  %4763 = vmatmul.bf16.gmra.mxu0 %v3768
  %v4764 = vpop.f32.mrf.mxu0
  %v4765 = vadd.f32 %v4746, %v4764
  %v4766 = vpop.f32.mrf.mxu0
  %v4767 = vadd.f32 %v4748, %v4766
  %4768 = vdwg.mxu0
  %4769 = vmatpush.bf16.msra.mxu0 %v3432
  %4770 = vmatpush.bf16.msra.mxu0 %v3428
  %4771 = vmatpush.bf16.msra.mxu0 %v3424
  %4772 = vmatpush.bf16.msra.mxu0 %v3420
  %4773 = vmatpush.bf16.msra.mxu0 %v3416
  %4774 = vmatpush.bf16.msra.mxu0 %v3412
  %4775 = vmatpush.bf16.msra.mxu0 %v3408
  %4776 = vmatpush.bf16.msra.mxu0 %v3404
  %4777 = vmatmul.bf16.gmra.mxu0 %v2093
  %v4778 = vpop.f32.mrf.mxu0
  %v4779 = vadd.f32 0.0, %v4778
  %v4780 = vpop.f32.mrf.mxu0
  %v4781 = vadd.f32 0.0, %v4780
  %4782 = vmatmul.bf16.gmra.mxu0 %v3767
  %v4783 = vpop.f32.mrf.mxu0
  %v4784 = vadd.f32 0.0, %v4783
  %v4785 = vpop.f32.mrf.mxu0
  %v4786 = vadd.f32 0.0, %v4785
  %4787 = vdwg.mxu0
  %4788 = vmatpush.bf16.msra.mxu0 %v3464
  %4789 = vmatpush.bf16.msra.mxu0 %v3460
  %4790 = vmatpush.bf16.msra.mxu0 %v3456
  %4791 = vmatpush.bf16.msra.mxu0 %v3452
  %4792 = vmatpush.bf16.msra.mxu0 %v3448
  %4793 = vmatpush.bf16.msra.mxu0 %v3444
  %4794 = vmatpush.bf16.msra.mxu0 %v3440
  %4795 = vmatpush.bf16.msra.mxu0 %v3436
  %4796 = vmatmul.bf16.gmra.mxu0 %v2094
  %v4797 = vpop.f32.mrf.mxu0
  %v4798 = vadd.f32 %v4779, %v4797
  %v4799 = vpop.f32.mrf.mxu0
  %v4800 = vadd.f32 %v4781, %v4799
  %4801 = vmatmul.bf16.gmra.mxu0 %v3768
  %v4802 = vpop.f32.mrf.mxu0
  %v4803 = vadd.f32 %v4784, %v4802
  %v4804 = vpop.f32.mrf.mxu0
  %v4805 = vadd.f32 %v4786, %v4804
  %4806 = vdwg.mxu0
  %4807 = vmatpush.bf16.msra.mxu0 %v3433
  %4808 = vmatpush.bf16.msra.mxu0 %v3429
  %4809 = vmatpush.bf16.msra.mxu0 %v3425
  %4810 = vmatpush.bf16.msra.mxu0 %v3421
  %4811 = vmatpush.bf16.msra.mxu0 %v3417
  %4812 = vmatpush.bf16.msra.mxu0 %v3413
  %4813 = vmatpush.bf16.msra.mxu0 %v3409
  %4814 = vmatpush.bf16.msra.mxu0 %v3405
  %4815 = vmatmul.bf16.gmra.mxu0 %v2093
  %v4816 = vpop.f32.mrf.mxu0
  %v4817 = vadd.f32 0.0, %v4816
  %v4818 = vpop.f32.mrf.mxu0
  %v4819 = vadd.f32 0.0, %v4818
  %4820 = vmatmul.bf16.gmra.mxu0 %v3767
  %v4821 = vpop.f32.mrf.mxu0
  %v4822 = vadd.f32 0.0, %v4821
  %v4823 = vpop.f32.mrf.mxu0
  %v4824 = vadd.f32 0.0, %v4823
  %4825 = vdwg.mxu0
  %4826 = vmatpush.bf16.msra.mxu0 %v3465
  %4827 = vmatpush.bf16.msra.mxu0 %v3461
  %4828 = vmatpush.bf16.msra.mxu0 %v3457
  %4829 = vmatpush.bf16.msra.mxu0 %v3453
  %4830 = vmatpush.bf16.msra.mxu0 %v3449
  %4831 = vmatpush.bf16.msra.mxu0 %v3445
  %4832 = vmatpush.bf16.msra.mxu0 %v3441
  %4833 = vmatpush.bf16.msra.mxu0 %v3437
  %4834 = vmatmul.bf16.gmra.mxu0 %v2094
  %v4835 = vpop.f32.mrf.mxu0
  %v4836 = vadd.f32 %v4817, %v4835
  %v4837 = vpop.f32.mrf.mxu0
  %v4838 = vadd.f32 %v4819, %v4837
  %4839 = vmatmul.bf16.gmra.mxu0 %v3768
  %v4840 = vpop.f32.mrf.mxu0
  %v4841 = vadd.f32 %v4822, %v4840
  %v4842 = vpop.f32.mrf.mxu0
  %v4843 = vadd.f32 %v4824, %v4842
  %4844 = vdwg.mxu0
  %4845 = vmatpush.bf16.msra.mxu0 %v3434
  %4846 = vmatpush.bf16.msra.mxu0 %v3430
  %4847 = vmatpush.bf16.msra.mxu0 %v3426
  %4848 = vmatpush.bf16.msra.mxu0 %v3422
  %4849 = vmatpush.bf16.msra.mxu0 %v3418
  %4850 = vmatpush.bf16.msra.mxu0 %v3414
  %4851 = vmatpush.bf16.msra.mxu0 %v3410
  %4852 = vmatpush.bf16.msra.mxu0 %v3406
  %4853 = vmatmul.bf16.gmra.mxu0 %v2093
  %v4854 = vpop.f32.mrf.mxu0
  %v4855 = vadd.f32 0.0, %v4854
  %v4856 = vpop.f32.mrf.mxu0
  %v4857 = vadd.f32 0.0, %v4856
  %4858 = vmatmul.bf16.gmra.mxu0 %v3767
  %v4859 = vpop.f32.mrf.mxu0
  %v4860 = vadd.f32 0.0, %v4859
  %v4861 = vpop.f32.mrf.mxu0
  %v4862 = vadd.f32 0.0, %v4861
  %4863 = vdwg.mxu0
  %4864 = vmatpush.bf16.msra.mxu0 %v3466
  %4865 = vmatpush.bf16.msra.mxu0 %v3462
  %4866 = vmatpush.bf16.msra.mxu0 %v3458
  %4867 = vmatpush.bf16.msra.mxu0 %v3454
  %4868 = vmatpush.bf16.msra.mxu0 %v3450
  %4869 = vmatpush.bf16.msra.mxu0 %v3446
  %4870 = vmatpush.bf16.msra.mxu0 %v3442
  %4871 = vmatpush.bf16.msra.mxu0 %v3438
  %4872 = vmatmul.bf16.gmra.mxu0 %v2094
  %v4873 = vpop.f32.mrf.mxu0
  %v4874 = vadd.f32 %v4855, %v4873
  %v4875 = vpop.f32.mrf.mxu0
  %v4876 = vadd.f32 %v4857, %v4875
  %4877 = vmatmul.bf16.gmra.mxu0 %v3768
  %v4878 = vpop.f32.mrf.mxu0
  %v4879 = vadd.f32 %v4860, %v4878
  %v4880 = vpop.f32.mrf.mxu0
  %v4881 = vadd.f32 %v4862, %v4880
  %4882 = vdwg.mxu0
  %v4883 = vadd.f32 %v4715, %v4760
  %v4884 = vadd.f32 %v4716, %v4798
  %v4885 = vadd.f32 %v4717, %v4836
  %v4886 = vadd.f32 %v4718, %v4874
  %v4887 = vadd.f32 %v4719, %v4762
  %v4888 = vadd.f32 %v4720, %v4800
  %v4889 = vadd.f32 %v4721, %v4838
  %v4890 = vadd.f32 %v4722, %v4876
  %v4891 = vadd.f32 %v4723, %v4765
  %v4892 = vadd.f32 %v4724, %v4803
  %v4893 = vadd.f32 %v4725, %v4841
  %v4894 = vadd.f32 %v4726, %v4879
  %v4895 = vadd.f32 %v4727, %v4767
  %v4896 = vadd.f32 %v4728, %v4805
  %v4897 = vadd.f32 %v4729, %v4843
  %v4898 = vadd.f32 %v4730, %v4881
  %v4900 = vunpack.c.l.b16 %v1456
  %v4901 = vunpack.c.h.b16 %v1456
  %v4902 = vpack.c.b16 %v4900, %v3201
  %v4903 = vpack.c.b16 %v4901, %v3202
  %4906 = vmatpush.bf16.msra.mxu0 %v3991
  %4907 = vmatpush.bf16.msra.mxu0 %v3987
  %4908 = vmatpush.bf16.msra.mxu0 %v3983
  %4909 = vmatpush.bf16.msra.mxu0 %v3979
  %4910 = vmatpush.bf16.msra.mxu0 %v3975
  %4911 = vmatpush.bf16.msra.mxu0 %v3971
  %4912 = vmatpush.bf16.msra.mxu0 %v3967
  %4913 = vmatpush.bf16.msra.mxu0 %v3963
  %4914 = vmatmul.bf16.gmra.mxu0 %v1601
  %v4915 = vpop.f32.mrf.mxu0
  %v4916 = vadd.f32 0.0, %v4915
  %v4917 = vpop.f32.mrf.mxu0
  %v4918 = vadd.f32 0.0, %v4917
  %4919 = vmatmul.bf16.gmra.mxu0 %v4902
  %v4920 = vpop.f32.mrf.mxu0
  %v4921 = vadd.f32 0.0, %v4920
  %v4922 = vpop.f32.mrf.mxu0
  %v4923 = vadd.f32 0.0, %v4922
  %4924 = vdwg.mxu0
  %4925 = vmatpush.bf16.msra.mxu0 %v4023
  %4926 = vmatpush.bf16.msra.mxu0 %v4019
  %4927 = vmatpush.bf16.msra.mxu0 %v4015
  %4928 = vmatpush.bf16.msra.mxu0 %v4011
  %4929 = vmatpush.bf16.msra.mxu0 %v4007
  %4930 = vmatpush.bf16.msra.mxu0 %v4003
  %4931 = vmatpush.bf16.msra.mxu0 %v3999
  %4932 = vmatpush.bf16.msra.mxu0 %v3995
  %4933 = vmatmul.bf16.gmra.mxu0 %v1602
  %v4934 = vpop.f32.mrf.mxu0
  %v4935 = vadd.f32 %v4916, %v4934
  %v4936 = vpop.f32.mrf.mxu0
  %v4937 = vadd.f32 %v4918, %v4936
  %4938 = vmatmul.bf16.gmra.mxu0 %v4903
  %v4939 = vpop.f32.mrf.mxu0
  %v4940 = vadd.f32 %v4921, %v4939
  %v4941 = vpop.f32.mrf.mxu0
  %v4942 = vadd.f32 %v4923, %v4941
  %4943 = vdwg.mxu0
  %4944 = vmatpush.bf16.msra.mxu0 %v3992
  %4945 = vmatpush.bf16.msra.mxu0 %v3988
  %4946 = vmatpush.bf16.msra.mxu0 %v3984
  %4947 = vmatpush.bf16.msra.mxu0 %v3980
  %4948 = vmatpush.bf16.msra.mxu0 %v3976
  %4949 = vmatpush.bf16.msra.mxu0 %v3972
  %4950 = vmatpush.bf16.msra.mxu0 %v3968
  %4951 = vmatpush.bf16.msra.mxu0 %v3964
  %4952 = vmatmul.bf16.gmra.mxu0 %v1601
  %v4953 = vpop.f32.mrf.mxu0
  %v4954 = vadd.f32 0.0, %v4953
  %v4955 = vpop.f32.mrf.mxu0
  %v4956 = vadd.f32 0.0, %v4955
  %4957 = vmatmul.bf16.gmra.mxu0 %v4902
  %v4958 = vpop.f32.mrf.mxu0
  %v4959 = vadd.f32 0.0, %v4958
  %v4960 = vpop.f32.mrf.mxu0
  %v4961 = vadd.f32 0.0, %v4960
  %4962 = vdwg.mxu0
  %4963 = vmatpush.bf16.msra.mxu0 %v4024
  %4964 = vmatpush.bf16.msra.mxu0 %v4020
  %4965 = vmatpush.bf16.msra.mxu0 %v4016
  %4966 = vmatpush.bf16.msra.mxu0 %v4012
  %4967 = vmatpush.bf16.msra.mxu0 %v4008
  %4968 = vmatpush.bf16.msra.mxu0 %v4004
  %4969 = vmatpush.bf16.msra.mxu0 %v4000
  %4970 = vmatpush.bf16.msra.mxu0 %v3996
  %4971 = vmatmul.bf16.gmra.mxu0 %v1602
  %v4972 = vpop.f32.mrf.mxu0
  %v4973 = vadd.f32 %v4954, %v4972
  %v4974 = vpop.f32.mrf.mxu0
  %v4975 = vadd.f32 %v4956, %v4974
  %4976 = vmatmul.bf16.gmra.mxu0 %v4903
  %v4977 = vpop.f32.mrf.mxu0
  %v4978 = vadd.f32 %v4959, %v4977
  %v4979 = vpop.f32.mrf.mxu0
  %v4980 = vadd.f32 %v4961, %v4979
  %4981 = vdwg.mxu0
  %4982 = vmatpush.bf16.msra.mxu0 %v3993
  %4983 = vmatpush.bf16.msra.mxu0 %v3989
  %4984 = vmatpush.bf16.msra.mxu0 %v3985
  %4985 = vmatpush.bf16.msra.mxu0 %v3981
  %4986 = vmatpush.bf16.msra.mxu0 %v3977
  %4987 = vmatpush.bf16.msra.mxu0 %v3973
  %4988 = vmatpush.bf16.msra.mxu0 %v3969
  %4989 = vmatpush.bf16.msra.mxu0 %v3965
  %4990 = vmatmul.bf16.gmra.mxu0 %v1601
  %v4991 = vpop.f32.mrf.mxu0
  %v4992 = vadd.f32 0.0, %v4991
  %v4993 = vpop.f32.mrf.mxu0
  %v4994 = vadd.f32 0.0, %v4993
  %4995 = vmatmul.bf16.gmra.mxu0 %v4902
  %v4996 = vpop.f32.mrf.mxu0
  %v4997 = vadd.f32 0.0, %v4996
  %v4998 = vpop.f32.mrf.mxu0
  %v4999 = vadd.f32 0.0, %v4998
  %5000 = vdwg.mxu0
  %5001 = vmatpush.bf16.msra.mxu0 %v4025
  %5002 = vmatpush.bf16.msra.mxu0 %v4021
  %5003 = vmatpush.bf16.msra.mxu0 %v4017
  %5004 = vmatpush.bf16.msra.mxu0 %v4013
  %5005 = vmatpush.bf16.msra.mxu0 %v4009
  %5006 = vmatpush.bf16.msra.mxu0 %v4005
  %5007 = vmatpush.bf16.msra.mxu0 %v4001
  %5008 = vmatpush.bf16.msra.mxu0 %v3997
  %5009 = vmatmul.bf16.gmra.mxu0 %v1602
  %v5010 = vpop.f32.mrf.mxu0
  %v5011 = vadd.f32 %v4992, %v5010
  %v5012 = vpop.f32.mrf.mxu0
  %v5013 = vadd.f32 %v4994, %v5012
  %5014 = vmatmul.bf16.gmra.mxu0 %v4903
  %v5015 = vpop.f32.mrf.mxu0
  %v5016 = vadd.f32 %v4997, %v5015
  %v5017 = vpop.f32.mrf.mxu0
  %v5018 = vadd.f32 %v4999, %v5017
  %5019 = vdwg.mxu0
  %5020 = vmatpush.bf16.msra.mxu0 %v3994
  %5021 = vmatpush.bf16.msra.mxu0 %v3990
  %5022 = vmatpush.bf16.msra.mxu0 %v3986
  %5023 = vmatpush.bf16.msra.mxu0 %v3982
  %5024 = vmatpush.bf16.msra.mxu0 %v3978
  %5025 = vmatpush.bf16.msra.mxu0 %v3974
  %5026 = vmatpush.bf16.msra.mxu0 %v3970
  %5027 = vmatpush.bf16.msra.mxu0 %v3966
  %5028 = vmatmul.bf16.gmra.mxu0 %v1601
  %v5029 = vpop.f32.mrf.mxu0
  %v5030 = vadd.f32 0.0, %v5029
  %v5031 = vpop.f32.mrf.mxu0
  %v5032 = vadd.f32 0.0, %v5031
  %5033 = vmatmul.bf16.gmra.mxu0 %v4902
  %v5034 = vpop.f32.mrf.mxu0
  %v5035 = vadd.f32 0.0, %v5034
  %v5036 = vpop.f32.mrf.mxu0
  %v5037 = vadd.f32 0.0, %v5036
  %5038 = vdwg.mxu0
  %5039 = vmatpush.bf16.msra.mxu0 %v4026
  %5040 = vmatpush.bf16.msra.mxu0 %v4022
  %5041 = vmatpush.bf16.msra.mxu0 %v4018
  %5042 = vmatpush.bf16.msra.mxu0 %v4014
  %5043 = vmatpush.bf16.msra.mxu0 %v4010
  %5044 = vmatpush.bf16.msra.mxu0 %v4006
  %5045 = vmatpush.bf16.msra.mxu0 %v4002
  %5046 = vmatpush.bf16.msra.mxu0 %v3998
  %5047 = vmatmul.bf16.gmra.mxu0 %v1602
  %v5048 = vpop.f32.mrf.mxu0
  %v5049 = vadd.f32 %v5030, %v5048
  %v5050 = vpop.f32.mrf.mxu0
  %v5051 = vadd.f32 %v5032, %v5050
  %5052 = vmatmul.bf16.gmra.mxu0 %v4903
  %v5053 = vpop.f32.mrf.mxu0
  %v5054 = vadd.f32 %v5035, %v5053
  %v5055 = vpop.f32.mrf.mxu0
  %v5056 = vadd.f32 %v5037, %v5055
  %5057 = vdwg.mxu0
  %v5058 = vadd.f32 %v4883, %v4935
  %v5059 = vadd.f32 %v4884, %v4973
  %v5060 = vadd.f32 %v4885, %v5011
  %v5061 = vadd.f32 %v4886, %v5049
  %v5062 = vadd.f32 %v4887, %v4937
  %v5063 = vadd.f32 %v4888, %v4975
  %v5064 = vadd.f32 %v4889, %v5013
  %v5065 = vadd.f32 %v4890, %v5051
  %v5066 = vadd.f32 %v4891, %v4940
  %v5067 = vadd.f32 %v4892, %v4978
  %v5068 = vadd.f32 %v4893, %v5016
  %v5069 = vadd.f32 %v4894, %v5054
  %v5070 = vadd.f32 %v4895, %v4942
  %v5071 = vadd.f32 %v4896, %v4980
  %v5072 = vadd.f32 %v4897, %v5018
  %v5073 = vadd.f32 %v4898, %v5056
  %v5074 = vmax.f32 %v4243, %v4245
  %v5075 = vmax.f32 %v4244, %v4246
  %v5076 = vmax.f32 %v4247, %v4249
  %v5077 = vmax.f32 %v4248, %v4250
  %v5078 = vmax.f32 %v4251, %v4253
  %v5079 = vmax.f32 %v4252, %v4254
  %v5080 = vmax.f32 %v4255, %v4257
  %v5081 = vmax.f32 %v4256, %v4258
  %v5082 = vmax.f32 %v5058, %v5060
  %v5083 = vmax.f32 %v5059, %v5061
  %v5084 = vmax.f32 %v5062, %v5064
  %v5085 = vmax.f32 %v5063, %v5065
  %v5086 = vmax.f32 %v5066, %v5068
  %v5087 = vmax.f32 %v5067, %v5069
  %v5088 = vmax.f32 %v5070, %v5072
  %v5089 = vmax.f32 %v5071, %v5073
  %v5090 = vmax.f32 %v5074, %v5082
  %v5091 = vmax.f32 %v5075, %v5083
  %v5092 = vmax.f32 %v5076, %v5084
  %v5093 = vmax.f32 %v5077, %v5085
  %v5094 = vmax.f32 %v5078, %v5086
  %v5095 = vmax.f32 %v5079, %v5087
  %v5096 = vmax.f32 %v5080, %v5088
  %v5097 = vmax.f32 %v5081, %v5089
  %v5099 = vperm.slane %v1457, 0
  %v5100 = vperm.slane %v1457, 1
  %v5103 = vadd.f32 %v5090, %v5099
  %v5104 = vadd.f32 %v5091, %v5100
  %v5105 = vadd.f32 %v5092, %v5099
  %v5106 = vadd.f32 %v5093, %v5100
  %v5107 = vadd.f32 %v5094, %v5099
  %v5108 = vadd.f32 %v5095, %v5100
  %v5109 = vadd.f32 %v5096, %v5099
  %v5110 = vadd.f32 %v5097, %v5100
  %v5111 = vmax.f32 %v5103, 0.0
  %v5112 = vmax.f32 %v5104, 0.0
  %v5113 = vmax.f32 %v5105, 0.0
  %v5114 = vmax.f32 %v5106, 0.0
  %v5115 = vmax.f32 %v5107, 0.0
  %v5116 = vmax.f32 %v5108, 0.0
  %v5117 = vmax.f32 %v5109, 0.0
  %v5118 = vmax.f32 %v5110, 0.0
  %v5119 = vpack.c.bf16 %v5112, %v5111
  %v5120 = vpack.c.bf16 %v5114, %v5113
  %v5121 = vpack.c.bf16 %v5116, %v5115
  %v5122 = vpack.c.bf16 %v5118, %v5117
  %5123 = vst [vmem:[%s5] sm:$0xff] %v5119
  %5124 = vst [vmem:[%s5 + $0x8] sm:$0xff] %v5120
  %5125 = vst [vmem:[%s5 + $0x10] sm:$0xff] %v5121
  %5126 = vst [vmem:[%s5 + $0x18] sm:$0xff] %v5122
  // Predicated region
  $region22: #{net_forward.2} parent=0 // pred_check
    _
  $region23: #{net_forward.2} parent=0 // pred_check_branch
    %5128 = sbr.rel (0) target = $region25
  $region24: #{net_forward.2} parent=0 // pred_region
    _
  $region25: #{net_forward.2} parent=0 // pred_fallthru
    _
  // Predicated region
  $region26: #{net_forward.2} parent=0 // pred_check
    _
  $region27: #{net_forward.2} parent=0 // pred_check_branch
    %5130 = sbr.rel (0) target = $region29
  $region28: #{net_forward.2} parent=0 // pred_region
    _
  $region29: #{net_forward.2} parent=0 // pred_fallthru
    _

</llo_original>
